<compile_context>
chip_gen: v5e
topology: v5e:2x2
jax: 0.10.0
libtpu: 0.0.40
codegen_flags: <defaults>
</compile_context>

<pallas_src>
import numpy as np
import jax
import jax.numpy as jnp
from jax.experimental import pallas as pl
from jax.experimental.pallas import tpu as pltpu

coordinate_L = 10
quaternion_L = 10
pos_dim = 3
quat_dim = 4
layer_num = 4
BN_EPS = 1e-5

N_FREQ = coordinate_L                      # == quaternion_L == 10
N_COLS = pos_dim + quat_dim                # 7 raw coordinates (x ++ q)
IN_DIM = 2 * N_FREQ * N_COLS + 1           # 141
OUT_DIM = pos_dim + quat_dim               # 7
OUT_PAD = 128                              # lane-dense padded output width
assert coordinate_L == quaternion_L

# 2^k * pi, k = 0..9  (single f32 constant shared by kernel, fallback and reference)
_FREQS_NP = ((2.0 ** np.arange(N_FREQ, dtype=np.float64)) * np.pi).astype(np.float32)


# ----------------------------------------------------------------------------
# Host-side weight preparation: de-interleave linear_1 rows, cast to bf16, pad w9.
# ----------------------------------------------------------------------------
def _w1_row_perm():
    sin_rows = []
    for j in range(N_COLS):
        base = j * 2 * N_FREQ          # x dims 0..2 -> 0,20,40 ; q dims 3..6 -> 60..120
        for k in range(N_FREQ):
            sin_rows.append(base + 2 * k)
    sin_rows = np.asarray(sin_rows, np.int32)
    return sin_rows, sin_rows + 1


def prepare_kernel_params(p):
    sin_rows, cos_rows = _w1_row_perm()
    bf16 = jnp.bfloat16
    w9p = jnp.zeros((128, OUT_PAD), jnp.float32).at[:, :OUT_DIM].set(p["w9"])
    b9p = jnp.zeros((1, OUT_PAD), jnp.float32).at[:, :OUT_DIM].set(p["b9"])
    return {
        "ws1": p["w1"][sin_rows, :].astype(bf16),      # (70, 512)  sin rows
        "wc1": p["w1"][cos_rows, :].astype(bf16),      # (70, 512)  cos rows
        "w1t": p["w1"][IN_DIM - 1:IN_DIM, :],          # (1, 512)   t row, folded into bias
        "b1": p["b1"], "g1": p["g_big"], "be1": p["be_big"],
        "wsq": p["ws"].astype(bf16), "bsq": p["bs"],
        "gsq": p["g_seq"], "besq": p["be_seq"],
        "w8": p["w8"].astype(bf16), "b8": p["b8"],
        "g8": p["g_small"], "be8": p["be_small"],
        "w9": w9p.astype(bf16), "b9": b9p,
    }


def _weight_args(kp, t):
    # Fold the (constant-per-batch) t column of linear_1 into the bias on the host.
    b1_eff = kp["b1"] + jnp.float32(t) * kp["w1t"]
    return (kp["ws1"], kp["wc1"], b1_eff, kp["g1"], kp["be1"],
            kp["wsq"], kp["bsq"], kp["gsq"], kp["besq"],
            kp["w8"], kp["b8"], kp["g8"], kp["be8"],
            kp["w9"], kp["b9"])


# ----------------------------------------------------------------------------
# Shared kernel math (also used, via jnp, by the pure-JAX reference).
# ----------------------------------------------------------------------------
def _bn_relu(h, gamma, beta):
    # One-pass training-mode BatchNorm1d (biased variance) folded into scale/shift.
    mu = jnp.mean(h, axis=0, keepdims=True)
    msq = jnp.mean(h * h, axis=0, keepdims=True)
    var = jnp.maximum(msq - mu * mu, 0.0)
    scale = gamma * jax.lax.rsqrt(var + BN_EPS)
    shift = beta - mu * scale
    return jnp.maximum(h * scale + shift, 0.0)


def _mlp_core(s, c,
              ws1, wc1, b1, g1, be1,
              wsq, bsq, gsq, besq,
              w8, b8, g8, be8,
              w9, b9):
    bf16 = jnp.bfloat16
    f32 = jnp.float32
    # linear_1 (sin/cos blocks, bf16 operands, f32 accumulate) + BN + ReLU
    h = (jnp.dot(s.astype(bf16), ws1, preferred_element_type=f32)
         + jnp.dot(c.astype(bf16), wc1, preferred_element_type=f32)
         + b1)
    h = _bn_relu(h, g1, be1)
    # mod_list holds 4 references to the SAME Sequential -> shared weights, applied 4x.
    for _ in range(layer_num):
        h = jnp.dot(h.astype(bf16), wsq, preferred_element_type=f32) + bsq
        h = _bn_relu(h, gsq, besq)
    h = jnp.dot(h.astype(bf16), w8, preferred_element_type=f32) + b8
    h = _bn_relu(h, g8, be8)
    return jnp.dot(h.astype(bf16), w9, preferred_element_type=f32) + b9   # (N, 128)


# ----------------------------------------------------------------------------
# Pallas kernels.
# ----------------------------------------------------------------------------
def _fused_kernel(xq_ref, freqs_ref, *rest):
    # Positional encoding fused into the kernel: angles + sin/cos computed here (EUP).
    wrefs, out_ref = rest[:-1], rest[-1]
    xq = xq_ref[...]                                     # (N, 7) = [x(3) | q(4)]
    freqs = freqs_ref[...]                               # (1, 10)
    pieces = [xq[:, j:j + 1] * freqs for j in range(N_COLS)]
    ang = jnp.concatenate(pieces, axis=1)                # (N, 70) f32 (exact products)
    s = jnp.sin(ang)
    c = jnp.cos(ang)
    out_ref[...] = _mlp_core(s, c, *(r[...] for r in wrefs))


def _precomp_kernel(s_ref, c_ref, *rest):
    # Fallback: sin/cos precomputed on host (bf16), same MLP core in-kernel.
    wrefs, out_ref = rest[:-1], rest[-1]
    out_ref[...] = _mlp_core(s_ref[...], c_ref[...], *(r[...] for r in wrefs))


def _full_spec(shape):
    return pl.BlockSpec(shape, lambda i, _n=len(shape): (0,) * _n)


def _call(kernel, n, args):
    return pl.pallas_call(
        kernel,
        out_shape=jax.ShapeDtypeStruct((n, OUT_PAD), jnp.float32),
        grid=(1,),
        in_specs=[_full_spec(a.shape) for a in args],
        out_specs=_full_spec((n, OUT_PAD)),
        compiler_params=pltpu.CompilerParams(
            dimension_semantics=("arbitrary",),
            vmem_limit_bytes=32 * 1024 * 1024),
    )(*args)


def run_mlp(x, q, t, kparams):
    n = x.shape[0]
    xq = jnp.concatenate([x.astype(jnp.float32), q.astype(jnp.float32)], axis=1)  # (N, 7)
    freqs = jnp.asarray(_FREQS_NP).reshape(1, N_FREQ)
    wargs = _weight_args(kparams, t)
    try:
        out = _call(_fused_kernel, n, (xq, freqs) + wargs)
    except Exception:
        # TODO(synk): in-kernel sin/cos not supported by this Mosaic build; fall back
        # to host-side trig (features still de-interleaved + bf16, same MLP kernel).
        ang = (xq[:, :, None]
               * jnp.asarray(_FREQS_NP)[None, None, :]).reshape(n, N_COLS * N_FREQ)
        s = jnp.sin(ang).astype(jnp.bfloat16)
        c = jnp.cos(ang).astype(jnp.bfloat16)
        out = _call(_precomp_kernel, n, (s, c) + wargs)
    return out[:, :OUT_DIM]                              # drop the zero lane padding


# ----------------------------------------------------------------------------
# Full forward (== DeformationNetworkCompletelyConnected.forward)
# ----------------------------------------------------------------------------
def deformation_forward(kparams, x, q, t):
    # Mirrors `if t == 0:` in the torch module -> needs a concrete host scalar t.
    if float(t) == 0.0:
        quat_norm = jnp.zeros((quat_dim,), jnp.float32).at[0].set(1.0)
        return jnp.zeros((pos_dim,), jnp.float32), quat_norm
    out = run_mlp(x, q, t, kparams)                      # (N, 7)
    out_x = out[:, :pos_dim]                             # split(...,3)[0]
    out_q = out[:, pos_dim:pos_dim + quat_dim]           # hstack(split[1], split[2])
    return out_x, out_q


# ----------------------------------------------------------------------------
# Deterministic parameter init (torch.nn.Linear-style uniform, BN gamma=1/beta=0)
# ----------------------------------------------------------------------------
def init_params(key):
    def linear(k, fan_in, fan_out):
        k1, k2 = jax.random.split(k)
        bound = 1.0 / np.sqrt(fan_in)
        w = jax.random.uniform(k1, (fan_in, fan_out), jnp.float32, -bound, bound)
        b = jax.random.uniform(k2, (1, fan_out), jnp.float32, -bound, bound)
        return w, b

    k1, k2, k3, k4 = jax.random.split(key, 4)
    w1, b1 = linear(k1, IN_DIM, 512)
    ws, bs = linear(k2, 512, 512)
    w8, b8 = linear(k3, 512, 128)
    w9, b9 = linear(k4, 128, OUT_DIM)
    return {
        "w1": w1, "b1": b1,
        "g_big": jnp.ones((1, 512), jnp.float32), "be_big": jnp.zeros((1, 512), jnp.float32),
        "ws": ws, "bs": bs,
        "g_seq": jnp.ones((1, 512), jnp.float32), "be_seq": jnp.zeros((1, 512), jnp.float32),
        "w8": w8, "b8": b8,
        "g_small": jnp.ones((1, 128), jnp.float32), "be_small": jnp.zeros((1, 128), jnp.float32),
        "w9": w9, "b9": b9,
    }


# ----------------------------------------------------------------------------
# Pure-JAX reference in the ORIGINAL module layout (interleaved sin/cos, original
# w1 ordering, explicit t column), with matching bf16 dot operands — validates the
# math, the host-side row permutation, and the t->bias fold of the kernel.
# ----------------------------------------------------------------------------
def higher_dim_gamma(p_arr, length_ar):
    exp = jnp.asarray(_FREQS_NP[:length_ar])
    ang = p_arr.reshape(-1)[:, None] * exp[None, :]
    inter = jnp.stack([jnp.sin(ang), jnp.cos(ang)], axis=-1)   # sin0,cos0,sin1,...
    return inter.reshape(p_arr.shape[0], p_arr.shape[1], 2 * length_ar)


def _ref_forward(p, x, q, t):
    n = x.shape[0]
    hx = higher_dim_gamma(x, coordinate_L).reshape(n, -1)
    hq = higher_dim_gamma(q, quaternion_L).reshape(n, -1)
    inp = jnp.concatenate([hx, hq, jnp.full((n, 1), t, jnp.float32)], axis=1)

    def dot(a, w):
        return jnp.dot(a.astype(jnp.bfloat16), w.astype(jnp.bfloat16),
                       preferred_element_type=jnp.float32)

    h = (dot(inp[:, :IN_DIM - 1], p["w1"][:IN_DIM - 1])
         + inp[:, IN_DIM - 1:] * p["w1"][IN_DIM - 1:] + p["b1"])
    h = _bn_relu(h, p["g_big"], p["be_big"])
    for _ in range(layer_num):
        h = dot(h, p["ws"]) + p["bs"]
        h = _bn_relu(h, p["g_seq"], p["be_seq"])
    h = dot(h, p["w8"]) + p["b8"]
    h = _bn_relu(h, p["g_small"], p["be_small"])
    return dot(h, p["w9"]) + p["b9"]


if __name__ == "__main__":
    key = jax.random.PRNGKey(0)
    kp, kx, kq = jax.random.split(key, 3)
    params = init_params(kp)
    kparams = prepare_kernel_params(params)

    N = 16
    x = jax.random.normal(kx, (N, pos_dim), jnp.float32)
    q = jax.random.normal(kq, (N, quat_dim), jnp.float32)
    t = 1.5

    out_x, out_q = deformation_forward(kparams, x, q, t)
    out_x = jax.block_until_ready(out_x)
    out_q = jax.block_until_ready(out_q)
    assert out_x.shape == (N, pos_dim) and out_q.shape == (N, quat_dim)

    # Sanity check against a module-layout pure-JAX reference (same bf16 operands).
    ref = _ref_forward(params, x, q, t)
    np.testing.assert_allclose(np.asarray(out_x), np.asarray(ref[:, :pos_dim]),
                               rtol=2e-2, atol=2e-2)
    np.testing.assert_allclose(np.asarray(out_q), np.asarray(ref[:, pos_dim:]),
                               rtol=2e-2, atol=2e-2)

    # t == 0 early-return branch (handled on host, no kernel launch)
    zx, zq = deformation_forward(kparams, x, q, 0.0)
    assert zx.shape == (pos_dim,) and float(zq[0]) == 1.0

    print("KERNEL_OK")
</pallas_src>

<mosaic_0001>
module attributes {stable_mosaic.version = 11 : i64} {
  func.func @_fused_kernel(%arg0: i32, %arg1: memref<16x7xf32, #tpu.memory_space<vmem>>, %arg2: memref<1x10xf32, #tpu.memory_space<vmem>>, %arg3: memref<70x512xbf16, #tpu.memory_space<vmem>>, %arg4: memref<70x512xbf16, #tpu.memory_space<vmem>>, %arg5: memref<1x512xf32, #tpu.memory_space<vmem>>, %arg6: memref<1x512xf32, #tpu.memory_space<vmem>>, %arg7: memref<1x512xf32, #tpu.memory_space<vmem>>, %arg8: memref<512x512xbf16, #tpu.memory_space<vmem>>, %arg9: memref<1x512xf32, #tpu.memory_space<vmem>>, %arg10: memref<1x512xf32, #tpu.memory_space<vmem>>, %arg11: memref<1x512xf32, #tpu.memory_space<vmem>>, %arg12: memref<512x128xbf16, #tpu.memory_space<vmem>>, %arg13: memref<1x128xf32, #tpu.memory_space<vmem>>, %arg14: memref<1x128xf32, #tpu.memory_space<vmem>>, %arg15: memref<1x128xf32, #tpu.memory_space<vmem>>, %arg16: memref<128x128xbf16, #tpu.memory_space<vmem>>, %arg17: memref<1x128xf32, #tpu.memory_space<vmem>>, %arg18: memref<16x128xf32, #tpu.memory_space<vmem>>) attributes {dimension_semantics = [#tpu.dimension_semantics<arbitrary>], iteration_bounds = array<i64: 1>, scalar_prefetch = 0 : i64, scratch_operands = 0 : i64, tpu.core_type = #tpu.core_type<tc>, window_params = [{pipeline_mode = #tpu.pipeline_mode<synchronous>, transform_indices = @transform_0, window_bounds = array<i64: 16, 7>}, {pipeline_mode = #tpu.pipeline_mode<synchronous>, transform_indices = @transform_1, window_bounds = array<i64: 1, 10>}, {pipeline_mode = #tpu.pipeline_mode<synchronous>, transform_indices = @transform_2, window_bounds = array<i64: 70, 512>}, {pipeline_mode = #tpu.pipeline_mode<synchronous>, transform_indices = @transform_3, window_bounds = array<i64: 70, 512>}, {pipeline_mode = #tpu.pipeline_mode<synchronous>, transform_indices = @transform_4, window_bounds = array<i64: 1, 512>}, {pipeline_mode = #tpu.pipeline_mode<synchronous>, transform_indices = @transform_5, window_bounds = array<i64: 1, 512>}, {pipeline_mode = #tpu.pipeline_mode<synchronous>, transform_indices = @transform_6, window_bounds = array<i64: 1, 512>}, {pipeline_mode = #tpu.pipeline_mode<synchronous>, transform_indices = @transform_7, window_bounds = array<i64: 512, 512>}, {pipeline_mode = #tpu.pipeline_mode<synchronous>, transform_indices = @transform_8, window_bounds = array<i64: 1, 512>}, {pipeline_mode = #tpu.pipeline_mode<synchronous>, transform_indices = @transform_9, window_bounds = array<i64: 1, 512>}, {pipeline_mode = #tpu.pipeline_mode<synchronous>, transform_indices = @transform_10, window_bounds = array<i64: 1, 512>}, {pipeline_mode = #tpu.pipeline_mode<synchronous>, transform_indices = @transform_11, window_bounds = array<i64: 512, 128>}, {pipeline_mode = #tpu.pipeline_mode<synchronous>, transform_indices = @transform_12, window_bounds = array<i64: 1, 128>}, {pipeline_mode = #tpu.pipeline_mode<synchronous>, transform_indices = @transform_13, window_bounds = array<i64: 1, 128>}, {pipeline_mode = #tpu.pipeline_mode<synchronous>, transform_indices = @transform_14, window_bounds = array<i64: 1, 128>}, {pipeline_mode = #tpu.pipeline_mode<synchronous>, transform_indices = @transform_15, window_bounds = array<i64: 128, 128>}, {pipeline_mode = #tpu.pipeline_mode<synchronous>, transform_indices = @transform_16, window_bounds = array<i64: 1, 128>}, {pipeline_mode = #tpu.pipeline_mode<synchronous>, transform_indices = @transform_17, window_bounds = array<i64: 16, 128>}]} {
    %c0 = arith.constant 0 : index
    %c0_0 = arith.constant 0 : index
    %0 = vector.load %arg1[%c0, %c0_0] : memref<16x7xf32, #tpu.memory_space<vmem>>, vector<16x7xf32>
    %c0_1 = arith.constant 0 : index
    %c0_2 = arith.constant 0 : index
    %1 = vector.load %arg2[%c0_1, %c0_2] : memref<1x10xf32, #tpu.memory_space<vmem>>, vector<1x10xf32>
    %2 = vector.extract_strided_slice %0 {offsets = [0, 0], sizes = [16, 1], strides = [1, 1]} : vector<16x7xf32> to vector<16x1xf32>
    %3 = vector.broadcast %2 : vector<16x1xf32> to vector<16x10xf32>
    %4 = vector.broadcast %1 : vector<1x10xf32> to vector<16x10xf32>
    %5 = arith.mulf %3, %4 : vector<16x10xf32>
    %6 = vector.extract_strided_slice %0 {offsets = [0, 1], sizes = [16, 1], strides = [1, 1]} : vector<16x7xf32> to vector<16x1xf32>
    %7 = vector.broadcast %6 : vector<16x1xf32> to vector<16x10xf32>
    %8 = vector.broadcast %1 : vector<1x10xf32> to vector<16x10xf32>
    %9 = arith.mulf %7, %8 : vector<16x10xf32>
    %10 = vector.extract_strided_slice %0 {offsets = [0, 2], sizes = [16, 1], strides = [1, 1]} : vector<16x7xf32> to vector<16x1xf32>
    %11 = vector.broadcast %10 : vector<16x1xf32> to vector<16x10xf32>
    %12 = vector.broadcast %1 : vector<1x10xf32> to vector<16x10xf32>
    %13 = arith.mulf %11, %12 : vector<16x10xf32>
    %14 = vector.extract_strided_slice %0 {offsets = [0, 3], sizes = [16, 1], strides = [1, 1]} : vector<16x7xf32> to vector<16x1xf32>
    %15 = vector.broadcast %14 : vector<16x1xf32> to vector<16x10xf32>
    %16 = vector.broadcast %1 : vector<1x10xf32> to vector<16x10xf32>
    %17 = arith.mulf %15, %16 : vector<16x10xf32>
    %18 = vector.extract_strided_slice %0 {offsets = [0, 4], sizes = [16, 1], strides = [1, 1]} : vector<16x7xf32> to vector<16x1xf32>
    %19 = vector.broadcast %18 : vector<16x1xf32> to vector<16x10xf32>
    %20 = vector.broadcast %1 : vector<1x10xf32> to vector<16x10xf32>
    %21 = arith.mulf %19, %20 : vector<16x10xf32>
    %22 = vector.extract_strided_slice %0 {offsets = [0, 5], sizes = [16, 1], strides = [1, 1]} : vector<16x7xf32> to vector<16x1xf32>
    %23 = vector.broadcast %22 : vector<16x1xf32> to vector<16x10xf32>
    %24 = vector.broadcast %1 : vector<1x10xf32> to vector<16x10xf32>
    %25 = arith.mulf %23, %24 : vector<16x10xf32>
    %26 = vector.extract_strided_slice %0 {offsets = [0, 6], sizes = [16, 1], strides = [1, 1]} : vector<16x7xf32> to vector<16x1xf32>
    %27 = vector.broadcast %26 : vector<16x1xf32> to vector<16x10xf32>
    %28 = vector.broadcast %1 : vector<1x10xf32> to vector<16x10xf32>
    %29 = arith.mulf %27, %28 : vector<16x10xf32>
    %30 = tpu.concatenate %5, %9, %13, %17, %21, %25, %29 in 1 : vector<16x10xf32>, vector<16x10xf32>, vector<16x10xf32>, vector<16x10xf32>, vector<16x10xf32>, vector<16x10xf32>, vector<16x10xf32> -> vector<16x70xf32>
    %31 = math.sin %30 : vector<16x70xf32>
    %32 = math.cos %30 : vector<16x70xf32>
    %c0_3 = arith.constant 0 : index
    %c0_4 = arith.constant 0 : index
    %33 = vector.load %arg3[%c0_3, %c0_4] : memref<70x512xbf16, #tpu.memory_space<vmem>>, vector<70x512xbf16>
    %c0_5 = arith.constant 0 : index
    %c0_6 = arith.constant 0 : index
    %34 = vector.load %arg4[%c0_5, %c0_6] : memref<70x512xbf16, #tpu.memory_space<vmem>>, vector<70x512xbf16>
    %c0_7 = arith.constant 0 : index
    %c0_8 = arith.constant 0 : index
    %35 = vector.load %arg5[%c0_7, %c0_8] : memref<1x512xf32, #tpu.memory_space<vmem>>, vector<1x512xf32>
    %c0_9 = arith.constant 0 : index
    %c0_10 = arith.constant 0 : index
    %36 = vector.load %arg6[%c0_9, %c0_10] : memref<1x512xf32, #tpu.memory_space<vmem>>, vector<1x512xf32>
    %c0_11 = arith.constant 0 : index
    %c0_12 = arith.constant 0 : index
    %37 = vector.load %arg7[%c0_11, %c0_12] : memref<1x512xf32, #tpu.memory_space<vmem>>, vector<1x512xf32>
    %c0_13 = arith.constant 0 : index
    %c0_14 = arith.constant 0 : index
    %38 = vector.load %arg8[%c0_13, %c0_14] : memref<512x512xbf16, #tpu.memory_space<vmem>>, vector<512x512xbf16>
    %c0_15 = arith.constant 0 : index
    %c0_16 = arith.constant 0 : index
    %39 = vector.load %arg9[%c0_15, %c0_16] : memref<1x512xf32, #tpu.memory_space<vmem>>, vector<1x512xf32>
    %c0_17 = arith.constant 0 : index
    %c0_18 = arith.constant 0 : index
    %40 = vector.load %arg10[%c0_17, %c0_18] : memref<1x512xf32, #tpu.memory_space<vmem>>, vector<1x512xf32>
    %c0_19 = arith.constant 0 : index
    %c0_20 = arith.constant 0 : index
    %41 = vector.load %arg11[%c0_19, %c0_20] : memref<1x512xf32, #tpu.memory_space<vmem>>, vector<1x512xf32>
    %c0_21 = arith.constant 0 : index
    %c0_22 = arith.constant 0 : index
    %42 = vector.load %arg12[%c0_21, %c0_22] : memref<512x128xbf16, #tpu.memory_space<vmem>>, vector<512x128xbf16>
    %c0_23 = arith.constant 0 : index
    %c0_24 = arith.constant 0 : index
    %43 = vector.load %arg13[%c0_23, %c0_24] : memref<1x128xf32, #tpu.memory_space<vmem>>, vector<1x128xf32>
    %c0_25 = arith.constant 0 : index
    %c0_26 = arith.constant 0 : index
    %44 = vector.load %arg14[%c0_25, %c0_26] : memref<1x128xf32, #tpu.memory_space<vmem>>, vector<1x128xf32>
    %c0_27 = arith.constant 0 : index
    %c0_28 = arith.constant 0 : index
    %45 = vector.load %arg15[%c0_27, %c0_28] : memref<1x128xf32, #tpu.memory_space<vmem>>, vector<1x128xf32>
    %c0_29 = arith.constant 0 : index
    %c0_30 = arith.constant 0 : index
    %46 = vector.load %arg16[%c0_29, %c0_30] : memref<128x128xbf16, #tpu.memory_space<vmem>>, vector<128x128xbf16>
    %c0_31 = arith.constant 0 : index
    %c0_32 = arith.constant 0 : index
    %47 = vector.load %arg17[%c0_31, %c0_32] : memref<1x128xf32, #tpu.memory_space<vmem>>, vector<1x128xf32>
    %48 = arith.truncf %31 : vector<16x70xf32> to vector<16x70xbf16>
    %cst = arith.constant dense<0.000000e+00> : vector<16x512xf32>
    %49 = tpu.matmul %48, %33, %cst {dimension_numbers = #tpu.dot_dimension_numbers<[1], [0], [0], [1], [0, 0, 1, 1], [], []>} : vector<16x70xbf16>, vector<70x512xbf16>, vector<16x512xf32> -> vector<16x512xf32>
    %50 = arith.truncf %32 : vector<16x70xf32> to vector<16x70xbf16>
    %cst_33 = arith.constant dense<0.000000e+00> : vector<16x512xf32>
    %51 = tpu.matmul %50, %34, %cst_33 {dimension_numbers = #tpu.dot_dimension_numbers<[1], [0], [0], [1], [0, 0, 1, 1], [], []>} : vector<16x70xbf16>, vector<70x512xbf16>, vector<16x512xf32> -> vector<16x512xf32>
    %52 = arith.addf %49, %51 : vector<16x512xf32>
    %53 = vector.broadcast %35 : vector<1x512xf32> to vector<16x512xf32>
    %54 = arith.addf %52, %53 : vector<16x512xf32>
    %cst_34 = arith.constant dense<0.000000e+00> : vector<512xf32>
    %55 = vector.multi_reduction <add>, %54, %cst_34 [0] : vector<16x512xf32> to vector<512xf32>
    %56 = vector.shape_cast %55 : vector<512xf32> to vector<1x512xf32>
    %cst_35 = arith.constant 1.600000e+01 : f32
    %57 = vector.broadcast %cst_35 : f32 to vector<1x512xf32>
    %58 = arith.divf %56, %57 : vector<1x512xf32>
    %59 = arith.mulf %54, %54 : vector<16x512xf32>
    %cst_36 = arith.constant dense<0.000000e+00> : vector<512xf32>
    %60 = vector.multi_reduction <add>, %59, %cst_36 [0] : vector<16x512xf32> to vector<512xf32>
    %61 = vector.shape_cast %60 : vector<512xf32> to vector<1x512xf32>
    %cst_37 = arith.constant 1.600000e+01 : f32
    %62 = vector.broadcast %cst_37 : f32 to vector<1x512xf32>
    %63 = arith.divf %61, %62 : vector<1x512xf32>
    %64 = arith.mulf %58, %58 : vector<1x512xf32>
    %65 = arith.subf %63, %64 : vector<1x512xf32>
    %cst_38 = arith.constant 0.000000e+00 : f32
    %66 = vector.broadcast %cst_38 : f32 to vector<1x512xf32>
    %67 = arith.maximumf %65, %66 : vector<1x512xf32>
    %cst_39 = arith.constant 9.99999974E-6 : f32
    %68 = vector.broadcast %cst_39 : f32 to vector<1x512xf32>
    %69 = arith.addf %67, %68 : vector<1x512xf32>
    %70 = math.rsqrt %69 : vector<1x512xf32>
    %71 = arith.mulf %36, %70 : vector<1x512xf32>
    %72 = arith.mulf %58, %71 : vector<1x512xf32>
    %73 = arith.subf %37, %72 : vector<1x512xf32>
    %74 = vector.broadcast %71 : vector<1x512xf32> to vector<16x512xf32>
    %75 = arith.mulf %54, %74 : vector<16x512xf32>
    %76 = vector.broadcast %73 : vector<1x512xf32> to vector<16x512xf32>
    %77 = arith.addf %75, %76 : vector<16x512xf32>
    %cst_40 = arith.constant 0.000000e+00 : f32
    %78 = vector.broadcast %cst_40 : f32 to vector<16x512xf32>
    %79 = arith.maximumf %77, %78 : vector<16x512xf32>
    %80 = arith.truncf %79 : vector<16x512xf32> to vector<16x512xbf16>
    %cst_41 = arith.constant dense<0.000000e+00> : vector<16x512xf32>
    %81 = tpu.matmul %80, %38, %cst_41 {dimension_numbers = #tpu.dot_dimension_numbers<[1], [0], [0], [1], [0, 0, 1, 1], [], []>} : vector<16x512xbf16>, vector<512x512xbf16>, vector<16x512xf32> -> vector<16x512xf32>
    %82 = vector.broadcast %39 : vector<1x512xf32> to vector<16x512xf32>
    %83 = arith.addf %81, %82 : vector<16x512xf32>
    %cst_42 = arith.constant dense<0.000000e+00> : vector<512xf32>
    %84 = vector.multi_reduction <add>, %83, %cst_42 [0] : vector<16x512xf32> to vector<512xf32>
    %85 = vector.shape_cast %84 : vector<512xf32> to vector<1x512xf32>
    %cst_43 = arith.constant 1.600000e+01 : f32
    %86 = vector.broadcast %cst_43 : f32 to vector<1x512xf32>
    %87 = arith.divf %85, %86 : vector<1x512xf32>
    %88 = arith.mulf %83, %83 : vector<16x512xf32>
    %cst_44 = arith.constant dense<0.000000e+00> : vector<512xf32>
    %89 = vector.multi_reduction <add>, %88, %cst_44 [0] : vector<16x512xf32> to vector<512xf32>
    %90 = vector.shape_cast %89 : vector<512xf32> to vector<1x512xf32>
    %cst_45 = arith.constant 1.600000e+01 : f32
    %91 = vector.broadcast %cst_45 : f32 to vector<1x512xf32>
    %92 = arith.divf %90, %91 : vector<1x512xf32>
    %93 = arith.mulf %87, %87 : vector<1x512xf32>
    %94 = arith.subf %92, %93 : vector<1x512xf32>
    %cst_46 = arith.constant 0.000000e+00 : f32
    %95 = vector.broadcast %cst_46 : f32 to vector<1x512xf32>
    %96 = arith.maximumf %94, %95 : vector<1x512xf32>
    %cst_47 = arith.constant 9.99999974E-6 : f32
    %97 = vector.broadcast %cst_47 : f32 to vector<1x512xf32>
    %98 = arith.addf %96, %97 : vector<1x512xf32>
    %99 = math.rsqrt %98 : vector<1x512xf32>
    %100 = arith.mulf %40, %99 : vector<1x512xf32>
    %101 = arith.mulf %87, %100 : vector<1x512xf32>
    %102 = arith.subf %41, %101 : vector<1x512xf32>
    %103 = vector.broadcast %100 : vector<1x512xf32> to vector<16x512xf32>
    %104 = arith.mulf %83, %103 : vector<16x512xf32>
    %105 = vector.broadcast %102 : vector<1x512xf32> to vector<16x512xf32>
    %106 = arith.addf %104, %105 : vector<16x512xf32>
    %cst_48 = arith.constant 0.000000e+00 : f32
    %107 = vector.broadcast %cst_48 : f32 to vector<16x512xf32>
    %108 = arith.maximumf %106, %107 : vector<16x512xf32>
    %109 = arith.truncf %108 : vector<16x512xf32> to vector<16x512xbf16>
    %cst_49 = arith.constant dense<0.000000e+00> : vector<16x512xf32>
    %110 = tpu.matmul %109, %38, %cst_49 {dimension_numbers = #tpu.dot_dimension_numbers<[1], [0], [0], [1], [0, 0, 1, 1], [], []>} : vector<16x512xbf16>, vector<512x512xbf16>, vector<16x512xf32> -> vector<16x512xf32>
    %111 = vector.broadcast %39 : vector<1x512xf32> to vector<16x512xf32>
    %112 = arith.addf %110, %111 : vector<16x512xf32>
    %cst_50 = arith.constant dense<0.000000e+00> : vector<512xf32>
    %113 = vector.multi_reduction <add>, %112, %cst_50 [0] : vector<16x512xf32> to vector<512xf32>
    %114 = vector.shape_cast %113 : vector<512xf32> to vector<1x512xf32>
    %cst_51 = arith.constant 1.600000e+01 : f32
    %115 = vector.broadcast %cst_51 : f32 to vector<1x512xf32>
    %116 = arith.divf %114, %115 : vector<1x512xf32>
    %117 = arith.mulf %112, %112 : vector<16x512xf32>
    %cst_52 = arith.constant dense<0.000000e+00> : vector<512xf32>
    %118 = vector.multi_reduction <add>, %117, %cst_52 [0] : vector<16x512xf32> to vector<512xf32>
    %119 = vector.shape_cast %118 : vector<512xf32> to vector<1x512xf32>
    %cst_53 = arith.constant 1.600000e+01 : f32
    %120 = vector.broadcast %cst_53 : f32 to vector<1x512xf32>
    %121 = arith.divf %119, %120 : vector<1x512xf32>
    %122 = arith.mulf %116, %116 : vector<1x512xf32>
    %123 = arith.subf %121, %122 : vector<1x512xf32>
    %cst_54 = arith.constant 0.000000e+00 : f32
    %124 = vector.broadcast %cst_54 : f32 to vector<1x512xf32>
    %125 = arith.maximumf %123, %124 : vector<1x512xf32>
    %cst_55 = arith.constant 9.99999974E-6 : f32
    %126 = vector.broadcast %cst_55 : f32 to vector<1x512xf32>
    %127 = arith.addf %125, %126 : vector<1x512xf32>
    %128 = math.rsqrt %127 : vector<1x512xf32>
    %129 = arith.mulf %40, %128 : vector<1x512xf32>
    %130 = arith.mulf %116, %129 : vector<1x512xf32>
    %131 = arith.subf %41, %130 : vector<1x512xf32>
    %132 = vector.broadcast %129 : vector<1x512xf32> to vector<16x512xf32>
    %133 = arith.mulf %112, %132 : vector<16x512xf32>
    %134 = vector.broadcast %131 : vector<1x512xf32> to vector<16x512xf32>
    %135 = arith.addf %133, %134 : vector<16x512xf32>
    %cst_56 = arith.constant 0.000000e+00 : f32
    %136 = vector.broadcast %cst_56 : f32 to vector<16x512xf32>
    %137 = arith.maximumf %135, %136 : vector<16x512xf32>
    %138 = arith.truncf %137 : vector<16x512xf32> to vector<16x512xbf16>
    %cst_57 = arith.constant dense<0.000000e+00> : vector<16x512xf32>
    %139 = tpu.matmul %138, %38, %cst_57 {dimension_numbers = #tpu.dot_dimension_numbers<[1], [0], [0], [1], [0, 0, 1, 1], [], []>} : vector<16x512xbf16>, vector<512x512xbf16>, vector<16x512xf32> -> vector<16x512xf32>
    %140 = vector.broadcast %39 : vector<1x512xf32> to vector<16x512xf32>
    %141 = arith.addf %139, %140 : vector<16x512xf32>
    %cst_58 = arith.constant dense<0.000000e+00> : vector<512xf32>
    %142 = vector.multi_reduction <add>, %141, %cst_58 [0] : vector<16x512xf32> to vector<512xf32>
    %143 = vector.shape_cast %142 : vector<512xf32> to vector<1x512xf32>
    %cst_59 = arith.constant 1.600000e+01 : f32
    %144 = vector.broadcast %cst_59 : f32 to vector<1x512xf32>
    %145 = arith.divf %143, %144 : vector<1x512xf32>
    %146 = arith.mulf %141, %141 : vector<16x512xf32>
    %cst_60 = arith.constant dense<0.000000e+00> : vector<512xf32>
    %147 = vector.multi_reduction <add>, %146, %cst_60 [0] : vector<16x512xf32> to vector<512xf32>
    %148 = vector.shape_cast %147 : vector<512xf32> to vector<1x512xf32>
    %cst_61 = arith.constant 1.600000e+01 : f32
    %149 = vector.broadcast %cst_61 : f32 to vector<1x512xf32>
    %150 = arith.divf %148, %149 : vector<1x512xf32>
    %151 = arith.mulf %145, %145 : vector<1x512xf32>
    %152 = arith.subf %150, %151 : vector<1x512xf32>
    %cst_62 = arith.constant 0.000000e+00 : f32
    %153 = vector.broadcast %cst_62 : f32 to vector<1x512xf32>
    %154 = arith.maximumf %152, %153 : vector<1x512xf32>
    %cst_63 = arith.constant 9.99999974E-6 : f32
    %155 = vector.broadcast %cst_63 : f32 to vector<1x512xf32>
    %156 = arith.addf %154, %155 : vector<1x512xf32>
    %157 = math.rsqrt %156 : vector<1x512xf32>
    %158 = arith.mulf %40, %157 : vector<1x512xf32>
    %159 = arith.mulf %145, %158 : vector<1x512xf32>
    %160 = arith.subf %41, %159 : vector<1x512xf32>
    %161 = vector.broadcast %158 : vector<1x512xf32> to vector<16x512xf32>
    %162 = arith.mulf %141, %161 : vector<16x512xf32>
    %163 = vector.broadcast %160 : vector<1x512xf32> to vector<16x512xf32>
    %164 = arith.addf %162, %163 : vector<16x512xf32>
    %cst_64 = arith.constant 0.000000e+00 : f32
    %165 = vector.broadcast %cst_64 : f32 to vector<16x512xf32>
    %166 = arith.maximumf %164, %165 : vector<16x512xf32>
    %167 = arith.truncf %166 : vector<16x512xf32> to vector<16x512xbf16>
    %cst_65 = arith.constant dense<0.000000e+00> : vector<16x512xf32>
    %168 = tpu.matmul %167, %38, %cst_65 {dimension_numbers = #tpu.dot_dimension_numbers<[1], [0], [0], [1], [0, 0, 1, 1], [], []>} : vector<16x512xbf16>, vector<512x512xbf16>, vector<16x512xf32> -> vector<16x512xf32>
    %169 = vector.broadcast %39 : vector<1x512xf32> to vector<16x512xf32>
    %170 = arith.addf %168, %169 : vector<16x512xf32>
    %cst_66 = arith.constant dense<0.000000e+00> : vector<512xf32>
    %171 = vector.multi_reduction <add>, %170, %cst_66 [0] : vector<16x512xf32> to vector<512xf32>
    %172 = vector.shape_cast %171 : vector<512xf32> to vector<1x512xf32>
    %cst_67 = arith.constant 1.600000e+01 : f32
    %173 = vector.broadcast %cst_67 : f32 to vector<1x512xf32>
    %174 = arith.divf %172, %173 : vector<1x512xf32>
    %175 = arith.mulf %170, %170 : vector<16x512xf32>
    %cst_68 = arith.constant dense<0.000000e+00> : vector<512xf32>
    %176 = vector.multi_reduction <add>, %175, %cst_68 [0] : vector<16x512xf32> to vector<512xf32>
    %177 = vector.shape_cast %176 : vector<512xf32> to vector<1x512xf32>
    %cst_69 = arith.constant 1.600000e+01 : f32
    %178 = vector.broadcast %cst_69 : f32 to vector<1x512xf32>
    %179 = arith.divf %177, %178 : vector<1x512xf32>
    %180 = arith.mulf %174, %174 : vector<1x512xf32>
    %181 = arith.subf %179, %180 : vector<1x512xf32>
    %cst_70 = arith.constant 0.000000e+00 : f32
    %182 = vector.broadcast %cst_70 : f32 to vector<1x512xf32>
    %183 = arith.maximumf %181, %182 : vector<1x512xf32>
    %cst_71 = arith.constant 9.99999974E-6 : f32
    %184 = vector.broadcast %cst_71 : f32 to vector<1x512xf32>
    %185 = arith.addf %183, %184 : vector<1x512xf32>
    %186 = math.rsqrt %185 : vector<1x512xf32>
    %187 = arith.mulf %40, %186 : vector<1x512xf32>
    %188 = arith.mulf %174, %187 : vector<1x512xf32>
    %189 = arith.subf %41, %188 : vector<1x512xf32>
    %190 = vector.broadcast %187 : vector<1x512xf32> to vector<16x512xf32>
    %191 = arith.mulf %170, %190 : vector<16x512xf32>
    %192 = vector.broadcast %189 : vector<1x512xf32> to vector<16x512xf32>
    %193 = arith.addf %191, %192 : vector<16x512xf32>
    %cst_72 = arith.constant 0.000000e+00 : f32
    %194 = vector.broadcast %cst_72 : f32 to vector<16x512xf32>
    %195 = arith.maximumf %193, %194 : vector<16x512xf32>
    %196 = arith.truncf %195 : vector<16x512xf32> to vector<16x512xbf16>
    %cst_73 = arith.constant dense<0.000000e+00> : vector<16x128xf32>
    %197 = tpu.matmul %196, %42, %cst_73 {dimension_numbers = #tpu.dot_dimension_numbers<[1], [0], [0], [1], [0, 0, 1, 1], [], []>} : vector<16x512xbf16>, vector<512x128xbf16>, vector<16x128xf32> -> vector<16x128xf32>
    %198 = vector.broadcast %43 : vector<1x128xf32> to vector<16x128xf32>
    %199 = arith.addf %197, %198 : vector<16x128xf32>
    %cst_74 = arith.constant dense<0.000000e+00> : vector<128xf32>
    %200 = vector.multi_reduction <add>, %199, %cst_74 [0] : vector<16x128xf32> to vector<128xf32>
    %201 = vector.shape_cast %200 : vector<128xf32> to vector<1x128xf32>
    %cst_75 = arith.constant 1.600000e+01 : f32
    %202 = vector.broadcast %cst_75 : f32 to vector<1x128xf32>
    %203 = arith.divf %201, %202 : vector<1x128xf32>
    %204 = arith.mulf %199, %199 : vector<16x128xf32>
    %cst_76 = arith.constant dense<0.000000e+00> : vector<128xf32>
    %205 = vector.multi_reduction <add>, %204, %cst_76 [0] : vector<16x128xf32> to vector<128xf32>
    %206 = vector.shape_cast %205 : vector<128xf32> to vector<1x128xf32>
    %cst_77 = arith.constant 1.600000e+01 : f32
    %207 = vector.broadcast %cst_77 : f32 to vector<1x128xf32>
    %208 = arith.divf %206, %207 : vector<1x128xf32>
    %209 = arith.mulf %203, %203 : vector<1x128xf32>
    %210 = arith.subf %208, %209 : vector<1x128xf32>
    %cst_78 = arith.constant 0.000000e+00 : f32
    %211 = vector.broadcast %cst_78 : f32 to vector<1x128xf32>
    %212 = arith.maximumf %210, %211 : vector<1x128xf32>
    %cst_79 = arith.constant 9.99999974E-6 : f32
    %213 = vector.broadcast %cst_79 : f32 to vector<1x128xf32>
    %214 = arith.addf %212, %213 : vector<1x128xf32>
    %215 = math.rsqrt %214 : vector<1x128xf32>
    %216 = arith.mulf %44, %215 : vector<1x128xf32>
    %217 = arith.mulf %203, %216 : vector<1x128xf32>
    %218 = arith.subf %45, %217 : vector<1x128xf32>
    %219 = vector.broadcast %216 : vector<1x128xf32> to vector<16x128xf32>
    %220 = arith.mulf %199, %219 : vector<16x128xf32>
    %221 = vector.broadcast %218 : vector<1x128xf32> to vector<16x128xf32>
    %222 = arith.addf %220, %221 : vector<16x128xf32>
    %cst_80 = arith.constant 0.000000e+00 : f32
    %223 = vector.broadcast %cst_80 : f32 to vector<16x128xf32>
    %224 = arith.maximumf %222, %223 : vector<16x128xf32>
    %225 = arith.truncf %224 : vector<16x128xf32> to vector<16x128xbf16>
    %cst_81 = arith.constant dense<0.000000e+00> : vector<16x128xf32>
    %226 = tpu.matmul %225, %46, %cst_81 {dimension_numbers = #tpu.dot_dimension_numbers<[1], [0], [0], [1], [0, 0, 1, 1], [], []>} : vector<16x128xbf16>, vector<128x128xbf16>, vector<16x128xf32> -> vector<16x128xf32>
    %227 = vector.broadcast %47 : vector<1x128xf32> to vector<16x128xf32>
    %228 = arith.addf %226, %227 : vector<16x128xf32>
    %c0_82 = arith.constant 0 : index
    %c0_83 = arith.constant 0 : index
    %229 = vector.load %arg18[%c0_82, %c0_83] : memref<16x128xf32, #tpu.memory_space<vmem>>, vector<16x128xf32>
    tpu.vector_store %arg18[%c0_82, %c0_83], %228 {strides = array<i32>} : memref<16x128xf32, #tpu.memory_space<vmem>>, vector<16x128xf32>,
    return
  }
  func.func @transform_0(%arg0: i32) -> (i32, i32) {
    %c0_i32 = arith.constant 0 : i32
    %c0_i32_0 = arith.constant 0 : i32
    %c0_i32_1 = arith.constant 0 : i32
    return %c0_i32, %c0_i32_0 : i32, i32
  }
  func.func @transform_1(%arg0: i32) -> (i32, i32) {
    %c0_i32 = arith.constant 0 : i32
    %c0_i32_0 = arith.constant 0 : i32
    %c0_i32_1 = arith.constant 0 : i32
    return %c0_i32, %c0_i32_0 : i32, i32
  }
  func.func @transform_2(%arg0: i32) -> (i32, i32) {
    %c0_i32 = arith.constant 0 : i32
    %c0_i32_0 = arith.constant 0 : i32
    %c0_i32_1 = arith.constant 0 : i32
    return %c0_i32, %c0_i32_0 : i32, i32
  }
  func.func @transform_3(%arg0: i32) -> (i32, i32) {
    %c0_i32 = arith.constant 0 : i32
    %c0_i32_0 = arith.constant 0 : i32
    %c0_i32_1 = arith.constant 0 : i32
    return %c0_i32, %c0_i32_0 : i32, i32
  }
  func.func @transform_4(%arg0: i32) -> (i32, i32) {
    %c0_i32 = arith.constant 0 : i32
    %c0_i32_0 = arith.constant 0 : i32
    %c0_i32_1 = arith.constant 0 : i32
    return %c0_i32, %c0_i32_0 : i32, i32
  }
  func.func @transform_5(%arg0: i32) -> (i32, i32) {
    %c0_i32 = arith.constant 0 : i32
    %c0_i32_0 = arith.constant 0 : i32
    %c0_i32_1 = arith.constant 0 : i32
    return %c0_i32, %c0_i32_0 : i32, i32
  }
  func.func @transform_6(%arg0: i32) -> (i32, i32) {
    %c0_i32 = arith.constant 0 : i32
    %c0_i32_0 = arith.constant 0 : i32
    %c0_i32_1 = arith.constant 0 : i32
    return %c0_i32, %c0_i32_0 : i32, i32
  }
  func.func @transform_7(%arg0: i32) -> (i32, i32) {
    %c0_i32 = arith.constant 0 : i32
    %c0_i32_0 = arith.constant 0 : i32
    %c0_i32_1 = arith.constant 0 : i32
    return %c0_i32, %c0_i32_0 : i32, i32
  }
  func.func @transform_8(%arg0: i32) -> (i32, i32) {
    %c0_i32 = arith.constant 0 : i32
    %c0_i32_0 = arith.constant 0 : i32
    %c0_i32_1 = arith.constant 0 : i32
    return %c0_i32, %c0_i32_0 : i32, i32
  }
  func.func @transform_9(%arg0: i32) -> (i32, i32) {
    %c0_i32 = arith.constant 0 : i32
    %c0_i32_0 = arith.constant 0 : i32
    %c0_i32_1 = arith.constant 0 : i32
    return %c0_i32, %c0_i32_0 : i32, i32
  }
  func.func @transform_10(%arg0: i32) -> (i32, i32) {
    %c0_i32 = arith.constant 0 : i32
    %c0_i32_0 = arith.constant 0 : i32
    %c0_i32_1 = arith.constant 0 : i32
    return %c0_i32, %c0_i32_0 : i32, i32
  }
  func.func @transform_11(%arg0: i32) -> (i32, i32) {
    %c0_i32 = arith.constant 0 : i32
    %c0_i32_0 = arith.constant 0 : i32
    %c0_i32_1 = arith.constant 0 : i32
    return %c0_i32, %c0_i32_0 : i32, i32
  }
  func.func @transform_12(%arg0: i32) -> (i32, i32) {
    %c0_i32 = arith.constant 0 : i32
    %c0_i32_0 = arith.constant 0 : i32
    %c0_i32_1 = arith.constant 0 : i32
    return %c0_i32, %c0_i32_0 : i32, i32
  }
  func.func @transform_13(%arg0: i32) -> (i32, i32) {
    %c0_i32 = arith.constant 0 : i32
    %c0_i32_0 = arith.constant 0 : i32
    %c0_i32_1 = arith.constant 0 : i32
    return %c0_i32, %c0_i32_0 : i32, i32
  }
  func.func @transform_14(%arg0: i32) -> (i32, i32) {
    %c0_i32 = arith.constant 0 : i32
    %c0_i32_0 = arith.constant 0 : i32
    %c0_i32_1 = arith.constant 0 : i32
    return %c0_i32, %c0_i32_0 : i32, i32
  }
  func.func @transform_15(%arg0: i32) -> (i32, i32) {
    %c0_i32 = arith.constant 0 : i32
    %c0_i32_0 = arith.constant 0 : i32
    %c0_i32_1 = arith.constant 0 : i32
    return %c0_i32, %c0_i32_0 : i32, i32
  }
  func.func @transform_16(%arg0: i32) -> (i32, i32) {
    %c0_i32 = arith.constant 0 : i32
    %c0_i32_0 = arith.constant 0 : i32
    %c0_i32_1 = arith.constant 0 : i32
    return %c0_i32, %c0_i32_0 : i32, i32
  }
  func.func @transform_17(%arg0: i32) -> (i32, i32) {
    %c0_i32 = arith.constant 0 : i32
    %c0_i32_0 = arith.constant 0 : i32
    %c0_i32_1 = arith.constant 0 : i32
    return %c0_i32, %c0_i32_0 : i32, i32
  }
}

module attributes {stable_mosaic.version = 11 : i64} {
  func.func @_precomp_kernel(%arg0: i32, %arg1: memref<16x70xbf16, #tpu.memory_space<vmem>>, %arg2: memref<16x70xbf16, #tpu.memory_space<vmem>>, %arg3: memref<70x512xbf16, #tpu.memory_space<vmem>>, %arg4: memref<70x512xbf16, #tpu.memory_space<vmem>>, %arg5: memref<1x512xf32, #tpu.memory_space<vmem>>, %arg6: memref<1x512xf32, #tpu.memory_space<vmem>>, %arg7: memref<1x512xf32, #tpu.memory_space<vmem>>, %arg8: memref<512x512xbf16, #tpu.memory_space<vmem>>, %arg9: memref<1x512xf32, #tpu.memory_space<vmem>>, %arg10: memref<1x512xf32, #tpu.memory_space<vmem>>, %arg11: memref<1x512xf32, #tpu.memory_space<vmem>>, %arg12: memref<512x128xbf16, #tpu.memory_space<vmem>>, %arg13: memref<1x128xf32, #tpu.memory_space<vmem>>, %arg14: memref<1x128xf32, #tpu.memory_space<vmem>>, %arg15: memref<1x128xf32, #tpu.memory_space<vmem>>, %arg16: memref<128x128xbf16, #tpu.memory_space<vmem>>, %arg17: memref<1x128xf32, #tpu.memory_space<vmem>>, %arg18: memref<16x128xf32, #tpu.memory_space<vmem>>) attributes {dimension_semantics = [#tpu.dimension_semantics<arbitrary>], iteration_bounds = array<i64: 1>, scalar_prefetch = 0 : i64, scratch_operands = 0 : i64, tpu.core_type = #tpu.core_type<tc>, window_params = [{pipeline_mode = #tpu.pipeline_mode<synchronous>, transform_indices = @transform_0, window_bounds = array<i64: 16, 70>}, {pipeline_mode = #tpu.pipeline_mode<synchronous>, transform_indices = @transform_1, window_bounds = array<i64: 16, 70>}, {pipeline_mode = #tpu.pipeline_mode<synchronous>, transform_indices = @transform_2, window_bounds = array<i64: 70, 512>}, {pipeline_mode = #tpu.pipeline_mode<synchronous>, transform_indices = @transform_3, window_bounds = array<i64: 70, 512>}, {pipeline_mode = #tpu.pipeline_mode<synchronous>, transform_indices = @transform_4, window_bounds = array<i64: 1, 512>}, {pipeline_mode = #tpu.pipeline_mode<synchronous>, transform_indices = @transform_5, window_bounds = array<i64: 1, 512>}, {pipeline_mode = #tpu.pipeline_mode<synchronous>, transform_indices = @transform_6, window_bounds = array<i64: 1, 512>}, {pipeline_mode = #tpu.pipeline_mode<synchronous>, transform_indices = @transform_7, window_bounds = array<i64: 512, 512>}, {pipeline_mode = #tpu.pipeline_mode<synchronous>, transform_indices = @transform_8, window_bounds = array<i64: 1, 512>}, {pipeline_mode = #tpu.pipeline_mode<synchronous>, transform_indices = @transform_9, window_bounds = array<i64: 1, 512>}, {pipeline_mode = #tpu.pipeline_mode<synchronous>, transform_indices = @transform_10, window_bounds = array<i64: 1, 512>}, {pipeline_mode = #tpu.pipeline_mode<synchronous>, transform_indices = @transform_11, window_bounds = array<i64: 512, 128>}, {pipeline_mode = #tpu.pipeline_mode<synchronous>, transform_indices = @transform_12, window_bounds = array<i64: 1, 128>}, {pipeline_mode = #tpu.pipeline_mode<synchronous>, transform_indices = @transform_13, window_bounds = array<i64: 1, 128>}, {pipeline_mode = #tpu.pipeline_mode<synchronous>, transform_indices = @transform_14, window_bounds = array<i64: 1, 128>}, {pipeline_mode = #tpu.pipeline_mode<synchronous>, transform_indices = @transform_15, window_bounds = array<i64: 128, 128>}, {pipeline_mode = #tpu.pipeline_mode<synchronous>, transform_indices = @transform_16, window_bounds = array<i64: 1, 128>}, {pipeline_mode = #tpu.pipeline_mode<synchronous>, transform_indices = @transform_17, window_bounds = array<i64: 16, 128>}]} {
    %c0 = arith.constant 0 : index
    %c0_0 = arith.constant 0 : index
    %0 = vector.load %arg1[%c0, %c0_0] : memref<16x70xbf16, #tpu.memory_space<vmem>>, vector<16x70xbf16>
    %c0_1 = arith.constant 0 : index
    %c0_2 = arith.constant 0 : index
    %1 = vector.load %arg2[%c0_1, %c0_2] : memref<16x70xbf16, #tpu.memory_space<vmem>>, vector<16x70xbf16>
    %c0_3 = arith.constant 0 : index
    %c0_4 = arith.constant 0 : index
    %2 = vector.load %arg3[%c0_3, %c0_4] : memref<70x512xbf16, #tpu.memory_space<vmem>>, vector<70x512xbf16>
    %c0_5 = arith.constant 0 : index
    %c0_6 = arith.constant 0 : index
    %3 = vector.load %arg4[%c0_5, %c0_6] : memref<70x512xbf16, #tpu.memory_space<vmem>>, vector<70x512xbf16>
    %c0_7 = arith.constant 0 : index
    %c0_8 = arith.constant 0 : index
    %4 = vector.load %arg5[%c0_7, %c0_8] : memref<1x512xf32, #tpu.memory_space<vmem>>, vector<1x512xf32>
    %c0_9 = arith.constant 0 : index
    %c0_10 = arith.constant 0 : index
    %5 = vector.load %arg6[%c0_9, %c0_10] : memref<1x512xf32, #tpu.memory_space<vmem>>, vector<1x512xf32>
    %c0_11 = arith.constant 0 : index
    %c0_12 = arith.constant 0 : index
    %6 = vector.load %arg7[%c0_11, %c0_12] : memref<1x512xf32, #tpu.memory_space<vmem>>, vector<1x512xf32>
    %c0_13 = arith.constant 0 : index
    %c0_14 = arith.constant 0 : index
    %7 = vector.load %arg8[%c0_13, %c0_14] : memref<512x512xbf16, #tpu.memory_space<vmem>>, vector<512x512xbf16>
    %c0_15 = arith.constant 0 : index
    %c0_16 = arith.constant 0 : index
    %8 = vector.load %arg9[%c0_15, %c0_16] : memref<1x512xf32, #tpu.memory_space<vmem>>, vector<1x512xf32>
    %c0_17 = arith.constant 0 : index
    %c0_18 = arith.constant 0 : index
    %9 = vector.load %arg10[%c0_17, %c0_18] : memref<1x512xf32, #tpu.memory_space<vmem>>, vector<1x512xf32>
    %c0_19 = arith.constant 0 : index
    %c0_20 = arith.constant 0 : index
    %10 = vector.load %arg11[%c0_19, %c0_20] : memref<1x512xf32, #tpu.memory_space<vmem>>, vector<1x512xf32>
    %c0_21 = arith.constant 0 : index
    %c0_22 = arith.constant 0 : index
    %11 = vector.load %arg12[%c0_21, %c0_22] : memref<512x128xbf16, #tpu.memory_space<vmem>>, vector<512x128xbf16>
    %c0_23 = arith.constant 0 : index
    %c0_24 = arith.constant 0 : index
    %12 = vector.load %arg13[%c0_23, %c0_24] : memref<1x128xf32, #tpu.memory_space<vmem>>, vector<1x128xf32>
    %c0_25 = arith.constant 0 : index
    %c0_26 = arith.constant 0 : index
    %13 = vector.load %arg14[%c0_25, %c0_26] : memref<1x128xf32, #tpu.memory_space<vmem>>, vector<1x128xf32>
    %c0_27 = arith.constant 0 : index
    %c0_28 = arith.constant 0 : index
    %14 = vector.load %arg15[%c0_27, %c0_28] : memref<1x128xf32, #tpu.memory_space<vmem>>, vector<1x128xf32>
    %c0_29 = arith.constant 0 : index
    %c0_30 = arith.constant 0 : index
    %15 = vector.load %arg16[%c0_29, %c0_30] : memref<128x128xbf16, #tpu.memory_space<vmem>>, vector<128x128xbf16>
    %c0_31 = arith.constant 0 : index
    %c0_32 = arith.constant 0 : index
    %16 = vector.load %arg17[%c0_31, %c0_32] : memref<1x128xf32, #tpu.memory_space<vmem>>, vector<1x128xf32>
    %cst = arith.constant dense<0.000000e+00> : vector<16x512xf32>
    %17 = tpu.matmul %0, %2, %cst {dimension_numbers = #tpu.dot_dimension_numbers<[1], [0], [0], [1], [0, 0, 1, 1], [], []>} : vector<16x70xbf16>, vector<70x512xbf16>, vector<16x512xf32> -> vector<16x512xf32>
    %cst_33 = arith.constant dense<0.000000e+00> : vector<16x512xf32>
    %18 = tpu.matmul %1, %3, %cst_33 {dimension_numbers = #tpu.dot_dimension_numbers<[1], [0], [0], [1], [0, 0, 1, 1], [], []>} : vector<16x70xbf16>, vector<70x512xbf16>, vector<16x512xf32> -> vector<16x512xf32>
    %19 = arith.addf %17, %18 : vector<16x512xf32>
    %20 = vector.broadcast %4 : vector<1x512xf32> to vector<16x512xf32>
    %21 = arith.addf %19, %20 : vector<16x512xf32>
    %cst_34 = arith.constant dense<0.000000e+00> : vector<512xf32>
    %22 = vector.multi_reduction <add>, %21, %cst_34 [0] : vector<16x512xf32> to vector<512xf32>
    %23 = vector.shape_cast %22 : vector<512xf32> to vector<1x512xf32>
    %cst_35 = arith.constant 1.600000e+01 : f32
    %24 = vector.broadcast %cst_35 : f32 to vector<1x512xf32>
    %25 = arith.divf %23, %24 : vector<1x512xf32>
    %26 = arith.mulf %21, %21 : vector<16x512xf32>
    %cst_36 = arith.constant dense<0.000000e+00> : vector<512xf32>
    %27 = vector.multi_reduction <add>, %26, %cst_36 [0] : vector<16x512xf32> to vector<512xf32>
    %28 = vector.shape_cast %27 : vector<512xf32> to vector<1x512xf32>
    %cst_37 = arith.constant 1.600000e+01 : f32
    %29 = vector.broadcast %cst_37 : f32 to vector<1x512xf32>
    %30 = arith.divf %28, %29 : vector<1x512xf32>
    %31 = arith.mulf %25, %25 : vector<1x512xf32>
    %32 = arith.subf %30, %31 : vector<1x512xf32>
    %cst_38 = arith.constant 0.000000e+00 : f32
    %33 = vector.broadcast %cst_38 : f32 to vector<1x512xf32>
    %34 = arith.maximumf %32, %33 : vector<1x512xf32>
    %cst_39 = arith.constant 9.99999974E-6 : f32
    %35 = vector.broadcast %cst_39 : f32 to vector<1x512xf32>
    %36 = arith.addf %34, %35 : vector<1x512xf32>
    %37 = math.rsqrt %36 : vector<1x512xf32>
    %38 = arith.mulf %5, %37 : vector<1x512xf32>
    %39 = arith.mulf %25, %38 : vector<1x512xf32>
    %40 = arith.subf %6, %39 : vector<1x512xf32>
    %41 = vector.broadcast %38 : vector<1x512xf32> to vector<16x512xf32>
    %42 = arith.mulf %21, %41 : vector<16x512xf32>
    %43 = vector.broadcast %40 : vector<1x512xf32> to vector<16x512xf32>
    %44 = arith.addf %42, %43 : vector<16x512xf32>
    %cst_40 = arith.constant 0.000000e+00 : f32
    %45 = vector.broadcast %cst_40 : f32 to vector<16x512xf32>
    %46 = arith.maximumf %44, %45 : vector<16x512xf32>
    %47 = arith.truncf %46 : vector<16x512xf32> to vector<16x512xbf16>
    %cst_41 = arith.constant dense<0.000000e+00> : vector<16x512xf32>
    %48 = tpu.matmul %47, %7, %cst_41 {dimension_numbers = #tpu.dot_dimension_numbers<[1], [0], [0], [1], [0, 0, 1, 1], [], []>} : vector<16x512xbf16>, vector<512x512xbf16>, vector<16x512xf32> -> vector<16x512xf32>
    %49 = vector.broadcast %8 : vector<1x512xf32> to vector<16x512xf32>
    %50 = arith.addf %48, %49 : vector<16x512xf32>
    %cst_42 = arith.constant dense<0.000000e+00> : vector<512xf32>
    %51 = vector.multi_reduction <add>, %50, %cst_42 [0] : vector<16x512xf32> to vector<512xf32>
    %52 = vector.shape_cast %51 : vector<512xf32> to vector<1x512xf32>
    %cst_43 = arith.constant 1.600000e+01 : f32
    %53 = vector.broadcast %cst_43 : f32 to vector<1x512xf32>
    %54 = arith.divf %52, %53 : vector<1x512xf32>
    %55 = arith.mulf %50, %50 : vector<16x512xf32>
    %cst_44 = arith.constant dense<0.000000e+00> : vector<512xf32>
    %56 = vector.multi_reduction <add>, %55, %cst_44 [0] : vector<16x512xf32> to vector<512xf32>
    %57 = vector.shape_cast %56 : vector<512xf32> to vector<1x512xf32>
    %cst_45 = arith.constant 1.600000e+01 : f32
    %58 = vector.broadcast %cst_45 : f32 to vector<1x512xf32>
    %59 = arith.divf %57, %58 : vector<1x512xf32>
    %60 = arith.mulf %54, %54 : vector<1x512xf32>
    %61 = arith.subf %59, %60 : vector<1x512xf32>
    %cst_46 = arith.constant 0.000000e+00 : f32
    %62 = vector.broadcast %cst_46 : f32 to vector<1x512xf32>
    %63 = arith.maximumf %61, %62 : vector<1x512xf32>
    %cst_47 = arith.constant 9.99999974E-6 : f32
    %64 = vector.broadcast %cst_47 : f32 to vector<1x512xf32>
    %65 = arith.addf %63, %64 : vector<1x512xf32>
    %66 = math.rsqrt %65 : vector<1x512xf32>
    %67 = arith.mulf %9, %66 : vector<1x512xf32>
    %68 = arith.mulf %54, %67 : vector<1x512xf32>
    %69 = arith.subf %10, %68 : vector<1x512xf32>
    %70 = vector.broadcast %67 : vector<1x512xf32> to vector<16x512xf32>
    %71 = arith.mulf %50, %70 : vector<16x512xf32>
    %72 = vector.broadcast %69 : vector<1x512xf32> to vector<16x512xf32>
    %73 = arith.addf %71, %72 : vector<16x512xf32>
    %cst_48 = arith.constant 0.000000e+00 : f32
    %74 = vector.broadcast %cst_48 : f32 to vector<16x512xf32>
    %75 = arith.maximumf %73, %74 : vector<16x512xf32>
    %76 = arith.truncf %75 : vector<16x512xf32> to vector<16x512xbf16>
    %cst_49 = arith.constant dense<0.000000e+00> : vector<16x512xf32>
    %77 = tpu.matmul %76, %7, %cst_49 {dimension_numbers = #tpu.dot_dimension_numbers<[1], [0], [0], [1], [0, 0, 1, 1], [], []>} : vector<16x512xbf16>, vector<512x512xbf16>, vector<16x512xf32> -> vector<16x512xf32>
    %78 = vector.broadcast %8 : vector<1x512xf32> to vector<16x512xf32>
    %79 = arith.addf %77, %78 : vector<16x512xf32>
    %cst_50 = arith.constant dense<0.000000e+00> : vector<512xf32>
    %80 = vector.multi_reduction <add>, %79, %cst_50 [0] : vector<16x512xf32> to vector<512xf32>
    %81 = vector.shape_cast %80 : vector<512xf32> to vector<1x512xf32>
    %cst_51 = arith.constant 1.600000e+01 : f32
    %82 = vector.broadcast %cst_51 : f32 to vector<1x512xf32>
    %83 = arith.divf %81, %82 : vector<1x512xf32>
    %84 = arith.mulf %79, %79 : vector<16x512xf32>
    %cst_52 = arith.constant dense<0.000000e+00> : vector<512xf32>
    %85 = vector.multi_reduction <add>, %84, %cst_52 [0] : vector<16x512xf32> to vector<512xf32>
    %86 = vector.shape_cast %85 : vector<512xf32> to vector<1x512xf32>
    %cst_53 = arith.constant 1.600000e+01 : f32
    %87 = vector.broadcast %cst_53 : f32 to vector<1x512xf32>
    %88 = arith.divf %86, %87 : vector<1x512xf32>
    %89 = arith.mulf %83, %83 : vector<1x512xf32>
    %90 = arith.subf %88, %89 : vector<1x512xf32>
    %cst_54 = arith.constant 0.000000e+00 : f32
    %91 = vector.broadcast %cst_54 : f32 to vector<1x512xf32>
    %92 = arith.maximumf %90, %91 : vector<1x512xf32>
    %cst_55 = arith.constant 9.99999974E-6 : f32
    %93 = vector.broadcast %cst_55 : f32 to vector<1x512xf32>
    %94 = arith.addf %92, %93 : vector<1x512xf32>
    %95 = math.rsqrt %94 : vector<1x512xf32>
    %96 = arith.mulf %9, %95 : vector<1x512xf32>
    %97 = arith.mulf %83, %96 : vector<1x512xf32>
    %98 = arith.subf %10, %97 : vector<1x512xf32>
    %99 = vector.broadcast %96 : vector<1x512xf32> to vector<16x512xf32>
    %100 = arith.mulf %79, %99 : vector<16x512xf32>
    %101 = vector.broadcast %98 : vector<1x512xf32> to vector<16x512xf32>
    %102 = arith.addf %100, %101 : vector<16x512xf32>
    %cst_56 = arith.constant 0.000000e+00 : f32
    %103 = vector.broadcast %cst_56 : f32 to vector<16x512xf32>
    %104 = arith.maximumf %102, %103 : vector<16x512xf32>
    %105 = arith.truncf %104 : vector<16x512xf32> to vector<16x512xbf16>
    %cst_57 = arith.constant dense<0.000000e+00> : vector<16x512xf32>
    %106 = tpu.matmul %105, %7, %cst_57 {dimension_numbers = #tpu.dot_dimension_numbers<[1], [0], [0], [1], [0, 0, 1, 1], [], []>} : vector<16x512xbf16>, vector<512x512xbf16>, vector<16x512xf32> -> vector<16x512xf32>
    %107 = vector.broadcast %8 : vector<1x512xf32> to vector<16x512xf32>
    %108 = arith.addf %106, %107 : vector<16x512xf32>
    %cst_58 = arith.constant dense<0.000000e+00> : vector<512xf32>
    %109 = vector.multi_reduction <add>, %108, %cst_58 [0] : vector<16x512xf32> to vector<512xf32>
    %110 = vector.shape_cast %109 : vector<512xf32> to vector<1x512xf32>
    %cst_59 = arith.constant 1.600000e+01 : f32
    %111 = vector.broadcast %cst_59 : f32 to vector<1x512xf32>
    %112 = arith.divf %110, %111 : vector<1x512xf32>
    %113 = arith.mulf %108, %108 : vector<16x512xf32>
    %cst_60 = arith.constant dense<0.000000e+00> : vector<512xf32>
    %114 = vector.multi_reduction <add>, %113, %cst_60 [0] : vector<16x512xf32> to vector<512xf32>
    %115 = vector.shape_cast %114 : vector<512xf32> to vector<1x512xf32>
    %cst_61 = arith.constant 1.600000e+01 : f32
    %116 = vector.broadcast %cst_61 : f32 to vector<1x512xf32>
    %117 = arith.divf %115, %116 : vector<1x512xf32>
    %118 = arith.mulf %112, %112 : vector<1x512xf32>
    %119 = arith.subf %117, %118 : vector<1x512xf32>
    %cst_62 = arith.constant 0.000000e+00 : f32
    %120 = vector.broadcast %cst_62 : f32 to vector<1x512xf32>
    %121 = arith.maximumf %119, %120 : vector<1x512xf32>
    %cst_63 = arith.constant 9.99999974E-6 : f32
    %122 = vector.broadcast %cst_63 : f32 to vector<1x512xf32>
    %123 = arith.addf %121, %122 : vector<1x512xf32>
    %124 = math.rsqrt %123 : vector<1x512xf32>
    %125 = arith.mulf %9, %124 : vector<1x512xf32>
    %126 = arith.mulf %112, %125 : vector<1x512xf32>
    %127 = arith.subf %10, %126 : vector<1x512xf32>
    %128 = vector.broadcast %125 : vector<1x512xf32> to vector<16x512xf32>
    %129 = arith.mulf %108, %128 : vector<16x512xf32>
    %130 = vector.broadcast %127 : vector<1x512xf32> to vector<16x512xf32>
    %131 = arith.addf %129, %130 : vector<16x512xf32>
    %cst_64 = arith.constant 0.000000e+00 : f32
    %132 = vector.broadcast %cst_64 : f32 to vector<16x512xf32>
    %133 = arith.maximumf %131, %132 : vector<16x512xf32>
    %134 = arith.truncf %133 : vector<16x512xf32> to vector<16x512xbf16>
    %cst_65 = arith.constant dense<0.000000e+00> : vector<16x512xf32>
    %135 = tpu.matmul %134, %7, %cst_65 {dimension_numbers = #tpu.dot_dimension_numbers<[1], [0], [0], [1], [0, 0, 1, 1], [], []>} : vector<16x512xbf16>, vector<512x512xbf16>, vector<16x512xf32> -> vector<16x512xf32>
    %136 = vector.broadcast %8 : vector<1x512xf32> to vector<16x512xf32>
    %137 = arith.addf %135, %136 : vector<16x512xf32>
    %cst_66 = arith.constant dense<0.000000e+00> : vector<512xf32>
    %138 = vector.multi_reduction <add>, %137, %cst_66 [0] : vector<16x512xf32> to vector<512xf32>
    %139 = vector.shape_cast %138 : vector<512xf32> to vector<1x512xf32>
    %cst_67 = arith.constant 1.600000e+01 : f32
    %140 = vector.broadcast %cst_67 : f32 to vector<1x512xf32>
    %141 = arith.divf %139, %140 : vector<1x512xf32>
    %142 = arith.mulf %137, %137 : vector<16x512xf32>
    %cst_68 = arith.constant dense<0.000000e+00> : vector<512xf32>
    %143 = vector.multi_reduction <add>, %142, %cst_68 [0] : vector<16x512xf32> to vector<512xf32>
    %144 = vector.shape_cast %143 : vector<512xf32> to vector<1x512xf32>
    %cst_69 = arith.constant 1.600000e+01 : f32
    %145 = vector.broadcast %cst_69 : f32 to vector<1x512xf32>
    %146 = arith.divf %144, %145 : vector<1x512xf32>
    %147 = arith.mulf %141, %141 : vector<1x512xf32>
    %148 = arith.subf %146, %147 : vector<1x512xf32>
    %cst_70 = arith.constant 0.000000e+00 : f32
    %149 = vector.broadcast %cst_70 : f32 to vector<1x512xf32>
    %150 = arith.maximumf %148, %149 : vector<1x512xf32>
    %cst_71 = arith.constant 9.99999974E-6 : f32
    %151 = vector.broadcast %cst_71 : f32 to vector<1x512xf32>
    %152 = arith.addf %150, %151 : vector<1x512xf32>
    %153 = math.rsqrt %152 : vector<1x512xf32>
    %154 = arith.mulf %9, %153 : vector<1x512xf32>
    %155 = arith.mulf %141, %154 : vector<1x512xf32>
    %156 = arith.subf %10, %155 : vector<1x512xf32>
    %157 = vector.broadcast %154 : vector<1x512xf32> to vector<16x512xf32>
    %158 = arith.mulf %137, %157 : vector<16x512xf32>
    %159 = vector.broadcast %156 : vector<1x512xf32> to vector<16x512xf32>
    %160 = arith.addf %158, %159 : vector<16x512xf32>
    %cst_72 = arith.constant 0.000000e+00 : f32
    %161 = vector.broadcast %cst_72 : f32 to vector<16x512xf32>
    %162 = arith.maximumf %160, %161 : vector<16x512xf32>
    %163 = arith.truncf %162 : vector<16x512xf32> to vector<16x512xbf16>
    %cst_73 = arith.constant dense<0.000000e+00> : vector<16x128xf32>
    %164 = tpu.matmul %163, %11, %cst_73 {dimension_numbers = #tpu.dot_dimension_numbers<[1], [0], [0], [1], [0, 0, 1, 1], [], []>} : vector<16x512xbf16>, vector<512x128xbf16>, vector<16x128xf32> -> vector<16x128xf32>
    %165 = vector.broadcast %12 : vector<1x128xf32> to vector<16x128xf32>
    %166 = arith.addf %164, %165 : vector<16x128xf32>
    %cst_74 = arith.constant dense<0.000000e+00> : vector<128xf32>
    %167 = vector.multi_reduction <add>, %166, %cst_74 [0] : vector<16x128xf32> to vector<128xf32>
    %168 = vector.shape_cast %167 : vector<128xf32> to vector<1x128xf32>
    %cst_75 = arith.constant 1.600000e+01 : f32
    %169 = vector.broadcast %cst_75 : f32 to vector<1x128xf32>
    %170 = arith.divf %168, %169 : vector<1x128xf32>
    %171 = arith.mulf %166, %166 : vector<16x128xf32>
    %cst_76 = arith.constant dense<0.000000e+00> : vector<128xf32>
    %172 = vector.multi_reduction <add>, %171, %cst_76 [0] : vector<16x128xf32> to vector<128xf32>
    %173 = vector.shape_cast %172 : vector<128xf32> to vector<1x128xf32>
    %cst_77 = arith.constant 1.600000e+01 : f32
    %174 = vector.broadcast %cst_77 : f32 to vector<1x128xf32>
    %175 = arith.divf %173, %174 : vector<1x128xf32>
    %176 = arith.mulf %170, %170 : vector<1x128xf32>
    %177 = arith.subf %175, %176 : vector<1x128xf32>
    %cst_78 = arith.constant 0.000000e+00 : f32
    %178 = vector.broadcast %cst_78 : f32 to vector<1x128xf32>
    %179 = arith.maximumf %177, %178 : vector<1x128xf32>
    %cst_79 = arith.constant 9.99999974E-6 : f32
    %180 = vector.broadcast %cst_79 : f32 to vector<1x128xf32>
    %181 = arith.addf %179, %180 : vector<1x128xf32>
    %182 = math.rsqrt %181 : vector<1x128xf32>
    %183 = arith.mulf %13, %182 : vector<1x128xf32>
    %184 = arith.mulf %170, %183 : vector<1x128xf32>
    %185 = arith.subf %14, %184 : vector<1x128xf32>
    %186 = vector.broadcast %183 : vector<1x128xf32> to vector<16x128xf32>
    %187 = arith.mulf %166, %186 : vector<16x128xf32>
    %188 = vector.broadcast %185 : vector<1x128xf32> to vector<16x128xf32>
    %189 = arith.addf %187, %188 : vector<16x128xf32>
    %cst_80 = arith.constant 0.000000e+00 : f32
    %190 = vector.broadcast %cst_80 : f32 to vector<16x128xf32>
    %191 = arith.maximumf %189, %190 : vector<16x128xf32>
    %192 = arith.truncf %191 : vector<16x128xf32> to vector<16x128xbf16>
    %cst_81 = arith.constant dense<0.000000e+00> : vector<16x128xf32>
    %193 = tpu.matmul %192, %15, %cst_81 {dimension_numbers = #tpu.dot_dimension_numbers<[1], [0], [0], [1], [0, 0, 1, 1], [], []>} : vector<16x128xbf16>, vector<128x128xbf16>, vector<16x128xf32> -> vector<16x128xf32>
    %194 = vector.broadcast %16 : vector<1x128xf32> to vector<16x128xf32>
    %195 = arith.addf %193, %194 : vector<16x128xf32>
    %c0_82 = arith.constant 0 : index
    %c0_83 = arith.constant 0 : index
    %196 = vector.load %arg18[%c0_82, %c0_83] : memref<16x128xf32, #tpu.memory_space<vmem>>, vector<16x128xf32>
    tpu.vector_store %arg18[%c0_82, %c0_83], %195 {strides = array<i32>} : memref<16x128xf32, #tpu.memory_space<vmem>>, vector<16x128xf32>,
    return
  }
  func.func @transform_0(%arg0: i32) -> (i32, i32) {
    %c0_i32 = arith.constant 0 : i32
    %c0_i32_0 = arith.constant 0 : i32
    %c0_i32_1 = arith.constant 0 : i32
    return %c0_i32, %c0_i32_0 : i32, i32
  }
  func.func @transform_1(%arg0: i32) -> (i32, i32) {
    %c0_i32 = arith.constant 0 : i32
    %c0_i32_0 = arith.constant 0 : i32
    %c0_i32_1 = arith.constant 0 : i32
    return %c0_i32, %c0_i32_0 : i32, i32
  }
  func.func @transform_2(%arg0: i32) -> (i32, i32) {
    %c0_i32 = arith.constant 0 : i32
    %c0_i32_0 = arith.constant 0 : i32
    %c0_i32_1 = arith.constant 0 : i32
    return %c0_i32, %c0_i32_0 : i32, i32
  }
  func.func @transform_3(%arg0: i32) -> (i32, i32) {
    %c0_i32 = arith.constant 0 : i32
    %c0_i32_0 = arith.constant 0 : i32
    %c0_i32_1 = arith.constant 0 : i32
    return %c0_i32, %c0_i32_0 : i32, i32
  }
  func.func @transform_4(%arg0: i32) -> (i32, i32) {
    %c0_i32 = arith.constant 0 : i32
    %c0_i32_0 = arith.constant 0 : i32
    %c0_i32_1 = arith.constant 0 : i32
    return %c0_i32, %c0_i32_0 : i32, i32
  }
  func.func @transform_5(%arg0: i32) -> (i32, i32) {
    %c0_i32 = arith.constant 0 : i32
    %c0_i32_0 = arith.constant 0 : i32
    %c0_i32_1 = arith.constant 0 : i32
    return %c0_i32, %c0_i32_0 : i32, i32
  }
  func.func @transform_6(%arg0: i32) -> (i32, i32) {
    %c0_i32 = arith.constant 0 : i32
    %c0_i32_0 = arith.constant 0 : i32
    %c0_i32_1 = arith.constant 0 : i32
    return %c0_i32, %c0_i32_0 : i32, i32
  }
  func.func @transform_7(%arg0: i32) -> (i32, i32) {
    %c0_i32 = arith.constant 0 : i32
    %c0_i32_0 = arith.constant 0 : i32
    %c0_i32_1 = arith.constant 0 : i32
    return %c0_i32, %c0_i32_0 : i32, i32
  }
  func.func @transform_8(%arg0: i32) -> (i32, i32) {
    %c0_i32 = arith.constant 0 : i32
    %c0_i32_0 = arith.constant 0 : i32
    %c0_i32_1 = arith.constant 0 : i32
    return %c0_i32, %c0_i32_0 : i32, i32
  }
  func.func @transform_9(%arg0: i32) -> (i32, i32) {
    %c0_i32 = arith.constant 0 : i32
    %c0_i32_0 = arith.constant 0 : i32
    %c0_i32_1 = arith.constant 0 : i32
    return %c0_i32, %c0_i32_0 : i32, i32
  }
  func.func @transform_10(%arg0: i32) -> (i32, i32) {
    %c0_i32 = arith.constant 0 : i32
    %c0_i32_0 = arith.constant 0 : i32
    %c0_i32_1 = arith.constant 0 : i32
    return %c0_i32, %c0_i32_0 : i32, i32
  }
  func.func @transform_11(%arg0: i32) -> (i32, i32) {
    %c0_i32 = arith.constant 0 : i32
    %c0_i32_0 = arith.constant 0 : i32
    %c0_i32_1 = arith.constant 0 : i32
    return %c0_i32, %c0_i32_0 : i32, i32
  }
  func.func @transform_12(%arg0: i32) -> (i32, i32) {
    %c0_i32 = arith.constant 0 : i32
    %c0_i32_0 = arith.constant 0 : i32
    %c0_i32_1 = arith.constant 0 : i32
    return %c0_i32, %c0_i32_0 : i32, i32
  }
  func.func @transform_13(%arg0: i32) -> (i32, i32) {
    %c0_i32 = arith.constant 0 : i32
    %c0_i32_0 = arith.constant 0 : i32
    %c0_i32_1 = arith.constant 0 : i32
    return %c0_i32, %c0_i32_0 : i32, i32
  }
  func.func @transform_14(%arg0: i32) -> (i32, i32) {
    %c0_i32 = arith.constant 0 : i32
    %c0_i32_0 = arith.constant 0 : i32
    %c0_i32_1 = arith.constant 0 : i32
    return %c0_i32, %c0_i32_0 : i32, i32
  }
  func.func @transform_15(%arg0: i32) -> (i32, i32) {
    %c0_i32 = arith.constant 0 : i32
    %c0_i32_0 = arith.constant 0 : i32
    %c0_i32_1 = arith.constant 0 : i32
    return %c0_i32, %c0_i32_0 : i32, i32
  }
  func.func @transform_16(%arg0: i32) -> (i32, i32) {
    %c0_i32 = arith.constant 0 : i32
    %c0_i32_0 = arith.constant 0 : i32
    %c0_i32_1 = arith.constant 0 : i32
    return %c0_i32, %c0_i32_0 : i32, i32
  }
  func.func @transform_17(%arg0: i32) -> (i32, i32) {
    %c0_i32 = arith.constant 0 : i32
    %c0_i32_0 = arith.constant 0 : i32
    %c0_i32_1 = arith.constant 0 : i32
    return %c0_i32, %c0_i32_0 : i32, i32
  }
}

</mosaic_0001>

<llo_original>
// kernel: tpu_custom_call.1
$region0: #{tpu_custom_call.1}
  #allocation0 [shape = 'u32[]', space=smem, size = 0x4, offset = 0x4, fixed_abs, tag = 'smem constant byte address 0x4 - core index']
  #allocation1 [shape = 'u32[72,128]{1,0:T(1,128)}', space=vmem, size = 0x9000, scoped, tag = 'internal scratch']
  %s0 = inlined_call_operand.vmem [shape: f32[16,7], index: 0, kind: input, shape index: {}]
  %s1 = inlined_call_operand.hbm [shape: f32[1,10], index: 1, kind: input, shape index: {}]
  %s2 = inlined_call_operand.hbm [shape: bf16[70,512], index: 2, kind: input, shape index: {}]
  %s3 = inlined_call_operand.hbm [shape: bf16[70,512], index: 3, kind: input, shape index: {}]
  %s4 = inlined_call_operand.vmem [shape: f32[1,512], index: 4, kind: input, shape index: {}]
  %s5 = inlined_call_operand.vmem [shape: f32[1,512], index: 5, kind: input, shape index: {}]
  %s6 = inlined_call_operand.vmem [shape: f32[1,512], index: 6, kind: input, shape index: {}]
  %s7 = inlined_call_operand.hbm [shape: bf16[512,512], index: 7, kind: input, shape index: {}]
  %s8 = inlined_call_operand.vmem [shape: f32[1,512], index: 8, kind: input, shape index: {}]
  %s9 = inlined_call_operand.vmem [shape: f32[1,512], index: 9, kind: input, shape index: {}]
  %s10 = inlined_call_operand.vmem [shape: f32[1,512], index: 10, kind: input, shape index: {}]
  %s11 = inlined_call_operand.hbm [shape: bf16[512,128], index: 11, kind: input, shape index: {}]
  %s12 = inlined_call_operand.vmem [shape: f32[1,128], index: 12, kind: input, shape index: {}]
  %s13 = inlined_call_operand.vmem [shape: f32[1,128], index: 13, kind: input, shape index: {}]
  %s14 = inlined_call_operand.vmem [shape: f32[1,128], index: 14, kind: input, shape index: {}]
  %s15 = inlined_call_operand.hbm [shape: bf16[128,128], index: 15, kind: input, shape index: {}]
  %s16 = inlined_call_operand.vmem [shape: f32[1,128], index: 16, kind: input, shape index: {}]
  %s17 = inlined_call_operand.hbm [shape: f32[16,128], index: 17, kind: output, shape index: {}]
  %s18 = sld [smem:[#allocation0]]
  $region102: #{tpu_custom_call.1} parent=0
    _
  %s20 = ssub.s32 1, %s18
  %s21 = scalar_select 0, %s20, %s18
  $region1: #{tpu_custom_call.1} parent=0
    #allocation2 [shape = 'u8[512]{0}', space=vmem, size = 0x400, scoped, tag = 'input window, operand 1, single buffered']
    #allocation3 [shape = 's32[1]{0}', space=sflag, size = 0x4, scoped, tag = 'scoped memory for tpu_custom_call.1']
    #allocation4 [shape = 's32[1]{0}', space=sflag, size = 0x4, scoped, tag = 'scoped memory for tpu_custom_call.1']
    #allocation5 [shape = 'u8[73728]{0}', space=vmem, size = 0x12000, scoped, tag = 'input window, operand 2, single buffered']
    #allocation6 [shape = 's32[1]{0}', space=sflag, size = 0x4, scoped, tag = 'scoped memory for tpu_custom_call.1']
    #allocation7 [shape = 'u8[73728]{0}', space=vmem, size = 0x12000, scoped, tag = 'input window, operand 3, single buffered']
    #allocation8 [shape = 'u8[524288]{0}', space=vmem, size = 0x80000, scoped, tag = 'input window, operand 7, single buffered']
    #allocation9 [shape = 's32[1]{0}', space=sflag, size = 0x4, scoped, tag = 'scoped memory for tpu_custom_call.1']
    #allocation10 [shape = 'u8[131072]{0}', space=vmem, size = 0x20000, scoped, tag = 'input window, operand 11, single buffered']
    #allocation11 [shape = 'u8[32768]{0}', space=vmem, size = 0x8000, scoped, tag = 'input window, operand 15, single buffered']
    #allocation12 [shape = 's32[1]{0}', space=sflag, size = 0x4, scoped, tag = 'scoped memory for tpu_custom_call.1']
    #allocation13 [shape = 'u8[8192]{0}', space=vmem, size = 0x2000, scoped, tag = 'output window, operand 0, single buffered']
    %22 = vsyncpa [#allocation3], 0
    %23 = vsyncpa [#allocation6], 0
    %24 = vsyncpa [#allocation9], 0
    %25 = vsyncpa [#allocation12], 0
    %26 = vsyncpa [#allocation4], 0
    // Predicated region
    $region2: #{tpu_custom_call.1} parent=1 // pred_check
      _
    $region3: #{tpu_custom_call.1} parent=1 // pred_check_branch
      %28 = sbr.rel (0) target = $region5
    $region4: #{tpu_custom_call.1} parent=1 // pred_region
      _
    $region5: #{tpu_custom_call.1} parent=1 // pred_fallthru
      _
    // Predicated region
    $region6: #{tpu_custom_call.1} parent=1 // pred_check
      _
    $region7: #{tpu_custom_call.1} parent=1 // pred_check_branch
      %30 = sbr.rel (0) target = $region9
    $region8: #{tpu_custom_call.1} parent=1 // pred_region
      %32 = vsyncadd [#allocation3], 0
      %s34 = sshll.u32 %s1, 4
      %s35 = int_to_ptr.hbm [resolvable:$true] %s34
      %s36 = sshll.u32 [#allocation2], 4
      %s37 = int_to_ptr.vmem [resolvable:$true] %s36
      %39 = dma.hbm_to_vmem [thread:$0]  %s35, 16, %s37, [#allocation3]
    $region9: #{tpu_custom_call.1} parent=1 // pred_fallthru
      _
    // Predicated region
    $region10: #{tpu_custom_call.1} parent=1 // pred_check
      _
    $region11: #{tpu_custom_call.1} parent=1 // pred_check_branch
      %41 = sbr.rel (0) target = $region13
    $region12: #{tpu_custom_call.1} parent=1 // pred_region
      %43 = vsyncadd [#allocation6], 0
      %s44 = sshll.u32 %s2, 4
      %s45 = int_to_ptr.hbm [resolvable:$true] %s44
      %s46 = sshll.u32 [#allocation5], 4
      %s47 = int_to_ptr.vmem [resolvable:$true] %s46
      %52 = dma.hbm_to_vmem [thread:$0]  %s45, 2304, %s47, [#allocation6], 256, 256, 16
    $region13: #{tpu_custom_call.1} parent=1 // pred_fallthru
      _
    // Predicated region
    $region14: #{tpu_custom_call.1} parent=1 // pred_check
      _
    $region15: #{tpu_custom_call.1} parent=1 // pred_check_branch
      %54 = sbr.rel (0) target = $region17
    $region16: #{tpu_custom_call.1} parent=1 // pred_region
      %56 = vsyncadd [#allocation6], 0
      %s57 = sshll.u32 %s3, 4
      %s58 = int_to_ptr.hbm [resolvable:$true] %s57
      %s59 = sshll.u32 [#allocation7], 4
      %s60 = int_to_ptr.vmem [resolvable:$true] %s59
      %65 = dma.hbm_to_vmem [thread:$0]  %s58, 2304, %s60, [#allocation6], 256, 256, 16
    $region17: #{tpu_custom_call.1} parent=1 // pred_fallthru
      _
    // Predicated region
    $region18: #{tpu_custom_call.1} parent=1 // pred_check
      _
    $region19: #{tpu_custom_call.1} parent=1 // pred_check_branch
      %67 = sbr.rel (0) target = $region21
    $region20: #{tpu_custom_call.1} parent=1 // pred_region
      _
    $region21: #{tpu_custom_call.1} parent=1 // pred_fallthru
      _
    // Predicated region
    $region22: #{tpu_custom_call.1} parent=1 // pred_check
      _
    $region23: #{tpu_custom_call.1} parent=1 // pred_check_branch
      %69 = sbr.rel (0) target = $region25
    $region24: #{tpu_custom_call.1} parent=1 // pred_region
      _
    $region25: #{tpu_custom_call.1} parent=1 // pred_fallthru
      _
    // Predicated region
    $region26: #{tpu_custom_call.1} parent=1 // pred_check
      _
    $region27: #{tpu_custom_call.1} parent=1 // pred_check_branch
      %71 = sbr.rel (0) target = $region29
    $region28: #{tpu_custom_call.1} parent=1 // pred_region
      _
    $region29: #{tpu_custom_call.1} parent=1 // pred_fallthru
      _
    // Predicated region
    $region30: #{tpu_custom_call.1} parent=1 // pred_check
      _
    $region31: #{tpu_custom_call.1} parent=1 // pred_check_branch
      %73 = sbr.rel (0) target = $region33
    $region32: #{tpu_custom_call.1} parent=1 // pred_region
      %75 = vsyncadd [#allocation9], 0
      %s76 = sshll.u32 %s7, 4
      %s77 = int_to_ptr.hbm [resolvable:$true] %s76
      %s78 = sshll.u32 [#allocation8], 4
      %s79 = int_to_ptr.vmem [resolvable:$true] %s78
      %84 = dma.hbm_to_vmem [thread:$0]  %s77, 16384, %s79, [#allocation9], 256, 256, 16
    $region33: #{tpu_custom_call.1} parent=1 // pred_fallthru
      _
    // Predicated region
    $region34: #{tpu_custom_call.1} parent=1 // pred_check
      _
    $region35: #{tpu_custom_call.1} parent=1 // pred_check_branch
      %86 = sbr.rel (0) target = $region37
    $region36: #{tpu_custom_call.1} parent=1 // pred_region
      _
    $region37: #{tpu_custom_call.1} parent=1 // pred_fallthru
      _
    // Predicated region
    $region38: #{tpu_custom_call.1} parent=1 // pred_check
      _
    $region39: #{tpu_custom_call.1} parent=1 // pred_check_branch
      %88 = sbr.rel (0) target = $region41
    $region40: #{tpu_custom_call.1} parent=1 // pred_region
      _
    $region41: #{tpu_custom_call.1} parent=1 // pred_fallthru
      _
    // Predicated region
    $region42: #{tpu_custom_call.1} parent=1 // pred_check
      _
    $region43: #{tpu_custom_call.1} parent=1 // pred_check_branch
      %90 = sbr.rel (0) target = $region45
    $region44: #{tpu_custom_call.1} parent=1 // pred_region
      _
    $region45: #{tpu_custom_call.1} parent=1 // pred_fallthru
      _
    // Predicated region
    $region46: #{tpu_custom_call.1} parent=1 // pred_check
      _
    $region47: #{tpu_custom_call.1} parent=1 // pred_check_branch
      %92 = sbr.rel (0) target = $region49
    $region48: #{tpu_custom_call.1} parent=1 // pred_region
      %94 = vsyncadd [#allocation9], 0
      %s95 = sshll.u32 %s11, 4
      %s96 = int_to_ptr.hbm [resolvable:$true] %s95
      %s97 = sshll.u32 [#allocation10], 4
      %s98 = int_to_ptr.vmem [resolvable:$true] %s97
      %103 = dma.hbm_to_vmem [thread:$0]  %s96, 4096, %s98, [#allocation9], 64, 64, 4
    $region49: #{tpu_custom_call.1} parent=1 // pred_fallthru
      _
    // Predicated region
    $region50: #{tpu_custom_call.1} parent=1 // pred_check
      _
    $region51: #{tpu_custom_call.1} parent=1 // pred_check_branch
      %105 = sbr.rel (0) target = $region53
    $region52: #{tpu_custom_call.1} parent=1 // pred_region
      _
    $region53: #{tpu_custom_call.1} parent=1 // pred_fallthru
      _
    // Predicated region
    $region54: #{tpu_custom_call.1} parent=1 // pred_check
      _
    $region55: #{tpu_custom_call.1} parent=1 // pred_check_branch
      %107 = sbr.rel (0) target = $region57
    $region56: #{tpu_custom_call.1} parent=1 // pred_region
      _
    $region57: #{tpu_custom_call.1} parent=1 // pred_fallthru
      _
    // Predicated region
    $region58: #{tpu_custom_call.1} parent=1 // pred_check
      _
    $region59: #{tpu_custom_call.1} parent=1 // pred_check_branch
      %109 = sbr.rel (0) target = $region61
    $region60: #{tpu_custom_call.1} parent=1 // pred_region
      _
    $region61: #{tpu_custom_call.1} parent=1 // pred_fallthru
      _
    // Predicated region
    $region62: #{tpu_custom_call.1} parent=1 // pred_check
      _
    $region63: #{tpu_custom_call.1} parent=1 // pred_check_branch
      %111 = sbr.rel (0) target = $region65
    $region64: #{tpu_custom_call.1} parent=1 // pred_region
      %113 = vsyncadd [#allocation12], 0
      %s114 = sshll.u32 %s15, 4
      %s115 = int_to_ptr.hbm [resolvable:$true] %s114
      %s116 = sshll.u32 [#allocation11], 4
      %s117 = int_to_ptr.vmem [resolvable:$true] %s116
      %122 = dma.hbm_to_vmem [thread:$0]  %s115, 1024, %s117, [#allocation12], 64, 64, 4
    $region65: #{tpu_custom_call.1} parent=1 // pred_fallthru
      _
    // Predicated region
    $region66: #{tpu_custom_call.1} parent=1 // pred_check
      _
    $region67: #{tpu_custom_call.1} parent=1 // pred_check_branch
      %124 = sbr.rel (0) target = $region69
    $region68: #{tpu_custom_call.1} parent=1 // pred_region
      _
    $region69: #{tpu_custom_call.1} parent=1 // pred_fallthru
      _
    // Predicated region
    $region70: #{tpu_custom_call.1} parent=1 // pred_check
      _
    $region71: #{tpu_custom_call.1} parent=1 // pred_check_branch
      %126 = sbr.rel (0) target = $region73
    $region72: #{tpu_custom_call.1} parent=1 // pred_region
      %128 = dma.done [#allocation3], 16
    $region73: #{tpu_custom_call.1} parent=1 // pred_fallthru
      _
    // Predicated region
    $region74: #{tpu_custom_call.1} parent=1 // pred_check
      _
    $region75: #{tpu_custom_call.1} parent=1 // pred_check_branch
      %130 = sbr.rel (0) target = $region77
    $region76: #{tpu_custom_call.1} parent=1 // pred_region
      %132 = dma.done [#allocation6], 2304
    $region77: #{tpu_custom_call.1} parent=1 // pred_fallthru
      _
    // Predicated region
    $region78: #{tpu_custom_call.1} parent=1 // pred_check
      _
    $region79: #{tpu_custom_call.1} parent=1 // pred_check_branch
      %134 = sbr.rel (0) target = $region81
    $region80: #{tpu_custom_call.1} parent=1 // pred_region
      %136 = dma.done [#allocation6], 2304
    $region81: #{tpu_custom_call.1} parent=1 // pred_fallthru
      _
    // Predicated region
    $region82: #{tpu_custom_call.1} parent=1 // pred_check
      _
    $region83: #{tpu_custom_call.1} parent=1 // pred_check_branch
      %138 = sbr.rel (0) target = $region85
    $region84: #{tpu_custom_call.1} parent=1 // pred_region
      %140 = dma.done [#allocation9], 16384
    $region85: #{tpu_custom_call.1} parent=1 // pred_fallthru
      _
    // Predicated region
    $region86: #{tpu_custom_call.1} parent=1 // pred_check
      _
    $region87: #{tpu_custom_call.1} parent=1 // pred_check_branch
      %142 = sbr.rel (0) target = $region89
    $region88: #{tpu_custom_call.1} parent=1 // pred_region
      %144 = dma.done [#allocation9], 4096
    $region89: #{tpu_custom_call.1} parent=1 // pred_fallthru
      _
    // Predicated region
    $region90: #{tpu_custom_call.1} parent=1 // pred_check
      _
    $region91: #{tpu_custom_call.1} parent=1 // pred_check_branch
      %146 = sbr.rel (0) target = $region93
    $region92: #{tpu_custom_call.1} parent=1 // pred_region
      %148 = dma.done [#allocation12], 1024
    $region93: #{tpu_custom_call.1} parent=1 // pred_fallthru
      _
    %v150 = vld [vmem:[%s0] sm:$0xff]
    %v151 = vld [vmem:[%s0 + $0x8] sm:$0xff]
    %v152 = vld [vmem:[#allocation2] sm:$0x1]
    %154 = vset.pattern.permute.xlu0 0
    %155 = vperm.xlu0 %154, %v150
    %v156 = vpop.permute.xlu0 %155
    %159 = vset.pattern.permute.xlu0 0
    %160 = vperm.xlu0 %159, %v151
    %v161 = vpop.permute.xlu0 %160
    %v164 = vperm.slane %v152, 0
    %v166 = vmul.f32 %v156, %v164
    %v167 = vmul.f32 %v161, %v164
    %168 = vset.pattern.permute.xlu0 1
    %169 = vperm.xlu0 %168, %v150
    %v170 = vpop.permute.xlu0 %169
    %172 = vset.pattern.permute.xlu0 1
    %173 = vperm.xlu0 %172, %v151
    %v174 = vpop.permute.xlu0 %173
    %v176 = vmul.f32 %v170, %v164
    %v177 = vmul.f32 %v174, %v164
    %178 = vset.pattern.permute.xlu0 2
    %179 = vperm.xlu0 %178, %v150
    %v180 = vpop.permute.xlu0 %179
    %182 = vset.pattern.permute.xlu0 2
    %183 = vperm.xlu0 %182, %v151
    %v184 = vpop.permute.xlu0 %183
    %v186 = vmul.f32 %v180, %v164
    %v187 = vmul.f32 %v184, %v164
    %188 = vset.pattern.permute.xlu0 3
    %189 = vperm.xlu0 %188, %v150
    %v190 = vpop.permute.xlu0 %189
    %192 = vset.pattern.permute.xlu0 3
    %193 = vperm.xlu0 %192, %v151
    %v194 = vpop.permute.xlu0 %193
    %v196 = vmul.f32 %v190, %v164
    %v197 = vmul.f32 %v194, %v164
    %198 = vset.pattern.permute.xlu0 4
    %199 = vperm.xlu0 %198, %v150
    %v200 = vpop.permute.xlu0 %199
    %202 = vset.pattern.permute.xlu0 4
    %203 = vperm.xlu0 %202, %v151
    %v204 = vpop.permute.xlu0 %203
    %v206 = vmul.f32 %v200, %v164
    %v207 = vmul.f32 %v204, %v164
    %208 = vset.pattern.permute.xlu0 5
    %209 = vperm.xlu0 %208, %v150
    %v210 = vpop.permute.xlu0 %209
    %212 = vset.pattern.permute.xlu0 5
    %213 = vperm.xlu0 %212, %v151
    %v214 = vpop.permute.xlu0 %213
    %v216 = vmul.f32 %v210, %v164
    %v217 = vmul.f32 %v214, %v164
    %218 = vset.pattern.permute.xlu0 6
    %219 = vperm.xlu0 %218, %v150
    %v220 = vpop.permute.xlu0 %219
    %222 = vset.pattern.permute.xlu0 6
    %223 = vperm.xlu0 %222, %v151
    %v224 = vpop.permute.xlu0 %223
    %v226 = vmul.f32 %v220, %v164
    %v227 = vmul.f32 %v224, %v164
    %230 = vrot.lane.b32.xlu0 %v176, 10
    %v231 = vpop.permute.xlu0 %230
    %232 = vrot.lane.b32.xlu0 %v177, 10
    %v233 = vpop.permute.xlu0 %232
    %238 = vrot.lane.b32.xlu0 %v186, 20
    %v239 = vpop.permute.xlu0 %238
    %240 = vrot.lane.b32.xlu0 %v187, 20
    %v241 = vpop.permute.xlu0 %240
    %246 = vrot.lane.b32.xlu0 %v196, 30
    %v247 = vpop.permute.xlu0 %246
    %248 = vrot.lane.b32.xlu0 %v197, 30
    %v249 = vpop.permute.xlu0 %248
    %254 = vrot.lane.b32.xlu0 %v206, 40
    %v255 = vpop.permute.xlu0 %254
    %256 = vrot.lane.b32.xlu0 %v207, 40
    %v257 = vpop.permute.xlu0 %256
    %262 = vrot.lane.b32.xlu0 %v216, 50
    %v263 = vpop.permute.xlu0 %262
    %264 = vrot.lane.b32.xlu0 %v217, 50
    %v265 = vpop.permute.xlu0 %264
    %270 = vrot.lane.b32.xlu0 %v226, 60
    %v271 = vpop.permute.xlu0 %270
    %272 = vrot.lane.b32.xlu0 %v227, 60
    %v273 = vpop.permute.xlu0 %272
    %vm276 = vcmask 80896
    %v277 = vsel %vm276, %v166, %v231
    %v278 = vsel %vm276, %v167, %v233
    %vm279 = vcmask 162816
    %v280 = vsel %vm279, %v277, %v239
    %v281 = vsel %vm279, %v278, %v241
    %vm282 = vcmask 244736
    %v283 = vsel %vm282, %v280, %v247
    %v284 = vsel %vm282, %v281, %v249
    %vm285 = vcmask 326656
    %v286 = vsel %vm285, %v283, %v255
    %v287 = vsel %vm285, %v284, %v257
    %vm288 = vcmask 408576
    %v289 = vsel %vm288, %v286, %v263
    %v290 = vsel %vm288, %v287, %v265
    %vm291 = vcmask 490496
    %v292 = vsel %vm291, %v289, %v271
    %v293 = vsel %vm291, %v290, %v273
    %v294 = vand.u32 2147483647, %v292
    %vm295 = vcmp.le.f32.partialorder %v294, 0.7853982
    %vm296 = vcmp.lt.s32.totalorder %v292, 0
    %v297 = vand.u32 %v292, 2139095040
    %v298 = vshrl.u32 %v297, 23
    %v299 = vsub.s32 %v298, 127
    %v300 = vand.u32 2147483647, %v292
    %v301 = vand.u32 %v300, 8388607
    %v302 = vor.u32 %v301, 8388608
    %v303 = vsub.s32 0, %v302
    %v304 = vadd.s32 %v299, 1
    %vm305 = vcmp.gt.s32.totalorder %v304, 0
    %v306 = vsel %vm305, %v304, 0
    %v307 = vshrl.u32 %v306, 5
    %v308 = vand.u32 %v306, 31
    %v309 = vsub.s32 32, %v308
    %v310 = vshrl.u32 683565275, %v309
    %v311 = vshll.u32 683565275, %v308
    %v312 = vshrl.u32 2475754826, %v309
    %v313 = vor.u32 %v311, %v312
    %v314 = vshll.u32 2475754826, %v308
    %v315 = vshrl.u32 2131351028, %v309
    %v316 = vor.u32 %v314, %v315
    %v317 = vshll.u32 2131351028, %v308
    %v318 = vshrl.u32 2102212464, %v309
    %v319 = vor.u32 %v317, %v318
    %v320 = vshll.u32 2102212464, %v308
    %v321 = vshrl.u32 920167782, %v309
    %v322 = vor.u32 %v320, %v321
    %v323 = vshll.u32 920167782, %v308
    %v324 = vshrl.u32 1326507024, %v309
    %v325 = vor.u32 %v323, %v324
    %vm326 = vcmp.lt.s32.totalorder %v307, 1
    %vm327 = vcmp.lt.s32.totalorder %v307, 2
    %vm328 = vcmp.lt.s32.totalorder %v307, 3
    %vm329 = vcmp.lt.s32.totalorder %v307, 4
    %v330 = vsel %vm326, %v310, %v313
    %v331 = vsel %vm329, %v319, 2102212464
    %v332 = vsel %vm328, %v316, %v331
    %v333 = vsel %vm327, %v330, %v332
    %v334 = vsel %vm326, %v313, %v316
    %v335 = vsel %vm329, %v322, 920167782
    %v336 = vsel %vm328, %v319, %v335
    %v337 = vsel %vm327, %v334, %v336
    %v338 = vsel %vm326, %v316, %v319
    %v339 = vsel %vm329, %v325, 1326507024
    %v340 = vsel %vm328, %v322, %v339
    %v341 = vsel %vm327, %v338, %v340
    %v342 = vshll.u32 %v302, 8
    %v343 = vand.u32 %v342, 65535
    %v344 = vshrl.u32 %v342, 16
    %v345 = vand.u32 %v341, 65535
    %v346 = vshrl.u32 %v341, 16
    %v347 = vmul.u32 %v343, %v345
    %v348 = vmul.u32 %v343, %v346
    %v349 = vmul.u32 %v344, %v345
    %v350 = vmul.u32 %v344, %v346
    %v351 = vshll.u32 %v348, 16
    %v352 = vshrl.u32 %v348, 16
    %v353 = vshll.u32 %v349, 16
    %v354 = vshrl.u32 %v349, 16
    %vm355 = vc.u32 %v347, %v351
    %v356 = vsel %vm355, 1, 0
    %v357 = vadd.s32 %v347, %v351
    %v358 = vadd.s32 %v350, %v356
    %vm359 = vc.u32 %v357, %v353
    %v360 = vsel %vm359, 1, 0
    %v361 = vadd.s32 %v357, %v353
    %v362 = vadd.s32 %v358, %v360
    %v363 = vadd.s32 %v362, %v352
    %v364 = vadd.s32 %v363, %v354
    %v365 = vand.u32 %v342, 65535
    %v366 = vshrl.u32 %v342, 16
    %v367 = vand.u32 %v337, 65535
    %v368 = vshrl.u32 %v337, 16
    %v369 = vmul.u32 %v365, %v367
    %v370 = vmul.u32 %v365, %v368
    %v371 = vmul.u32 %v366, %v367
    %v372 = vmul.u32 %v366, %v368
    %v373 = vshll.u32 %v370, 16
    %v374 = vshrl.u32 %v370, 16
    %v375 = vshll.u32 %v371, 16
    %v376 = vshrl.u32 %v371, 16
    %vm377 = vc.u32 %v369, %v373
    %v378 = vsel %vm377, 1, 0
    %v379 = vadd.s32 %v369, %v373
    %v380 = vadd.s32 %v372, %v378
    %vm381 = vc.u32 %v379, %v375
    %v382 = vsel %vm381, 1, 0
    %v383 = vadd.s32 %v379, %v375
    %v384 = vadd.s32 %v380, %v382
    %v385 = vadd.s32 %v384, %v374
    %v386 = vadd.s32 %v385, %v376
    %v387 = vmul.u32 %v342, %v333
    %v388 = vadd.s32 %v364, %v383
    %vm389 = vc.u32 %v364, %v383
    %v390 = vadd.s32 %v386, 1
    %v391 = vsel %vm389, %v390, %v386
    %v392 = vadd.s32 %v387, %v391
    %v393 = vadd.s32 %v392, 536870912
    %v394 = vshrl.u32 %v393, 30
    %v395 = vshll.u32 %v394, 30
    %v396 = vsub.s32 %v392, %v395
    %vm397 = vcmp.lt.s32.totalorder %v396, 0
    %v398 = vsub.s32 0, %v396
    %v399 = vsel %vm397, %v398, %v396
    %v400 = vclz %v399
    %v401 = vsub.s32 %v400, 2
    %vm402 = vcmp.gt.s32.totalorder 0, %v401
    %v403 = vsel %vm402, 0, %v401
    %v404 = vsub.s32 32, %v403
    %v405 = vshll.u32 %v396, %v403
    %v406 = vshrl.u32 %v388, %v404
    %v407 = vor.u32 %v405, %v406
    %v408 = vsub.s32 4294967266, %v403
    %v409 = vadd.s32 %v408, 127
    %v410 = vshll.u32 %v409, 23
    %v411 = vor.u32 4788187, %v410
    %v412 = vand.u32 2147483647, %v411
    %v414 = vcvt.s32.f32 %v407
    %v415 = vmul.f32 %v414, %v412
    %v416 = vxor.u32 %v415, 2147483648
    %v417 = vsel %vm296, %v416, %v415
    %v418 = vsub.s32 4, %v394
    %v419 = vsel %vm296, %v418, %v394
    %v420 = vsel %vm295, %v292, %v417
    %v421 = vsel %vm295, 0, %v419
    %v422 = vmul.f32 %v420, %v420
    %v423 = vmul.f32 %v422, -0.001358992
    %v424 = vadd.f32 %v423, 0.041655596
    %v425 = vmul.f32 %v422, %v424
    %v426 = vadd.f32 %v425, -0.4999988
    %v427 = vmul.f32 %v422, %v426
    %v428 = vadd.f32 1.0, %v427
    %v429 = vmul.f32 %v420, %v420
    %v430 = vmul.f32 %v429, -0.00019511016
    %v431 = vadd.f32 %v430, 0.008332121
    %v432 = vmul.f32 %v429, %v431
    %v433 = vadd.f32 %v432, -0.16666654
    %v434 = vmul.f32 %v429, %v433
    %v435 = vadd.f32 %v434, 1.0
    %v436 = vmul.f32 %v435, %v420
    %vm437 = vweird.f32 %v292
    %v438 = vadd.s32 %v421, 3
    %v439 = vand.u32 %v438, 3
    %vm440 = vcmp.lt.s32.totalorder %v439, 2
    %vm441 = vcmp.eq.s32.totalorder %v439, 0
    %v442 = vxor.u32 %v436, 2147483648
    %v443 = vsel %vm441, %v428, %v442
    %vm444 = vcmp.eq.s32.totalorder %v439, 2
    %v445 = vxor.u32 %v428, 2147483648
    %v446 = vsel %vm444, %v445, %v436
    %v447 = vsel %vm440, %v443, %v446
    %v448 = vsel %vm437, nan, %v447
    %v449 = vand.u32 2147483647, %v293
    %vm450 = vcmp.le.f32.partialorder %v449, 0.7853982
    %vm451 = vcmp.lt.s32.totalorder %v293, 0
    %v452 = vand.u32 %v293, 2139095040
    %v453 = vshrl.u32 %v452, 23
    %v454 = vsub.s32 %v453, 127
    %v455 = vand.u32 2147483647, %v293
    %v456 = vand.u32 %v455, 8388607
    %v457 = vor.u32 %v456, 8388608
    %v458 = vsub.s32 0, %v457
    %v459 = vadd.s32 %v454, 1
    %vm460 = vcmp.gt.s32.totalorder %v459, 0
    %v461 = vsel %vm460, %v459, 0
    %v462 = vshrl.u32 %v461, 5
    %v463 = vand.u32 %v461, 31
    %v464 = vsub.s32 32, %v463
    %v465 = vshrl.u32 683565275, %v464
    %v466 = vshll.u32 683565275, %v463
    %v467 = vshrl.u32 2475754826, %v464
    %v468 = vor.u32 %v466, %v467
    %v469 = vshll.u32 2475754826, %v463
    %v470 = vshrl.u32 2131351028, %v464
    %v471 = vor.u32 %v469, %v470
    %v472 = vshll.u32 2131351028, %v463
    %v473 = vshrl.u32 2102212464, %v464
    %v474 = vor.u32 %v472, %v473
    %v475 = vshll.u32 2102212464, %v463
    %v476 = vshrl.u32 920167782, %v464
    %v477 = vor.u32 %v475, %v476
    %v478 = vshll.u32 920167782, %v463
    %v479 = vshrl.u32 1326507024, %v464
    %v480 = vor.u32 %v478, %v479
    %vm481 = vcmp.lt.s32.totalorder %v462, 1
    %vm482 = vcmp.lt.s32.totalorder %v462, 2
    %vm483 = vcmp.lt.s32.totalorder %v462, 3
    %vm484 = vcmp.lt.s32.totalorder %v462, 4
    %v485 = vsel %vm481, %v465, %v468
    %v486 = vsel %vm484, %v474, 2102212464
    %v487 = vsel %vm483, %v471, %v486
    %v488 = vsel %vm482, %v485, %v487
    %v489 = vsel %vm481, %v468, %v471
    %v490 = vsel %vm484, %v477, 920167782
    %v491 = vsel %vm483, %v474, %v490
    %v492 = vsel %vm482, %v489, %v491
    %v493 = vsel %vm481, %v471, %v474
    %v494 = vsel %vm484, %v480, 1326507024
    %v495 = vsel %vm483, %v477, %v494
    %v496 = vsel %vm482, %v493, %v495
    %v497 = vshll.u32 %v457, 8
    %v498 = vand.u32 %v497, 65535
    %v499 = vshrl.u32 %v497, 16
    %v500 = vand.u32 %v496, 65535
    %v501 = vshrl.u32 %v496, 16
    %v502 = vmul.u32 %v498, %v500
    %v503 = vmul.u32 %v498, %v501
    %v504 = vmul.u32 %v499, %v500
    %v505 = vmul.u32 %v499, %v501
    %v506 = vshll.u32 %v503, 16
    %v507 = vshrl.u32 %v503, 16
    %v508 = vshll.u32 %v504, 16
    %v509 = vshrl.u32 %v504, 16
    %vm510 = vc.u32 %v502, %v506
    %v511 = vsel %vm510, 1, 0
    %v512 = vadd.s32 %v502, %v506
    %v513 = vadd.s32 %v505, %v511
    %vm514 = vc.u32 %v512, %v508
    %v515 = vsel %vm514, 1, 0
    %v516 = vadd.s32 %v512, %v508
    %v517 = vadd.s32 %v513, %v515
    %v518 = vadd.s32 %v517, %v507
    %v519 = vadd.s32 %v518, %v509
    %v520 = vand.u32 %v497, 65535
    %v521 = vshrl.u32 %v497, 16
    %v522 = vand.u32 %v492, 65535
    %v523 = vshrl.u32 %v492, 16
    %v524 = vmul.u32 %v520, %v522
    %v525 = vmul.u32 %v520, %v523
    %v526 = vmul.u32 %v521, %v522
    %v527 = vmul.u32 %v521, %v523
    %v528 = vshll.u32 %v525, 16
    %v529 = vshrl.u32 %v525, 16
    %v530 = vshll.u32 %v526, 16
    %v531 = vshrl.u32 %v526, 16
    %vm532 = vc.u32 %v524, %v528
    %v533 = vsel %vm532, 1, 0
    %v534 = vadd.s32 %v524, %v528
    %v535 = vadd.s32 %v527, %v533
    %vm536 = vc.u32 %v534, %v530
    %v537 = vsel %vm536, 1, 0
    %v538 = vadd.s32 %v534, %v530
    %v539 = vadd.s32 %v535, %v537
    %v540 = vadd.s32 %v539, %v529
    %v541 = vadd.s32 %v540, %v531
    %v542 = vmul.u32 %v497, %v488
    %v543 = vadd.s32 %v519, %v538
    %vm544 = vc.u32 %v519, %v538
    %v545 = vadd.s32 %v541, 1
    %v546 = vsel %vm544, %v545, %v541
    %v547 = vadd.s32 %v542, %v546
    %v548 = vadd.s32 %v547, 536870912
    %v549 = vshrl.u32 %v548, 30
    %v550 = vshll.u32 %v549, 30
    %v551 = vsub.s32 %v547, %v550
    %vm552 = vcmp.lt.s32.totalorder %v551, 0
    %v553 = vsub.s32 0, %v551
    %v554 = vsel %vm552, %v553, %v551
    %v555 = vclz %v554
    %v556 = vsub.s32 %v555, 2
    %vm557 = vcmp.gt.s32.totalorder 0, %v556
    %v558 = vsel %vm557, 0, %v556
    %v559 = vsub.s32 32, %v558
    %v560 = vshll.u32 %v551, %v558
    %v561 = vshrl.u32 %v543, %v559
    %v562 = vor.u32 %v560, %v561
    %v563 = vsub.s32 4294967266, %v558
    %v564 = vadd.s32 %v563, 127
    %v565 = vshll.u32 %v564, 23
    %v566 = vor.u32 4788187, %v565
    %v567 = vand.u32 2147483647, %v566
    %v569 = vcvt.s32.f32 %v562
    %v570 = vmul.f32 %v569, %v567
    %v571 = vxor.u32 %v570, 2147483648
    %v572 = vsel %vm451, %v571, %v570
    %v573 = vsub.s32 4, %v549
    %v574 = vsel %vm451, %v573, %v549
    %v575 = vsel %vm450, %v293, %v572
    %v576 = vsel %vm450, 0, %v574
    %v577 = vmul.f32 %v575, %v575
    %v578 = vmul.f32 %v577, -0.001358992
    %v579 = vadd.f32 %v578, 0.041655596
    %v580 = vmul.f32 %v577, %v579
    %v581 = vadd.f32 %v580, -0.4999988
    %v582 = vmul.f32 %v577, %v581
    %v583 = vadd.f32 1.0, %v582
    %v584 = vmul.f32 %v575, %v575
    %v585 = vmul.f32 %v584, -0.00019511016
    %v586 = vadd.f32 %v585, 0.008332121
    %v587 = vmul.f32 %v584, %v586
    %v588 = vadd.f32 %v587, -0.16666654
    %v589 = vmul.f32 %v584, %v588
    %v590 = vadd.f32 %v589, 1.0
    %v591 = vmul.f32 %v590, %v575
    %vm592 = vweird.f32 %v293
    %v593 = vadd.s32 %v576, 3
    %v594 = vand.u32 %v593, 3
    %vm595 = vcmp.lt.s32.totalorder %v594, 2
    %vm596 = vcmp.eq.s32.totalorder %v594, 0
    %v597 = vxor.u32 %v591, 2147483648
    %v598 = vsel %vm596, %v583, %v597
    %vm599 = vcmp.eq.s32.totalorder %v594, 2
    %v600 = vxor.u32 %v583, 2147483648
    %v601 = vsel %vm599, %v600, %v591
    %v602 = vsel %vm595, %v598, %v601
    %v603 = vsel %vm592, nan, %v602
    %v604 = vand.u32 2147483647, %v292
    %vm605 = vcmp.le.f32.partialorder %v604, 0.7853982
    %vm606 = vcmp.lt.s32.totalorder %v292, 0
    %v607 = vand.u32 %v292, 2139095040
    %v608 = vshrl.u32 %v607, 23
    %v609 = vsub.s32 %v608, 127
    %v610 = vand.u32 2147483647, %v292
    %v611 = vand.u32 %v610, 8388607
    %v612 = vor.u32 %v611, 8388608
    %v613 = vsub.s32 0, %v612
    %v614 = vadd.s32 %v609, 1
    %vm615 = vcmp.gt.s32.totalorder %v614, 0
    %v616 = vsel %vm615, %v614, 0
    %v617 = vshrl.u32 %v616, 5
    %v618 = vand.u32 %v616, 31
    %v619 = vsub.s32 32, %v618
    %v620 = vshrl.u32 683565275, %v619
    %v621 = vshll.u32 683565275, %v618
    %v622 = vshrl.u32 2475754826, %v619
    %v623 = vor.u32 %v621, %v622
    %v624 = vshll.u32 2475754826, %v618
    %v625 = vshrl.u32 2131351028, %v619
    %v626 = vor.u32 %v624, %v625
    %v627 = vshll.u32 2131351028, %v618
    %v628 = vshrl.u32 2102212464, %v619
    %v629 = vor.u32 %v627, %v628
    %v630 = vshll.u32 2102212464, %v618
    %v631 = vshrl.u32 920167782, %v619
    %v632 = vor.u32 %v630, %v631
    %v633 = vshll.u32 920167782, %v618
    %v634 = vshrl.u32 1326507024, %v619
    %v635 = vor.u32 %v633, %v634
    %vm636 = vcmp.lt.s32.totalorder %v617, 1
    %vm637 = vcmp.lt.s32.totalorder %v617, 2
    %vm638 = vcmp.lt.s32.totalorder %v617, 3
    %vm639 = vcmp.lt.s32.totalorder %v617, 4
    %v640 = vsel %vm636, %v620, %v623
    %v641 = vsel %vm639, %v629, 2102212464
    %v642 = vsel %vm638, %v626, %v641
    %v643 = vsel %vm637, %v640, %v642
    %v644 = vsel %vm636, %v623, %v626
    %v645 = vsel %vm639, %v632, 920167782
    %v646 = vsel %vm638, %v629, %v645
    %v647 = vsel %vm637, %v644, %v646
    %v648 = vsel %vm636, %v626, %v629
    %v649 = vsel %vm639, %v635, 1326507024
    %v650 = vsel %vm638, %v632, %v649
    %v651 = vsel %vm637, %v648, %v650
    %v652 = vshll.u32 %v612, 8
    %v653 = vand.u32 %v652, 65535
    %v654 = vshrl.u32 %v652, 16
    %v655 = vand.u32 %v651, 65535
    %v656 = vshrl.u32 %v651, 16
    %v657 = vmul.u32 %v653, %v655
    %v658 = vmul.u32 %v653, %v656
    %v659 = vmul.u32 %v654, %v655
    %v660 = vmul.u32 %v654, %v656
    %v661 = vshll.u32 %v658, 16
    %v662 = vshrl.u32 %v658, 16
    %v663 = vshll.u32 %v659, 16
    %v664 = vshrl.u32 %v659, 16
    %vm665 = vc.u32 %v657, %v661
    %v666 = vsel %vm665, 1, 0
    %v667 = vadd.s32 %v657, %v661
    %v668 = vadd.s32 %v660, %v666
    %vm669 = vc.u32 %v667, %v663
    %v670 = vsel %vm669, 1, 0
    %v671 = vadd.s32 %v667, %v663
    %v672 = vadd.s32 %v668, %v670
    %v673 = vadd.s32 %v672, %v662
    %v674 = vadd.s32 %v673, %v664
    %v675 = vand.u32 %v652, 65535
    %v676 = vshrl.u32 %v652, 16
    %v677 = vand.u32 %v647, 65535
    %v678 = vshrl.u32 %v647, 16
    %v679 = vmul.u32 %v675, %v677
    %v680 = vmul.u32 %v675, %v678
    %v681 = vmul.u32 %v676, %v677
    %v682 = vmul.u32 %v676, %v678
    %v683 = vshll.u32 %v680, 16
    %v684 = vshrl.u32 %v680, 16
    %v685 = vshll.u32 %v681, 16
    %v686 = vshrl.u32 %v681, 16
    %vm687 = vc.u32 %v679, %v683
    %v688 = vsel %vm687, 1, 0
    %v689 = vadd.s32 %v679, %v683
    %v690 = vadd.s32 %v682, %v688
    %vm691 = vc.u32 %v689, %v685
    %v692 = vsel %vm691, 1, 0
    %v693 = vadd.s32 %v689, %v685
    %v694 = vadd.s32 %v690, %v692
    %v695 = vadd.s32 %v694, %v684
    %v696 = vadd.s32 %v695, %v686
    %v697 = vmul.u32 %v652, %v643
    %v698 = vadd.s32 %v674, %v693
    %vm699 = vc.u32 %v674, %v693
    %v700 = vadd.s32 %v696, 1
    %v701 = vsel %vm699, %v700, %v696
    %v702 = vadd.s32 %v697, %v701
    %v703 = vadd.s32 %v702, 536870912
    %v704 = vshrl.u32 %v703, 30
    %v705 = vshll.u32 %v704, 30
    %v706 = vsub.s32 %v702, %v705
    %vm707 = vcmp.lt.s32.totalorder %v706, 0
    %v708 = vsub.s32 0, %v706
    %v709 = vsel %vm707, %v708, %v706
    %v710 = vclz %v709
    %v711 = vsub.s32 %v710, 2
    %vm712 = vcmp.gt.s32.totalorder 0, %v711
    %v713 = vsel %vm712, 0, %v711
    %v714 = vsub.s32 32, %v713
    %v715 = vshll.u32 %v706, %v713
    %v716 = vshrl.u32 %v698, %v714
    %v717 = vor.u32 %v715, %v716
    %v718 = vsub.s32 4294967266, %v713
    %v719 = vadd.s32 %v718, 127
    %v720 = vshll.u32 %v719, 23
    %v721 = vor.u32 4788187, %v720
    %v722 = vand.u32 2147483647, %v721
    %v724 = vcvt.s32.f32 %v717
    %v725 = vmul.f32 %v724, %v722
    %v726 = vxor.u32 %v725, 2147483648
    %v727 = vsel %vm606, %v726, %v725
    %v728 = vsub.s32 4, %v704
    %v729 = vsel %vm606, %v728, %v704
    %v730 = vsel %vm605, %v292, %v727
    %v731 = vsel %vm605, 0, %v729
    %v732 = vmul.f32 %v730, %v730
    %v733 = vmul.f32 %v732, -0.001358992
    %v734 = vadd.f32 %v733, 0.041655596
    %v735 = vmul.f32 %v732, %v734
    %v736 = vadd.f32 %v735, -0.4999988
    %v737 = vmul.f32 %v732, %v736
    %v738 = vadd.f32 1.0, %v737
    %v739 = vmul.f32 %v730, %v730
    %v740 = vmul.f32 %v739, -0.00019511016
    %v741 = vadd.f32 %v740, 0.008332121
    %v742 = vmul.f32 %v739, %v741
    %v743 = vadd.f32 %v742, -0.16666654
    %v744 = vmul.f32 %v739, %v743
    %v745 = vadd.f32 %v744, 1.0
    %v746 = vmul.f32 %v745, %v730
    %vm747 = vweird.f32 %v292
    %v748 = vand.u32 %v731, 3
    %vm749 = vcmp.lt.s32.totalorder %v748, 2
    %vm750 = vcmp.eq.s32.totalorder %v748, 0
    %v751 = vxor.u32 %v746, 2147483648
    %v752 = vsel %vm750, %v738, %v751
    %vm753 = vcmp.eq.s32.totalorder %v748, 2
    %v754 = vxor.u32 %v738, 2147483648
    %v755 = vsel %vm753, %v754, %v746
    %v756 = vsel %vm749, %v752, %v755
    %v757 = vsel %vm747, nan, %v756
    %v758 = vand.u32 2147483647, %v293
    %vm759 = vcmp.le.f32.partialorder %v758, 0.7853982
    %vm760 = vcmp.lt.s32.totalorder %v293, 0
    %v761 = vand.u32 %v293, 2139095040
    %v762 = vshrl.u32 %v761, 23
    %v763 = vsub.s32 %v762, 127
    %v764 = vand.u32 2147483647, %v293
    %v765 = vand.u32 %v764, 8388607
    %v766 = vor.u32 %v765, 8388608
    %v767 = vsub.s32 0, %v766
    %v768 = vadd.s32 %v763, 1
    %vm769 = vcmp.gt.s32.totalorder %v768, 0
    %v770 = vsel %vm769, %v768, 0
    %v771 = vshrl.u32 %v770, 5
    %v772 = vand.u32 %v770, 31
    %v773 = vsub.s32 32, %v772
    %v774 = vshrl.u32 683565275, %v773
    %v775 = vshll.u32 683565275, %v772
    %v776 = vshrl.u32 2475754826, %v773
    %v777 = vor.u32 %v775, %v776
    %v778 = vshll.u32 2475754826, %v772
    %v779 = vshrl.u32 2131351028, %v773
    %v780 = vor.u32 %v778, %v779
    %v781 = vshll.u32 2131351028, %v772
    %v782 = vshrl.u32 2102212464, %v773
    %v783 = vor.u32 %v781, %v782
    %v784 = vshll.u32 2102212464, %v772
    %v785 = vshrl.u32 920167782, %v773
    %v786 = vor.u32 %v784, %v785
    %v787 = vshll.u32 920167782, %v772
    %v788 = vshrl.u32 1326507024, %v773
    %v789 = vor.u32 %v787, %v788
    %vm790 = vcmp.lt.s32.totalorder %v771, 1
    %vm791 = vcmp.lt.s32.totalorder %v771, 2
    %vm792 = vcmp.lt.s32.totalorder %v771, 3
    %vm793 = vcmp.lt.s32.totalorder %v771, 4
    %v794 = vsel %vm790, %v774, %v777
    %v795 = vsel %vm793, %v783, 2102212464
    %v796 = vsel %vm792, %v780, %v795
    %v797 = vsel %vm791, %v794, %v796
    %v798 = vsel %vm790, %v777, %v780
    %v799 = vsel %vm793, %v786, 920167782
    %v800 = vsel %vm792, %v783, %v799
    %v801 = vsel %vm791, %v798, %v800
    %v802 = vsel %vm790, %v780, %v783
    %v803 = vsel %vm793, %v789, 1326507024
    %v804 = vsel %vm792, %v786, %v803
    %v805 = vsel %vm791, %v802, %v804
    %v806 = vshll.u32 %v766, 8
    %v807 = vand.u32 %v806, 65535
    %v808 = vshrl.u32 %v806, 16
    %v809 = vand.u32 %v805, 65535
    %v810 = vshrl.u32 %v805, 16
    %v811 = vmul.u32 %v807, %v809
    %v812 = vmul.u32 %v807, %v810
    %v813 = vmul.u32 %v808, %v809
    %v814 = vmul.u32 %v808, %v810
    %v815 = vshll.u32 %v812, 16
    %v816 = vshrl.u32 %v812, 16
    %v817 = vshll.u32 %v813, 16
    %v818 = vshrl.u32 %v813, 16
    %vm819 = vc.u32 %v811, %v815
    %v820 = vsel %vm819, 1, 0
    %v821 = vadd.s32 %v811, %v815
    %v822 = vadd.s32 %v814, %v820
    %vm823 = vc.u32 %v821, %v817
    %v824 = vsel %vm823, 1, 0
    %v825 = vadd.s32 %v821, %v817
    %v826 = vadd.s32 %v822, %v824
    %v827 = vadd.s32 %v826, %v816
    %v828 = vadd.s32 %v827, %v818
    %v829 = vand.u32 %v806, 65535
    %v830 = vshrl.u32 %v806, 16
    %v831 = vand.u32 %v801, 65535
    %v832 = vshrl.u32 %v801, 16
    %v833 = vmul.u32 %v829, %v831
    %v834 = vmul.u32 %v829, %v832
    %v835 = vmul.u32 %v830, %v831
    %v836 = vmul.u32 %v830, %v832
    %v837 = vshll.u32 %v834, 16
    %v838 = vshrl.u32 %v834, 16
    %v839 = vshll.u32 %v835, 16
    %v840 = vshrl.u32 %v835, 16
    %vm841 = vc.u32 %v833, %v837
    %v842 = vsel %vm841, 1, 0
    %v843 = vadd.s32 %v833, %v837
    %v844 = vadd.s32 %v836, %v842
    %vm845 = vc.u32 %v843, %v839
    %v846 = vsel %vm845, 1, 0
    %v847 = vadd.s32 %v843, %v839
    %v848 = vadd.s32 %v844, %v846
    %v849 = vadd.s32 %v848, %v838
    %v850 = vadd.s32 %v849, %v840
    %v851 = vmul.u32 %v806, %v797
    %v852 = vadd.s32 %v828, %v847
    %vm853 = vc.u32 %v828, %v847
    %v854 = vadd.s32 %v850, 1
    %v855 = vsel %vm853, %v854, %v850
    %v856 = vadd.s32 %v851, %v855
    %v857 = vadd.s32 %v856, 536870912
    %v858 = vshrl.u32 %v857, 30
    %v859 = vshll.u32 %v858, 30
    %v860 = vsub.s32 %v856, %v859
    %vm861 = vcmp.lt.s32.totalorder %v860, 0
    %v862 = vsub.s32 0, %v860
    %v863 = vsel %vm861, %v862, %v860
    %v864 = vclz %v863
    %v865 = vsub.s32 %v864, 2
    %vm866 = vcmp.gt.s32.totalorder 0, %v865
    %v867 = vsel %vm866, 0, %v865
    %v868 = vsub.s32 32, %v867
    %v869 = vshll.u32 %v860, %v867
    %v870 = vshrl.u32 %v852, %v868
    %v871 = vor.u32 %v869, %v870
    %v872 = vsub.s32 4294967266, %v867
    %v873 = vadd.s32 %v872, 127
    %v874 = vshll.u32 %v873, 23
    %v875 = vor.u32 4788187, %v874
    %v876 = vand.u32 2147483647, %v875
    %v878 = vcvt.s32.f32 %v871
    %v879 = vmul.f32 %v878, %v876
    %v880 = vxor.u32 %v879, 2147483648
    %v881 = vsel %vm760, %v880, %v879
    %v882 = vsub.s32 4, %v858
    %v883 = vsel %vm760, %v882, %v858
    %v884 = vsel %vm759, %v293, %v881
    %v885 = vsel %vm759, 0, %v883
    %v886 = vmul.f32 %v884, %v884
    %v887 = vmul.f32 %v886, -0.001358992
    %v888 = vadd.f32 %v887, 0.041655596
    %v889 = vmul.f32 %v886, %v888
    %v890 = vadd.f32 %v889, -0.4999988
    %v891 = vmul.f32 %v886, %v890
    %v892 = vadd.f32 1.0, %v891
    %v893 = vmul.f32 %v884, %v884
    %v894 = vmul.f32 %v893, -0.00019511016
    %v895 = vadd.f32 %v894, 0.008332121
    %v896 = vmul.f32 %v893, %v895
    %v897 = vadd.f32 %v896, -0.16666654
    %v898 = vmul.f32 %v893, %v897
    %v899 = vadd.f32 %v898, 1.0
    %v900 = vmul.f32 %v899, %v884
    %vm901 = vweird.f32 %v293
    %v902 = vand.u32 %v885, 3
    %vm903 = vcmp.lt.s32.totalorder %v902, 2
    %vm904 = vcmp.eq.s32.totalorder %v902, 0
    %v905 = vxor.u32 %v900, 2147483648
    %v906 = vsel %vm904, %v892, %v905
    %vm907 = vcmp.eq.s32.totalorder %v902, 2
    %v908 = vxor.u32 %v892, 2147483648
    %v909 = vsel %vm907, %v908, %v900
    %v910 = vsel %vm903, %v906, %v909
    %v911 = vsel %vm901, nan, %v910
    %v912 = vld [vmem:[#allocation5] sm:$0xff]
    %v913 = vld [vmem:[#allocation5 + $0x8] sm:$0xff]
    %v914 = vld [vmem:[#allocation5 + $0x10] sm:$0xff]
    %v915 = vld [vmem:[#allocation5 + $0x18] sm:$0xff]
    %v916 = vld [vmem:[#allocation5 + $0x20] sm:$0xff]
    %v917 = vld [vmem:[#allocation5 + $0x28] sm:$0xff]
    %v918 = vld [vmem:[#allocation5 + $0x30] sm:$0xff]
    %v919 = vld [vmem:[#allocation5 + $0x38] sm:$0xff]
    %v920 = vld [vmem:[#allocation5 + $0x40] sm:$0xff]
    %v921 = vld [vmem:[#allocation5 + $0x48] sm:$0xff]
    %v922 = vld [vmem:[#allocation5 + $0x50] sm:$0xff]
    %v923 = vld [vmem:[#allocation5 + $0x58] sm:$0xff]
    %v924 = vld [vmem:[#allocation5 + $0x60] sm:$0xff]
    %v925 = vld [vmem:[#allocation5 + $0x68] sm:$0xff]
    %v926 = vld [vmem:[#allocation5 + $0x70] sm:$0xff]
    %v927 = vld [vmem:[#allocation5 + $0x78] sm:$0xff]
    %v928 = vld [vmem:[#allocation5 + $0x80] sm:$0x77]
    %v929 = vld [vmem:[#allocation5 + $0x88] sm:$0x77]
    %v930 = vld [vmem:[#allocation7] sm:$0xff]
    %v931 = vld [vmem:[#allocation7 + $0x8] sm:$0xff]
    %v932 = vld [vmem:[#allocation7 + $0x10] sm:$0xff]
    %v933 = vld [vmem:[#allocation7 + $0x18] sm:$0xff]
    %v934 = vld [vmem:[#allocation7 + $0x20] sm:$0xff]
    %v935 = vld [vmem:[#allocation7 + $0x28] sm:$0xff]
    %v936 = vld [vmem:[#allocation7 + $0x30] sm:$0xff]
    %v937 = vld [vmem:[#allocation7 + $0x38] sm:$0xff]
    %v938 = vld [vmem:[#allocation7 + $0x40] sm:$0xff]
    %v939 = vld [vmem:[#allocation7 + $0x48] sm:$0xff]
    %v940 = vld [vmem:[#allocation7 + $0x50] sm:$0xff]
    %v941 = vld [vmem:[#allocation7 + $0x58] sm:$0xff]
    %v942 = vld [vmem:[#allocation7 + $0x60] sm:$0xff]
    %v943 = vld [vmem:[#allocation7 + $0x68] sm:$0xff]
    %v944 = vld [vmem:[#allocation7 + $0x70] sm:$0xff]
    %v945 = vld [vmem:[#allocation7 + $0x78] sm:$0xff]
    %v946 = vld [vmem:[#allocation7 + $0x80] sm:$0x77]
    %v947 = vld [vmem:[#allocation7 + $0x88] sm:$0x77]
    %v948 = vld [vmem:[%s4] sm:$0xf]
    %v949 = vld [vmem:[%s5] sm:$0xf]
    %v950 = vld [vmem:[%s6] sm:$0xf]
    %v951 = vld [vmem:[#allocation8] sm:$0xff]
    %v952 = vld [vmem:[#allocation8 + $0x8] sm:$0xff]
    %v953 = vld [vmem:[#allocation8 + $0x10] sm:$0xff]
    %v954 = vld [vmem:[#allocation8 + $0x18] sm:$0xff]
    %v955 = vld [vmem:[#allocation8 + $0x20] sm:$0xff]
    %v956 = vld [vmem:[#allocation8 + $0x28] sm:$0xff]
    %v957 = vld [vmem:[#allocation8 + $0x30] sm:$0xff]
    %v958 = vld [vmem:[#allocation8 + $0x38] sm:$0xff]
    %v959 = vld [vmem:[#allocation8 + $0x40] sm:$0xff]
    %v960 = vld [vmem:[#allocation8 + $0x48] sm:$0xff]
    %v961 = vld [vmem:[#allocation8 + $0x50] sm:$0xff]
    %v962 = vld [vmem:[#allocation8 + $0x58] sm:$0xff]
    %v963 = vld [vmem:[#allocation8 + $0x60] sm:$0xff]
    %v964 = vld [vmem:[#allocation8 + $0x68] sm:$0xff]
    %v965 = vld [vmem:[#allocation8 + $0x70] sm:$0xff]
    %v966 = vld [vmem:[#allocation8 + $0x78] sm:$0xff]
    %v967 = vld [vmem:[#allocation8 + $0x80] sm:$0xff]
    %v968 = vld [vmem:[#allocation8 + $0x88] sm:$0xff]
    %v969 = vld [vmem:[#allocation8 + $0x90] sm:$0xff]
    %v970 = vld [vmem:[#allocation8 + $0x98] sm:$0xff]
    %v971 = vld [vmem:[#allocation8 + $0xa0] sm:$0xff]
    %v972 = vld [vmem:[#allocation8 + $0xa8] sm:$0xff]
    %v973 = vld [vmem:[#allocation8 + $0xb0] sm:$0xff]
    %v974 = vld [vmem:[#allocation8 + $0xb8] sm:$0xff]
    %v975 = vld [vmem:[#allocation8 + $0xc0] sm:$0xff]
    %v976 = vld [vmem:[#allocation8 + $0xc8] sm:$0xff]
    %v977 = vld [vmem:[#allocation8 + $0xd0] sm:$0xff]
    %v978 = vld [vmem:[#allocation8 + $0xd8] sm:$0xff]
    %v979 = vld [vmem:[#allocation8 + $0xe0] sm:$0xff]
    %v980 = vld [vmem:[#allocation8 + $0xe8] sm:$0xff]
    %v981 = vld [vmem:[#allocation8 + $0xf0] sm:$0xff]
    %v982 = vld [vmem:[#allocation8 + $0xf8] sm:$0xff]
    %v983 = vld [vmem:[#allocation8 + $0x100] sm:$0xff]
    %v984 = vld [vmem:[#allocation8 + $0x108] sm:$0xff]
    %v985 = vld [vmem:[#allocation8 + $0x110] sm:$0xff]
    %v986 = vld [vmem:[#allocation8 + $0x118] sm:$0xff]
    %v987 = vld [vmem:[#allocation8 + $0x120] sm:$0xff]
    %v988 = vld [vmem:[#allocation8 + $0x128] sm:$0xff]
    %v989 = vld [vmem:[#allocation8 + $0x130] sm:$0xff]
    %v990 = vld [vmem:[#allocation8 + $0x138] sm:$0xff]
    %v991 = vld [vmem:[#allocation8 + $0x140] sm:$0xff]
    %v992 = vld [vmem:[#allocation8 + $0x148] sm:$0xff]
    %v993 = vld [vmem:[#allocation8 + $0x150] sm:$0xff]
    %v994 = vld [vmem:[#allocation8 + $0x158] sm:$0xff]
    %v995 = vld [vmem:[#allocation8 + $0x160] sm:$0xff]
    %v996 = vld [vmem:[#allocation8 + $0x168] sm:$0xff]
    %v997 = vld [vmem:[#allocation8 + $0x170] sm:$0xff]
    %v998 = vld [vmem:[#allocation8 + $0x178] sm:$0xff]
    %v999 = vld [vmem:[#allocation8 + $0x180] sm:$0xff]
    %v1000 = vld [vmem:[#allocation8 + $0x188] sm:$0xff]
    %v1001 = vld [vmem:[#allocation8 + $0x190] sm:$0xff]
    %v1002 = vld [vmem:[#allocation8 + $0x198] sm:$0xff]
    %v1003 = vld [vmem:[#allocation8 + $0x1a0] sm:$0xff]
    %v1004 = vld [vmem:[#allocation8 + $0x1a8] sm:$0xff]
    %v1005 = vld [vmem:[#allocation8 + $0x1b0] sm:$0xff]
    %v1006 = vld [vmem:[#allocation8 + $0x1b8] sm:$0xff]
    %v1007 = vld [vmem:[#allocation8 + $0x1c0] sm:$0xff]
    %v1008 = vld [vmem:[#allocation8 + $0x1c8] sm:$0xff]
    %v1009 = vld [vmem:[#allocation8 + $0x1d0] sm:$0xff]
    %v1010 = vld [vmem:[#allocation8 + $0x1d8] sm:$0xff]
    %v1011 = vld [vmem:[#allocation8 + $0x1e0] sm:$0xff]
    %v1012 = vld [vmem:[#allocation8 + $0x1e8] sm:$0xff]
    %v1013 = vld [vmem:[#allocation8 + $0x1f0] sm:$0xff]
    %v1014 = vld [vmem:[#allocation8 + $0x1f8] sm:$0xff]
    %v1015 = vld [vmem:[#allocation8 + $0x200] sm:$0xff]
    %v1016 = vld [vmem:[#allocation8 + $0x208] sm:$0xff]
    %v1017 = vld [vmem:[#allocation8 + $0x210] sm:$0xff]
    %v1018 = vld [vmem:[#allocation8 + $0x218] sm:$0xff]
    %v1019 = vld [vmem:[#allocation8 + $0x220] sm:$0xff]
    %v1020 = vld [vmem:[#allocation8 + $0x228] sm:$0xff]
    %v1021 = vld [vmem:[#allocation8 + $0x230] sm:$0xff]
    %v1022 = vld [vmem:[#allocation8 + $0x238] sm:$0xff]
    %v1023 = vld [vmem:[#allocation8 + $0x240] sm:$0xff]
    %v1024 = vld [vmem:[#allocation8 + $0x248] sm:$0xff]
    %v1025 = vld [vmem:[#allocation8 + $0x250] sm:$0xff]
    %v1026 = vld [vmem:[#allocation8 + $0x258] sm:$0xff]
    %v1027 = vld [vmem:[#allocation8 + $0x260] sm:$0xff]
    %v1028 = vld [vmem:[#allocation8 + $0x268] sm:$0xff]
    %v1029 = vld [vmem:[#allocation8 + $0x270] sm:$0xff]
    %v1030 = vld [vmem:[#allocation8 + $0x278] sm:$0xff]
    %v1031 = vld [vmem:[#allocation8 + $0x280] sm:$0xff]
    %v1032 = vld [vmem:[#allocation8 + $0x288] sm:$0xff]
    %v1033 = vld [vmem:[#allocation8 + $0x290] sm:$0xff]
    %v1034 = vld [vmem:[#allocation8 + $0x298] sm:$0xff]
    %v1035 = vld [vmem:[#allocation8 + $0x2a0] sm:$0xff]
    %v1036 = vld [vmem:[#allocation8 + $0x2a8] sm:$0xff]
    %v1037 = vld [vmem:[#allocation8 + $0x2b0] sm:$0xff]
    %v1038 = vld [vmem:[#allocation8 + $0x2b8] sm:$0xff]
    %v1039 = vld [vmem:[#allocation8 + $0x2c0] sm:$0xff]
    %v1040 = vld [vmem:[#allocation8 + $0x2c8] sm:$0xff]
    %v1041 = vld [vmem:[#allocation8 + $0x2d0] sm:$0xff]
    %v1042 = vld [vmem:[#allocation8 + $0x2d8] sm:$0xff]
    %v1043 = vld [vmem:[#allocation8 + $0x2e0] sm:$0xff]
    %v1044 = vld [vmem:[#allocation8 + $0x2e8] sm:$0xff]
    %v1045 = vld [vmem:[#allocation8 + $0x2f0] sm:$0xff]
    %v1046 = vld [vmem:[#allocation8 + $0x2f8] sm:$0xff]
    %v1047 = vld [vmem:[#allocation8 + $0x300] sm:$0xff]
    %v1048 = vld [vmem:[#allocation8 + $0x308] sm:$0xff]
    %v1049 = vld [vmem:[#allocation8 + $0x310] sm:$0xff]
    %v1050 = vld [vmem:[#allocation8 + $0x318] sm:$0xff]
    %v1051 = vld [vmem:[#allocation8 + $0x320] sm:$0xff]
    %v1052 = vld [vmem:[#allocation8 + $0x328] sm:$0xff]
    %v1053 = vld [vmem:[#allocation8 + $0x330] sm:$0xff]
    %v1054 = vld [vmem:[#allocation8 + $0x338] sm:$0xff]
    %v1055 = vld [vmem:[#allocation8 + $0x340] sm:$0xff]
    %v1056 = vld [vmem:[#allocation8 + $0x348] sm:$0xff]
    %v1057 = vld [vmem:[#allocation8 + $0x350] sm:$0xff]
    %v1058 = vld [vmem:[#allocation8 + $0x358] sm:$0xff]
    %v1059 = vld [vmem:[#allocation8 + $0x360] sm:$0xff]
    %v1060 = vld [vmem:[#allocation8 + $0x368] sm:$0xff]
    %v1061 = vld [vmem:[#allocation8 + $0x370] sm:$0xff]
    %v1062 = vld [vmem:[#allocation8 + $0x378] sm:$0xff]
    %v1063 = vld [vmem:[#allocation8 + $0x380] sm:$0xff]
    %v1064 = vld [vmem:[#allocation8 + $0x388] sm:$0xff]
    %v1065 = vld [vmem:[#allocation8 + $0x390] sm:$0xff]
    %v1066 = vld [vmem:[#allocation8 + $0x398] sm:$0xff]
    %v1067 = vld [vmem:[#allocation8 + $0x3a0] sm:$0xff]
    %v1068 = vld [vmem:[#allocation8 + $0x3a8] sm:$0xff]
    %v1069 = vld [vmem:[#allocation8 + $0x3b0] sm:$0xff]
    %v1070 = vld [vmem:[#allocation8 + $0x3b8] sm:$0xff]
    %v1071 = vld [vmem:[#allocation8 + $0x3c0] sm:$0xff]
    %v1072 = vld [vmem:[#allocation8 + $0x3c8] sm:$0xff]
    %v1073 = vld [vmem:[#allocation8 + $0x3d0] sm:$0xff]
    %v1074 = vld [vmem:[#allocation8 + $0x3d8] sm:$0xff]
    %v1075 = vld [vmem:[#allocation8 + $0x3e0] sm:$0xff]
    %v1076 = vld [vmem:[#allocation8 + $0x3e8] sm:$0xff]
    %v1077 = vld [vmem:[#allocation8 + $0x3f0] sm:$0xff]
    %v1078 = vld [vmem:[#allocation8 + $0x3f8] sm:$0xff]
    %v1079 = vld [vmem:[%s8] sm:$0xf]
    %v1080 = vld [vmem:[%s9] sm:$0xf]
    %v1081 = vld [vmem:[%s10] sm:$0xf]
    %v1082 = vld [vmem:[#allocation10] sm:$0xf]
    %v1083 = vld [vmem:[#allocation10 + $0x4] sm:$0xf]
    %v1084 = vld [vmem:[#allocation10 + $0x8] sm:$0xf]
    %v1085 = vld [vmem:[#allocation10 + $0xc] sm:$0xf]
    %v1086 = vld [vmem:[#allocation10 + $0x10] sm:$0xf]
    %v1087 = vld [vmem:[#allocation10 + $0x14] sm:$0xf]
    %v1088 = vld [vmem:[#allocation10 + $0x18] sm:$0xf]
    %v1089 = vld [vmem:[#allocation10 + $0x1c] sm:$0xf]
    %v1090 = vld [vmem:[#allocation10 + $0x20] sm:$0xf]
    %v1091 = vld [vmem:[#allocation10 + $0x24] sm:$0xf]
    %v1092 = vld [vmem:[#allocation10 + $0x28] sm:$0xf]
    %v1093 = vld [vmem:[#allocation10 + $0x2c] sm:$0xf]
    %v1094 = vld [vmem:[#allocation10 + $0x30] sm:$0xf]
    %v1095 = vld [vmem:[#allocation10 + $0x34] sm:$0xf]
    %v1096 = vld [vmem:[#allocation10 + $0x38] sm:$0xf]
    %v1097 = vld [vmem:[#allocation10 + $0x3c] sm:$0xf]
    %v1098 = vld [vmem:[#allocation10 + $0x40] sm:$0xf]
    %v1099 = vld [vmem:[#allocation10 + $0x44] sm:$0xf]
    %v1100 = vld [vmem:[#allocation10 + $0x48] sm:$0xf]
    %v1101 = vld [vmem:[#allocation10 + $0x4c] sm:$0xf]
    %v1102 = vld [vmem:[#allocation10 + $0x50] sm:$0xf]
    %v1103 = vld [vmem:[#allocation10 + $0x54] sm:$0xf]
    %v1104 = vld [vmem:[#allocation10 + $0x58] sm:$0xf]
    %v1105 = vld [vmem:[#allocation10 + $0x5c] sm:$0xf]
    %v1106 = vld [vmem:[#allocation10 + $0x60] sm:$0xf]
    %v1107 = vld [vmem:[#allocation10 + $0x64] sm:$0xf]
    %v1108 = vld [vmem:[#allocation10 + $0x68] sm:$0xf]
    %v1109 = vld [vmem:[#allocation10 + $0x6c] sm:$0xf]
    %v1110 = vld [vmem:[#allocation10 + $0x70] sm:$0xf]
    %v1111 = vld [vmem:[#allocation10 + $0x74] sm:$0xf]
    %v1112 = vld [vmem:[#allocation10 + $0x78] sm:$0xf]
    %v1113 = vld [vmem:[#allocation10 + $0x7c] sm:$0xf]
    %v1114 = vld [vmem:[#allocation10 + $0x80] sm:$0xf]
    %v1115 = vld [vmem:[#allocation10 + $0x84] sm:$0xf]
    %v1116 = vld [vmem:[#allocation10 + $0x88] sm:$0xf]
    %v1117 = vld [vmem:[#allocation10 + $0x8c] sm:$0xf]
    %v1118 = vld [vmem:[#allocation10 + $0x90] sm:$0xf]
    %v1119 = vld [vmem:[#allocation10 + $0x94] sm:$0xf]
    %v1120 = vld [vmem:[#allocation10 + $0x98] sm:$0xf]
    %v1121 = vld [vmem:[#allocation10 + $0x9c] sm:$0xf]
    %v1122 = vld [vmem:[#allocation10 + $0xa0] sm:$0xf]
    %v1123 = vld [vmem:[#allocation10 + $0xa4] sm:$0xf]
    %v1124 = vld [vmem:[#allocation10 + $0xa8] sm:$0xf]
    %v1125 = vld [vmem:[#allocation10 + $0xac] sm:$0xf]
    %v1126 = vld [vmem:[#allocation10 + $0xb0] sm:$0xf]
    %v1127 = vld [vmem:[#allocation10 + $0xb4] sm:$0xf]
    %v1128 = vld [vmem:[#allocation10 + $0xb8] sm:$0xf]
    %v1129 = vld [vmem:[#allocation10 + $0xbc] sm:$0xf]
    %v1130 = vld [vmem:[#allocation10 + $0xc0] sm:$0xf]
    %v1131 = vld [vmem:[#allocation10 + $0xc4] sm:$0xf]
    %v1132 = vld [vmem:[#allocation10 + $0xc8] sm:$0xf]
    %v1133 = vld [vmem:[#allocation10 + $0xcc] sm:$0xf]
    %v1134 = vld [vmem:[#allocation10 + $0xd0] sm:$0xf]
    %v1135 = vld [vmem:[#allocation10 + $0xd4] sm:$0xf]
    %v1136 = vld [vmem:[#allocation10 + $0xd8] sm:$0xf]
    %v1137 = vld [vmem:[#allocation10 + $0xdc] sm:$0xf]
    %v1138 = vld [vmem:[#allocation10 + $0xe0] sm:$0xf]
    %v1139 = vld [vmem:[#allocation10 + $0xe4] sm:$0xf]
    %v1140 = vld [vmem:[#allocation10 + $0xe8] sm:$0xf]
    %v1141 = vld [vmem:[#allocation10 + $0xec] sm:$0xf]
    %v1142 = vld [vmem:[#allocation10 + $0xf0] sm:$0xf]
    %v1143 = vld [vmem:[#allocation10 + $0xf4] sm:$0xf]
    %v1144 = vld [vmem:[#allocation10 + $0xf8] sm:$0xf]
    %v1145 = vld [vmem:[#allocation10 + $0xfc] sm:$0xf]
    %v1146 = vld [vmem:[%s12] sm:$0x1]
    %v1147 = vld [vmem:[%s13] sm:$0x1]
    %v1148 = vld [vmem:[%s14] sm:$0x1]
    %v1149 = vld [vmem:[#allocation11] sm:$0xf]
    %v1150 = vld [vmem:[#allocation11 + $0x4] sm:$0xf]
    %v1151 = vld [vmem:[#allocation11 + $0x8] sm:$0xf]
    %v1152 = vld [vmem:[#allocation11 + $0xc] sm:$0xf]
    %v1153 = vld [vmem:[#allocation11 + $0x10] sm:$0xf]
    %v1154 = vld [vmem:[#allocation11 + $0x14] sm:$0xf]
    %v1155 = vld [vmem:[#allocation11 + $0x18] sm:$0xf]
    %v1156 = vld [vmem:[#allocation11 + $0x1c] sm:$0xf]
    %v1157 = vld [vmem:[#allocation11 + $0x20] sm:$0xf]
    %v1158 = vld [vmem:[#allocation11 + $0x24] sm:$0xf]
    %v1159 = vld [vmem:[#allocation11 + $0x28] sm:$0xf]
    %v1160 = vld [vmem:[#allocation11 + $0x2c] sm:$0xf]
    %v1161 = vld [vmem:[#allocation11 + $0x30] sm:$0xf]
    %v1162 = vld [vmem:[#allocation11 + $0x34] sm:$0xf]
    %v1163 = vld [vmem:[#allocation11 + $0x38] sm:$0xf]
    %v1164 = vld [vmem:[#allocation11 + $0x3c] sm:$0xf]
    %v1165 = vld [vmem:[%s16] sm:$0x1]
    %v1166 = vpack.c.bf16 %v603, %v448
    %v1167 = vpack.c.bf16 %v911, %v757
    %v1186 = vunpack.c.l.b16 %v930
    %v1187 = vunpack.c.h.b16 %v930
    %v1188 = vunpack.c.l.b16 %v931
    %v1189 = vunpack.c.h.b16 %v931
    %v1190 = vunpack.c.l.b16 %v932
    %v1191 = vunpack.c.h.b16 %v932
    %v1192 = vunpack.c.l.b16 %v933
    %v1193 = vunpack.c.h.b16 %v933
    %v1194 = vunpack.c.l.b16 %v934
    %v1195 = vunpack.c.h.b16 %v934
    %v1196 = vunpack.c.l.b16 %v935
    %v1197 = vunpack.c.h.b16 %v935
    %v1198 = vunpack.c.l.b16 %v936
    %v1199 = vunpack.c.h.b16 %v936
    %v1200 = vunpack.c.l.b16 %v937
    %v1201 = vunpack.c.h.b16 %v937
    %v1202 = vunpack.c.l.b16 %v938
    %v1203 = vunpack.c.h.b16 %v938
    %v1204 = vunpack.c.l.b16 %v939
    %v1205 = vunpack.c.h.b16 %v939
    %v1206 = vunpack.c.l.b16 %v940
    %v1207 = vunpack.c.h.b16 %v940
    %v1208 = vunpack.c.l.b16 %v941
    %v1209 = vunpack.c.h.b16 %v941
    %v1210 = vunpack.c.l.b16 %v942
    %v1211 = vunpack.c.h.b16 %v942
    %v1212 = vunpack.c.l.b16 %v943
    %v1213 = vunpack.c.h.b16 %v943
    %v1214 = vunpack.c.l.b16 %v944
    %v1215 = vunpack.c.h.b16 %v944
    %v1216 = vunpack.c.l.b16 %v945
    %v1217 = vunpack.c.h.b16 %v945
    %v1218 = vunpack.c.l.b16 %v946
    %v1219 = vunpack.c.h.b16 %v946
    %v1220 = vunpack.c.l.b16 %v947
    %v1221 = vunpack.c.h.b16 %v947
    %v1222 = vpack.c.b16 %v1190, %v1186
    %v1223 = vpack.c.b16 %v1191, %v1187
    %v1224 = vpack.c.b16 %v1192, %v1188
    %v1225 = vpack.c.b16 %v1193, %v1189
    %v1226 = vpack.c.b16 %v1198, %v1194
    %v1227 = vpack.c.b16 %v1199, %v1195
    %v1228 = vpack.c.b16 %v1200, %v1196
    %v1229 = vpack.c.b16 %v1201, %v1197
    %v1230 = vpack.c.b16 %v1206, %v1202
    %v1231 = vpack.c.b16 %v1207, %v1203
    %v1232 = vpack.c.b16 %v1208, %v1204
    %v1233 = vpack.c.b16 %v1209, %v1205
    %v1234 = vpack.c.b16 %v1214, %v1210
    %v1235 = vpack.c.b16 %v1215, %v1211
    %v1236 = vpack.c.b16 %v1216, %v1212
    %v1237 = vpack.c.b16 %v1217, %v1213
    %v1238 = vpack.c.b16 %v1218, %v1218
    %v1239 = vpack.c.b16 %v1219, %v1219
    %v1240 = vpack.c.b16 %v1220, %v1220
    %v1241 = vpack.c.b16 %v1221, %v1221
    %vm1258 = vcmask 572416
    %v1260 = vsel %vm1258, %v1167, 0
    %vm1262 = vcmask 1042432
    %v1264 = vsel %vm1262, %v1238, 0
    %v1267 = vsel %vm1262, %v1239, 0
    %v1270 = vsel %vm1262, %v1240, 0
    %v1273 = vsel %vm1262, %v1241, 0
    %1275 = vmatpush.bf16.msra.mxu0 0
    %1276 = vmatpush.bf16.msra.mxu0 0
    %1277 = vmatpush.bf16.msra.mxu0 0
    %1278 = vmatpush.bf16.msra.mxu0 %v1264
    %1279 = vmatpush.bf16.msra.mxu0 %v1234
    %1280 = vmatpush.bf16.msra.mxu0 %v1230
    %1281 = vmatpush.bf16.msra.mxu0 %v1226
    %1282 = vmatpush.bf16.msra.mxu0 %v1222
    %1283 = vmatmul.bf16.gmra.mxu0 %v1260
    %v1284 = vpop.f32.mrf.mxu0
    %v1285 = vadd.f32 0.0, %v1284
    %v1286 = vpop.f32.mrf.mxu0
    %v1287 = vadd.f32 0.0, %v1286
    %1288 = vdwg.mxu0
    %1289 = vmatpush.bf16.msra.mxu0 0
    %1290 = vmatpush.bf16.msra.mxu0 0
    %1291 = vmatpush.bf16.msra.mxu0 0
    %1292 = vmatpush.bf16.msra.mxu0 %v1267
    %1293 = vmatpush.bf16.msra.mxu0 %v1235
    %1294 = vmatpush.bf16.msra.mxu0 %v1231
    %1295 = vmatpush.bf16.msra.mxu0 %v1227
    %1296 = vmatpush.bf16.msra.mxu0 %v1223
    %1297 = vmatmul.bf16.gmra.mxu0 %v1260
    %v1298 = vpop.f32.mrf.mxu0
    %v1299 = vadd.f32 0.0, %v1298
    %v1300 = vpop.f32.mrf.mxu0
    %v1301 = vadd.f32 0.0, %v1300
    %1302 = vdwg.mxu0
    %1303 = vmatpush.bf16.msra.mxu0 0
    %1304 = vmatpush.bf16.msra.mxu0 0
    %1305 = vmatpush.bf16.msra.mxu0 0
    %1306 = vmatpush.bf16.msra.mxu0 %v1270
    %1307 = vmatpush.bf16.msra.mxu0 %v1236
    %1308 = vmatpush.bf16.msra.mxu0 %v1232
    %1309 = vmatpush.bf16.msra.mxu0 %v1228
    %1310 = vmatpush.bf16.msra.mxu0 %v1224
    %1311 = vmatmul.bf16.gmra.mxu0 %v1260
    %v1312 = vpop.f32.mrf.mxu0
    %v1313 = vadd.f32 0.0, %v1312
    %v1314 = vpop.f32.mrf.mxu0
    %v1315 = vadd.f32 0.0, %v1314
    %1316 = vdwg.mxu0
    %1317 = vmatpush.bf16.msra.mxu0 0
    %1318 = vmatpush.bf16.msra.mxu0 0
    %1319 = vmatpush.bf16.msra.mxu0 0
    %1320 = vmatpush.bf16.msra.mxu0 %v1273
    %1321 = vmatpush.bf16.msra.mxu0 %v1237
    %1322 = vmatpush.bf16.msra.mxu0 %v1233
    %1323 = vmatpush.bf16.msra.mxu0 %v1229
    %1324 = vmatpush.bf16.msra.mxu0 %v1225
    %1325 = vmatmul.bf16.gmra.mxu0 %v1260
    %v1326 = vpop.f32.mrf.mxu0
    %v1327 = vadd.f32 0.0, %v1326
    %v1328 = vpop.f32.mrf.mxu0
    %v1329 = vadd.f32 0.0, %v1328
    %1330 = vdwg.mxu0
    %v1349 = vunpack.c.l.b16 %v912
    %v1350 = vunpack.c.h.b16 %v912
    %v1351 = vunpack.c.l.b16 %v913
    %v1352 = vunpack.c.h.b16 %v913
    %v1353 = vunpack.c.l.b16 %v914
    %v1354 = vunpack.c.h.b16 %v914
    %v1355 = vunpack.c.l.b16 %v915
    %v1356 = vunpack.c.h.b16 %v915
    %v1357 = vunpack.c.l.b16 %v916
    %v1358 = vunpack.c.h.b16 %v916
    %v1359 = vunpack.c.l.b16 %v917
    %v1360 = vunpack.c.h.b16 %v917
    %v1361 = vunpack.c.l.b16 %v918
    %v1362 = vunpack.c.h.b16 %v918
    %v1363 = vunpack.c.l.b16 %v919
    %v1364 = vunpack.c.h.b16 %v919
    %v1365 = vunpack.c.l.b16 %v920
    %v1366 = vunpack.c.h.b16 %v920
    %v1367 = vunpack.c.l.b16 %v921
    %v1368 = vunpack.c.h.b16 %v921
    %v1369 = vunpack.c.l.b16 %v922
    %v1370 = vunpack.c.h.b16 %v922
    %v1371 = vunpack.c.l.b16 %v923
    %v1372 = vunpack.c.h.b16 %v923
    %v1373 = vunpack.c.l.b16 %v924
    %v1374 = vunpack.c.h.b16 %v924
    %v1375 = vunpack.c.l.b16 %v925
    %v1376 = vunpack.c.h.b16 %v925
    %v1377 = vunpack.c.l.b16 %v926
    %v1378 = vunpack.c.h.b16 %v926
    %v1379 = vunpack.c.l.b16 %v927
    %v1380 = vunpack.c.h.b16 %v927
    %v1381 = vunpack.c.l.b16 %v928
    %v1382 = vunpack.c.h.b16 %v928
    %v1383 = vunpack.c.l.b16 %v929
    %v1384 = vunpack.c.h.b16 %v929
    %v1385 = vpack.c.b16 %v1353, %v1349
    %v1386 = vpack.c.b16 %v1354, %v1350
    %v1387 = vpack.c.b16 %v1355, %v1351
    %v1388 = vpack.c.b16 %v1356, %v1352
    %v1389 = vpack.c.b16 %v1361, %v1357
    %v1390 = vpack.c.b16 %v1362, %v1358
    %v1391 = vpack.c.b16 %v1363, %v1359
    %v1392 = vpack.c.b16 %v1364, %v1360
    %v1393 = vpack.c.b16 %v1369, %v1365
    %v1394 = vpack.c.b16 %v1370, %v1366
    %v1395 = vpack.c.b16 %v1371, %v1367
    %v1396 = vpack.c.b16 %v1372, %v1368
    %v1397 = vpack.c.b16 %v1377, %v1373
    %v1398 = vpack.c.b16 %v1378, %v1374
    %v1399 = vpack.c.b16 %v1379, %v1375
    %v1400 = vpack.c.b16 %v1380, %v1376
    %v1401 = vpack.c.b16 %v1381, %v1381
    %v1402 = vpack.c.b16 %v1382, %v1382
    %v1403 = vpack.c.b16 %v1383, %v1383
    %v1404 = vpack.c.b16 %v1384, %v1384
    %v1422 = vsel %vm1258, %v1166, 0
    %v1425 = vsel %vm1262, %v1401, 0
    %v1428 = vsel %vm1262, %v1402, 0
    %v1431 = vsel %vm1262, %v1403, 0
    %v1434 = vsel %vm1262, %v1404, 0
    %1436 = vmatpush.bf16.msra.mxu0 0
    %1437 = vmatpush.bf16.msra.mxu0 0
    %1438 = vmatpush.bf16.msra.mxu0 0
    %1439 = vmatpush.bf16.msra.mxu0 %v1425
    %1440 = vmatpush.bf16.msra.mxu0 %v1397
    %1441 = vmatpush.bf16.msra.mxu0 %v1393
    %1442 = vmatpush.bf16.msra.mxu0 %v1389
    %1443 = vmatpush.bf16.msra.mxu0 %v1385
    %1444 = vmatmul.bf16.gmra.mxu0 %v1422
    %v1445 = vpop.f32.mrf.mxu0
    %v1446 = vadd.f32 %v1285, %v1445
    %v1447 = vpop.f32.mrf.mxu0
    %v1448 = vadd.f32 %v1287, %v1447
    %1449 = vdwg.mxu0
    %1450 = vmatpush.bf16.msra.mxu0 0
    %1451 = vmatpush.bf16.msra.mxu0 0
    %1452 = vmatpush.bf16.msra.mxu0 0
    %1453 = vmatpush.bf16.msra.mxu0 %v1428
    %1454 = vmatpush.bf16.msra.mxu0 %v1398
    %1455 = vmatpush.bf16.msra.mxu0 %v1394
    %1456 = vmatpush.bf16.msra.mxu0 %v1390
    %1457 = vmatpush.bf16.msra.mxu0 %v1386
    %1458 = vmatmul.bf16.gmra.mxu0 %v1422
    %v1459 = vpop.f32.mrf.mxu0
    %v1460 = vadd.f32 %v1299, %v1459
    %v1461 = vpop.f32.mrf.mxu0
    %v1462 = vadd.f32 %v1301, %v1461
    %1463 = vdwg.mxu0
    %1464 = vmatpush.bf16.msra.mxu0 0
    %1465 = vmatpush.bf16.msra.mxu0 0
    %1466 = vmatpush.bf16.msra.mxu0 0
    %1467 = vmatpush.bf16.msra.mxu0 %v1431
    %1468 = vmatpush.bf16.msra.mxu0 %v1399
    %1469 = vmatpush.bf16.msra.mxu0 %v1395
    %1470 = vmatpush.bf16.msra.mxu0 %v1391
    %1471 = vmatpush.bf16.msra.mxu0 %v1387
    %1472 = vmatmul.bf16.gmra.mxu0 %v1422
    %v1473 = vpop.f32.mrf.mxu0
    %v1474 = vadd.f32 %v1313, %v1473
    %v1475 = vpop.f32.mrf.mxu0
    %v1476 = vadd.f32 %v1315, %v1475
    %1477 = vdwg.mxu0
    %1478 = vmatpush.bf16.msra.mxu0 0
    %1479 = vmatpush.bf16.msra.mxu0 0
    %1480 = vmatpush.bf16.msra.mxu0 0
    %1481 = vmatpush.bf16.msra.mxu0 %v1434
    %1482 = vmatpush.bf16.msra.mxu0 %v1400
    %1483 = vmatpush.bf16.msra.mxu0 %v1396
    %1484 = vmatpush.bf16.msra.mxu0 %v1392
    %1485 = vmatpush.bf16.msra.mxu0 %v1388
    %1486 = vmatmul.bf16.gmra.mxu0 %v1422
    %v1487 = vpop.f32.mrf.mxu0
    %v1488 = vadd.f32 %v1327, %v1487
    %v1489 = vpop.f32.mrf.mxu0
    %v1490 = vadd.f32 %v1329, %v1489
    %1491 = vdwg.mxu0
    %v1493 = vperm.slane %v948, 0
    %v1494 = vperm.slane %v948, 1
    %v1495 = vperm.slane %v948, 2
    %v1496 = vperm.slane %v948, 3
    %v1501 = vadd.f32 %v1446, %v1493
    %v1502 = vadd.f32 %v1460, %v1494
    %v1503 = vadd.f32 %v1474, %v1495
    %v1504 = vadd.f32 %v1488, %v1496
    %v1505 = vadd.f32 %v1448, %v1493
    %v1506 = vadd.f32 %v1462, %v1494
    %v1507 = vadd.f32 %v1476, %v1495
    %v1508 = vadd.f32 %v1490, %v1496
    %v1509 = vadd.f32 %v1501, %v1505
    %v1510 = vrot.slane %v1509, 4
    %v1511 = vadd.f32 %v1509, %v1510
    %v1512 = vrot.slane %v1511, 2
    %v1513 = vadd.f32 %v1511, %v1512
    %v1514 = vrot.slane %v1513, 1
    %v1515 = vadd.f32 %v1513, %v1514
    %v1516 = vadd.f32 %v1502, %v1506
    %v1517 = vrot.slane %v1516, 4
    %v1518 = vadd.f32 %v1516, %v1517
    %v1519 = vrot.slane %v1518, 2
    %v1520 = vadd.f32 %v1518, %v1519
    %v1521 = vrot.slane %v1520, 1
    %v1522 = vadd.f32 %v1520, %v1521
    %v1523 = vadd.f32 %v1503, %v1507
    %v1524 = vrot.slane %v1523, 4
    %v1525 = vadd.f32 %v1523, %v1524
    %v1526 = vrot.slane %v1525, 2
    %v1527 = vadd.f32 %v1525, %v1526
    %v1528 = vrot.slane %v1527, 1
    %v1529 = vadd.f32 %v1527, %v1528
    %v1530 = vadd.f32 %v1504, %v1508
    %v1531 = vrot.slane %v1530, 4
    %v1532 = vadd.f32 %v1530, %v1531
    %v1533 = vrot.slane %v1532, 2
    %v1534 = vadd.f32 %v1532, %v1533
    %v1535 = vrot.slane %v1534, 1
    %v1536 = vadd.f32 %v1534, %v1535
    %v1537 = vrcp.pop 16.0
    %v1538 = vmul.f32 16.0, %v1537
    %v1539 = vsub.f32 1.0, %v1538
    %v1540 = vmul.f32 %v1537, %v1539
    %v1541 = vadd.f32 %v1537, %v1540
    %vm1542 = vweird.f32 %v1537
    %v1543 = vsel %vm1542, %v1537, %v1541
    %v1544 = vmul.f32 %v1515, %v1543
    %v1545 = vmul.f32 %v1522, %v1543
    %v1546 = vmul.f32 %v1529, %v1543
    %v1547 = vmul.f32 %v1536, %v1543
    %v1548 = vmul.f32 %v1501, %v1501
    %v1549 = vmul.f32 %v1502, %v1502
    %v1550 = vmul.f32 %v1503, %v1503
    %v1551 = vmul.f32 %v1504, %v1504
    %v1552 = vmul.f32 %v1505, %v1505
    %v1553 = vmul.f32 %v1506, %v1506
    %v1554 = vmul.f32 %v1507, %v1507
    %v1555 = vmul.f32 %v1508, %v1508
    %v1556 = vadd.f32 %v1548, %v1552
    %v1557 = vrot.slane %v1556, 4
    %v1558 = vadd.f32 %v1556, %v1557
    %v1559 = vrot.slane %v1558, 2
    %v1560 = vadd.f32 %v1558, %v1559
    %v1561 = vrot.slane %v1560, 1
    %v1562 = vadd.f32 %v1560, %v1561
    %v1563 = vadd.f32 %v1549, %v1553
    %v1564 = vrot.slane %v1563, 4
    %v1565 = vadd.f32 %v1563, %v1564
    %v1566 = vrot.slane %v1565, 2
    %v1567 = vadd.f32 %v1565, %v1566
    %v1568 = vrot.slane %v1567, 1
    %v1569 = vadd.f32 %v1567, %v1568
    %v1570 = vadd.f32 %v1550, %v1554
    %v1571 = vrot.slane %v1570, 4
    %v1572 = vadd.f32 %v1570, %v1571
    %v1573 = vrot.slane %v1572, 2
    %v1574 = vadd.f32 %v1572, %v1573
    %v1575 = vrot.slane %v1574, 1
    %v1576 = vadd.f32 %v1574, %v1575
    %v1577 = vadd.f32 %v1551, %v1555
    %v1578 = vrot.slane %v1577, 4
    %v1579 = vadd.f32 %v1577, %v1578
    %v1580 = vrot.slane %v1579, 2
    %v1581 = vadd.f32 %v1579, %v1580
    %v1582 = vrot.slane %v1581, 1
    %v1583 = vadd.f32 %v1581, %v1582
    %v1584 = vmul.f32 %v1562, %v1543
    %v1585 = vmul.f32 %v1569, %v1543
    %v1586 = vmul.f32 %v1576, %v1543
    %v1587 = vmul.f32 %v1583, %v1543
    %v1588 = vmul.f32 %v1544, %v1544
    %v1589 = vmul.f32 %v1545, %v1545
    %v1590 = vmul.f32 %v1546, %v1546
    %v1591 = vmul.f32 %v1547, %v1547
    %v1592 = vsub.f32 %v1584, %v1588
    %v1593 = vsub.f32 %v1585, %v1589
    %v1594 = vsub.f32 %v1586, %v1590
    %v1595 = vsub.f32 %v1587, %v1591
    %v1596 = vmax.f32 %v1592, 0.0
    %v1597 = vmax.f32 %v1593, 0.0
    %v1598 = vmax.f32 %v1594, 0.0
    %v1599 = vmax.f32 %v1595, 0.0
    %v1600 = vadd.f32 %v1596, 1e-05
    %v1601 = vadd.f32 %v1597, 1e-05
    %v1602 = vadd.f32 %v1598, 1e-05
    %v1603 = vadd.f32 %v1599, 1e-05
    %v1604 = vrsqrt.pop %v1600
    %v1605 = vmul.f32 %v1604, %v1600
    %v1606 = vmul.f32 %v1605, %v1604
    %v1607 = vmul.f32 0.5, %v1606
    %v1608 = vsub.f32 1.5, %v1607
    %v1609 = vmul.f32 %v1604, %v1608
    %vm1610 = vweird.f32 %v1600
    %vm1611 = vweird.f32 %v1604
    %vm1612 = vmor %vm1610, %vm1611
    %v1613 = vsel %vm1612, %v1604, %v1609
    %v1614 = vrsqrt.pop %v1601
    %v1615 = vmul.f32 %v1614, %v1601
    %v1616 = vmul.f32 %v1615, %v1614
    %v1617 = vmul.f32 0.5, %v1616
    %v1618 = vsub.f32 1.5, %v1617
    %v1619 = vmul.f32 %v1614, %v1618
    %vm1620 = vweird.f32 %v1601
    %vm1621 = vweird.f32 %v1614
    %vm1622 = vmor %vm1620, %vm1621
    %v1623 = vsel %vm1622, %v1614, %v1619
    %v1624 = vrsqrt.pop %v1602
    %v1625 = vmul.f32 %v1624, %v1602
    %v1626 = vmul.f32 %v1625, %v1624
    %v1627 = vmul.f32 0.5, %v1626
    %v1628 = vsub.f32 1.5, %v1627
    %v1629 = vmul.f32 %v1624, %v1628
    %vm1630 = vweird.f32 %v1602
    %vm1631 = vweird.f32 %v1624
    %vm1632 = vmor %vm1630, %vm1631
    %v1633 = vsel %vm1632, %v1624, %v1629
    %v1634 = vrsqrt.pop %v1603
    %v1635 = vmul.f32 %v1634, %v1603
    %v1636 = vmul.f32 %v1635, %v1634
    %v1637 = vmul.f32 0.5, %v1636
    %v1638 = vsub.f32 1.5, %v1637
    %v1639 = vmul.f32 %v1634, %v1638
    %vm1640 = vweird.f32 %v1603
    %vm1641 = vweird.f32 %v1634
    %vm1642 = vmor %vm1640, %vm1641
    %v1643 = vsel %vm1642, %v1634, %v1639
    %v1648 = vrot.slane %v1623, 7
    %v1649 = vrot.slane %v1633, 6
    %v1650 = vrot.slane %v1643, 5
    %vm1651 = vcmask 1040384
    %v1652 = vsel %vm1651, %v1613, %v1648
    %vm1653 = vcmask 1042434
    %v1654 = vsel %vm1653, %v1649, %v1650
    %vm1655 = vcmask 1041408
    %v1656 = vsel %vm1655, %v1652, %v1654
    %v1658 = vmul.f32 %v949, %v1656
    %v1660 = vperm.slane %v1658, 0
    %v1661 = vperm.slane %v1658, 1
    %v1662 = vperm.slane %v1658, 2
    %v1663 = vperm.slane %v1658, 3
    %v1668 = vmul.f32 %v1544, %v1660
    %v1669 = vmul.f32 %v1545, %v1661
    %v1670 = vmul.f32 %v1546, %v1662
    %v1671 = vmul.f32 %v1547, %v1663
    %v1676 = vrot.slane %v1669, 7
    %v1677 = vrot.slane %v1670, 6
    %v1678 = vrot.slane %v1671, 5
    %v1679 = vsel %vm1651, %v1668, %v1676
    %v1680 = vsel %vm1653, %v1677, %v1678
    %v1681 = vsel %vm1655, %v1679, %v1680
    %v1683 = vsub.f32 %v950, %v1681
    %v1684 = vmul.f32 %v1501, %v1660
    %v1685 = vmul.f32 %v1502, %v1661
    %v1686 = vmul.f32 %v1503, %v1662
    %v1687 = vmul.f32 %v1504, %v1663
    %v1688 = vmul.f32 %v1505, %v1660
    %v1689 = vmul.f32 %v1506, %v1661
    %v1690 = vmul.f32 %v1507, %v1662
    %v1691 = vmul.f32 %v1508, %v1663
    %v1693 = vperm.slane %v1683, 0
    %v1694 = vperm.slane %v1683, 1
    %v1695 = vperm.slane %v1683, 2
    %v1696 = vperm.slane %v1683, 3
    %v1701 = vadd.f32 %v1684, %v1693
    %v1702 = vadd.f32 %v1685, %v1694
    %v1703 = vadd.f32 %v1686, %v1695
    %v1704 = vadd.f32 %v1687, %v1696
    %v1705 = vadd.f32 %v1688, %v1693
    %v1706 = vadd.f32 %v1689, %v1694
    %v1707 = vadd.f32 %v1690, %v1695
    %v1708 = vadd.f32 %v1691, %v1696
    %v1709 = vmax.f32 %v1701, 0.0
    %v1710 = vmax.f32 %v1702, 0.0
    %v1711 = vmax.f32 %v1703, 0.0
    %v1712 = vmax.f32 %v1704, 0.0
    %v1713 = vmax.f32 %v1705, 0.0
    %v1714 = vmax.f32 %v1706, 0.0
    %v1715 = vmax.f32 %v1707, 0.0
    %v1716 = vmax.f32 %v1708, 0.0
    %v1717 = vpack.c.bf16 %v1713, %v1709
    %v1718 = vpack.c.bf16 %v1714, %v1710
    %v1719 = vpack.c.bf16 %v1715, %v1711
    %v1720 = vpack.c.bf16 %v1716, %v1712
    %v1722 = vperm.slane %v1079, 0
    %v1723 = vperm.slane %v1079, 1
    %v1724 = vperm.slane %v1079, 2
    %v1725 = vperm.slane %v1079, 3
    %v1858 = vunpack.c.l.b16 %v951
    %v1859 = vunpack.c.h.b16 %v951
    %v1860 = vunpack.c.l.b16 %v952
    %v1861 = vunpack.c.h.b16 %v952
    %v1862 = vunpack.c.l.b16 %v953
    %v1863 = vunpack.c.h.b16 %v953
    %v1864 = vunpack.c.l.b16 %v954
    %v1865 = vunpack.c.h.b16 %v954
    %v1866 = vunpack.c.l.b16 %v955
    %v1867 = vunpack.c.h.b16 %v955
    %v1868 = vunpack.c.l.b16 %v956
    %v1869 = vunpack.c.h.b16 %v956
    %v1870 = vunpack.c.l.b16 %v957
    %v1871 = vunpack.c.h.b16 %v957
    %v1872 = vunpack.c.l.b16 %v958
    %v1873 = vunpack.c.h.b16 %v958
    %v1874 = vunpack.c.l.b16 %v959
    %v1875 = vunpack.c.h.b16 %v959
    %v1876 = vunpack.c.l.b16 %v960
    %v1877 = vunpack.c.h.b16 %v960
    %v1878 = vunpack.c.l.b16 %v961
    %v1879 = vunpack.c.h.b16 %v961
    %v1880 = vunpack.c.l.b16 %v962
    %v1881 = vunpack.c.h.b16 %v962
    %v1882 = vunpack.c.l.b16 %v963
    %v1883 = vunpack.c.h.b16 %v963
    %v1884 = vunpack.c.l.b16 %v964
    %v1885 = vunpack.c.h.b16 %v964
    %v1886 = vunpack.c.l.b16 %v965
    %v1887 = vunpack.c.h.b16 %v965
    %v1888 = vunpack.c.l.b16 %v966
    %v1889 = vunpack.c.h.b16 %v966
    %v1890 = vunpack.c.l.b16 %v967
    %v1891 = vunpack.c.h.b16 %v967
    %v1892 = vunpack.c.l.b16 %v968
    %v1893 = vunpack.c.h.b16 %v968
    %v1894 = vunpack.c.l.b16 %v969
    %v1895 = vunpack.c.h.b16 %v969
    %v1896 = vunpack.c.l.b16 %v970
    %v1897 = vunpack.c.h.b16 %v970
    %v1898 = vunpack.c.l.b16 %v971
    %v1899 = vunpack.c.h.b16 %v971
    %v1900 = vunpack.c.l.b16 %v972
    %v1901 = vunpack.c.h.b16 %v972
    %v1902 = vunpack.c.l.b16 %v973
    %v1903 = vunpack.c.h.b16 %v973
    %v1904 = vunpack.c.l.b16 %v974
    %v1905 = vunpack.c.h.b16 %v974
    %v1906 = vunpack.c.l.b16 %v975
    %v1907 = vunpack.c.h.b16 %v975
    %v1908 = vunpack.c.l.b16 %v976
    %v1909 = vunpack.c.h.b16 %v976
    %v1910 = vunpack.c.l.b16 %v977
    %v1911 = vunpack.c.h.b16 %v977
    %v1912 = vunpack.c.l.b16 %v978
    %v1913 = vunpack.c.h.b16 %v978
    %v1914 = vunpack.c.l.b16 %v979
    %v1915 = vunpack.c.h.b16 %v979
    %v1916 = vunpack.c.l.b16 %v980
    %v1917 = vunpack.c.h.b16 %v980
    %v1918 = vunpack.c.l.b16 %v981
    %v1919 = vunpack.c.h.b16 %v981
    %v1920 = vunpack.c.l.b16 %v982
    %v1921 = vunpack.c.h.b16 %v982
    %v1922 = vunpack.c.l.b16 %v983
    %v1923 = vunpack.c.h.b16 %v983
    %v1924 = vunpack.c.l.b16 %v984
    %v1925 = vunpack.c.h.b16 %v984
    %v1926 = vunpack.c.l.b16 %v985
    %v1927 = vunpack.c.h.b16 %v985
    %v1928 = vunpack.c.l.b16 %v986
    %v1929 = vunpack.c.h.b16 %v986
    %v1930 = vunpack.c.l.b16 %v987
    %v1931 = vunpack.c.h.b16 %v987
    %v1932 = vunpack.c.l.b16 %v988
    %v1933 = vunpack.c.h.b16 %v988
    %v1934 = vunpack.c.l.b16 %v989
    %v1935 = vunpack.c.h.b16 %v989
    %v1936 = vunpack.c.l.b16 %v990
    %v1937 = vunpack.c.h.b16 %v990
    %v1938 = vunpack.c.l.b16 %v991
    %v1939 = vunpack.c.h.b16 %v991
    %v1940 = vunpack.c.l.b16 %v992
    %v1941 = vunpack.c.h.b16 %v992
    %v1942 = vunpack.c.l.b16 %v993
    %v1943 = vunpack.c.h.b16 %v993
    %v1944 = vunpack.c.l.b16 %v994
    %v1945 = vunpack.c.h.b16 %v994
    %v1946 = vunpack.c.l.b16 %v995
    %v1947 = vunpack.c.h.b16 %v995
    %v1948 = vunpack.c.l.b16 %v996
    %v1949 = vunpack.c.h.b16 %v996
    %v1950 = vunpack.c.l.b16 %v997
    %v1951 = vunpack.c.h.b16 %v997
    %v1952 = vunpack.c.l.b16 %v998
    %v1953 = vunpack.c.h.b16 %v998
    %v1954 = vunpack.c.l.b16 %v999
    %v1955 = vunpack.c.h.b16 %v999
    %v1956 = vunpack.c.l.b16 %v1000
    %v1957 = vunpack.c.h.b16 %v1000
    %v1958 = vunpack.c.l.b16 %v1001
    %v1959 = vunpack.c.h.b16 %v1001
    %v1960 = vunpack.c.l.b16 %v1002
    %v1961 = vunpack.c.h.b16 %v1002
    %v1962 = vunpack.c.l.b16 %v1003
    %v1963 = vunpack.c.h.b16 %v1003
    %v1964 = vunpack.c.l.b16 %v1004
    %v1965 = vunpack.c.h.b16 %v1004
    %v1966 = vunpack.c.l.b16 %v1005
    %v1967 = vunpack.c.h.b16 %v1005
    %v1968 = vunpack.c.l.b16 %v1006
    %v1969 = vunpack.c.h.b16 %v1006
    %v1970 = vunpack.c.l.b16 %v1007
    %v1971 = vunpack.c.h.b16 %v1007
    %v1972 = vunpack.c.l.b16 %v1008
    %v1973 = vunpack.c.h.b16 %v1008
    %v1974 = vunpack.c.l.b16 %v1009
    %v1975 = vunpack.c.h.b16 %v1009
    %v1976 = vunpack.c.l.b16 %v1010
    %v1977 = vunpack.c.h.b16 %v1010
    %v1978 = vunpack.c.l.b16 %v1011
    %v1979 = vunpack.c.h.b16 %v1011
    %v1980 = vunpack.c.l.b16 %v1012
    %v1981 = vunpack.c.h.b16 %v1012
    %v1982 = vunpack.c.l.b16 %v1013
    %v1983 = vunpack.c.h.b16 %v1013
    %v1984 = vunpack.c.l.b16 %v1014
    %v1985 = vunpack.c.h.b16 %v1014
    %v1986 = vunpack.c.l.b16 %v1015
    %v1987 = vunpack.c.h.b16 %v1015
    %v1988 = vunpack.c.l.b16 %v1016
    %v1989 = vunpack.c.h.b16 %v1016
    %v1990 = vunpack.c.l.b16 %v1017
    %v1991 = vunpack.c.h.b16 %v1017
    %v1992 = vunpack.c.l.b16 %v1018
    %v1993 = vunpack.c.h.b16 %v1018
    %v1994 = vunpack.c.l.b16 %v1019
    %v1995 = vunpack.c.h.b16 %v1019
    %v1996 = vunpack.c.l.b16 %v1020
    %v1997 = vunpack.c.h.b16 %v1020
    %v1998 = vunpack.c.l.b16 %v1021
    %v1999 = vunpack.c.h.b16 %v1021
    %v2000 = vunpack.c.l.b16 %v1022
    %v2001 = vunpack.c.h.b16 %v1022
    %v2002 = vunpack.c.l.b16 %v1023
    %v2003 = vunpack.c.h.b16 %v1023
    %v2004 = vunpack.c.l.b16 %v1024
    %v2005 = vunpack.c.h.b16 %v1024
    %v2006 = vunpack.c.l.b16 %v1025
    %v2007 = vunpack.c.h.b16 %v1025
    %v2008 = vunpack.c.l.b16 %v1026
    %v2009 = vunpack.c.h.b16 %v1026
    %v2010 = vunpack.c.l.b16 %v1027
    %v2011 = vunpack.c.h.b16 %v1027
    %v2012 = vunpack.c.l.b16 %v1028
    %v2013 = vunpack.c.h.b16 %v1028
    %v2014 = vunpack.c.l.b16 %v1029
    %v2015 = vunpack.c.h.b16 %v1029
    %v2016 = vunpack.c.l.b16 %v1030
    %v2017 = vunpack.c.h.b16 %v1030
    %v2018 = vunpack.c.l.b16 %v1031
    %v2019 = vunpack.c.h.b16 %v1031
    %v2020 = vunpack.c.l.b16 %v1032
    %v2021 = vunpack.c.h.b16 %v1032
    %v2022 = vunpack.c.l.b16 %v1033
    %v2023 = vunpack.c.h.b16 %v1033
    %v2024 = vunpack.c.l.b16 %v1034
    %v2025 = vunpack.c.h.b16 %v1034
    %v2026 = vunpack.c.l.b16 %v1035
    %v2027 = vunpack.c.h.b16 %v1035
    %v2028 = vunpack.c.l.b16 %v1036
    %v2029 = vunpack.c.h.b16 %v1036
    %v2030 = vunpack.c.l.b16 %v1037
    %v2031 = vunpack.c.h.b16 %v1037
    %v2032 = vunpack.c.l.b16 %v1038
    %v2033 = vunpack.c.h.b16 %v1038
    %v2034 = vunpack.c.l.b16 %v1039
    %v2035 = vunpack.c.h.b16 %v1039
    %v2036 = vunpack.c.l.b16 %v1040
    %v2037 = vunpack.c.h.b16 %v1040
    %v2038 = vunpack.c.l.b16 %v1041
    %v2039 = vunpack.c.h.b16 %v1041
    %v2040 = vunpack.c.l.b16 %v1042
    %v2041 = vunpack.c.h.b16 %v1042
    %v2042 = vunpack.c.l.b16 %v1043
    %v2043 = vunpack.c.h.b16 %v1043
    %v2044 = vunpack.c.l.b16 %v1044
    %v2045 = vunpack.c.h.b16 %v1044
    %v2046 = vunpack.c.l.b16 %v1045
    %v2047 = vunpack.c.h.b16 %v1045
    %v2048 = vunpack.c.l.b16 %v1046
    %v2049 = vunpack.c.h.b16 %v1046
    %v2050 = vunpack.c.l.b16 %v1047
    %v2051 = vunpack.c.h.b16 %v1047
    %v2052 = vunpack.c.l.b16 %v1048
    %v2053 = vunpack.c.h.b16 %v1048
    %v2054 = vunpack.c.l.b16 %v1049
    %v2055 = vunpack.c.h.b16 %v1049
    %v2056 = vunpack.c.l.b16 %v1050
    %v2057 = vunpack.c.h.b16 %v1050
    %v2058 = vunpack.c.l.b16 %v1051
    %v2059 = vunpack.c.h.b16 %v1051
    %v2060 = vunpack.c.l.b16 %v1052
    %v2061 = vunpack.c.h.b16 %v1052
    %v2062 = vunpack.c.l.b16 %v1053
    %v2063 = vunpack.c.h.b16 %v1053
    %v2064 = vunpack.c.l.b16 %v1054
    %v2065 = vunpack.c.h.b16 %v1054
    %v2066 = vunpack.c.l.b16 %v1055
    %v2067 = vunpack.c.h.b16 %v1055
    %v2068 = vunpack.c.l.b16 %v1056
    %v2069 = vunpack.c.h.b16 %v1056
    %v2070 = vunpack.c.l.b16 %v1057
    %v2071 = vunpack.c.h.b16 %v1057
    %v2072 = vunpack.c.l.b16 %v1058
    %v2073 = vunpack.c.h.b16 %v1058
    %v2074 = vunpack.c.l.b16 %v1059
    %v2075 = vunpack.c.h.b16 %v1059
    %v2076 = vunpack.c.l.b16 %v1060
    %v2077 = vunpack.c.h.b16 %v1060
    %v2078 = vunpack.c.l.b16 %v1061
    %v2079 = vunpack.c.h.b16 %v1061
    %v2080 = vunpack.c.l.b16 %v1062
    %v2081 = vunpack.c.h.b16 %v1062
    %v2082 = vunpack.c.l.b16 %v1063
    %v2083 = vunpack.c.h.b16 %v1063
    %v2084 = vunpack.c.l.b16 %v1064
    %v2085 = vunpack.c.h.b16 %v1064
    %v2086 = vunpack.c.l.b16 %v1065
    %v2087 = vunpack.c.h.b16 %v1065
    %v2088 = vunpack.c.l.b16 %v1066
    %v2089 = vunpack.c.h.b16 %v1066
    %v2090 = vunpack.c.l.b16 %v1067
    %v2091 = vunpack.c.h.b16 %v1067
    %v2092 = vunpack.c.l.b16 %v1068
    %v2093 = vunpack.c.h.b16 %v1068
    %v2094 = vunpack.c.l.b16 %v1069
    %v2095 = vunpack.c.h.b16 %v1069
    %v2096 = vunpack.c.l.b16 %v1070
    %v2097 = vunpack.c.h.b16 %v1070
    %v2098 = vunpack.c.l.b16 %v1071
    %v2099 = vunpack.c.h.b16 %v1071
    %v2100 = vunpack.c.l.b16 %v1072
    %v2101 = vunpack.c.h.b16 %v1072
    %v2102 = vunpack.c.l.b16 %v1073
    %v2103 = vunpack.c.h.b16 %v1073
    %v2104 = vunpack.c.l.b16 %v1074
    %v2105 = vunpack.c.h.b16 %v1074
    %v2106 = vunpack.c.l.b16 %v1075
    %v2107 = vunpack.c.h.b16 %v1075
    %v2108 = vunpack.c.l.b16 %v1076
    %v2109 = vunpack.c.h.b16 %v1076
    %v2110 = vunpack.c.l.b16 %v1077
    %v2111 = vunpack.c.h.b16 %v1077
    %v2112 = vunpack.c.l.b16 %v1078
    %v2113 = vunpack.c.h.b16 %v1078
    %v2114 = vpack.c.b16 %v1862, %v1858
    %v2115 = vpack.c.b16 %v1863, %v1859
    %v2116 = vpack.c.b16 %v1864, %v1860
    %v2117 = vpack.c.b16 %v1865, %v1861
    %v2118 = vpack.c.b16 %v1870, %v1866
    %v2119 = vpack.c.b16 %v1871, %v1867
    %v2120 = vpack.c.b16 %v1872, %v1868
    %v2121 = vpack.c.b16 %v1873, %v1869
    %v2122 = vpack.c.b16 %v1878, %v1874
    %v2123 = vpack.c.b16 %v1879, %v1875
    %v2124 = vpack.c.b16 %v1880, %v1876
    %v2125 = vpack.c.b16 %v1881, %v1877
    %v2126 = vpack.c.b16 %v1886, %v1882
    %v2127 = vpack.c.b16 %v1887, %v1883
    %v2128 = vpack.c.b16 %v1888, %v1884
    %v2129 = vpack.c.b16 %v1889, %v1885
    %v2130 = vpack.c.b16 %v1894, %v1890
    %v2131 = vpack.c.b16 %v1895, %v1891
    %v2132 = vpack.c.b16 %v1896, %v1892
    %v2133 = vpack.c.b16 %v1897, %v1893
    %v2134 = vpack.c.b16 %v1902, %v1898
    %v2135 = vpack.c.b16 %v1903, %v1899
    %v2136 = vpack.c.b16 %v1904, %v1900
    %v2137 = vpack.c.b16 %v1905, %v1901
    %v2138 = vpack.c.b16 %v1910, %v1906
    %v2139 = vpack.c.b16 %v1911, %v1907
    %v2140 = vpack.c.b16 %v1912, %v1908
    %v2141 = vpack.c.b16 %v1913, %v1909
    %v2142 = vpack.c.b16 %v1918, %v1914
    %v2143 = vpack.c.b16 %v1919, %v1915
    %v2144 = vpack.c.b16 %v1920, %v1916
    %v2145 = vpack.c.b16 %v1921, %v1917
    %v2146 = vpack.c.b16 %v1926, %v1922
    %v2147 = vpack.c.b16 %v1927, %v1923
    %v2148 = vpack.c.b16 %v1928, %v1924
    %v2149 = vpack.c.b16 %v1929, %v1925
    %v2150 = vpack.c.b16 %v1934, %v1930
    %v2151 = vpack.c.b16 %v1935, %v1931
    %v2152 = vpack.c.b16 %v1936, %v1932
    %v2153 = vpack.c.b16 %v1937, %v1933
    %v2154 = vpack.c.b16 %v1942, %v1938
    %v2155 = vpack.c.b16 %v1943, %v1939
    %v2156 = vpack.c.b16 %v1944, %v1940
    %v2157 = vpack.c.b16 %v1945, %v1941
    %v2158 = vpack.c.b16 %v1950, %v1946
    %v2159 = vpack.c.b16 %v1951, %v1947
    %v2160 = vpack.c.b16 %v1952, %v1948
    %v2161 = vpack.c.b16 %v1953, %v1949
    %v2162 = vpack.c.b16 %v1958, %v1954
    %v2163 = vpack.c.b16 %v1959, %v1955
    %v2164 = vpack.c.b16 %v1960, %v1956
    %v2165 = vpack.c.b16 %v1961, %v1957
    %v2166 = vpack.c.b16 %v1966, %v1962
    %v2167 = vpack.c.b16 %v1967, %v1963
    %v2168 = vpack.c.b16 %v1968, %v1964
    %v2169 = vpack.c.b16 %v1969, %v1965
    %v2170 = vpack.c.b16 %v1974, %v1970
    %v2171 = vpack.c.b16 %v1975, %v1971
    %v2172 = vpack.c.b16 %v1976, %v1972
    %v2173 = vpack.c.b16 %v1977, %v1973
    %v2174 = vpack.c.b16 %v1982, %v1978
    %v2175 = vpack.c.b16 %v1983, %v1979
    %v2176 = vpack.c.b16 %v1984, %v1980
    %v2177 = vpack.c.b16 %v1985, %v1981
    %v2178 = vpack.c.b16 %v1990, %v1986
    %v2179 = vpack.c.b16 %v1991, %v1987
    %v2180 = vpack.c.b16 %v1992, %v1988
    %v2181 = vpack.c.b16 %v1993, %v1989
    %v2182 = vpack.c.b16 %v1998, %v1994
    %v2183 = vpack.c.b16 %v1999, %v1995
    %v2184 = vpack.c.b16 %v2000, %v1996
    %v2185 = vpack.c.b16 %v2001, %v1997
    %v2186 = vpack.c.b16 %v2006, %v2002
    %v2187 = vpack.c.b16 %v2007, %v2003
    %v2188 = vpack.c.b16 %v2008, %v2004
    %v2189 = vpack.c.b16 %v2009, %v2005
    %v2190 = vpack.c.b16 %v2014, %v2010
    %v2191 = vpack.c.b16 %v2015, %v2011
    %v2192 = vpack.c.b16 %v2016, %v2012
    %v2193 = vpack.c.b16 %v2017, %v2013
    %v2194 = vpack.c.b16 %v2022, %v2018
    %v2195 = vpack.c.b16 %v2023, %v2019
    %v2196 = vpack.c.b16 %v2024, %v2020
    %v2197 = vpack.c.b16 %v2025, %v2021
    %v2198 = vpack.c.b16 %v2030, %v2026
    %v2199 = vpack.c.b16 %v2031, %v2027
    %v2200 = vpack.c.b16 %v2032, %v2028
    %v2201 = vpack.c.b16 %v2033, %v2029
    %v2202 = vpack.c.b16 %v2038, %v2034
    %v2203 = vpack.c.b16 %v2039, %v2035
    %v2204 = vpack.c.b16 %v2040, %v2036
    %v2205 = vpack.c.b16 %v2041, %v2037
    %v2206 = vpack.c.b16 %v2046, %v2042
    %v2207 = vpack.c.b16 %v2047, %v2043
    %v2208 = vpack.c.b16 %v2048, %v2044
    %v2209 = vpack.c.b16 %v2049, %v2045
    %v2210 = vpack.c.b16 %v2054, %v2050
    %v2211 = vpack.c.b16 %v2055, %v2051
    %v2212 = vpack.c.b16 %v2056, %v2052
    %v2213 = vpack.c.b16 %v2057, %v2053
    %v2214 = vpack.c.b16 %v2062, %v2058
    %v2215 = vpack.c.b16 %v2063, %v2059
    %v2216 = vpack.c.b16 %v2064, %v2060
    %v2217 = vpack.c.b16 %v2065, %v2061
    %v2218 = vpack.c.b16 %v2070, %v2066
    %v2219 = vpack.c.b16 %v2071, %v2067
    %v2220 = vpack.c.b16 %v2072, %v2068
    %v2221 = vpack.c.b16 %v2073, %v2069
    %v2222 = vpack.c.b16 %v2078, %v2074
    %v2223 = vpack.c.b16 %v2079, %v2075
    %v2224 = vpack.c.b16 %v2080, %v2076
    %v2225 = vpack.c.b16 %v2081, %v2077
    %v2226 = vpack.c.b16 %v2086, %v2082
    %v2227 = vpack.c.b16 %v2087, %v2083
    %v2228 = vpack.c.b16 %v2088, %v2084
    %v2229 = vpack.c.b16 %v2089, %v2085
    %v2230 = vpack.c.b16 %v2094, %v2090
    %v2231 = vpack.c.b16 %v2095, %v2091
    %v2232 = vpack.c.b16 %v2096, %v2092
    %v2233 = vpack.c.b16 %v2097, %v2093
    %v2234 = vpack.c.b16 %v2102, %v2098
    %v2235 = vpack.c.b16 %v2103, %v2099
    %v2236 = vpack.c.b16 %v2104, %v2100
    %v2237 = vpack.c.b16 %v2105, %v2101
    %v2238 = vpack.c.b16 %v2110, %v2106
    %v2239 = vpack.c.b16 %v2111, %v2107
    %v2240 = vpack.c.b16 %v2112, %v2108
    %v2241 = vpack.c.b16 %v2113, %v2109
    %2370 = vmatpush.bf16.msra.mxu0 %v2142
    %2371 = vmatpush.bf16.msra.mxu0 %v2138
    %2372 = vmatpush.bf16.msra.mxu0 %v2134
    %2373 = vmatpush.bf16.msra.mxu0 %v2130
    %2374 = vmatpush.bf16.msra.mxu0 %v2126
    %2375 = vmatpush.bf16.msra.mxu0 %v2122
    %2376 = vmatpush.bf16.msra.mxu0 %v2118
    %2377 = vmatpush.bf16.msra.mxu0 %v2114
    %2378 = vmatmul.bf16.gmra.mxu0 %v1717
    %v2379 = vpop.f32.mrf.mxu0
    %v2380 = vadd.f32 %v1722, %v2379
    %v2381 = vpop.f32.mrf.mxu0
    %v2382 = vadd.f32 %v1722, %v2381
    %2383 = vdwg.mxu0
    %2384 = vmatpush.bf16.msra.mxu0 %v2174
    %2385 = vmatpush.bf16.msra.mxu0 %v2170
    %2386 = vmatpush.bf16.msra.mxu0 %v2166
    %2387 = vmatpush.bf16.msra.mxu0 %v2162
    %2388 = vmatpush.bf16.msra.mxu0 %v2158
    %2389 = vmatpush.bf16.msra.mxu0 %v2154
    %2390 = vmatpush.bf16.msra.mxu0 %v2150
    %2391 = vmatpush.bf16.msra.mxu0 %v2146
    %2392 = vmatmul.bf16.gmra.mxu0 %v1718
    %v2393 = vpop.f32.mrf.mxu0
    %v2394 = vadd.f32 %v2380, %v2393
    %v2395 = vpop.f32.mrf.mxu0
    %v2396 = vadd.f32 %v2382, %v2395
    %2397 = vdwg.mxu0
    %2398 = vmatpush.bf16.msra.mxu0 %v2206
    %2399 = vmatpush.bf16.msra.mxu0 %v2202
    %2400 = vmatpush.bf16.msra.mxu0 %v2198
    %2401 = vmatpush.bf16.msra.mxu0 %v2194
    %2402 = vmatpush.bf16.msra.mxu0 %v2190
    %2403 = vmatpush.bf16.msra.mxu0 %v2186
    %2404 = vmatpush.bf16.msra.mxu0 %v2182
    %2405 = vmatpush.bf16.msra.mxu0 %v2178
    %2406 = vmatmul.bf16.gmra.mxu0 %v1719
    %v2407 = vpop.f32.mrf.mxu0
    %v2408 = vadd.f32 %v2394, %v2407
    %v2409 = vpop.f32.mrf.mxu0
    %v2410 = vadd.f32 %v2396, %v2409
    %2411 = vdwg.mxu0
    %2412 = vmatpush.bf16.msra.mxu0 %v2238
    %2413 = vmatpush.bf16.msra.mxu0 %v2234
    %2414 = vmatpush.bf16.msra.mxu0 %v2230
    %2415 = vmatpush.bf16.msra.mxu0 %v2226
    %2416 = vmatpush.bf16.msra.mxu0 %v2222
    %2417 = vmatpush.bf16.msra.mxu0 %v2218
    %2418 = vmatpush.bf16.msra.mxu0 %v2214
    %2419 = vmatpush.bf16.msra.mxu0 %v2210
    %2420 = vmatmul.bf16.gmra.mxu0 %v1720
    %v2421 = vpop.f32.mrf.mxu0
    %v2422 = vadd.f32 %v2408, %v2421
    %v2423 = vpop.f32.mrf.mxu0
    %v2424 = vadd.f32 %v2410, %v2423
    %2425 = vdwg.mxu0
    %2426 = vmatpush.bf16.msra.mxu0 %v2143
    %2427 = vmatpush.bf16.msra.mxu0 %v2139
    %2428 = vmatpush.bf16.msra.mxu0 %v2135
    %2429 = vmatpush.bf16.msra.mxu0 %v2131
    %2430 = vmatpush.bf16.msra.mxu0 %v2127
    %2431 = vmatpush.bf16.msra.mxu0 %v2123
    %2432 = vmatpush.bf16.msra.mxu0 %v2119
    %2433 = vmatpush.bf16.msra.mxu0 %v2115
    %2434 = vmatmul.bf16.gmra.mxu0 %v1717
    %v2435 = vpop.f32.mrf.mxu0
    %v2436 = vadd.f32 %v1723, %v2435
    %v2437 = vpop.f32.mrf.mxu0
    %v2438 = vadd.f32 %v1723, %v2437
    %2439 = vdwg.mxu0
    %2440 = vmatpush.bf16.msra.mxu0 %v2175
    %2441 = vmatpush.bf16.msra.mxu0 %v2171
    %2442 = vmatpush.bf16.msra.mxu0 %v2167
    %2443 = vmatpush.bf16.msra.mxu0 %v2163
    %2444 = vmatpush.bf16.msra.mxu0 %v2159
    %2445 = vmatpush.bf16.msra.mxu0 %v2155
    %2446 = vmatpush.bf16.msra.mxu0 %v2151
    %2447 = vmatpush.bf16.msra.mxu0 %v2147
    %2448 = vmatmul.bf16.gmra.mxu0 %v1718
    %v2449 = vpop.f32.mrf.mxu0
    %v2450 = vadd.f32 %v2436, %v2449
    %v2451 = vpop.f32.mrf.mxu0
    %v2452 = vadd.f32 %v2438, %v2451
    %2453 = vdwg.mxu0
    %2454 = vmatpush.bf16.msra.mxu0 %v2207
    %2455 = vmatpush.bf16.msra.mxu0 %v2203
    %2456 = vmatpush.bf16.msra.mxu0 %v2199
    %2457 = vmatpush.bf16.msra.mxu0 %v2195
    %2458 = vmatpush.bf16.msra.mxu0 %v2191
    %2459 = vmatpush.bf16.msra.mxu0 %v2187
    %2460 = vmatpush.bf16.msra.mxu0 %v2183
    %2461 = vmatpush.bf16.msra.mxu0 %v2179
    %2462 = vmatmul.bf16.gmra.mxu0 %v1719
    %v2463 = vpop.f32.mrf.mxu0
    %v2464 = vadd.f32 %v2450, %v2463
    %v2465 = vpop.f32.mrf.mxu0
    %v2466 = vadd.f32 %v2452, %v2465
    %2467 = vdwg.mxu0
    %2468 = vmatpush.bf16.msra.mxu0 %v2239
    %2469 = vmatpush.bf16.msra.mxu0 %v2235
    %2470 = vmatpush.bf16.msra.mxu0 %v2231
    %2471 = vmatpush.bf16.msra.mxu0 %v2227
    %2472 = vmatpush.bf16.msra.mxu0 %v2223
    %2473 = vmatpush.bf16.msra.mxu0 %v2219
    %2474 = vmatpush.bf16.msra.mxu0 %v2215
    %2475 = vmatpush.bf16.msra.mxu0 %v2211
    %2476 = vmatmul.bf16.gmra.mxu0 %v1720
    %v2477 = vpop.f32.mrf.mxu0
    %v2478 = vadd.f32 %v2464, %v2477
    %v2479 = vpop.f32.mrf.mxu0
    %v2480 = vadd.f32 %v2466, %v2479
    %2481 = vdwg.mxu0
    %2482 = vmatpush.bf16.msra.mxu0 %v2144
    %2483 = vmatpush.bf16.msra.mxu0 %v2140
    %2484 = vmatpush.bf16.msra.mxu0 %v2136
    %2485 = vmatpush.bf16.msra.mxu0 %v2132
    %2486 = vmatpush.bf16.msra.mxu0 %v2128
    %2487 = vmatpush.bf16.msra.mxu0 %v2124
    %2488 = vmatpush.bf16.msra.mxu0 %v2120
    %2489 = vmatpush.bf16.msra.mxu0 %v2116
    %2490 = vmatmul.bf16.gmra.mxu0 %v1717
    %v2491 = vpop.f32.mrf.mxu0
    %v2492 = vadd.f32 %v1724, %v2491
    %v2493 = vpop.f32.mrf.mxu0
    %v2494 = vadd.f32 %v1724, %v2493
    %2495 = vdwg.mxu0
    %2496 = vmatpush.bf16.msra.mxu0 %v2176
    %2497 = vmatpush.bf16.msra.mxu0 %v2172
    %2498 = vmatpush.bf16.msra.mxu0 %v2168
    %2499 = vmatpush.bf16.msra.mxu0 %v2164
    %2500 = vmatpush.bf16.msra.mxu0 %v2160
    %2501 = vmatpush.bf16.msra.mxu0 %v2156
    %2502 = vmatpush.bf16.msra.mxu0 %v2152
    %2503 = vmatpush.bf16.msra.mxu0 %v2148
    %2504 = vmatmul.bf16.gmra.mxu0 %v1718
    %v2505 = vpop.f32.mrf.mxu0
    %v2506 = vadd.f32 %v2492, %v2505
    %v2507 = vpop.f32.mrf.mxu0
    %v2508 = vadd.f32 %v2494, %v2507
    %2509 = vdwg.mxu0
    %2510 = vmatpush.bf16.msra.mxu0 %v2208
    %2511 = vmatpush.bf16.msra.mxu0 %v2204
    %2512 = vmatpush.bf16.msra.mxu0 %v2200
    %2513 = vmatpush.bf16.msra.mxu0 %v2196
    %2514 = vmatpush.bf16.msra.mxu0 %v2192
    %2515 = vmatpush.bf16.msra.mxu0 %v2188
    %2516 = vmatpush.bf16.msra.mxu0 %v2184
    %2517 = vmatpush.bf16.msra.mxu0 %v2180
    %2518 = vmatmul.bf16.gmra.mxu0 %v1719
    %v2519 = vpop.f32.mrf.mxu0
    %v2520 = vadd.f32 %v2506, %v2519
    %v2521 = vpop.f32.mrf.mxu0
    %v2522 = vadd.f32 %v2508, %v2521
    %2523 = vdwg.mxu0
    %2524 = vmatpush.bf16.msra.mxu0 %v2240
    %2525 = vmatpush.bf16.msra.mxu0 %v2236
    %2526 = vmatpush.bf16.msra.mxu0 %v2232
    %2527 = vmatpush.bf16.msra.mxu0 %v2228
    %2528 = vmatpush.bf16.msra.mxu0 %v2224
    %2529 = vmatpush.bf16.msra.mxu0 %v2220
    %2530 = vmatpush.bf16.msra.mxu0 %v2216
    %2531 = vmatpush.bf16.msra.mxu0 %v2212
    %2532 = vmatmul.bf16.gmra.mxu0 %v1720
    %v2533 = vpop.f32.mrf.mxu0
    %v2534 = vadd.f32 %v2520, %v2533
    %v2535 = vpop.f32.mrf.mxu0
    %v2536 = vadd.f32 %v2522, %v2535
    %2537 = vdwg.mxu0
    %2538 = vmatpush.bf16.msra.mxu0 %v2145
    %2539 = vmatpush.bf16.msra.mxu0 %v2141
    %2540 = vmatpush.bf16.msra.mxu0 %v2137
    %2541 = vmatpush.bf16.msra.mxu0 %v2133
    %2542 = vmatpush.bf16.msra.mxu0 %v2129
    %2543 = vmatpush.bf16.msra.mxu0 %v2125
    %2544 = vmatpush.bf16.msra.mxu0 %v2121
    %2545 = vmatpush.bf16.msra.mxu0 %v2117
    %2546 = vmatmul.bf16.gmra.mxu0 %v1717
    %v2547 = vpop.f32.mrf.mxu0
    %v2548 = vadd.f32 %v1725, %v2547
    %v2549 = vpop.f32.mrf.mxu0
    %v2550 = vadd.f32 %v1725, %v2549
    %2551 = vdwg.mxu0
    %2552 = vmatpush.bf16.msra.mxu0 %v2177
    %2553 = vmatpush.bf16.msra.mxu0 %v2173
    %2554 = vmatpush.bf16.msra.mxu0 %v2169
    %2555 = vmatpush.bf16.msra.mxu0 %v2165
    %2556 = vmatpush.bf16.msra.mxu0 %v2161
    %2557 = vmatpush.bf16.msra.mxu0 %v2157
    %2558 = vmatpush.bf16.msra.mxu0 %v2153
    %2559 = vmatpush.bf16.msra.mxu0 %v2149
    %2560 = vmatmul.bf16.gmra.mxu0 %v1718
    %v2561 = vpop.f32.mrf.mxu0
    %v2562 = vadd.f32 %v2548, %v2561
    %v2563 = vpop.f32.mrf.mxu0
    %v2564 = vadd.f32 %v2550, %v2563
    %2565 = vdwg.mxu0
    %2566 = vmatpush.bf16.msra.mxu0 %v2209
    %2567 = vmatpush.bf16.msra.mxu0 %v2205
    %2568 = vmatpush.bf16.msra.mxu0 %v2201
    %2569 = vmatpush.bf16.msra.mxu0 %v2197
    %2570 = vmatpush.bf16.msra.mxu0 %v2193
    %2571 = vmatpush.bf16.msra.mxu0 %v2189
    %2572 = vmatpush.bf16.msra.mxu0 %v2185
    %2573 = vmatpush.bf16.msra.mxu0 %v2181
    %2574 = vmatmul.bf16.gmra.mxu0 %v1719
    %v2575 = vpop.f32.mrf.mxu0
    %v2576 = vadd.f32 %v2562, %v2575
    %v2577 = vpop.f32.mrf.mxu0
    %v2578 = vadd.f32 %v2564, %v2577
    %2579 = vdwg.mxu0
    %2580 = vmatpush.bf16.msra.mxu0 %v2241
    %2581 = vmatpush.bf16.msra.mxu0 %v2237
    %2582 = vmatpush.bf16.msra.mxu0 %v2233
    %2583 = vmatpush.bf16.msra.mxu0 %v2229
    %2584 = vmatpush.bf16.msra.mxu0 %v2225
    %2585 = vmatpush.bf16.msra.mxu0 %v2221
    %2586 = vmatpush.bf16.msra.mxu0 %v2217
    %2587 = vmatpush.bf16.msra.mxu0 %v2213
    %2588 = vmatmul.bf16.gmra.mxu0 %v1720
    %v2589 = vpop.f32.mrf.mxu0
    %v2590 = vadd.f32 %v2576, %v2589
    %v2591 = vpop.f32.mrf.mxu0
    %v2592 = vadd.f32 %v2578, %v2591
    %2593 = vdwg.mxu0
    %v2594 = vadd.f32 %v2422, %v2424
    %v2595 = vrot.slane %v2594, 4
    %v2596 = vadd.f32 %v2594, %v2595
    %v2597 = vrot.slane %v2596, 2
    %v2598 = vadd.f32 %v2596, %v2597
    %v2599 = vrot.slane %v2598, 1
    %v2600 = vadd.f32 %v2598, %v2599
    %v2601 = vadd.f32 %v2478, %v2480
    %v2602 = vrot.slane %v2601, 4
    %v2603 = vadd.f32 %v2601, %v2602
    %v2604 = vrot.slane %v2603, 2
    %v2605 = vadd.f32 %v2603, %v2604
    %v2606 = vrot.slane %v2605, 1
    %v2607 = vadd.f32 %v2605, %v2606
    %v2608 = vadd.f32 %v2534, %v2536
    %v2609 = vrot.slane %v2608, 4
    %v2610 = vadd.f32 %v2608, %v2609
    %v2611 = vrot.slane %v2610, 2
    %v2612 = vadd.f32 %v2610, %v2611
    %v2613 = vrot.slane %v2612, 1
    %v2614 = vadd.f32 %v2612, %v2613
    %v2615 = vadd.f32 %v2590, %v2592
    %v2616 = vrot.slane %v2615, 4
    %v2617 = vadd.f32 %v2615, %v2616
    %v2618 = vrot.slane %v2617, 2
    %v2619 = vadd.f32 %v2617, %v2618
    %v2620 = vrot.slane %v2619, 1
    %v2621 = vadd.f32 %v2619, %v2620
    %v2622 = vmul.f32 %v2600, %v1543
    %v2623 = vmul.f32 %v2607, %v1543
    %v2624 = vmul.f32 %v2614, %v1543
    %v2625 = vmul.f32 %v2621, %v1543
    %v2626 = vmul.f32 %v2422, %v2422
    %v2627 = vmul.f32 %v2478, %v2478
    %v2628 = vmul.f32 %v2534, %v2534
    %v2629 = vmul.f32 %v2590, %v2590
    %v2630 = vmul.f32 %v2424, %v2424
    %v2631 = vmul.f32 %v2480, %v2480
    %v2632 = vmul.f32 %v2536, %v2536
    %v2633 = vmul.f32 %v2592, %v2592
    %v2634 = vadd.f32 %v2626, %v2630
    %v2635 = vrot.slane %v2634, 4
    %v2636 = vadd.f32 %v2634, %v2635
    %v2637 = vrot.slane %v2636, 2
    %v2638 = vadd.f32 %v2636, %v2637
    %v2639 = vrot.slane %v2638, 1
    %v2640 = vadd.f32 %v2638, %v2639
    %v2641 = vadd.f32 %v2627, %v2631
    %v2642 = vrot.slane %v2641, 4
    %v2643 = vadd.f32 %v2641, %v2642
    %v2644 = vrot.slane %v2643, 2
    %v2645 = vadd.f32 %v2643, %v2644
    %v2646 = vrot.slane %v2645, 1
    %v2647 = vadd.f32 %v2645, %v2646
    %v2648 = vadd.f32 %v2628, %v2632
    %v2649 = vrot.slane %v2648, 4
    %v2650 = vadd.f32 %v2648, %v2649
    %v2651 = vrot.slane %v2650, 2
    %v2652 = vadd.f32 %v2650, %v2651
    %v2653 = vrot.slane %v2652, 1
    %v2654 = vadd.f32 %v2652, %v2653
    %v2655 = vadd.f32 %v2629, %v2633
    %v2656 = vrot.slane %v2655, 4
    %v2657 = vadd.f32 %v2655, %v2656
    %v2658 = vrot.slane %v2657, 2
    %v2659 = vadd.f32 %v2657, %v2658
    %v2660 = vrot.slane %v2659, 1
    %v2661 = vadd.f32 %v2659, %v2660
    %v2662 = vmul.f32 %v2640, %v1543
    %v2663 = vmul.f32 %v2647, %v1543
    %v2664 = vmul.f32 %v2654, %v1543
    %v2665 = vmul.f32 %v2661, %v1543
    %v2666 = vmul.f32 %v2622, %v2622
    %v2667 = vmul.f32 %v2623, %v2623
    %v2668 = vmul.f32 %v2624, %v2624
    %v2669 = vmul.f32 %v2625, %v2625
    %v2670 = vsub.f32 %v2662, %v2666
    %v2671 = vsub.f32 %v2663, %v2667
    %v2672 = vsub.f32 %v2664, %v2668
    %v2673 = vsub.f32 %v2665, %v2669
    %v2674 = vmax.f32 %v2670, 0.0
    %v2675 = vmax.f32 %v2671, 0.0
    %v2676 = vmax.f32 %v2672, 0.0
    %v2677 = vmax.f32 %v2673, 0.0
    %v2678 = vadd.f32 %v2674, 1e-05
    %v2679 = vadd.f32 %v2675, 1e-05
    %v2680 = vadd.f32 %v2676, 1e-05
    %v2681 = vadd.f32 %v2677, 1e-05
    %v2682 = vrsqrt.pop %v2678
    %v2683 = vmul.f32 %v2682, %v2678
    %v2684 = vmul.f32 %v2683, %v2682
    %v2685 = vmul.f32 0.5, %v2684
    %v2686 = vsub.f32 1.5, %v2685
    %v2687 = vmul.f32 %v2682, %v2686
    %vm2688 = vweird.f32 %v2678
    %vm2689 = vweird.f32 %v2682
    %vm2690 = vmor %vm2688, %vm2689
    %v2691 = vsel %vm2690, %v2682, %v2687
    %v2692 = vrsqrt.pop %v2679
    %v2693 = vmul.f32 %v2692, %v2679
    %v2694 = vmul.f32 %v2693, %v2692
    %v2695 = vmul.f32 0.5, %v2694
    %v2696 = vsub.f32 1.5, %v2695
    %v2697 = vmul.f32 %v2692, %v2696
    %vm2698 = vweird.f32 %v2679
    %vm2699 = vweird.f32 %v2692
    %vm2700 = vmor %vm2698, %vm2699
    %v2701 = vsel %vm2700, %v2692, %v2697
    %v2702 = vrsqrt.pop %v2680
    %v2703 = vmul.f32 %v2702, %v2680
    %v2704 = vmul.f32 %v2703, %v2702
    %v2705 = vmul.f32 0.5, %v2704
    %v2706 = vsub.f32 1.5, %v2705
    %v2707 = vmul.f32 %v2702, %v2706
    %vm2708 = vweird.f32 %v2680
    %vm2709 = vweird.f32 %v2702
    %vm2710 = vmor %vm2708, %vm2709
    %v2711 = vsel %vm2710, %v2702, %v2707
    %v2712 = vrsqrt.pop %v2681
    %v2713 = vmul.f32 %v2712, %v2681
    %v2714 = vmul.f32 %v2713, %v2712
    %v2715 = vmul.f32 0.5, %v2714
    %v2716 = vsub.f32 1.5, %v2715
    %v2717 = vmul.f32 %v2712, %v2716
    %vm2718 = vweird.f32 %v2681
    %vm2719 = vweird.f32 %v2712
    %vm2720 = vmor %vm2718, %vm2719
    %v2721 = vsel %vm2720, %v2712, %v2717
    %v2726 = vrot.slane %v2701, 7
    %v2727 = vrot.slane %v2711, 6
    %v2728 = vrot.slane %v2721, 5
    %v2729 = vsel %vm1651, %v2691, %v2726
    %v2730 = vsel %vm1653, %v2727, %v2728
    %v2731 = vsel %vm1655, %v2729, %v2730
    %v2733 = vmul.f32 %v1080, %v2731
    %v2735 = vperm.slane %v2733, 0
    %v2736 = vperm.slane %v2733, 1
    %v2737 = vperm.slane %v2733, 2
    %v2738 = vperm.slane %v2733, 3
    %v2743 = vmul.f32 %v2622, %v2735
    %v2744 = vmul.f32 %v2623, %v2736
    %v2745 = vmul.f32 %v2624, %v2737
    %v2746 = vmul.f32 %v2625, %v2738
    %v2751 = vrot.slane %v2744, 7
    %v2752 = vrot.slane %v2745, 6
    %v2753 = vrot.slane %v2746, 5
    %v2754 = vsel %vm1651, %v2743, %v2751
    %v2755 = vsel %vm1653, %v2752, %v2753
    %v2756 = vsel %vm1655, %v2754, %v2755
    %v2758 = vsub.f32 %v1081, %v2756
    %v2759 = vmul.f32 %v2422, %v2735
    %v2760 = vmul.f32 %v2478, %v2736
    %v2761 = vmul.f32 %v2534, %v2737
    %v2762 = vmul.f32 %v2590, %v2738
    %v2763 = vmul.f32 %v2424, %v2735
    %v2764 = vmul.f32 %v2480, %v2736
    %v2765 = vmul.f32 %v2536, %v2737
    %v2766 = vmul.f32 %v2592, %v2738
    %v2768 = vperm.slane %v2758, 0
    %v2769 = vperm.slane %v2758, 1
    %v2770 = vperm.slane %v2758, 2
    %v2771 = vperm.slane %v2758, 3
    %v2776 = vadd.f32 %v2759, %v2768
    %v2777 = vadd.f32 %v2760, %v2769
    %v2778 = vadd.f32 %v2761, %v2770
    %v2779 = vadd.f32 %v2762, %v2771
    %v2780 = vadd.f32 %v2763, %v2768
    %v2781 = vadd.f32 %v2764, %v2769
    %v2782 = vadd.f32 %v2765, %v2770
    %v2783 = vadd.f32 %v2766, %v2771
    %v2784 = vmax.f32 %v2776, 0.0
    %v2785 = vmax.f32 %v2777, 0.0
    %v2786 = vmax.f32 %v2778, 0.0
    %v2787 = vmax.f32 %v2779, 0.0
    %v2788 = vmax.f32 %v2780, 0.0
    %v2789 = vmax.f32 %v2781, 0.0
    %v2790 = vmax.f32 %v2782, 0.0
    %v2791 = vmax.f32 %v2783, 0.0
    %v2792 = vpack.c.bf16 %v2788, %v2784
    %v2793 = vpack.c.bf16 %v2789, %v2785
    %v2794 = vpack.c.bf16 %v2790, %v2786
    %v2795 = vpack.c.bf16 %v2791, %v2787
    %2796 = vmatpush.bf16.msra.mxu0 %v2142
    %2797 = vmatpush.bf16.msra.mxu0 %v2138
    %2798 = vmatpush.bf16.msra.mxu0 %v2134
    %2799 = vmatpush.bf16.msra.mxu0 %v2130
    %2800 = vmatpush.bf16.msra.mxu0 %v2126
    %2801 = vmatpush.bf16.msra.mxu0 %v2122
    %2802 = vmatpush.bf16.msra.mxu0 %v2118
    %2803 = vmatpush.bf16.msra.mxu0 %v2114
    %2804 = vmatmul.bf16.gmra.mxu0 %v2792
    %v2805 = vpop.f32.mrf.mxu0
    %v2806 = vadd.f32 %v1722, %v2805
    %v2807 = vpop.f32.mrf.mxu0
    %v2808 = vadd.f32 %v1722, %v2807
    %2809 = vdwg.mxu0
    %2810 = vmatpush.bf16.msra.mxu0 %v2174
    %2811 = vmatpush.bf16.msra.mxu0 %v2170
    %2812 = vmatpush.bf16.msra.mxu0 %v2166
    %2813 = vmatpush.bf16.msra.mxu0 %v2162
    %2814 = vmatpush.bf16.msra.mxu0 %v2158
    %2815 = vmatpush.bf16.msra.mxu0 %v2154
    %2816 = vmatpush.bf16.msra.mxu0 %v2150
    %2817 = vmatpush.bf16.msra.mxu0 %v2146
    %2818 = vmatmul.bf16.gmra.mxu0 %v2793
    %v2819 = vpop.f32.mrf.mxu0
    %v2820 = vadd.f32 %v2806, %v2819
    %v2821 = vpop.f32.mrf.mxu0
    %v2822 = vadd.f32 %v2808, %v2821
    %2823 = vdwg.mxu0
    %2824 = vmatpush.bf16.msra.mxu0 %v2206
    %2825 = vmatpush.bf16.msra.mxu0 %v2202
    %2826 = vmatpush.bf16.msra.mxu0 %v2198
    %2827 = vmatpush.bf16.msra.mxu0 %v2194
    %2828 = vmatpush.bf16.msra.mxu0 %v2190
    %2829 = vmatpush.bf16.msra.mxu0 %v2186
    %2830 = vmatpush.bf16.msra.mxu0 %v2182
    %2831 = vmatpush.bf16.msra.mxu0 %v2178
    %2832 = vmatmul.bf16.gmra.mxu0 %v2794
    %v2833 = vpop.f32.mrf.mxu0
    %v2834 = vadd.f32 %v2820, %v2833
    %v2835 = vpop.f32.mrf.mxu0
    %v2836 = vadd.f32 %v2822, %v2835
    %2837 = vdwg.mxu0
    %2838 = vmatpush.bf16.msra.mxu0 %v2238
    %2839 = vmatpush.bf16.msra.mxu0 %v2234
    %2840 = vmatpush.bf16.msra.mxu0 %v2230
    %2841 = vmatpush.bf16.msra.mxu0 %v2226
    %2842 = vmatpush.bf16.msra.mxu0 %v2222
    %2843 = vmatpush.bf16.msra.mxu0 %v2218
    %2844 = vmatpush.bf16.msra.mxu0 %v2214
    %2845 = vmatpush.bf16.msra.mxu0 %v2210
    %2846 = vmatmul.bf16.gmra.mxu0 %v2795
    %v2847 = vpop.f32.mrf.mxu0
    %v2848 = vadd.f32 %v2834, %v2847
    %v2849 = vpop.f32.mrf.mxu0
    %v2850 = vadd.f32 %v2836, %v2849
    %2851 = vdwg.mxu0
    %2852 = vmatpush.bf16.msra.mxu0 %v2143
    %2853 = vmatpush.bf16.msra.mxu0 %v2139
    %2854 = vmatpush.bf16.msra.mxu0 %v2135
    %2855 = vmatpush.bf16.msra.mxu0 %v2131
    %2856 = vmatpush.bf16.msra.mxu0 %v2127
    %2857 = vmatpush.bf16.msra.mxu0 %v2123
    %2858 = vmatpush.bf16.msra.mxu0 %v2119
    %2859 = vmatpush.bf16.msra.mxu0 %v2115
    %2860 = vmatmul.bf16.gmra.mxu0 %v2792
    %v2861 = vpop.f32.mrf.mxu0
    %v2862 = vadd.f32 %v1723, %v2861
    %v2863 = vpop.f32.mrf.mxu0
    %v2864 = vadd.f32 %v1723, %v2863
    %2865 = vdwg.mxu0
    %2866 = vmatpush.bf16.msra.mxu0 %v2175
    %2867 = vmatpush.bf16.msra.mxu0 %v2171
    %2868 = vmatpush.bf16.msra.mxu0 %v2167
    %2869 = vmatpush.bf16.msra.mxu0 %v2163
    %2870 = vmatpush.bf16.msra.mxu0 %v2159
    %2871 = vmatpush.bf16.msra.mxu0 %v2155
    %2872 = vmatpush.bf16.msra.mxu0 %v2151
    %2873 = vmatpush.bf16.msra.mxu0 %v2147
    %2874 = vmatmul.bf16.gmra.mxu0 %v2793
    %v2875 = vpop.f32.mrf.mxu0
    %v2876 = vadd.f32 %v2862, %v2875
    %v2877 = vpop.f32.mrf.mxu0
    %v2878 = vadd.f32 %v2864, %v2877
    %2879 = vdwg.mxu0
    %2880 = vmatpush.bf16.msra.mxu0 %v2207
    %2881 = vmatpush.bf16.msra.mxu0 %v2203
    %2882 = vmatpush.bf16.msra.mxu0 %v2199
    %2883 = vmatpush.bf16.msra.mxu0 %v2195
    %2884 = vmatpush.bf16.msra.mxu0 %v2191
    %2885 = vmatpush.bf16.msra.mxu0 %v2187
    %2886 = vmatpush.bf16.msra.mxu0 %v2183
    %2887 = vmatpush.bf16.msra.mxu0 %v2179
    %2888 = vmatmul.bf16.gmra.mxu0 %v2794
    %v2889 = vpop.f32.mrf.mxu0
    %v2890 = vadd.f32 %v2876, %v2889
    %v2891 = vpop.f32.mrf.mxu0
    %v2892 = vadd.f32 %v2878, %v2891
    %2893 = vdwg.mxu0
    %2894 = vmatpush.bf16.msra.mxu0 %v2239
    %2895 = vmatpush.bf16.msra.mxu0 %v2235
    %2896 = vmatpush.bf16.msra.mxu0 %v2231
    %2897 = vmatpush.bf16.msra.mxu0 %v2227
    %2898 = vmatpush.bf16.msra.mxu0 %v2223
    %2899 = vmatpush.bf16.msra.mxu0 %v2219
    %2900 = vmatpush.bf16.msra.mxu0 %v2215
    %2901 = vmatpush.bf16.msra.mxu0 %v2211
    %2902 = vmatmul.bf16.gmra.mxu0 %v2795
    %v2903 = vpop.f32.mrf.mxu0
    %v2904 = vadd.f32 %v2890, %v2903
    %v2905 = vpop.f32.mrf.mxu0
    %v2906 = vadd.f32 %v2892, %v2905
    %2907 = vdwg.mxu0
    %2908 = vmatpush.bf16.msra.mxu0 %v2144
    %2909 = vmatpush.bf16.msra.mxu0 %v2140
    %2910 = vmatpush.bf16.msra.mxu0 %v2136
    %2911 = vmatpush.bf16.msra.mxu0 %v2132
    %2912 = vmatpush.bf16.msra.mxu0 %v2128
    %2913 = vmatpush.bf16.msra.mxu0 %v2124
    %2914 = vmatpush.bf16.msra.mxu0 %v2120
    %2915 = vmatpush.bf16.msra.mxu0 %v2116
    %2916 = vmatmul.bf16.gmra.mxu0 %v2792
    %v2917 = vpop.f32.mrf.mxu0
    %v2918 = vadd.f32 %v1724, %v2917
    %v2919 = vpop.f32.mrf.mxu0
    %v2920 = vadd.f32 %v1724, %v2919
    %2921 = vdwg.mxu0
    %2922 = vmatpush.bf16.msra.mxu0 %v2176
    %2923 = vmatpush.bf16.msra.mxu0 %v2172
    %2924 = vmatpush.bf16.msra.mxu0 %v2168
    %2925 = vmatpush.bf16.msra.mxu0 %v2164
    %2926 = vmatpush.bf16.msra.mxu0 %v2160
    %2927 = vmatpush.bf16.msra.mxu0 %v2156
    %2928 = vmatpush.bf16.msra.mxu0 %v2152
    %2929 = vmatpush.bf16.msra.mxu0 %v2148
    %2930 = vmatmul.bf16.gmra.mxu0 %v2793
    %v2931 = vpop.f32.mrf.mxu0
    %v2932 = vadd.f32 %v2918, %v2931
    %v2933 = vpop.f32.mrf.mxu0
    %v2934 = vadd.f32 %v2920, %v2933
    %2935 = vdwg.mxu0
    %2936 = vmatpush.bf16.msra.mxu0 %v2208
    %2937 = vmatpush.bf16.msra.mxu0 %v2204
    %2938 = vmatpush.bf16.msra.mxu0 %v2200
    %2939 = vmatpush.bf16.msra.mxu0 %v2196
    %2940 = vmatpush.bf16.msra.mxu0 %v2192
    %2941 = vmatpush.bf16.msra.mxu0 %v2188
    %2942 = vmatpush.bf16.msra.mxu0 %v2184
    %2943 = vmatpush.bf16.msra.mxu0 %v2180
    %2944 = vmatmul.bf16.gmra.mxu0 %v2794
    %v2945 = vpop.f32.mrf.mxu0
    %v2946 = vadd.f32 %v2932, %v2945
    %v2947 = vpop.f32.mrf.mxu0
    %v2948 = vadd.f32 %v2934, %v2947
    %2949 = vdwg.mxu0
    %2950 = vmatpush.bf16.msra.mxu0 %v2240
    %2951 = vmatpush.bf16.msra.mxu0 %v2236
    %2952 = vmatpush.bf16.msra.mxu0 %v2232
    %2953 = vmatpush.bf16.msra.mxu0 %v2228
    %2954 = vmatpush.bf16.msra.mxu0 %v2224
    %2955 = vmatpush.bf16.msra.mxu0 %v2220
    %2956 = vmatpush.bf16.msra.mxu0 %v2216
    %2957 = vmatpush.bf16.msra.mxu0 %v2212
    %2958 = vmatmul.bf16.gmra.mxu0 %v2795
    %v2959 = vpop.f32.mrf.mxu0
    %v2960 = vadd.f32 %v2946, %v2959
    %v2961 = vpop.f32.mrf.mxu0
    %v2962 = vadd.f32 %v2948, %v2961
    %2963 = vdwg.mxu0
    %2964 = vmatpush.bf16.msra.mxu0 %v2145
    %2965 = vmatpush.bf16.msra.mxu0 %v2141
    %2966 = vmatpush.bf16.msra.mxu0 %v2137
    %2967 = vmatpush.bf16.msra.mxu0 %v2133
    %2968 = vmatpush.bf16.msra.mxu0 %v2129
    %2969 = vmatpush.bf16.msra.mxu0 %v2125
    %2970 = vmatpush.bf16.msra.mxu0 %v2121
    %2971 = vmatpush.bf16.msra.mxu0 %v2117
    %2972 = vmatmul.bf16.gmra.mxu0 %v2792
    %v2973 = vpop.f32.mrf.mxu0
    %v2974 = vadd.f32 %v1725, %v2973
    %v2975 = vpop.f32.mrf.mxu0
    %v2976 = vadd.f32 %v1725, %v2975
    %2977 = vdwg.mxu0
    %2978 = vmatpush.bf16.msra.mxu0 %v2177
    %2979 = vmatpush.bf16.msra.mxu0 %v2173
    %2980 = vmatpush.bf16.msra.mxu0 %v2169
    %2981 = vmatpush.bf16.msra.mxu0 %v2165
    %2982 = vmatpush.bf16.msra.mxu0 %v2161
    %2983 = vmatpush.bf16.msra.mxu0 %v2157
    %2984 = vmatpush.bf16.msra.mxu0 %v2153
    %2985 = vmatpush.bf16.msra.mxu0 %v2149
    %2986 = vmatmul.bf16.gmra.mxu0 %v2793
    %v2987 = vpop.f32.mrf.mxu0
    %v2988 = vadd.f32 %v2974, %v2987
    %v2989 = vpop.f32.mrf.mxu0
    %v2990 = vadd.f32 %v2976, %v2989
    %2991 = vdwg.mxu0
    %2992 = vmatpush.bf16.msra.mxu0 %v2209
    %2993 = vmatpush.bf16.msra.mxu0 %v2205
    %2994 = vmatpush.bf16.msra.mxu0 %v2201
    %2995 = vmatpush.bf16.msra.mxu0 %v2197
    %2996 = vmatpush.bf16.msra.mxu0 %v2193
    %2997 = vmatpush.bf16.msra.mxu0 %v2189
    %2998 = vmatpush.bf16.msra.mxu0 %v2185
    %2999 = vmatpush.bf16.msra.mxu0 %v2181
    %3000 = vmatmul.bf16.gmra.mxu0 %v2794
    %v3001 = vpop.f32.mrf.mxu0
    %v3002 = vadd.f32 %v2988, %v3001
    %v3003 = vpop.f32.mrf.mxu0
    %v3004 = vadd.f32 %v2990, %v3003
    %3005 = vdwg.mxu0
    %3006 = vmatpush.bf16.msra.mxu0 %v2241
    %3007 = vmatpush.bf16.msra.mxu0 %v2237
    %3008 = vmatpush.bf16.msra.mxu0 %v2233
    %3009 = vmatpush.bf16.msra.mxu0 %v2229
    %3010 = vmatpush.bf16.msra.mxu0 %v2225
    %3011 = vmatpush.bf16.msra.mxu0 %v2221
    %3012 = vmatpush.bf16.msra.mxu0 %v2217
    %3013 = vmatpush.bf16.msra.mxu0 %v2213
    %3014 = vmatmul.bf16.gmra.mxu0 %v2795
    %v3015 = vpop.f32.mrf.mxu0
    %v3016 = vadd.f32 %v3002, %v3015
    %v3017 = vpop.f32.mrf.mxu0
    %v3018 = vadd.f32 %v3004, %v3017
    %3019 = vdwg.mxu0
    %v3020 = vadd.f32 %v2848, %v2850
    %v3021 = vrot.slane %v3020, 4
    %v3022 = vadd.f32 %v3020, %v3021
    %v3023 = vrot.slane %v3022, 2
    %v3024 = vadd.f32 %v3022, %v3023
    %v3025 = vrot.slane %v3024, 1
    %v3026 = vadd.f32 %v3024, %v3025
    %v3027 = vadd.f32 %v2904, %v2906
    %v3028 = vrot.slane %v3027, 4
    %v3029 = vadd.f32 %v3027, %v3028
    %v3030 = vrot.slane %v3029, 2
    %v3031 = vadd.f32 %v3029, %v3030
    %v3032 = vrot.slane %v3031, 1
    %v3033 = vadd.f32 %v3031, %v3032
    %v3034 = vadd.f32 %v2960, %v2962
    %v3035 = vrot.slane %v3034, 4
    %v3036 = vadd.f32 %v3034, %v3035
    %v3037 = vrot.slane %v3036, 2
    %v3038 = vadd.f32 %v3036, %v3037
    %v3039 = vrot.slane %v3038, 1
    %v3040 = vadd.f32 %v3038, %v3039
    %v3041 = vadd.f32 %v3016, %v3018
    %v3042 = vrot.slane %v3041, 4
    %v3043 = vadd.f32 %v3041, %v3042
    %v3044 = vrot.slane %v3043, 2
    %v3045 = vadd.f32 %v3043, %v3044
    %v3046 = vrot.slane %v3045, 1
    %v3047 = vadd.f32 %v3045, %v3046
    %v3048 = vmul.f32 %v3026, %v1543
    %v3049 = vmul.f32 %v3033, %v1543
    %v3050 = vmul.f32 %v3040, %v1543
    %v3051 = vmul.f32 %v3047, %v1543
    %v3052 = vmul.f32 %v2848, %v2848
    %v3053 = vmul.f32 %v2904, %v2904
    %v3054 = vmul.f32 %v2960, %v2960
    %v3055 = vmul.f32 %v3016, %v3016
    %v3056 = vmul.f32 %v2850, %v2850
    %v3057 = vmul.f32 %v2906, %v2906
    %v3058 = vmul.f32 %v2962, %v2962
    %v3059 = vmul.f32 %v3018, %v3018
    %v3060 = vadd.f32 %v3052, %v3056
    %v3061 = vrot.slane %v3060, 4
    %v3062 = vadd.f32 %v3060, %v3061
    %v3063 = vrot.slane %v3062, 2
    %v3064 = vadd.f32 %v3062, %v3063
    %v3065 = vrot.slane %v3064, 1
    %v3066 = vadd.f32 %v3064, %v3065
    %v3067 = vadd.f32 %v3053, %v3057
    %v3068 = vrot.slane %v3067, 4
    %v3069 = vadd.f32 %v3067, %v3068
    %v3070 = vrot.slane %v3069, 2
    %v3071 = vadd.f32 %v3069, %v3070
    %v3072 = vrot.slane %v3071, 1
    %v3073 = vadd.f32 %v3071, %v3072
    %v3074 = vadd.f32 %v3054, %v3058
    %v3075 = vrot.slane %v3074, 4
    %v3076 = vadd.f32 %v3074, %v3075
    %v3077 = vrot.slane %v3076, 2
    %v3078 = vadd.f32 %v3076, %v3077
    %v3079 = vrot.slane %v3078, 1
    %v3080 = vadd.f32 %v3078, %v3079
    %v3081 = vadd.f32 %v3055, %v3059
    %v3082 = vrot.slane %v3081, 4
    %v3083 = vadd.f32 %v3081, %v3082
    %v3084 = vrot.slane %v3083, 2
    %v3085 = vadd.f32 %v3083, %v3084
    %v3086 = vrot.slane %v3085, 1
    %v3087 = vadd.f32 %v3085, %v3086
    %v3088 = vmul.f32 %v3066, %v1543
    %v3089 = vmul.f32 %v3073, %v1543
    %v3090 = vmul.f32 %v3080, %v1543
    %v3091 = vmul.f32 %v3087, %v1543
    %v3092 = vmul.f32 %v3048, %v3048
    %v3093 = vmul.f32 %v3049, %v3049
    %v3094 = vmul.f32 %v3050, %v3050
    %v3095 = vmul.f32 %v3051, %v3051
    %v3096 = vsub.f32 %v3088, %v3092
    %v3097 = vsub.f32 %v3089, %v3093
    %v3098 = vsub.f32 %v3090, %v3094
    %v3099 = vsub.f32 %v3091, %v3095
    %v3100 = vmax.f32 %v3096, 0.0
    %v3101 = vmax.f32 %v3097, 0.0
    %v3102 = vmax.f32 %v3098, 0.0
    %v3103 = vmax.f32 %v3099, 0.0
    %v3104 = vadd.f32 %v3100, 1e-05
    %v3105 = vadd.f32 %v3101, 1e-05
    %v3106 = vadd.f32 %v3102, 1e-05
    %v3107 = vadd.f32 %v3103, 1e-05
    %v3108 = vrsqrt.pop %v3104
    %v3109 = vmul.f32 %v3108, %v3104
    %v3110 = vmul.f32 %v3109, %v3108
    %v3111 = vmul.f32 0.5, %v3110
    %v3112 = vsub.f32 1.5, %v3111
    %v3113 = vmul.f32 %v3108, %v3112
    %vm3114 = vweird.f32 %v3104
    %vm3115 = vweird.f32 %v3108
    %vm3116 = vmor %vm3114, %vm3115
    %v3117 = vsel %vm3116, %v3108, %v3113
    %v3118 = vrsqrt.pop %v3105
    %v3119 = vmul.f32 %v3118, %v3105
    %v3120 = vmul.f32 %v3119, %v3118
    %v3121 = vmul.f32 0.5, %v3120
    %v3122 = vsub.f32 1.5, %v3121
    %v3123 = vmul.f32 %v3118, %v3122
    %vm3124 = vweird.f32 %v3105
    %vm3125 = vweird.f32 %v3118
    %vm3126 = vmor %vm3124, %vm3125
    %v3127 = vsel %vm3126, %v3118, %v3123
    %v3128 = vrsqrt.pop %v3106
    %v3129 = vmul.f32 %v3128, %v3106
    %v3130 = vmul.f32 %v3129, %v3128
    %v3131 = vmul.f32 0.5, %v3130
    %v3132 = vsub.f32 1.5, %v3131
    %v3133 = vmul.f32 %v3128, %v3132
    %vm3134 = vweird.f32 %v3106
    %vm3135 = vweird.f32 %v3128
    %vm3136 = vmor %vm3134, %vm3135
    %v3137 = vsel %vm3136, %v3128, %v3133
    %v3138 = vrsqrt.pop %v3107
    %v3139 = vmul.f32 %v3138, %v3107
    %v3140 = vmul.f32 %v3139, %v3138
    %v3141 = vmul.f32 0.5, %v3140
    %v3142 = vsub.f32 1.5, %v3141
    %v3143 = vmul.f32 %v3138, %v3142
    %vm3144 = vweird.f32 %v3107
    %vm3145 = vweird.f32 %v3138
    %vm3146 = vmor %vm3144, %vm3145
    %v3147 = vsel %vm3146, %v3138, %v3143
    %v3152 = vrot.slane %v3127, 7
    %v3153 = vrot.slane %v3137, 6
    %v3154 = vrot.slane %v3147, 5
    %v3155 = vsel %vm1651, %v3117, %v3152
    %v3156 = vsel %vm1653, %v3153, %v3154
    %v3157 = vsel %vm1655, %v3155, %v3156
    %v3159 = vmul.f32 %v1080, %v3157
    %v3161 = vperm.slane %v3159, 0
    %v3162 = vperm.slane %v3159, 1
    %v3163 = vperm.slane %v3159, 2
    %v3164 = vperm.slane %v3159, 3
    %v3169 = vmul.f32 %v3048, %v3161
    %v3170 = vmul.f32 %v3049, %v3162
    %v3171 = vmul.f32 %v3050, %v3163
    %v3172 = vmul.f32 %v3051, %v3164
    %v3177 = vrot.slane %v3170, 7
    %v3178 = vrot.slane %v3171, 6
    %v3179 = vrot.slane %v3172, 5
    %v3180 = vsel %vm1651, %v3169, %v3177
    %v3181 = vsel %vm1653, %v3178, %v3179
    %v3182 = vsel %vm1655, %v3180, %v3181
    %v3184 = vsub.f32 %v1081, %v3182
    %v3185 = vmul.f32 %v2848, %v3161
    %v3186 = vmul.f32 %v2904, %v3162
    %v3187 = vmul.f32 %v2960, %v3163
    %v3188 = vmul.f32 %v3016, %v3164
    %v3189 = vmul.f32 %v2850, %v3161
    %v3190 = vmul.f32 %v2906, %v3162
    %v3191 = vmul.f32 %v2962, %v3163
    %v3192 = vmul.f32 %v3018, %v3164
    %v3194 = vperm.slane %v3184, 0
    %v3195 = vperm.slane %v3184, 1
    %v3196 = vperm.slane %v3184, 2
    %v3197 = vperm.slane %v3184, 3
    %v3202 = vadd.f32 %v3185, %v3194
    %v3203 = vadd.f32 %v3186, %v3195
    %v3204 = vadd.f32 %v3187, %v3196
    %v3205 = vadd.f32 %v3188, %v3197
    %v3206 = vadd.f32 %v3189, %v3194
    %v3207 = vadd.f32 %v3190, %v3195
    %v3208 = vadd.f32 %v3191, %v3196
    %v3209 = vadd.f32 %v3192, %v3197
    %v3210 = vmax.f32 %v3202, 0.0
    %v3211 = vmax.f32 %v3203, 0.0
    %v3212 = vmax.f32 %v3204, 0.0
    %v3213 = vmax.f32 %v3205, 0.0
    %v3214 = vmax.f32 %v3206, 0.0
    %v3215 = vmax.f32 %v3207, 0.0
    %v3216 = vmax.f32 %v3208, 0.0
    %v3217 = vmax.f32 %v3209, 0.0
    %v3218 = vpack.c.bf16 %v3214, %v3210
    %v3219 = vpack.c.bf16 %v3215, %v3211
    %v3220 = vpack.c.bf16 %v3216, %v3212
    %v3221 = vpack.c.bf16 %v3217, %v3213
    %3222 = vmatpush.bf16.msra.mxu0 %v2142
    %3223 = vmatpush.bf16.msra.mxu0 %v2138
    %3224 = vmatpush.bf16.msra.mxu0 %v2134
    %3225 = vmatpush.bf16.msra.mxu0 %v2130
    %3226 = vmatpush.bf16.msra.mxu0 %v2126
    %3227 = vmatpush.bf16.msra.mxu0 %v2122
    %3228 = vmatpush.bf16.msra.mxu0 %v2118
    %3229 = vmatpush.bf16.msra.mxu0 %v2114
    %3230 = vmatmul.bf16.gmra.mxu0 %v3218
    %v3231 = vpop.f32.mrf.mxu0
    %v3232 = vadd.f32 %v1722, %v3231
    %v3233 = vpop.f32.mrf.mxu0
    %v3234 = vadd.f32 %v1722, %v3233
    %3235 = vdwg.mxu0
    %3236 = vmatpush.bf16.msra.mxu0 %v2174
    %3237 = vmatpush.bf16.msra.mxu0 %v2170
    %3238 = vmatpush.bf16.msra.mxu0 %v2166
    %3239 = vmatpush.bf16.msra.mxu0 %v2162
    %3240 = vmatpush.bf16.msra.mxu0 %v2158
    %3241 = vmatpush.bf16.msra.mxu0 %v2154
    %3242 = vmatpush.bf16.msra.mxu0 %v2150
    %3243 = vmatpush.bf16.msra.mxu0 %v2146
    %3244 = vmatmul.bf16.gmra.mxu0 %v3219
    %v3245 = vpop.f32.mrf.mxu0
    %v3246 = vadd.f32 %v3232, %v3245
    %v3247 = vpop.f32.mrf.mxu0
    %v3248 = vadd.f32 %v3234, %v3247
    %3249 = vdwg.mxu0
    %3250 = vmatpush.bf16.msra.mxu0 %v2206
    %3251 = vmatpush.bf16.msra.mxu0 %v2202
    %3252 = vmatpush.bf16.msra.mxu0 %v2198
    %3253 = vmatpush.bf16.msra.mxu0 %v2194
    %3254 = vmatpush.bf16.msra.mxu0 %v2190
    %3255 = vmatpush.bf16.msra.mxu0 %v2186
    %3256 = vmatpush.bf16.msra.mxu0 %v2182
    %3257 = vmatpush.bf16.msra.mxu0 %v2178
    %3258 = vmatmul.bf16.gmra.mxu0 %v3220
    %v3259 = vpop.f32.mrf.mxu0
    %v3260 = vadd.f32 %v3246, %v3259
    %v3261 = vpop.f32.mrf.mxu0
    %v3262 = vadd.f32 %v3248, %v3261
    %3263 = vdwg.mxu0
    %3264 = vmatpush.bf16.msra.mxu0 %v2238
    %3265 = vmatpush.bf16.msra.mxu0 %v2234
    %3266 = vmatpush.bf16.msra.mxu0 %v2230
    %3267 = vmatpush.bf16.msra.mxu0 %v2226
    %3268 = vmatpush.bf16.msra.mxu0 %v2222
    %3269 = vmatpush.bf16.msra.mxu0 %v2218
    %3270 = vmatpush.bf16.msra.mxu0 %v2214
    %3271 = vmatpush.bf16.msra.mxu0 %v2210
    %3272 = vmatmul.bf16.gmra.mxu0 %v3221
    %v3273 = vpop.f32.mrf.mxu0
    %v3274 = vadd.f32 %v3260, %v3273
    %v3275 = vpop.f32.mrf.mxu0
    %v3276 = vadd.f32 %v3262, %v3275
    %3277 = vdwg.mxu0
    %3278 = vmatpush.bf16.msra.mxu0 %v2143
    %3279 = vmatpush.bf16.msra.mxu0 %v2139
    %3280 = vmatpush.bf16.msra.mxu0 %v2135
    %3281 = vmatpush.bf16.msra.mxu0 %v2131
    %3282 = vmatpush.bf16.msra.mxu0 %v2127
    %3283 = vmatpush.bf16.msra.mxu0 %v2123
    %3284 = vmatpush.bf16.msra.mxu0 %v2119
    %3285 = vmatpush.bf16.msra.mxu0 %v2115
    %3286 = vmatmul.bf16.gmra.mxu0 %v3218
    %v3287 = vpop.f32.mrf.mxu0
    %v3288 = vadd.f32 %v1723, %v3287
    %v3289 = vpop.f32.mrf.mxu0
    %v3290 = vadd.f32 %v1723, %v3289
    %3291 = vdwg.mxu0
    %3292 = vmatpush.bf16.msra.mxu0 %v2175
    %3293 = vmatpush.bf16.msra.mxu0 %v2171
    %3294 = vmatpush.bf16.msra.mxu0 %v2167
    %3295 = vmatpush.bf16.msra.mxu0 %v2163
    %3296 = vmatpush.bf16.msra.mxu0 %v2159
    %3297 = vmatpush.bf16.msra.mxu0 %v2155
    %3298 = vmatpush.bf16.msra.mxu0 %v2151
    %3299 = vmatpush.bf16.msra.mxu0 %v2147
    %3300 = vmatmul.bf16.gmra.mxu0 %v3219
    %v3301 = vpop.f32.mrf.mxu0
    %v3302 = vadd.f32 %v3288, %v3301
    %v3303 = vpop.f32.mrf.mxu0
    %v3304 = vadd.f32 %v3290, %v3303
    %3305 = vdwg.mxu0
    %3306 = vmatpush.bf16.msra.mxu0 %v2207
    %3307 = vmatpush.bf16.msra.mxu0 %v2203
    %3308 = vmatpush.bf16.msra.mxu0 %v2199
    %3309 = vmatpush.bf16.msra.mxu0 %v2195
    %3310 = vmatpush.bf16.msra.mxu0 %v2191
    %3311 = vmatpush.bf16.msra.mxu0 %v2187
    %3312 = vmatpush.bf16.msra.mxu0 %v2183
    %3313 = vmatpush.bf16.msra.mxu0 %v2179
    %3314 = vmatmul.bf16.gmra.mxu0 %v3220
    %v3315 = vpop.f32.mrf.mxu0
    %v3316 = vadd.f32 %v3302, %v3315
    %v3317 = vpop.f32.mrf.mxu0
    %v3318 = vadd.f32 %v3304, %v3317
    %3319 = vdwg.mxu0
    %3320 = vmatpush.bf16.msra.mxu0 %v2239
    %3321 = vmatpush.bf16.msra.mxu0 %v2235
    %3322 = vmatpush.bf16.msra.mxu0 %v2231
    %3323 = vmatpush.bf16.msra.mxu0 %v2227
    %3324 = vmatpush.bf16.msra.mxu0 %v2223
    %3325 = vmatpush.bf16.msra.mxu0 %v2219
    %3326 = vmatpush.bf16.msra.mxu0 %v2215
    %3327 = vmatpush.bf16.msra.mxu0 %v2211
    %3328 = vmatmul.bf16.gmra.mxu0 %v3221
    %v3329 = vpop.f32.mrf.mxu0
    %v3330 = vadd.f32 %v3316, %v3329
    %v3331 = vpop.f32.mrf.mxu0
    %v3332 = vadd.f32 %v3318, %v3331
    %3333 = vdwg.mxu0
    %3334 = vmatpush.bf16.msra.mxu0 %v2144
    %3335 = vmatpush.bf16.msra.mxu0 %v2140
    %3336 = vmatpush.bf16.msra.mxu0 %v2136
    %3337 = vmatpush.bf16.msra.mxu0 %v2132
    %3338 = vmatpush.bf16.msra.mxu0 %v2128
    %3339 = vmatpush.bf16.msra.mxu0 %v2124
    %3340 = vmatpush.bf16.msra.mxu0 %v2120
    %3341 = vmatpush.bf16.msra.mxu0 %v2116
    %3342 = vmatmul.bf16.gmra.mxu0 %v3218
    %v3343 = vpop.f32.mrf.mxu0
    %v3344 = vadd.f32 %v1724, %v3343
    %v3345 = vpop.f32.mrf.mxu0
    %v3346 = vadd.f32 %v1724, %v3345
    %3347 = vdwg.mxu0
    %3348 = vmatpush.bf16.msra.mxu0 %v2176
    %3349 = vmatpush.bf16.msra.mxu0 %v2172
    %3350 = vmatpush.bf16.msra.mxu0 %v2168
    %3351 = vmatpush.bf16.msra.mxu0 %v2164
    %3352 = vmatpush.bf16.msra.mxu0 %v2160
    %3353 = vmatpush.bf16.msra.mxu0 %v2156
    %3354 = vmatpush.bf16.msra.mxu0 %v2152
    %3355 = vmatpush.bf16.msra.mxu0 %v2148
    %3356 = vmatmul.bf16.gmra.mxu0 %v3219
    %v3357 = vpop.f32.mrf.mxu0
    %v3358 = vadd.f32 %v3344, %v3357
    %v3359 = vpop.f32.mrf.mxu0
    %v3360 = vadd.f32 %v3346, %v3359
    %3361 = vdwg.mxu0
    %3362 = vmatpush.bf16.msra.mxu0 %v2208
    %3363 = vmatpush.bf16.msra.mxu0 %v2204
    %3364 = vmatpush.bf16.msra.mxu0 %v2200
    %3365 = vmatpush.bf16.msra.mxu0 %v2196
    %3366 = vmatpush.bf16.msra.mxu0 %v2192
    %3367 = vmatpush.bf16.msra.mxu0 %v2188
    %3368 = vmatpush.bf16.msra.mxu0 %v2184
    %3369 = vmatpush.bf16.msra.mxu0 %v2180
    %3370 = vmatmul.bf16.gmra.mxu0 %v3220
    %v3371 = vpop.f32.mrf.mxu0
    %v3372 = vadd.f32 %v3358, %v3371
    %v3373 = vpop.f32.mrf.mxu0
    %v3374 = vadd.f32 %v3360, %v3373
    %3375 = vdwg.mxu0
    %3376 = vmatpush.bf16.msra.mxu0 %v2240
    %3377 = vmatpush.bf16.msra.mxu0 %v2236
    %3378 = vmatpush.bf16.msra.mxu0 %v2232
    %3379 = vmatpush.bf16.msra.mxu0 %v2228
    %3380 = vmatpush.bf16.msra.mxu0 %v2224
    %3381 = vmatpush.bf16.msra.mxu0 %v2220
    %3382 = vmatpush.bf16.msra.mxu0 %v2216
    %3383 = vmatpush.bf16.msra.mxu0 %v2212
    %3384 = vmatmul.bf16.gmra.mxu0 %v3221
    %v3385 = vpop.f32.mrf.mxu0
    %v3386 = vadd.f32 %v3372, %v3385
    %v3387 = vpop.f32.mrf.mxu0
    %v3388 = vadd.f32 %v3374, %v3387
    %3389 = vdwg.mxu0
    %3390 = vmatpush.bf16.msra.mxu0 %v2145
    %3391 = vmatpush.bf16.msra.mxu0 %v2141
    %3392 = vmatpush.bf16.msra.mxu0 %v2137
    %3393 = vmatpush.bf16.msra.mxu0 %v2133
    %3394 = vmatpush.bf16.msra.mxu0 %v2129
    %3395 = vmatpush.bf16.msra.mxu0 %v2125
    %3396 = vmatpush.bf16.msra.mxu0 %v2121
    %3397 = vmatpush.bf16.msra.mxu0 %v2117
    %3398 = vmatmul.bf16.gmra.mxu0 %v3218
    %v3399 = vpop.f32.mrf.mxu0
    %v3400 = vadd.f32 %v1725, %v3399
    %v3401 = vpop.f32.mrf.mxu0
    %v3402 = vadd.f32 %v1725, %v3401
    %3403 = vdwg.mxu0
    %3404 = vmatpush.bf16.msra.mxu0 %v2177
    %3405 = vmatpush.bf16.msra.mxu0 %v2173
    %3406 = vmatpush.bf16.msra.mxu0 %v2169
    %3407 = vmatpush.bf16.msra.mxu0 %v2165
    %3408 = vmatpush.bf16.msra.mxu0 %v2161
    %3409 = vmatpush.bf16.msra.mxu0 %v2157
    %3410 = vmatpush.bf16.msra.mxu0 %v2153
    %3411 = vmatpush.bf16.msra.mxu0 %v2149
    %3412 = vmatmul.bf16.gmra.mxu0 %v3219
    %v3413 = vpop.f32.mrf.mxu0
    %v3414 = vadd.f32 %v3400, %v3413
    %v3415 = vpop.f32.mrf.mxu0
    %v3416 = vadd.f32 %v3402, %v3415
    %3417 = vdwg.mxu0
    %3418 = vmatpush.bf16.msra.mxu0 %v2209
    %3419 = vmatpush.bf16.msra.mxu0 %v2205
    %3420 = vmatpush.bf16.msra.mxu0 %v2201
    %3421 = vmatpush.bf16.msra.mxu0 %v2197
    %3422 = vmatpush.bf16.msra.mxu0 %v2193
    %3423 = vmatpush.bf16.msra.mxu0 %v2189
    %3424 = vmatpush.bf16.msra.mxu0 %v2185
    %3425 = vmatpush.bf16.msra.mxu0 %v2181
    %3426 = vmatmul.bf16.gmra.mxu0 %v3220
    %v3427 = vpop.f32.mrf.mxu0
    %v3428 = vadd.f32 %v3414, %v3427
    %v3429 = vpop.f32.mrf.mxu0
    %v3430 = vadd.f32 %v3416, %v3429
    %3431 = vdwg.mxu0
    %3432 = vmatpush.bf16.msra.mxu0 %v2241
    %3433 = vmatpush.bf16.msra.mxu0 %v2237
    %3434 = vmatpush.bf16.msra.mxu0 %v2233
    %3435 = vmatpush.bf16.msra.mxu0 %v2229
    %3436 = vmatpush.bf16.msra.mxu0 %v2225
    %3437 = vmatpush.bf16.msra.mxu0 %v2221
    %3438 = vmatpush.bf16.msra.mxu0 %v2217
    %3439 = vmatpush.bf16.msra.mxu0 %v2213
    %3440 = vmatmul.bf16.gmra.mxu0 %v3221
    %v3441 = vpop.f32.mrf.mxu0
    %v3442 = vadd.f32 %v3428, %v3441
    %v3443 = vpop.f32.mrf.mxu0
    %v3444 = vadd.f32 %v3430, %v3443
    %3445 = vdwg.mxu0
    %v3446 = vadd.f32 %v3274, %v3276
    %v3447 = vrot.slane %v3446, 4
    %v3448 = vadd.f32 %v3446, %v3447
    %v3449 = vrot.slane %v3448, 2
    %v3450 = vadd.f32 %v3448, %v3449
    %v3451 = vrot.slane %v3450, 1
    %v3452 = vadd.f32 %v3450, %v3451
    %v3453 = vadd.f32 %v3330, %v3332
    %v3454 = vrot.slane %v3453, 4
    %v3455 = vadd.f32 %v3453, %v3454
    %v3456 = vrot.slane %v3455, 2
    %v3457 = vadd.f32 %v3455, %v3456
    %v3458 = vrot.slane %v3457, 1
    %v3459 = vadd.f32 %v3457, %v3458
    %v3460 = vadd.f32 %v3386, %v3388
    %v3461 = vrot.slane %v3460, 4
    %v3462 = vadd.f32 %v3460, %v3461
    %v3463 = vrot.slane %v3462, 2
    %v3464 = vadd.f32 %v3462, %v3463
    %v3465 = vrot.slane %v3464, 1
    %v3466 = vadd.f32 %v3464, %v3465
    %v3467 = vadd.f32 %v3442, %v3444
    %v3468 = vrot.slane %v3467, 4
    %v3469 = vadd.f32 %v3467, %v3468
    %v3470 = vrot.slane %v3469, 2
    %v3471 = vadd.f32 %v3469, %v3470
    %v3472 = vrot.slane %v3471, 1
    %v3473 = vadd.f32 %v3471, %v3472
    %v3474 = vmul.f32 %v3452, %v1543
    %v3475 = vmul.f32 %v3459, %v1543
    %v3476 = vmul.f32 %v3466, %v1543
    %v3477 = vmul.f32 %v3473, %v1543
    %v3478 = vmul.f32 %v3274, %v3274
    %v3479 = vmul.f32 %v3330, %v3330
    %v3480 = vmul.f32 %v3386, %v3386
    %v3481 = vmul.f32 %v3442, %v3442
    %v3482 = vmul.f32 %v3276, %v3276
    %v3483 = vmul.f32 %v3332, %v3332
    %v3484 = vmul.f32 %v3388, %v3388
    %v3485 = vmul.f32 %v3444, %v3444
    %v3486 = vadd.f32 %v3478, %v3482
    %v3487 = vrot.slane %v3486, 4
    %v3488 = vadd.f32 %v3486, %v3487
    %v3489 = vrot.slane %v3488, 2
    %v3490 = vadd.f32 %v3488, %v3489
    %v3491 = vrot.slane %v3490, 1
    %v3492 = vadd.f32 %v3490, %v3491
    %v3493 = vadd.f32 %v3479, %v3483
    %v3494 = vrot.slane %v3493, 4
    %v3495 = vadd.f32 %v3493, %v3494
    %v3496 = vrot.slane %v3495, 2
    %v3497 = vadd.f32 %v3495, %v3496
    %v3498 = vrot.slane %v3497, 1
    %v3499 = vadd.f32 %v3497, %v3498
    %v3500 = vadd.f32 %v3480, %v3484
    %v3501 = vrot.slane %v3500, 4
    %v3502 = vadd.f32 %v3500, %v3501
    %v3503 = vrot.slane %v3502, 2
    %v3504 = vadd.f32 %v3502, %v3503
    %v3505 = vrot.slane %v3504, 1
    %v3506 = vadd.f32 %v3504, %v3505
    %v3507 = vadd.f32 %v3481, %v3485
    %v3508 = vrot.slane %v3507, 4
    %v3509 = vadd.f32 %v3507, %v3508
    %v3510 = vrot.slane %v3509, 2
    %v3511 = vadd.f32 %v3509, %v3510
    %v3512 = vrot.slane %v3511, 1
    %v3513 = vadd.f32 %v3511, %v3512
    %v3514 = vmul.f32 %v3492, %v1543
    %v3515 = vmul.f32 %v3499, %v1543
    %v3516 = vmul.f32 %v3506, %v1543
    %v3517 = vmul.f32 %v3513, %v1543
    %v3518 = vmul.f32 %v3474, %v3474
    %v3519 = vmul.f32 %v3475, %v3475
    %v3520 = vmul.f32 %v3476, %v3476
    %v3521 = vmul.f32 %v3477, %v3477
    %v3522 = vsub.f32 %v3514, %v3518
    %v3523 = vsub.f32 %v3515, %v3519
    %v3524 = vsub.f32 %v3516, %v3520
    %v3525 = vsub.f32 %v3517, %v3521
    %v3526 = vmax.f32 %v3522, 0.0
    %v3527 = vmax.f32 %v3523, 0.0
    %v3528 = vmax.f32 %v3524, 0.0
    %v3529 = vmax.f32 %v3525, 0.0
    %v3530 = vadd.f32 %v3526, 1e-05
    %v3531 = vadd.f32 %v3527, 1e-05
    %v3532 = vadd.f32 %v3528, 1e-05
    %v3533 = vadd.f32 %v3529, 1e-05
    %v3534 = vrsqrt.pop %v3530
    %v3535 = vmul.f32 %v3534, %v3530
    %v3536 = vmul.f32 %v3535, %v3534
    %v3537 = vmul.f32 0.5, %v3536
    %v3538 = vsub.f32 1.5, %v3537
    %v3539 = vmul.f32 %v3534, %v3538
    %vm3540 = vweird.f32 %v3530
    %vm3541 = vweird.f32 %v3534
    %vm3542 = vmor %vm3540, %vm3541
    %v3543 = vsel %vm3542, %v3534, %v3539
    %v3544 = vrsqrt.pop %v3531
    %v3545 = vmul.f32 %v3544, %v3531
    %v3546 = vmul.f32 %v3545, %v3544
    %v3547 = vmul.f32 0.5, %v3546
    %v3548 = vsub.f32 1.5, %v3547
    %v3549 = vmul.f32 %v3544, %v3548
    %vm3550 = vweird.f32 %v3531
    %vm3551 = vweird.f32 %v3544
    %vm3552 = vmor %vm3550, %vm3551
    %v3553 = vsel %vm3552, %v3544, %v3549
    %v3554 = vrsqrt.pop %v3532
    %v3555 = vmul.f32 %v3554, %v3532
    %v3556 = vmul.f32 %v3555, %v3554
    %v3557 = vmul.f32 0.5, %v3556
    %v3558 = vsub.f32 1.5, %v3557
    %v3559 = vmul.f32 %v3554, %v3558
    %vm3560 = vweird.f32 %v3532
    %vm3561 = vweird.f32 %v3554
    %vm3562 = vmor %vm3560, %vm3561
    %v3563 = vsel %vm3562, %v3554, %v3559
    %v3564 = vrsqrt.pop %v3533
    %v3565 = vmul.f32 %v3564, %v3533
    %v3566 = vmul.f32 %v3565, %v3564
    %v3567 = vmul.f32 0.5, %v3566
    %v3568 = vsub.f32 1.5, %v3567
    %v3569 = vmul.f32 %v3564, %v3568
    %vm3570 = vweird.f32 %v3533
    %vm3571 = vweird.f32 %v3564
    %vm3572 = vmor %vm3570, %vm3571
    %v3573 = vsel %vm3572, %v3564, %v3569
    %v3578 = vrot.slane %v3553, 7
    %v3579 = vrot.slane %v3563, 6
    %v3580 = vrot.slane %v3573, 5
    %v3581 = vsel %vm1651, %v3543, %v3578
    %v3582 = vsel %vm1653, %v3579, %v3580
    %v3583 = vsel %vm1655, %v3581, %v3582
    %v3585 = vmul.f32 %v1080, %v3583
    %v3587 = vperm.slane %v3585, 0
    %v3588 = vperm.slane %v3585, 1
    %v3589 = vperm.slane %v3585, 2
    %v3590 = vperm.slane %v3585, 3
    %v3595 = vmul.f32 %v3474, %v3587
    %v3596 = vmul.f32 %v3475, %v3588
    %v3597 = vmul.f32 %v3476, %v3589
    %v3598 = vmul.f32 %v3477, %v3590
    %v3603 = vrot.slane %v3596, 7
    %v3604 = vrot.slane %v3597, 6
    %v3605 = vrot.slane %v3598, 5
    %v3606 = vsel %vm1651, %v3595, %v3603
    %v3607 = vsel %vm1653, %v3604, %v3605
    %v3608 = vsel %vm1655, %v3606, %v3607
    %v3610 = vsub.f32 %v1081, %v3608
    %v3611 = vmul.f32 %v3274, %v3587
    %v3612 = vmul.f32 %v3330, %v3588
    %v3613 = vmul.f32 %v3386, %v3589
    %v3614 = vmul.f32 %v3442, %v3590
    %v3615 = vmul.f32 %v3276, %v3587
    %v3616 = vmul.f32 %v3332, %v3588
    %v3617 = vmul.f32 %v3388, %v3589
    %v3618 = vmul.f32 %v3444, %v3590
    %v3620 = vperm.slane %v3610, 0
    %v3621 = vperm.slane %v3610, 1
    %v3622 = vperm.slane %v3610, 2
    %v3623 = vperm.slane %v3610, 3
    %v3628 = vadd.f32 %v3611, %v3620
    %v3629 = vadd.f32 %v3612, %v3621
    %v3630 = vadd.f32 %v3613, %v3622
    %v3631 = vadd.f32 %v3614, %v3623
    %v3632 = vadd.f32 %v3615, %v3620
    %v3633 = vadd.f32 %v3616, %v3621
    %v3634 = vadd.f32 %v3617, %v3622
    %v3635 = vadd.f32 %v3618, %v3623
    %v3636 = vmax.f32 %v3628, 0.0
    %v3637 = vmax.f32 %v3629, 0.0
    %v3638 = vmax.f32 %v3630, 0.0
    %v3639 = vmax.f32 %v3631, 0.0
    %v3640 = vmax.f32 %v3632, 0.0
    %v3641 = vmax.f32 %v3633, 0.0
    %v3642 = vmax.f32 %v3634, 0.0
    %v3643 = vmax.f32 %v3635, 0.0
    %v3644 = vpack.c.bf16 %v3640, %v3636
    %v3645 = vpack.c.bf16 %v3641, %v3637
    %v3646 = vpack.c.bf16 %v3642, %v3638
    %v3647 = vpack.c.bf16 %v3643, %v3639
    %3648 = vmatpush.bf16.msra.mxu0 %v2142
    %3649 = vmatpush.bf16.msra.mxu0 %v2138
    %3650 = vmatpush.bf16.msra.mxu0 %v2134
    %3651 = vmatpush.bf16.msra.mxu0 %v2130
    %3652 = vmatpush.bf16.msra.mxu0 %v2126
    %3653 = vmatpush.bf16.msra.mxu0 %v2122
    %3654 = vmatpush.bf16.msra.mxu0 %v2118
    %3655 = vmatpush.bf16.msra.mxu0 %v2114
    %3656 = vmatmul.bf16.gmra.mxu0 %v3644
    %v3657 = vpop.f32.mrf.mxu0
    %v3658 = vadd.f32 %v1722, %v3657
    %v3659 = vpop.f32.mrf.mxu0
    %v3660 = vadd.f32 %v1722, %v3659
    %3661 = vdwg.mxu0
    %3662 = vmatpush.bf16.msra.mxu0 %v2174
    %3663 = vmatpush.bf16.msra.mxu0 %v2170
    %3664 = vmatpush.bf16.msra.mxu0 %v2166
    %3665 = vmatpush.bf16.msra.mxu0 %v2162
    %3666 = vmatpush.bf16.msra.mxu0 %v2158
    %3667 = vmatpush.bf16.msra.mxu0 %v2154
    %3668 = vmatpush.bf16.msra.mxu0 %v2150
    %3669 = vmatpush.bf16.msra.mxu0 %v2146
    %3670 = vmatmul.bf16.gmra.mxu0 %v3645
    %v3671 = vpop.f32.mrf.mxu0
    %v3672 = vadd.f32 %v3658, %v3671
    %v3673 = vpop.f32.mrf.mxu0
    %v3674 = vadd.f32 %v3660, %v3673
    %3675 = vdwg.mxu0
    %3676 = vmatpush.bf16.msra.mxu0 %v2206
    %3677 = vmatpush.bf16.msra.mxu0 %v2202
    %3678 = vmatpush.bf16.msra.mxu0 %v2198
    %3679 = vmatpush.bf16.msra.mxu0 %v2194
    %3680 = vmatpush.bf16.msra.mxu0 %v2190
    %3681 = vmatpush.bf16.msra.mxu0 %v2186
    %3682 = vmatpush.bf16.msra.mxu0 %v2182
    %3683 = vmatpush.bf16.msra.mxu0 %v2178
    %3684 = vmatmul.bf16.gmra.mxu0 %v3646
    %v3685 = vpop.f32.mrf.mxu0
    %v3686 = vadd.f32 %v3672, %v3685
    %v3687 = vpop.f32.mrf.mxu0
    %v3688 = vadd.f32 %v3674, %v3687
    %3689 = vdwg.mxu0
    %3690 = vmatpush.bf16.msra.mxu0 %v2238
    %3691 = vmatpush.bf16.msra.mxu0 %v2234
    %3692 = vmatpush.bf16.msra.mxu0 %v2230
    %3693 = vmatpush.bf16.msra.mxu0 %v2226
    %3694 = vmatpush.bf16.msra.mxu0 %v2222
    %3695 = vmatpush.bf16.msra.mxu0 %v2218
    %3696 = vmatpush.bf16.msra.mxu0 %v2214
    %3697 = vmatpush.bf16.msra.mxu0 %v2210
    %3698 = vmatmul.bf16.gmra.mxu0 %v3647
    %v3699 = vpop.f32.mrf.mxu0
    %v3700 = vadd.f32 %v3686, %v3699
    %v3701 = vpop.f32.mrf.mxu0
    %v3702 = vadd.f32 %v3688, %v3701
    %3703 = vdwg.mxu0
    %3704 = vmatpush.bf16.msra.mxu0 %v2143
    %3705 = vmatpush.bf16.msra.mxu0 %v2139
    %3706 = vmatpush.bf16.msra.mxu0 %v2135
    %3707 = vmatpush.bf16.msra.mxu0 %v2131
    %3708 = vmatpush.bf16.msra.mxu0 %v2127
    %3709 = vmatpush.bf16.msra.mxu0 %v2123
    %3710 = vmatpush.bf16.msra.mxu0 %v2119
    %3711 = vmatpush.bf16.msra.mxu0 %v2115
    %3712 = vmatmul.bf16.gmra.mxu0 %v3644
    %v3713 = vpop.f32.mrf.mxu0
    %v3714 = vadd.f32 %v1723, %v3713
    %v3715 = vpop.f32.mrf.mxu0
    %v3716 = vadd.f32 %v1723, %v3715
    %3717 = vdwg.mxu0
    %3718 = vmatpush.bf16.msra.mxu0 %v2175
    %3719 = vmatpush.bf16.msra.mxu0 %v2171
    %3720 = vmatpush.bf16.msra.mxu0 %v2167
    %3721 = vmatpush.bf16.msra.mxu0 %v2163
    %3722 = vmatpush.bf16.msra.mxu0 %v2159
    %3723 = vmatpush.bf16.msra.mxu0 %v2155
    %3724 = vmatpush.bf16.msra.mxu0 %v2151
    %3725 = vmatpush.bf16.msra.mxu0 %v2147
    %3726 = vmatmul.bf16.gmra.mxu0 %v3645
    %v3727 = vpop.f32.mrf.mxu0
    %v3728 = vadd.f32 %v3714, %v3727
    %v3729 = vpop.f32.mrf.mxu0
    %v3730 = vadd.f32 %v3716, %v3729
    %3731 = vdwg.mxu0
    %3732 = vmatpush.bf16.msra.mxu0 %v2207
    %3733 = vmatpush.bf16.msra.mxu0 %v2203
    %3734 = vmatpush.bf16.msra.mxu0 %v2199
    %3735 = vmatpush.bf16.msra.mxu0 %v2195
    %3736 = vmatpush.bf16.msra.mxu0 %v2191
    %3737 = vmatpush.bf16.msra.mxu0 %v2187
    %3738 = vmatpush.bf16.msra.mxu0 %v2183
    %3739 = vmatpush.bf16.msra.mxu0 %v2179
    %3740 = vmatmul.bf16.gmra.mxu0 %v3646
    %v3741 = vpop.f32.mrf.mxu0
    %v3742 = vadd.f32 %v3728, %v3741
    %v3743 = vpop.f32.mrf.mxu0
    %v3744 = vadd.f32 %v3730, %v3743
    %3745 = vdwg.mxu0
    %3746 = vmatpush.bf16.msra.mxu0 %v2239
    %3747 = vmatpush.bf16.msra.mxu0 %v2235
    %3748 = vmatpush.bf16.msra.mxu0 %v2231
    %3749 = vmatpush.bf16.msra.mxu0 %v2227
    %3750 = vmatpush.bf16.msra.mxu0 %v2223
    %3751 = vmatpush.bf16.msra.mxu0 %v2219
    %3752 = vmatpush.bf16.msra.mxu0 %v2215
    %3753 = vmatpush.bf16.msra.mxu0 %v2211
    %3754 = vmatmul.bf16.gmra.mxu0 %v3647
    %v3755 = vpop.f32.mrf.mxu0
    %v3756 = vadd.f32 %v3742, %v3755
    %v3757 = vpop.f32.mrf.mxu0
    %v3758 = vadd.f32 %v3744, %v3757
    %3759 = vdwg.mxu0
    %3760 = vmatpush.bf16.msra.mxu0 %v2144
    %3761 = vmatpush.bf16.msra.mxu0 %v2140
    %3762 = vmatpush.bf16.msra.mxu0 %v2136
    %3763 = vmatpush.bf16.msra.mxu0 %v2132
    %3764 = vmatpush.bf16.msra.mxu0 %v2128
    %3765 = vmatpush.bf16.msra.mxu0 %v2124
    %3766 = vmatpush.bf16.msra.mxu0 %v2120
    %3767 = vmatpush.bf16.msra.mxu0 %v2116
    %3768 = vmatmul.bf16.gmra.mxu0 %v3644
    %v3769 = vpop.f32.mrf.mxu0
    %v3770 = vadd.f32 %v1724, %v3769
    %v3771 = vpop.f32.mrf.mxu0
    %v3772 = vadd.f32 %v1724, %v3771
    %3773 = vdwg.mxu0
    %3774 = vmatpush.bf16.msra.mxu0 %v2176
    %3775 = vmatpush.bf16.msra.mxu0 %v2172
    %3776 = vmatpush.bf16.msra.mxu0 %v2168
    %3777 = vmatpush.bf16.msra.mxu0 %v2164
    %3778 = vmatpush.bf16.msra.mxu0 %v2160
    %3779 = vmatpush.bf16.msra.mxu0 %v2156
    %3780 = vmatpush.bf16.msra.mxu0 %v2152
    %3781 = vmatpush.bf16.msra.mxu0 %v2148
    %3782 = vmatmul.bf16.gmra.mxu0 %v3645
    %v3783 = vpop.f32.mrf.mxu0
    %v3784 = vadd.f32 %v3770, %v3783
    %v3785 = vpop.f32.mrf.mxu0
    %v3786 = vadd.f32 %v3772, %v3785
    %3787 = vdwg.mxu0
    %3788 = vmatpush.bf16.msra.mxu0 %v2208
    %3789 = vmatpush.bf16.msra.mxu0 %v2204
    %3790 = vmatpush.bf16.msra.mxu0 %v2200
    %3791 = vmatpush.bf16.msra.mxu0 %v2196
    %3792 = vmatpush.bf16.msra.mxu0 %v2192
    %3793 = vmatpush.bf16.msra.mxu0 %v2188
    %3794 = vmatpush.bf16.msra.mxu0 %v2184
    %3795 = vmatpush.bf16.msra.mxu0 %v2180
    %3796 = vmatmul.bf16.gmra.mxu0 %v3646
    %v3797 = vpop.f32.mrf.mxu0
    %v3798 = vadd.f32 %v3784, %v3797
    %v3799 = vpop.f32.mrf.mxu0
    %v3800 = vadd.f32 %v3786, %v3799
    %3801 = vdwg.mxu0
    %3802 = vmatpush.bf16.msra.mxu0 %v2240
    %3803 = vmatpush.bf16.msra.mxu0 %v2236
    %3804 = vmatpush.bf16.msra.mxu0 %v2232
    %3805 = vmatpush.bf16.msra.mxu0 %v2228
    %3806 = vmatpush.bf16.msra.mxu0 %v2224
    %3807 = vmatpush.bf16.msra.mxu0 %v2220
    %3808 = vmatpush.bf16.msra.mxu0 %v2216
    %3809 = vmatpush.bf16.msra.mxu0 %v2212
    %3810 = vmatmul.bf16.gmra.mxu0 %v3647
    %v3811 = vpop.f32.mrf.mxu0
    %v3812 = vadd.f32 %v3798, %v3811
    %v3813 = vpop.f32.mrf.mxu0
    %v3814 = vadd.f32 %v3800, %v3813
    %3815 = vdwg.mxu0
    %3816 = vmatpush.bf16.msra.mxu0 %v2145
    %3817 = vmatpush.bf16.msra.mxu0 %v2141
    %3818 = vmatpush.bf16.msra.mxu0 %v2137
    %3819 = vmatpush.bf16.msra.mxu0 %v2133
    %3820 = vmatpush.bf16.msra.mxu0 %v2129
    %3821 = vmatpush.bf16.msra.mxu0 %v2125
    %3822 = vmatpush.bf16.msra.mxu0 %v2121
    %3823 = vmatpush.bf16.msra.mxu0 %v2117
    %3824 = vmatmul.bf16.gmra.mxu0 %v3644
    %v3825 = vpop.f32.mrf.mxu0
    %v3826 = vadd.f32 %v1725, %v3825
    %v3827 = vpop.f32.mrf.mxu0
    %v3828 = vadd.f32 %v1725, %v3827
    %3829 = vdwg.mxu0
    %3830 = vmatpush.bf16.msra.mxu0 %v2177
    %3831 = vmatpush.bf16.msra.mxu0 %v2173
    %3832 = vmatpush.bf16.msra.mxu0 %v2169
    %3833 = vmatpush.bf16.msra.mxu0 %v2165
    %3834 = vmatpush.bf16.msra.mxu0 %v2161
    %3835 = vmatpush.bf16.msra.mxu0 %v2157
    %3836 = vmatpush.bf16.msra.mxu0 %v2153
    %3837 = vmatpush.bf16.msra.mxu0 %v2149
    %3838 = vmatmul.bf16.gmra.mxu0 %v3645
    %v3839 = vpop.f32.mrf.mxu0
    %v3840 = vadd.f32 %v3826, %v3839
    %v3841 = vpop.f32.mrf.mxu0
    %v3842 = vadd.f32 %v3828, %v3841
    %3843 = vdwg.mxu0
    %3844 = vmatpush.bf16.msra.mxu0 %v2209
    %3845 = vmatpush.bf16.msra.mxu0 %v2205
    %3846 = vmatpush.bf16.msra.mxu0 %v2201
    %3847 = vmatpush.bf16.msra.mxu0 %v2197
    %3848 = vmatpush.bf16.msra.mxu0 %v2193
    %3849 = vmatpush.bf16.msra.mxu0 %v2189
    %3850 = vmatpush.bf16.msra.mxu0 %v2185
    %3851 = vmatpush.bf16.msra.mxu0 %v2181
    %3852 = vmatmul.bf16.gmra.mxu0 %v3646
    %v3853 = vpop.f32.mrf.mxu0
    %v3854 = vadd.f32 %v3840, %v3853
    %v3855 = vpop.f32.mrf.mxu0
    %v3856 = vadd.f32 %v3842, %v3855
    %3857 = vdwg.mxu0
    %3858 = vmatpush.bf16.msra.mxu0 %v2241
    %3859 = vmatpush.bf16.msra.mxu0 %v2237
    %3860 = vmatpush.bf16.msra.mxu0 %v2233
    %3861 = vmatpush.bf16.msra.mxu0 %v2229
    %3862 = vmatpush.bf16.msra.mxu0 %v2225
    %3863 = vmatpush.bf16.msra.mxu0 %v2221
    %3864 = vmatpush.bf16.msra.mxu0 %v2217
    %3865 = vmatpush.bf16.msra.mxu0 %v2213
    %3866 = vmatmul.bf16.gmra.mxu0 %v3647
    %v3867 = vpop.f32.mrf.mxu0
    %v3868 = vadd.f32 %v3854, %v3867
    %v3869 = vpop.f32.mrf.mxu0
    %v3870 = vadd.f32 %v3856, %v3869
    %3871 = vdwg.mxu0
    %v3872 = vadd.f32 %v3700, %v3702
    %v3873 = vrot.slane %v3872, 4
    %v3874 = vadd.f32 %v3872, %v3873
    %v3875 = vrot.slane %v3874, 2
    %v3876 = vadd.f32 %v3874, %v3875
    %v3877 = vrot.slane %v3876, 1
    %v3878 = vadd.f32 %v3876, %v3877
    %v3879 = vadd.f32 %v3756, %v3758
    %v3880 = vrot.slane %v3879, 4
    %v3881 = vadd.f32 %v3879, %v3880
    %v3882 = vrot.slane %v3881, 2
    %v3883 = vadd.f32 %v3881, %v3882
    %v3884 = vrot.slane %v3883, 1
    %v3885 = vadd.f32 %v3883, %v3884
    %v3886 = vadd.f32 %v3812, %v3814
    %v3887 = vrot.slane %v3886, 4
    %v3888 = vadd.f32 %v3886, %v3887
    %v3889 = vrot.slane %v3888, 2
    %v3890 = vadd.f32 %v3888, %v3889
    %v3891 = vrot.slane %v3890, 1
    %v3892 = vadd.f32 %v3890, %v3891
    %v3893 = vadd.f32 %v3868, %v3870
    %v3894 = vrot.slane %v3893, 4
    %v3895 = vadd.f32 %v3893, %v3894
    %v3896 = vrot.slane %v3895, 2
    %v3897 = vadd.f32 %v3895, %v3896
    %v3898 = vrot.slane %v3897, 1
    %v3899 = vadd.f32 %v3897, %v3898
    %v3900 = vmul.f32 %v3878, %v1543
    %v3901 = vmul.f32 %v3885, %v1543
    %v3902 = vmul.f32 %v3892, %v1543
    %v3903 = vmul.f32 %v3899, %v1543
    %v3904 = vmul.f32 %v3700, %v3700
    %v3905 = vmul.f32 %v3756, %v3756
    %v3906 = vmul.f32 %v3812, %v3812
    %v3907 = vmul.f32 %v3868, %v3868
    %v3908 = vmul.f32 %v3702, %v3702
    %v3909 = vmul.f32 %v3758, %v3758
    %v3910 = vmul.f32 %v3814, %v3814
    %v3911 = vmul.f32 %v3870, %v3870
    %v3912 = vadd.f32 %v3904, %v3908
    %v3913 = vrot.slane %v3912, 4
    %v3914 = vadd.f32 %v3912, %v3913
    %v3915 = vrot.slane %v3914, 2
    %v3916 = vadd.f32 %v3914, %v3915
    %v3917 = vrot.slane %v3916, 1
    %v3918 = vadd.f32 %v3916, %v3917
    %v3919 = vadd.f32 %v3905, %v3909
    %v3920 = vrot.slane %v3919, 4
    %v3921 = vadd.f32 %v3919, %v3920
    %v3922 = vrot.slane %v3921, 2
    %v3923 = vadd.f32 %v3921, %v3922
    %v3924 = vrot.slane %v3923, 1
    %v3925 = vadd.f32 %v3923, %v3924
    %v3926 = vadd.f32 %v3906, %v3910
    %v3927 = vrot.slane %v3926, 4
    %v3928 = vadd.f32 %v3926, %v3927
    %v3929 = vrot.slane %v3928, 2
    %v3930 = vadd.f32 %v3928, %v3929
    %v3931 = vrot.slane %v3930, 1
    %v3932 = vadd.f32 %v3930, %v3931
    %v3933 = vadd.f32 %v3907, %v3911
    %v3934 = vrot.slane %v3933, 4
    %v3935 = vadd.f32 %v3933, %v3934
    %v3936 = vrot.slane %v3935, 2
    %v3937 = vadd.f32 %v3935, %v3936
    %v3938 = vrot.slane %v3937, 1
    %v3939 = vadd.f32 %v3937, %v3938
    %v3940 = vmul.f32 %v3918, %v1543
    %v3941 = vmul.f32 %v3925, %v1543
    %v3942 = vmul.f32 %v3932, %v1543
    %v3943 = vmul.f32 %v3939, %v1543
    %v3944 = vmul.f32 %v3900, %v3900
    %v3945 = vmul.f32 %v3901, %v3901
    %v3946 = vmul.f32 %v3902, %v3902
    %v3947 = vmul.f32 %v3903, %v3903
    %v3948 = vsub.f32 %v3940, %v3944
    %v3949 = vsub.f32 %v3941, %v3945
    %v3950 = vsub.f32 %v3942, %v3946
    %v3951 = vsub.f32 %v3943, %v3947
    %v3952 = vmax.f32 %v3948, 0.0
    %v3953 = vmax.f32 %v3949, 0.0
    %v3954 = vmax.f32 %v3950, 0.0
    %v3955 = vmax.f32 %v3951, 0.0
    %v3956 = vadd.f32 %v3952, 1e-05
    %v3957 = vadd.f32 %v3953, 1e-05
    %v3958 = vadd.f32 %v3954, 1e-05
    %v3959 = vadd.f32 %v3955, 1e-05
    %v3960 = vrsqrt.pop %v3956
    %v3961 = vmul.f32 %v3960, %v3956
    %v3962 = vmul.f32 %v3961, %v3960
    %v3963 = vmul.f32 0.5, %v3962
    %v3964 = vsub.f32 1.5, %v3963
    %v3965 = vmul.f32 %v3960, %v3964
    %vm3966 = vweird.f32 %v3956
    %vm3967 = vweird.f32 %v3960
    %vm3968 = vmor %vm3966, %vm3967
    %v3969 = vsel %vm3968, %v3960, %v3965
    %v3970 = vrsqrt.pop %v3957
    %v3971 = vmul.f32 %v3970, %v3957
    %v3972 = vmul.f32 %v3971, %v3970
    %v3973 = vmul.f32 0.5, %v3972
    %v3974 = vsub.f32 1.5, %v3973
    %v3975 = vmul.f32 %v3970, %v3974
    %vm3976 = vweird.f32 %v3957
    %vm3977 = vweird.f32 %v3970
    %vm3978 = vmor %vm3976, %vm3977
    %v3979 = vsel %vm3978, %v3970, %v3975
    %v3980 = vrsqrt.pop %v3958
    %v3981 = vmul.f32 %v3980, %v3958
    %v3982 = vmul.f32 %v3981, %v3980
    %v3983 = vmul.f32 0.5, %v3982
    %v3984 = vsub.f32 1.5, %v3983
    %v3985 = vmul.f32 %v3980, %v3984
    %vm3986 = vweird.f32 %v3958
    %vm3987 = vweird.f32 %v3980
    %vm3988 = vmor %vm3986, %vm3987
    %v3989 = vsel %vm3988, %v3980, %v3985
    %v3990 = vrsqrt.pop %v3959
    %v3991 = vmul.f32 %v3990, %v3959
    %v3992 = vmul.f32 %v3991, %v3990
    %v3993 = vmul.f32 0.5, %v3992
    %v3994 = vsub.f32 1.5, %v3993
    %v3995 = vmul.f32 %v3990, %v3994
    %vm3996 = vweird.f32 %v3959
    %vm3997 = vweird.f32 %v3990
    %vm3998 = vmor %vm3996, %vm3997
    %v3999 = vsel %vm3998, %v3990, %v3995
    %v4004 = vrot.slane %v3979, 7
    %v4005 = vrot.slane %v3989, 6
    %v4006 = vrot.slane %v3999, 5
    %v4007 = vsel %vm1651, %v3969, %v4004
    %v4008 = vsel %vm1653, %v4005, %v4006
    %v4009 = vsel %vm1655, %v4007, %v4008
    %v4011 = vmul.f32 %v1080, %v4009
    %v4013 = vperm.slane %v4011, 0
    %v4014 = vperm.slane %v4011, 1
    %v4015 = vperm.slane %v4011, 2
    %v4016 = vperm.slane %v4011, 3
    %v4021 = vmul.f32 %v3900, %v4013
    %v4022 = vmul.f32 %v3901, %v4014
    %v4023 = vmul.f32 %v3902, %v4015
    %v4024 = vmul.f32 %v3903, %v4016
    %v4029 = vrot.slane %v4022, 7
    %v4030 = vrot.slane %v4023, 6
    %v4031 = vrot.slane %v4024, 5
    %v4032 = vsel %vm1651, %v4021, %v4029
    %v4033 = vsel %vm1653, %v4030, %v4031
    %v4034 = vsel %vm1655, %v4032, %v4033
    %v4036 = vsub.f32 %v1081, %v4034
    %v4037 = vmul.f32 %v3700, %v4013
    %v4038 = vmul.f32 %v3756, %v4014
    %v4039 = vmul.f32 %v3812, %v4015
    %v4040 = vmul.f32 %v3868, %v4016
    %v4041 = vmul.f32 %v3702, %v4013
    %v4042 = vmul.f32 %v3758, %v4014
    %v4043 = vmul.f32 %v3814, %v4015
    %v4044 = vmul.f32 %v3870, %v4016
    %v4046 = vperm.slane %v4036, 0
    %v4047 = vperm.slane %v4036, 1
    %v4048 = vperm.slane %v4036, 2
    %v4049 = vperm.slane %v4036, 3
    %v4054 = vadd.f32 %v4037, %v4046
    %v4055 = vadd.f32 %v4038, %v4047
    %v4056 = vadd.f32 %v4039, %v4048
    %v4057 = vadd.f32 %v4040, %v4049
    %v4058 = vadd.f32 %v4041, %v4046
    %v4059 = vadd.f32 %v4042, %v4047
    %v4060 = vadd.f32 %v4043, %v4048
    %v4061 = vadd.f32 %v4044, %v4049
    %v4062 = vmax.f32 %v4054, 0.0
    %v4063 = vmax.f32 %v4055, 0.0
    %v4064 = vmax.f32 %v4056, 0.0
    %v4065 = vmax.f32 %v4057, 0.0
    %v4066 = vmax.f32 %v4058, 0.0
    %v4067 = vmax.f32 %v4059, 0.0
    %v4068 = vmax.f32 %v4060, 0.0
    %v4069 = vmax.f32 %v4061, 0.0
    %v4070 = vpack.c.bf16 %v4066, %v4062
    %v4071 = vpack.c.bf16 %v4067, %v4063
    %v4072 = vpack.c.bf16 %v4068, %v4064
    %v4073 = vpack.c.bf16 %v4069, %v4065
    %v4075 = vperm.slane %v1146, 0
    %v4141 = vunpack.c.l.b16 %v1082
    %v4142 = vunpack.c.l.b16 %v1083
    %v4143 = vunpack.c.l.b16 %v1084
    %v4144 = vunpack.c.l.b16 %v1085
    %v4145 = vunpack.c.l.b16 %v1086
    %v4146 = vunpack.c.l.b16 %v1087
    %v4147 = vunpack.c.l.b16 %v1088
    %v4148 = vunpack.c.l.b16 %v1089
    %v4149 = vunpack.c.l.b16 %v1090
    %v4150 = vunpack.c.l.b16 %v1091
    %v4151 = vunpack.c.l.b16 %v1092
    %v4152 = vunpack.c.l.b16 %v1093
    %v4153 = vunpack.c.l.b16 %v1094
    %v4154 = vunpack.c.l.b16 %v1095
    %v4155 = vunpack.c.l.b16 %v1096
    %v4156 = vunpack.c.l.b16 %v1097
    %v4157 = vunpack.c.l.b16 %v1098
    %v4158 = vunpack.c.l.b16 %v1099
    %v4159 = vunpack.c.l.b16 %v1100
    %v4160 = vunpack.c.l.b16 %v1101
    %v4161 = vunpack.c.l.b16 %v1102
    %v4162 = vunpack.c.l.b16 %v1103
    %v4163 = vunpack.c.l.b16 %v1104
    %v4164 = vunpack.c.l.b16 %v1105
    %v4165 = vunpack.c.l.b16 %v1106
    %v4166 = vunpack.c.l.b16 %v1107
    %v4167 = vunpack.c.l.b16 %v1108
    %v4168 = vunpack.c.l.b16 %v1109
    %v4169 = vunpack.c.l.b16 %v1110
    %v4170 = vunpack.c.l.b16 %v1111
    %v4171 = vunpack.c.l.b16 %v1112
    %v4172 = vunpack.c.l.b16 %v1113
    %v4173 = vunpack.c.l.b16 %v1114
    %v4174 = vunpack.c.l.b16 %v1115
    %v4175 = vunpack.c.l.b16 %v1116
    %v4176 = vunpack.c.l.b16 %v1117
    %v4177 = vunpack.c.l.b16 %v1118
    %v4178 = vunpack.c.l.b16 %v1119
    %v4179 = vunpack.c.l.b16 %v1120
    %v4180 = vunpack.c.l.b16 %v1121
    %v4181 = vunpack.c.l.b16 %v1122
    %v4182 = vunpack.c.l.b16 %v1123
    %v4183 = vunpack.c.l.b16 %v1124
    %v4184 = vunpack.c.l.b16 %v1125
    %v4185 = vunpack.c.l.b16 %v1126
    %v4186 = vunpack.c.l.b16 %v1127
    %v4187 = vunpack.c.l.b16 %v1128
    %v4188 = vunpack.c.l.b16 %v1129
    %v4189 = vunpack.c.l.b16 %v1130
    %v4190 = vunpack.c.l.b16 %v1131
    %v4191 = vunpack.c.l.b16 %v1132
    %v4192 = vunpack.c.l.b16 %v1133
    %v4193 = vunpack.c.l.b16 %v1134
    %v4194 = vunpack.c.l.b16 %v1135
    %v4195 = vunpack.c.l.b16 %v1136
    %v4196 = vunpack.c.l.b16 %v1137
    %v4197 = vunpack.c.l.b16 %v1138
    %v4198 = vunpack.c.l.b16 %v1139
    %v4199 = vunpack.c.l.b16 %v1140
    %v4200 = vunpack.c.l.b16 %v1141
    %v4201 = vunpack.c.l.b16 %v1142
    %v4202 = vunpack.c.l.b16 %v1143
    %v4203 = vunpack.c.l.b16 %v1144
    %v4204 = vunpack.c.l.b16 %v1145
    %v4205 = vpack.c.b16 %v4142, %v4141
    %v4206 = vpack.c.b16 %v4144, %v4143
    %v4207 = vpack.c.b16 %v4146, %v4145
    %v4208 = vpack.c.b16 %v4148, %v4147
    %v4209 = vpack.c.b16 %v4150, %v4149
    %v4210 = vpack.c.b16 %v4152, %v4151
    %v4211 = vpack.c.b16 %v4154, %v4153
    %v4212 = vpack.c.b16 %v4156, %v4155
    %v4213 = vpack.c.b16 %v4158, %v4157
    %v4214 = vpack.c.b16 %v4160, %v4159
    %v4215 = vpack.c.b16 %v4162, %v4161
    %v4216 = vpack.c.b16 %v4164, %v4163
    %v4217 = vpack.c.b16 %v4166, %v4165
    %v4218 = vpack.c.b16 %v4168, %v4167
    %v4219 = vpack.c.b16 %v4170, %v4169
    %v4220 = vpack.c.b16 %v4172, %v4171
    %v4221 = vpack.c.b16 %v4174, %v4173
    %v4222 = vpack.c.b16 %v4176, %v4175
    %v4223 = vpack.c.b16 %v4178, %v4177
    %v4224 = vpack.c.b16 %v4180, %v4179
    %v4225 = vpack.c.b16 %v4182, %v4181
    %v4226 = vpack.c.b16 %v4184, %v4183
    %v4227 = vpack.c.b16 %v4186, %v4185
    %v4228 = vpack.c.b16 %v4188, %v4187
    %v4229 = vpack.c.b16 %v4190, %v4189
    %v4230 = vpack.c.b16 %v4192, %v4191
    %v4231 = vpack.c.b16 %v4194, %v4193
    %v4232 = vpack.c.b16 %v4196, %v4195
    %v4233 = vpack.c.b16 %v4198, %v4197
    %v4234 = vpack.c.b16 %v4200, %v4199
    %v4235 = vpack.c.b16 %v4202, %v4201
    %v4236 = vpack.c.b16 %v4204, %v4203
    %4269 = vmatpush.bf16.msra.mxu0 %v4212
    %4270 = vmatpush.bf16.msra.mxu0 %v4211
    %4271 = vmatpush.bf16.msra.mxu0 %v4210
    %4272 = vmatpush.bf16.msra.mxu0 %v4209
    %4273 = vmatpush.bf16.msra.mxu0 %v4208
    %4274 = vmatpush.bf16.msra.mxu0 %v4207
    %4275 = vmatpush.bf16.msra.mxu0 %v4206
    %4276 = vmatpush.bf16.msra.mxu0 %v4205
    %4277 = vmatmul.bf16.gmra.mxu0 %v4070
    %v4278 = vpop.f32.mrf.mxu0
    %v4279 = vadd.f32 %v4075, %v4278
    %v4280 = vpop.f32.mrf.mxu0
    %v4281 = vadd.f32 %v4075, %v4280
    %4282 = vdwg.mxu0
    %4283 = vmatpush.bf16.msra.mxu0 %v4220
    %4284 = vmatpush.bf16.msra.mxu0 %v4219
    %4285 = vmatpush.bf16.msra.mxu0 %v4218
    %4286 = vmatpush.bf16.msra.mxu0 %v4217
    %4287 = vmatpush.bf16.msra.mxu0 %v4216
    %4288 = vmatpush.bf16.msra.mxu0 %v4215
    %4289 = vmatpush.bf16.msra.mxu0 %v4214
    %4290 = vmatpush.bf16.msra.mxu0 %v4213
    %4291 = vmatmul.bf16.gmra.mxu0 %v4071
    %v4292 = vpop.f32.mrf.mxu0
    %v4293 = vadd.f32 %v4279, %v4292
    %v4294 = vpop.f32.mrf.mxu0
    %v4295 = vadd.f32 %v4281, %v4294
    %4296 = vdwg.mxu0
    %4297 = vmatpush.bf16.msra.mxu0 %v4228
    %4298 = vmatpush.bf16.msra.mxu0 %v4227
    %4299 = vmatpush.bf16.msra.mxu0 %v4226
    %4300 = vmatpush.bf16.msra.mxu0 %v4225
    %4301 = vmatpush.bf16.msra.mxu0 %v4224
    %4302 = vmatpush.bf16.msra.mxu0 %v4223
    %4303 = vmatpush.bf16.msra.mxu0 %v4222
    %4304 = vmatpush.bf16.msra.mxu0 %v4221
    %4305 = vmatmul.bf16.gmra.mxu0 %v4072
    %v4306 = vpop.f32.mrf.mxu0
    %v4307 = vadd.f32 %v4293, %v4306
    %v4308 = vpop.f32.mrf.mxu0
    %v4309 = vadd.f32 %v4295, %v4308
    %4310 = vdwg.mxu0
    %4311 = vmatpush.bf16.msra.mxu0 %v4236
    %4312 = vmatpush.bf16.msra.mxu0 %v4235
    %4313 = vmatpush.bf16.msra.mxu0 %v4234
    %4314 = vmatpush.bf16.msra.mxu0 %v4233
    %4315 = vmatpush.bf16.msra.mxu0 %v4232
    %4316 = vmatpush.bf16.msra.mxu0 %v4231
    %4317 = vmatpush.bf16.msra.mxu0 %v4230
    %4318 = vmatpush.bf16.msra.mxu0 %v4229
    %4319 = vmatmul.bf16.gmra.mxu0 %v4073
    %v4320 = vpop.f32.mrf.mxu0
    %v4321 = vadd.f32 %v4307, %v4320
    %v4322 = vpop.f32.mrf.mxu0
    %v4323 = vadd.f32 %v4309, %v4322
    %4324 = vdwg.mxu0
    %v4325 = vadd.f32 %v4321, %v4323
    %v4326 = vrot.slane %v4325, 4
    %v4327 = vadd.f32 %v4325, %v4326
    %v4328 = vrot.slane %v4327, 2
    %v4329 = vadd.f32 %v4327, %v4328
    %v4330 = vrot.slane %v4329, 1
    %v4331 = vadd.f32 %v4329, %v4330
    %v4332 = vmul.f32 %v4331, %v1543
    %v4333 = vmul.f32 %v4321, %v4321
    %v4334 = vmul.f32 %v4323, %v4323
    %v4335 = vadd.f32 %v4333, %v4334
    %v4336 = vrot.slane %v4335, 4
    %v4337 = vadd.f32 %v4335, %v4336
    %v4338 = vrot.slane %v4337, 2
    %v4339 = vadd.f32 %v4337, %v4338
    %v4340 = vrot.slane %v4339, 1
    %v4341 = vadd.f32 %v4339, %v4340
    %v4342 = vmul.f32 %v4341, %v1543
    %v4343 = vmul.f32 %v4332, %v4332
    %v4344 = vsub.f32 %v4342, %v4343
    %v4345 = vmax.f32 %v4344, 0.0
    %v4346 = vadd.f32 %v4345, 1e-05
    %v4347 = vrsqrt.pop %v4346
    %v4348 = vmul.f32 %v4347, %v4346
    %v4349 = vmul.f32 %v4348, %v4347
    %v4350 = vmul.f32 0.5, %v4349
    %v4351 = vsub.f32 1.5, %v4350
    %v4352 = vmul.f32 %v4347, %v4351
    %vm4353 = vweird.f32 %v4346
    %vm4354 = vweird.f32 %v4347
    %vm4355 = vmor %vm4353, %vm4354
    %v4356 = vsel %vm4355, %v4347, %v4352
    %v4357 = vmul.f32 %v1147, %v4356
    %v4358 = vmul.f32 %v4332, %v4357
    %v4359 = vsub.f32 %v1148, %v4358
    %v4361 = vperm.slane %v4357, 0
    %v4363 = vmul.f32 %v4321, %v4361
    %v4364 = vmul.f32 %v4323, %v4361
    %v4366 = vperm.slane %v4359, 0
    %v4368 = vadd.f32 %v4363, %v4366
    %v4369 = vadd.f32 %v4364, %v4366
    %v4370 = vmax.f32 %v4368, 0.0
    %v4371 = vmax.f32 %v4369, 0.0
    %v4372 = vpack.c.bf16 %v4371, %v4370
    %v4374 = vperm.slane %v1165, 0
    %v4392 = vunpack.c.l.b16 %v1149
    %v4393 = vunpack.c.l.b16 %v1150
    %v4394 = vunpack.c.l.b16 %v1151
    %v4395 = vunpack.c.l.b16 %v1152
    %v4396 = vunpack.c.l.b16 %v1153
    %v4397 = vunpack.c.l.b16 %v1154
    %v4398 = vunpack.c.l.b16 %v1155
    %v4399 = vunpack.c.l.b16 %v1156
    %v4400 = vunpack.c.l.b16 %v1157
    %v4401 = vunpack.c.l.b16 %v1158
    %v4402 = vunpack.c.l.b16 %v1159
    %v4403 = vunpack.c.l.b16 %v1160
    %v4404 = vunpack.c.l.b16 %v1161
    %v4405 = vunpack.c.l.b16 %v1162
    %v4406 = vunpack.c.l.b16 %v1163
    %v4407 = vunpack.c.l.b16 %v1164
    %v4408 = vpack.c.b16 %v4393, %v4392
    %v4409 = vpack.c.b16 %v4395, %v4394
    %v4410 = vpack.c.b16 %v4397, %v4396
    %v4411 = vpack.c.b16 %v4399, %v4398
    %v4412 = vpack.c.b16 %v4401, %v4400
    %v4413 = vpack.c.b16 %v4403, %v4402
    %v4414 = vpack.c.b16 %v4405, %v4404
    %v4415 = vpack.c.b16 %v4407, %v4406
    %4424 = vmatpush.bf16.msra.mxu0 %v4415
    %4425 = vmatpush.bf16.msra.mxu0 %v4414
    %4426 = vmatpush.bf16.msra.mxu0 %v4413
    %4427 = vmatpush.bf16.msra.mxu0 %v4412
    %4428 = vmatpush.bf16.msra.mxu0 %v4411
    %4429 = vmatpush.bf16.msra.mxu0 %v4410
    %4430 = vmatpush.bf16.msra.mxu0 %v4409
    %4431 = vmatpush.bf16.msra.mxu0 %v4408
    %4432 = vmatmul.bf16.gmra.mxu0 %v4372
    %v4433 = vpop.f32.mrf.mxu0
    %v4434 = vadd.f32 %v4374, %v4433
    %v4435 = vpop.f32.mrf.mxu0
    %v4436 = vadd.f32 %v4374, %v4435
    %4437 = vdwg.mxu0
    %4438 = vst [vmem:[#allocation13] sm:$0xff] %v4434
    %4439 = vst [vmem:[#allocation13 + $0x8] sm:$0xff] %v4436
    // Predicated region
    $region94: #{tpu_custom_call.1} parent=1 // pred_check
      _
    $region95: #{tpu_custom_call.1} parent=1 // pred_check_branch
      %4441 = sbr.rel (0) target = $region97
    $region96: #{tpu_custom_call.1} parent=1 // pred_region
      %4443 = vsyncadd [#allocation4], 0
      %s4444 = sshll.u32 [#allocation13], 4
      %s4445 = int_to_ptr.vmem [resolvable:$true] %s4444
      %s4446 = sshll.u32 %s17, 4
      %s4447 = int_to_ptr.hbm [resolvable:$true] %s4446
      %4452 = dma.vmem_to_hbm [thread:$0]  %s4445, 256, %s4447, [#allocation4], 128, 128, 8
    $region97: #{tpu_custom_call.1} parent=1 // pred_fallthru
      _
    // Predicated region
    $region98: #{tpu_custom_call.1} parent=1 // pred_check
      _
    $region99: #{tpu_custom_call.1} parent=1 // pred_check_branch
      %4454 = sbr.rel (0) target = $region101
    $region100: #{tpu_custom_call.1} parent=1 // pred_region
      %4456 = dma.done [#allocation4], 256
    $region101: #{tpu_custom_call.1} parent=1 // pred_fallthru
      _
    %4457 = vsyncpa [#allocation3], 1
    %4458 = vsyncpa [#allocation6], 1
    %4459 = vsyncpa [#allocation9], 1
    %4460 = vsyncpa [#allocation12], 1
    %4461 = vsyncpa [#allocation4], 1

// kernel: tpu_custom_call.1
$region0: #{tpu_custom_call.1}
  #allocation0 [shape = 'u32[]', space=smem, size = 0x4, offset = 0x4, fixed_abs, tag = 'smem constant byte address 0x4 - core index']
  #allocation1 [shape = 'u32[72,128]{1,0:T(1,128)}', space=vmem, size = 0x9000, scoped, tag = 'internal scratch']
  %s0 = inlined_call_operand.hbm [shape: bf16[16,70], index: 0, kind: input, shape index: {}]
  %s1 = inlined_call_operand.hbm [shape: bf16[16,70], index: 1, kind: input, shape index: {}]
  %s2 = inlined_call_operand.hbm [shape: bf16[70,512], index: 2, kind: input, shape index: {}]
  %s3 = inlined_call_operand.hbm [shape: bf16[70,512], index: 3, kind: input, shape index: {}]
  %s4 = inlined_call_operand.hbm [shape: f32[1,512], index: 4, kind: input, shape index: {}]
  %s5 = inlined_call_operand.vmem [shape: f32[1,512], index: 5, kind: input, shape index: {}]
  %s6 = inlined_call_operand.hbm [shape: f32[1,512], index: 6, kind: input, shape index: {}]
  %s7 = inlined_call_operand.hbm [shape: bf16[512,512], index: 7, kind: input, shape index: {}]
  %s8 = inlined_call_operand.hbm [shape: f32[1,512], index: 8, kind: input, shape index: {}]
  %s9 = inlined_call_operand.vmem [shape: f32[1,512], index: 9, kind: input, shape index: {}]
  %s10 = inlined_call_operand.hbm [shape: f32[1,512], index: 10, kind: input, shape index: {}]
  %s11 = inlined_call_operand.hbm [shape: bf16[512,128], index: 11, kind: input, shape index: {}]
  %s12 = inlined_call_operand.vmem [shape: f32[1,128], index: 12, kind: input, shape index: {}]
  %s13 = inlined_call_operand.vmem [shape: f32[1,128], index: 13, kind: input, shape index: {}]
  %s14 = inlined_call_operand.vmem [shape: f32[1,128], index: 14, kind: input, shape index: {}]
  %s15 = inlined_call_operand.hbm [shape: bf16[128,128], index: 15, kind: input, shape index: {}]
  %s16 = inlined_call_operand.vmem [shape: f32[1,128], index: 16, kind: input, shape index: {}]
  %s17 = inlined_call_operand.hbm [shape: f32[16,128], index: 17, kind: output, shape index: {}]
  %s18 = sld [smem:[#allocation0]]
  $region122: #{tpu_custom_call.1} parent=0
    _
  %s20 = ssub.s32 1, %s18
  %s21 = scalar_select 0, %s20, %s18
  $region1: #{tpu_custom_call.1} parent=0
    #allocation2 [shape = 'u8[4096]{0}', space=vmem, size = 0x1000, scoped, tag = 'input window, operand 0, single buffered']
    #allocation3 [shape = 's32[1]{0}', space=sflag, size = 0x4, scoped, tag = 'scoped memory for tpu_custom_call.1']
    #allocation4 [shape = 's32[1]{0}', space=sflag, size = 0x4, scoped, tag = 'scoped memory for tpu_custom_call.1']
    #allocation5 [shape = 'u8[4096]{0}', space=vmem, size = 0x1000, scoped, tag = 'input window, operand 1, single buffered']
    #allocation6 [shape = 's32[1]{0}', space=sflag, size = 0x4, scoped, tag = 'scoped memory for tpu_custom_call.1']
    #allocation7 [shape = 'u8[73728]{0}', space=vmem, size = 0x12000, scoped, tag = 'input window, operand 2, single buffered']
    #allocation8 [shape = 'u8[73728]{0}', space=vmem, size = 0x12000, scoped, tag = 'input window, operand 3, single buffered']
    #allocation9 [shape = 's32[1]{0}', space=sflag, size = 0x4, scoped, tag = 'scoped memory for tpu_custom_call.1']
    #allocation10 [shape = 'u8[2048]{0}', space=vmem, size = 0x800, scoped, tag = 'input window, operand 4, single buffered']
    #allocation11 [shape = 'u8[2048]{0}', space=vmem, size = 0x800, scoped, tag = 'input window, operand 6, single buffered']
    #allocation12 [shape = 's32[1]{0}', space=sflag, size = 0x4, scoped, tag = 'scoped memory for tpu_custom_call.1']
    #allocation13 [shape = 'u8[524288]{0}', space=vmem, size = 0x80000, scoped, tag = 'input window, operand 7, single buffered']
    #allocation14 [shape = 'u8[2048]{0}', space=vmem, size = 0x800, scoped, tag = 'input window, operand 8, single buffered']
    #allocation15 [shape = 's32[1]{0}', space=sflag, size = 0x4, scoped, tag = 'scoped memory for tpu_custom_call.1']
    #allocation16 [shape = 'u8[2048]{0}', space=vmem, size = 0x800, scoped, tag = 'input window, operand 10, single buffered']
    #allocation17 [shape = 'u8[131072]{0}', space=vmem, size = 0x20000, scoped, tag = 'input window, operand 11, single buffered']
    #allocation18 [shape = 's32[1]{0}', space=sflag, size = 0x4, scoped, tag = 'scoped memory for tpu_custom_call.1']
    #allocation19 [shape = 'u8[32768]{0}', space=vmem, size = 0x8000, scoped, tag = 'input window, operand 15, single buffered']
    #allocation20 [shape = 'u8[8192]{0}', space=vmem, size = 0x2000, scoped, tag = 'output window, operand 0, single buffered']
    %22 = vsyncpa [#allocation3], 0
    %23 = vsyncpa [#allocation6], 0
    %24 = vsyncpa [#allocation9], 0
    %25 = vsyncpa [#allocation12], 0
    %26 = vsyncpa [#allocation15], 0
    %27 = vsyncpa [#allocation18], 0
    %28 = vsyncpa [#allocation4], 0
    // Predicated region
    $region2: #{tpu_custom_call.1} parent=1 // pred_check
      _
    $region3: #{tpu_custom_call.1} parent=1 // pred_check_branch
      %30 = sbr.rel (0) target = $region5
    $region4: #{tpu_custom_call.1} parent=1 // pred_region
      %32 = vsyncadd [#allocation3], 0
      %s33 = sshll.u32 %s0, 4
      %s34 = int_to_ptr.hbm [resolvable:$true] %s33
      %s35 = sshll.u32 [#allocation2], 4
      %s36 = int_to_ptr.vmem [resolvable:$true] %s35
      %41 = dma.hbm_to_vmem [thread:$0]  %s34, 128, %s36, [#allocation3], 64, 64, 4
    $region5: #{tpu_custom_call.1} parent=1 // pred_fallthru
      _
    // Predicated region
    $region6: #{tpu_custom_call.1} parent=1 // pred_check
      _
    $region7: #{tpu_custom_call.1} parent=1 // pred_check_branch
      %43 = sbr.rel (0) target = $region9
    $region8: #{tpu_custom_call.1} parent=1 // pred_region
      %45 = vsyncadd [#allocation6], 0
      %s46 = sshll.u32 %s1, 4
      %s47 = int_to_ptr.hbm [resolvable:$true] %s46
      %s48 = sshll.u32 [#allocation5], 4
      %s49 = int_to_ptr.vmem [resolvable:$true] %s48
      %54 = dma.hbm_to_vmem [thread:$0]  %s47, 128, %s49, [#allocation6], 64, 64, 4
    $region9: #{tpu_custom_call.1} parent=1 // pred_fallthru
      _
    // Predicated region
    $region10: #{tpu_custom_call.1} parent=1 // pred_check
      _
    $region11: #{tpu_custom_call.1} parent=1 // pred_check_branch
      %56 = sbr.rel (0) target = $region13
    $region12: #{tpu_custom_call.1} parent=1 // pred_region
      %58 = vsyncadd [#allocation6], 0
      %s59 = sshll.u32 %s2, 4
      %s60 = int_to_ptr.hbm [resolvable:$true] %s59
      %s61 = sshll.u32 [#allocation7], 4
      %s62 = int_to_ptr.vmem [resolvable:$true] %s61
      %67 = dma.hbm_to_vmem [thread:$0]  %s60, 2304, %s62, [#allocation6], 256, 256, 16
    $region13: #{tpu_custom_call.1} parent=1 // pred_fallthru
      _
    // Predicated region
    $region14: #{tpu_custom_call.1} parent=1 // pred_check
      _
    $region15: #{tpu_custom_call.1} parent=1 // pred_check_branch
      %69 = sbr.rel (0) target = $region17
    $region16: #{tpu_custom_call.1} parent=1 // pred_region
      %71 = vsyncadd [#allocation9], 0
      %s72 = sshll.u32 %s3, 4
      %s73 = int_to_ptr.hbm [resolvable:$true] %s72
      %s74 = sshll.u32 [#allocation8], 4
      %s75 = int_to_ptr.vmem [resolvable:$true] %s74
      %80 = dma.hbm_to_vmem [thread:$0]  %s73, 2304, %s75, [#allocation9], 256, 256, 16
    $region17: #{tpu_custom_call.1} parent=1 // pred_fallthru
      _
    // Predicated region
    $region18: #{tpu_custom_call.1} parent=1 // pred_check
      _
    $region19: #{tpu_custom_call.1} parent=1 // pred_check_branch
      %82 = sbr.rel (0) target = $region21
    $region20: #{tpu_custom_call.1} parent=1 // pred_region
      %84 = vsyncadd [#allocation9], 0
      %s86 = sshll.u32 %s4, 4
      %s87 = int_to_ptr.hbm [resolvable:$true] %s86
      %s88 = sshll.u32 [#allocation10], 4
      %s89 = int_to_ptr.vmem [resolvable:$true] %s88
      %91 = dma.hbm_to_vmem [thread:$0]  %s87, 64, %s89, [#allocation9]
    $region21: #{tpu_custom_call.1} parent=1 // pred_fallthru
      _
    // Predicated region
    $region22: #{tpu_custom_call.1} parent=1 // pred_check
      _
    $region23: #{tpu_custom_call.1} parent=1 // pred_check_branch
      %93 = sbr.rel (0) target = $region25
    $region24: #{tpu_custom_call.1} parent=1 // pred_region
      _
    $region25: #{tpu_custom_call.1} parent=1 // pred_fallthru
      _
    // Predicated region
    $region26: #{tpu_custom_call.1} parent=1 // pred_check
      _
    $region27: #{tpu_custom_call.1} parent=1 // pred_check_branch
      %95 = sbr.rel (0) target = $region29
    $region28: #{tpu_custom_call.1} parent=1 // pred_region
      %97 = vsyncadd [#allocation12], 0
      %s99 = sshll.u32 %s6, 4
      %s100 = int_to_ptr.hbm [resolvable:$true] %s99
      %s101 = sshll.u32 [#allocation11], 4
      %s102 = int_to_ptr.vmem [resolvable:$true] %s101
      %104 = dma.hbm_to_vmem [thread:$0]  %s100, 64, %s102, [#allocation12]
    $region29: #{tpu_custom_call.1} parent=1 // pred_fallthru
      _
    // Predicated region
    $region30: #{tpu_custom_call.1} parent=1 // pred_check
      _
    $region31: #{tpu_custom_call.1} parent=1 // pred_check_branch
      %106 = sbr.rel (0) target = $region33
    $region32: #{tpu_custom_call.1} parent=1 // pred_region
      %108 = vsyncadd [#allocation12], 0
      %s109 = sshll.u32 %s7, 4
      %s110 = int_to_ptr.hbm [resolvable:$true] %s109
      %s111 = sshll.u32 [#allocation13], 4
      %s112 = int_to_ptr.vmem [resolvable:$true] %s111
      %117 = dma.hbm_to_vmem [thread:$0]  %s110, 16384, %s112, [#allocation12], 256, 256, 16
    $region33: #{tpu_custom_call.1} parent=1 // pred_fallthru
      _
    // Predicated region
    $region34: #{tpu_custom_call.1} parent=1 // pred_check
      _
    $region35: #{tpu_custom_call.1} parent=1 // pred_check_branch
      %119 = sbr.rel (0) target = $region37
    $region36: #{tpu_custom_call.1} parent=1 // pred_region
      %121 = vsyncadd [#allocation15], 0
      %s123 = sshll.u32 %s8, 4
      %s124 = int_to_ptr.hbm [resolvable:$true] %s123
      %s125 = sshll.u32 [#allocation14], 4
      %s126 = int_to_ptr.vmem [resolvable:$true] %s125
      %128 = dma.hbm_to_vmem [thread:$0]  %s124, 64, %s126, [#allocation15]
    $region37: #{tpu_custom_call.1} parent=1 // pred_fallthru
      _
    // Predicated region
    $region38: #{tpu_custom_call.1} parent=1 // pred_check
      _
    $region39: #{tpu_custom_call.1} parent=1 // pred_check_branch
      %130 = sbr.rel (0) target = $region41
    $region40: #{tpu_custom_call.1} parent=1 // pred_region
      _
    $region41: #{tpu_custom_call.1} parent=1 // pred_fallthru
      _
    // Predicated region
    $region42: #{tpu_custom_call.1} parent=1 // pred_check
      _
    $region43: #{tpu_custom_call.1} parent=1 // pred_check_branch
      %132 = sbr.rel (0) target = $region45
    $region44: #{tpu_custom_call.1} parent=1 // pred_region
      %134 = vsyncadd [#allocation15], 0
      %s136 = sshll.u32 %s10, 4
      %s137 = int_to_ptr.hbm [resolvable:$true] %s136
      %s138 = sshll.u32 [#allocation16], 4
      %s139 = int_to_ptr.vmem [resolvable:$true] %s138
      %141 = dma.hbm_to_vmem [thread:$0]  %s137, 64, %s139, [#allocation15]
    $region45: #{tpu_custom_call.1} parent=1 // pred_fallthru
      _
    // Predicated region
    $region46: #{tpu_custom_call.1} parent=1 // pred_check
      _
    $region47: #{tpu_custom_call.1} parent=1 // pred_check_branch
      %143 = sbr.rel (0) target = $region49
    $region48: #{tpu_custom_call.1} parent=1 // pred_region
      %145 = vsyncadd [#allocation18], 0
      %s146 = sshll.u32 %s11, 4
      %s147 = int_to_ptr.hbm [resolvable:$true] %s146
      %s148 = sshll.u32 [#allocation17], 4
      %s149 = int_to_ptr.vmem [resolvable:$true] %s148
      %154 = dma.hbm_to_vmem [thread:$0]  %s147, 4096, %s149, [#allocation18], 64, 64, 4
    $region49: #{tpu_custom_call.1} parent=1 // pred_fallthru
      _
    // Predicated region
    $region50: #{tpu_custom_call.1} parent=1 // pred_check
      _
    $region51: #{tpu_custom_call.1} parent=1 // pred_check_branch
      %156 = sbr.rel (0) target = $region53
    $region52: #{tpu_custom_call.1} parent=1 // pred_region
      _
    $region53: #{tpu_custom_call.1} parent=1 // pred_fallthru
      _
    // Predicated region
    $region54: #{tpu_custom_call.1} parent=1 // pred_check
      _
    $region55: #{tpu_custom_call.1} parent=1 // pred_check_branch
      %158 = sbr.rel (0) target = $region57
    $region56: #{tpu_custom_call.1} parent=1 // pred_region
      _
    $region57: #{tpu_custom_call.1} parent=1 // pred_fallthru
      _
    // Predicated region
    $region58: #{tpu_custom_call.1} parent=1 // pred_check
      _
    $region59: #{tpu_custom_call.1} parent=1 // pred_check_branch
      %160 = sbr.rel (0) target = $region61
    $region60: #{tpu_custom_call.1} parent=1 // pred_region
      _
    $region61: #{tpu_custom_call.1} parent=1 // pred_fallthru
      _
    // Predicated region
    $region62: #{tpu_custom_call.1} parent=1 // pred_check
      _
    $region63: #{tpu_custom_call.1} parent=1 // pred_check_branch
      %162 = sbr.rel (0) target = $region65
    $region64: #{tpu_custom_call.1} parent=1 // pred_region
      %164 = vsyncadd [#allocation18], 0
      %s165 = sshll.u32 %s15, 4
      %s166 = int_to_ptr.hbm [resolvable:$true] %s165
      %s167 = sshll.u32 [#allocation19], 4
      %s168 = int_to_ptr.vmem [resolvable:$true] %s167
      %173 = dma.hbm_to_vmem [thread:$0]  %s166, 1024, %s168, [#allocation18], 64, 64, 4
    $region65: #{tpu_custom_call.1} parent=1 // pred_fallthru
      _
    // Predicated region
    $region66: #{tpu_custom_call.1} parent=1 // pred_check
      _
    $region67: #{tpu_custom_call.1} parent=1 // pred_check_branch
      %175 = sbr.rel (0) target = $region69
    $region68: #{tpu_custom_call.1} parent=1 // pred_region
      _
    $region69: #{tpu_custom_call.1} parent=1 // pred_fallthru
      _
    // Predicated region
    $region70: #{tpu_custom_call.1} parent=1 // pred_check
      _
    $region71: #{tpu_custom_call.1} parent=1 // pred_check_branch
      %177 = sbr.rel (0) target = $region73
    $region72: #{tpu_custom_call.1} parent=1 // pred_region
      %179 = dma.done [#allocation3], 128
    $region73: #{tpu_custom_call.1} parent=1 // pred_fallthru
      _
    // Predicated region
    $region74: #{tpu_custom_call.1} parent=1 // pred_check
      _
    $region75: #{tpu_custom_call.1} parent=1 // pred_check_branch
      %181 = sbr.rel (0) target = $region77
    $region76: #{tpu_custom_call.1} parent=1 // pred_region
      %183 = dma.done [#allocation6], 128
    $region77: #{tpu_custom_call.1} parent=1 // pred_fallthru
      _
    // Predicated region
    $region78: #{tpu_custom_call.1} parent=1 // pred_check
      _
    $region79: #{tpu_custom_call.1} parent=1 // pred_check_branch
      %185 = sbr.rel (0) target = $region81
    $region80: #{tpu_custom_call.1} parent=1 // pred_region
      %187 = dma.done [#allocation6], 2304
    $region81: #{tpu_custom_call.1} parent=1 // pred_fallthru
      _
    // Predicated region
    $region82: #{tpu_custom_call.1} parent=1 // pred_check
      _
    $region83: #{tpu_custom_call.1} parent=1 // pred_check_branch
      %189 = sbr.rel (0) target = $region85
    $region84: #{tpu_custom_call.1} parent=1 // pred_region
      %191 = dma.done [#allocation9], 2304
    $region85: #{tpu_custom_call.1} parent=1 // pred_fallthru
      _
    // Predicated region
    $region86: #{tpu_custom_call.1} parent=1 // pred_check
      _
    $region87: #{tpu_custom_call.1} parent=1 // pred_check_branch
      %193 = sbr.rel (0) target = $region89
    $region88: #{tpu_custom_call.1} parent=1 // pred_region
      %195 = dma.done [#allocation9], 64
    $region89: #{tpu_custom_call.1} parent=1 // pred_fallthru
      _
    // Predicated region
    $region90: #{tpu_custom_call.1} parent=1 // pred_check
      _
    $region91: #{tpu_custom_call.1} parent=1 // pred_check_branch
      %197 = sbr.rel (0) target = $region93
    $region92: #{tpu_custom_call.1} parent=1 // pred_region
      %199 = dma.done [#allocation12], 64
    $region93: #{tpu_custom_call.1} parent=1 // pred_fallthru
      _
    // Predicated region
    $region94: #{tpu_custom_call.1} parent=1 // pred_check
      _
    $region95: #{tpu_custom_call.1} parent=1 // pred_check_branch
      %201 = sbr.rel (0) target = $region97
    $region96: #{tpu_custom_call.1} parent=1 // pred_region
      %203 = dma.done [#allocation12], 16384
    $region97: #{tpu_custom_call.1} parent=1 // pred_fallthru
      _
    // Predicated region
    $region98: #{tpu_custom_call.1} parent=1 // pred_check
      _
    $region99: #{tpu_custom_call.1} parent=1 // pred_check_branch
      %205 = sbr.rel (0) target = $region101
    $region100: #{tpu_custom_call.1} parent=1 // pred_region
      %207 = dma.done [#allocation15], 64
    $region101: #{tpu_custom_call.1} parent=1 // pred_fallthru
      _
    // Predicated region
    $region102: #{tpu_custom_call.1} parent=1 // pred_check
      _
    $region103: #{tpu_custom_call.1} parent=1 // pred_check_branch
      %209 = sbr.rel (0) target = $region105
    $region104: #{tpu_custom_call.1} parent=1 // pred_region
      %211 = dma.done [#allocation15], 64
    $region105: #{tpu_custom_call.1} parent=1 // pred_fallthru
      _
    // Predicated region
    $region106: #{tpu_custom_call.1} parent=1 // pred_check
      _
    $region107: #{tpu_custom_call.1} parent=1 // pred_check_branch
      %213 = sbr.rel (0) target = $region109
    $region108: #{tpu_custom_call.1} parent=1 // pred_region
      %215 = dma.done [#allocation18], 4096
    $region109: #{tpu_custom_call.1} parent=1 // pred_fallthru
      _
    // Predicated region
    $region110: #{tpu_custom_call.1} parent=1 // pred_check
      _
    $region111: #{tpu_custom_call.1} parent=1 // pred_check_branch
      %217 = sbr.rel (0) target = $region113
    $region112: #{tpu_custom_call.1} parent=1 // pred_region
      %219 = dma.done [#allocation18], 1024
    $region113: #{tpu_custom_call.1} parent=1 // pred_fallthru
      _
    %v221 = vld [vmem:[#allocation2] sm:$0xf]
    %v222 = vld [vmem:[#allocation2 + $0x4] sm:$0xf]
    %v223 = vld [vmem:[#allocation5] sm:$0xf]
    %v224 = vld [vmem:[#allocation5 + $0x4] sm:$0xf]
    %v225 = vld [vmem:[#allocation7] sm:$0xff]
    %v226 = vld [vmem:[#allocation7 + $0x8] sm:$0xff]
    %v227 = vld [vmem:[#allocation7 + $0x10] sm:$0xff]
    %v228 = vld [vmem:[#allocation7 + $0x18] sm:$0xff]
    %v229 = vld [vmem:[#allocation7 + $0x20] sm:$0xff]
    %v230 = vld [vmem:[#allocation7 + $0x28] sm:$0xff]
    %v231 = vld [vmem:[#allocation7 + $0x30] sm:$0xff]
    %v232 = vld [vmem:[#allocation7 + $0x38] sm:$0xff]
    %v233 = vld [vmem:[#allocation7 + $0x40] sm:$0xff]
    %v234 = vld [vmem:[#allocation7 + $0x48] sm:$0xff]
    %v235 = vld [vmem:[#allocation7 + $0x50] sm:$0xff]
    %v236 = vld [vmem:[#allocation7 + $0x58] sm:$0xff]
    %v237 = vld [vmem:[#allocation7 + $0x60] sm:$0xff]
    %v238 = vld [vmem:[#allocation7 + $0x68] sm:$0xff]
    %v239 = vld [vmem:[#allocation7 + $0x70] sm:$0xff]
    %v240 = vld [vmem:[#allocation7 + $0x78] sm:$0xff]
    %v241 = vld [vmem:[#allocation7 + $0x80] sm:$0x77]
    %v242 = vld [vmem:[#allocation7 + $0x88] sm:$0x77]
    %v243 = vld [vmem:[#allocation8] sm:$0xff]
    %v244 = vld [vmem:[#allocation8 + $0x8] sm:$0xff]
    %v245 = vld [vmem:[#allocation8 + $0x10] sm:$0xff]
    %v246 = vld [vmem:[#allocation8 + $0x18] sm:$0xff]
    %v247 = vld [vmem:[#allocation8 + $0x20] sm:$0xff]
    %v248 = vld [vmem:[#allocation8 + $0x28] sm:$0xff]
    %v249 = vld [vmem:[#allocation8 + $0x30] sm:$0xff]
    %v250 = vld [vmem:[#allocation8 + $0x38] sm:$0xff]
    %v251 = vld [vmem:[#allocation8 + $0x40] sm:$0xff]
    %v252 = vld [vmem:[#allocation8 + $0x48] sm:$0xff]
    %v253 = vld [vmem:[#allocation8 + $0x50] sm:$0xff]
    %v254 = vld [vmem:[#allocation8 + $0x58] sm:$0xff]
    %v255 = vld [vmem:[#allocation8 + $0x60] sm:$0xff]
    %v256 = vld [vmem:[#allocation8 + $0x68] sm:$0xff]
    %v257 = vld [vmem:[#allocation8 + $0x70] sm:$0xff]
    %v258 = vld [vmem:[#allocation8 + $0x78] sm:$0xff]
    %v259 = vld [vmem:[#allocation8 + $0x80] sm:$0x77]
    %v260 = vld [vmem:[#allocation8 + $0x88] sm:$0x77]
    %v261 = vld [vmem:[#allocation10] sm:$0xf]
    %v262 = vld [vmem:[%s5] sm:$0xf]
    %v263 = vld [vmem:[#allocation11] sm:$0xf]
    %v264 = vld [vmem:[#allocation13] sm:$0xff]
    %v265 = vld [vmem:[#allocation13 + $0x8] sm:$0xff]
    %v266 = vld [vmem:[#allocation13 + $0x10] sm:$0xff]
    %v267 = vld [vmem:[#allocation13 + $0x18] sm:$0xff]
    %v268 = vld [vmem:[#allocation13 + $0x20] sm:$0xff]
    %v269 = vld [vmem:[#allocation13 + $0x28] sm:$0xff]
    %v270 = vld [vmem:[#allocation13 + $0x30] sm:$0xff]
    %v271 = vld [vmem:[#allocation13 + $0x38] sm:$0xff]
    %v272 = vld [vmem:[#allocation13 + $0x40] sm:$0xff]
    %v273 = vld [vmem:[#allocation13 + $0x48] sm:$0xff]
    %v274 = vld [vmem:[#allocation13 + $0x50] sm:$0xff]
    %v275 = vld [vmem:[#allocation13 + $0x58] sm:$0xff]
    %v276 = vld [vmem:[#allocation13 + $0x60] sm:$0xff]
    %v277 = vld [vmem:[#allocation13 + $0x68] sm:$0xff]
    %v278 = vld [vmem:[#allocation13 + $0x70] sm:$0xff]
    %v279 = vld [vmem:[#allocation13 + $0x78] sm:$0xff]
    %v280 = vld [vmem:[#allocation13 + $0x80] sm:$0xff]
    %v281 = vld [vmem:[#allocation13 + $0x88] sm:$0xff]
    %v282 = vld [vmem:[#allocation13 + $0x90] sm:$0xff]
    %v283 = vld [vmem:[#allocation13 + $0x98] sm:$0xff]
    %v284 = vld [vmem:[#allocation13 + $0xa0] sm:$0xff]
    %v285 = vld [vmem:[#allocation13 + $0xa8] sm:$0xff]
    %v286 = vld [vmem:[#allocation13 + $0xb0] sm:$0xff]
    %v287 = vld [vmem:[#allocation13 + $0xb8] sm:$0xff]
    %v288 = vld [vmem:[#allocation13 + $0xc0] sm:$0xff]
    %v289 = vld [vmem:[#allocation13 + $0xc8] sm:$0xff]
    %v290 = vld [vmem:[#allocation13 + $0xd0] sm:$0xff]
    %v291 = vld [vmem:[#allocation13 + $0xd8] sm:$0xff]
    %v292 = vld [vmem:[#allocation13 + $0xe0] sm:$0xff]
    %v293 = vld [vmem:[#allocation13 + $0xe8] sm:$0xff]
    %v294 = vld [vmem:[#allocation13 + $0xf0] sm:$0xff]
    %v295 = vld [vmem:[#allocation13 + $0xf8] sm:$0xff]
    %v296 = vld [vmem:[#allocation13 + $0x100] sm:$0xff]
    %v297 = vld [vmem:[#allocation13 + $0x108] sm:$0xff]
    %v298 = vld [vmem:[#allocation13 + $0x110] sm:$0xff]
    %v299 = vld [vmem:[#allocation13 + $0x118] sm:$0xff]
    %v300 = vld [vmem:[#allocation13 + $0x120] sm:$0xff]
    %v301 = vld [vmem:[#allocation13 + $0x128] sm:$0xff]
    %v302 = vld [vmem:[#allocation13 + $0x130] sm:$0xff]
    %v303 = vld [vmem:[#allocation13 + $0x138] sm:$0xff]
    %v304 = vld [vmem:[#allocation13 + $0x140] sm:$0xff]
    %v305 = vld [vmem:[#allocation13 + $0x148] sm:$0xff]
    %v306 = vld [vmem:[#allocation13 + $0x150] sm:$0xff]
    %v307 = vld [vmem:[#allocation13 + $0x158] sm:$0xff]
    %v308 = vld [vmem:[#allocation13 + $0x160] sm:$0xff]
    %v309 = vld [vmem:[#allocation13 + $0x168] sm:$0xff]
    %v310 = vld [vmem:[#allocation13 + $0x170] sm:$0xff]
    %v311 = vld [vmem:[#allocation13 + $0x178] sm:$0xff]
    %v312 = vld [vmem:[#allocation13 + $0x180] sm:$0xff]
    %v313 = vld [vmem:[#allocation13 + $0x188] sm:$0xff]
    %v314 = vld [vmem:[#allocation13 + $0x190] sm:$0xff]
    %v315 = vld [vmem:[#allocation13 + $0x198] sm:$0xff]
    %v316 = vld [vmem:[#allocation13 + $0x1a0] sm:$0xff]
    %v317 = vld [vmem:[#allocation13 + $0x1a8] sm:$0xff]
    %v318 = vld [vmem:[#allocation13 + $0x1b0] sm:$0xff]
    %v319 = vld [vmem:[#allocation13 + $0x1b8] sm:$0xff]
    %v320 = vld [vmem:[#allocation13 + $0x1c0] sm:$0xff]
    %v321 = vld [vmem:[#allocation13 + $0x1c8] sm:$0xff]
    %v322 = vld [vmem:[#allocation13 + $0x1d0] sm:$0xff]
    %v323 = vld [vmem:[#allocation13 + $0x1d8] sm:$0xff]
    %v324 = vld [vmem:[#allocation13 + $0x1e0] sm:$0xff]
    %v325 = vld [vmem:[#allocation13 + $0x1e8] sm:$0xff]
    %v326 = vld [vmem:[#allocation13 + $0x1f0] sm:$0xff]
    %v327 = vld [vmem:[#allocation13 + $0x1f8] sm:$0xff]
    %v328 = vld [vmem:[#allocation13 + $0x200] sm:$0xff]
    %v329 = vld [vmem:[#allocation13 + $0x208] sm:$0xff]
    %v330 = vld [vmem:[#allocation13 + $0x210] sm:$0xff]
    %v331 = vld [vmem:[#allocation13 + $0x218] sm:$0xff]
    %v332 = vld [vmem:[#allocation13 + $0x220] sm:$0xff]
    %v333 = vld [vmem:[#allocation13 + $0x228] sm:$0xff]
    %v334 = vld [vmem:[#allocation13 + $0x230] sm:$0xff]
    %v335 = vld [vmem:[#allocation13 + $0x238] sm:$0xff]
    %v336 = vld [vmem:[#allocation13 + $0x240] sm:$0xff]
    %v337 = vld [vmem:[#allocation13 + $0x248] sm:$0xff]
    %v338 = vld [vmem:[#allocation13 + $0x250] sm:$0xff]
    %v339 = vld [vmem:[#allocation13 + $0x258] sm:$0xff]
    %v340 = vld [vmem:[#allocation13 + $0x260] sm:$0xff]
    %v341 = vld [vmem:[#allocation13 + $0x268] sm:$0xff]
    %v342 = vld [vmem:[#allocation13 + $0x270] sm:$0xff]
    %v343 = vld [vmem:[#allocation13 + $0x278] sm:$0xff]
    %v344 = vld [vmem:[#allocation13 + $0x280] sm:$0xff]
    %v345 = vld [vmem:[#allocation13 + $0x288] sm:$0xff]
    %v346 = vld [vmem:[#allocation13 + $0x290] sm:$0xff]
    %v347 = vld [vmem:[#allocation13 + $0x298] sm:$0xff]
    %v348 = vld [vmem:[#allocation13 + $0x2a0] sm:$0xff]
    %v349 = vld [vmem:[#allocation13 + $0x2a8] sm:$0xff]
    %v350 = vld [vmem:[#allocation13 + $0x2b0] sm:$0xff]
    %v351 = vld [vmem:[#allocation13 + $0x2b8] sm:$0xff]
    %v352 = vld [vmem:[#allocation13 + $0x2c0] sm:$0xff]
    %v353 = vld [vmem:[#allocation13 + $0x2c8] sm:$0xff]
    %v354 = vld [vmem:[#allocation13 + $0x2d0] sm:$0xff]
    %v355 = vld [vmem:[#allocation13 + $0x2d8] sm:$0xff]
    %v356 = vld [vmem:[#allocation13 + $0x2e0] sm:$0xff]
    %v357 = vld [vmem:[#allocation13 + $0x2e8] sm:$0xff]
    %v358 = vld [vmem:[#allocation13 + $0x2f0] sm:$0xff]
    %v359 = vld [vmem:[#allocation13 + $0x2f8] sm:$0xff]
    %v360 = vld [vmem:[#allocation13 + $0x300] sm:$0xff]
    %v361 = vld [vmem:[#allocation13 + $0x308] sm:$0xff]
    %v362 = vld [vmem:[#allocation13 + $0x310] sm:$0xff]
    %v363 = vld [vmem:[#allocation13 + $0x318] sm:$0xff]
    %v364 = vld [vmem:[#allocation13 + $0x320] sm:$0xff]
    %v365 = vld [vmem:[#allocation13 + $0x328] sm:$0xff]
    %v366 = vld [vmem:[#allocation13 + $0x330] sm:$0xff]
    %v367 = vld [vmem:[#allocation13 + $0x338] sm:$0xff]
    %v368 = vld [vmem:[#allocation13 + $0x340] sm:$0xff]
    %v369 = vld [vmem:[#allocation13 + $0x348] sm:$0xff]
    %v370 = vld [vmem:[#allocation13 + $0x350] sm:$0xff]
    %v371 = vld [vmem:[#allocation13 + $0x358] sm:$0xff]
    %v372 = vld [vmem:[#allocation13 + $0x360] sm:$0xff]
    %v373 = vld [vmem:[#allocation13 + $0x368] sm:$0xff]
    %v374 = vld [vmem:[#allocation13 + $0x370] sm:$0xff]
    %v375 = vld [vmem:[#allocation13 + $0x378] sm:$0xff]
    %v376 = vld [vmem:[#allocation13 + $0x380] sm:$0xff]
    %v377 = vld [vmem:[#allocation13 + $0x388] sm:$0xff]
    %v378 = vld [vmem:[#allocation13 + $0x390] sm:$0xff]
    %v379 = vld [vmem:[#allocation13 + $0x398] sm:$0xff]
    %v380 = vld [vmem:[#allocation13 + $0x3a0] sm:$0xff]
    %v381 = vld [vmem:[#allocation13 + $0x3a8] sm:$0xff]
    %v382 = vld [vmem:[#allocation13 + $0x3b0] sm:$0xff]
    %v383 = vld [vmem:[#allocation13 + $0x3b8] sm:$0xff]
    %v384 = vld [vmem:[#allocation13 + $0x3c0] sm:$0xff]
    %v385 = vld [vmem:[#allocation13 + $0x3c8] sm:$0xff]
    %v386 = vld [vmem:[#allocation13 + $0x3d0] sm:$0xff]
    %v387 = vld [vmem:[#allocation13 + $0x3d8] sm:$0xff]
    %v388 = vld [vmem:[#allocation13 + $0x3e0] sm:$0xff]
    %v389 = vld [vmem:[#allocation13 + $0x3e8] sm:$0xff]
    %v390 = vld [vmem:[#allocation13 + $0x3f0] sm:$0xff]
    %v391 = vld [vmem:[#allocation13 + $0x3f8] sm:$0xff]
    %v392 = vld [vmem:[#allocation14] sm:$0xf]
    %v393 = vld [vmem:[%s9] sm:$0xf]
    %v394 = vld [vmem:[#allocation16] sm:$0xf]
    %v395 = vld [vmem:[#allocation17] sm:$0xf]
    %v396 = vld [vmem:[#allocation17 + $0x4] sm:$0xf]
    %v397 = vld [vmem:[#allocation17 + $0x8] sm:$0xf]
    %v398 = vld [vmem:[#allocation17 + $0xc] sm:$0xf]
    %v399 = vld [vmem:[#allocation17 + $0x10] sm:$0xf]
    %v400 = vld [vmem:[#allocation17 + $0x14] sm:$0xf]
    %v401 = vld [vmem:[#allocation17 + $0x18] sm:$0xf]
    %v402 = vld [vmem:[#allocation17 + $0x1c] sm:$0xf]
    %v403 = vld [vmem:[#allocation17 + $0x20] sm:$0xf]
    %v404 = vld [vmem:[#allocation17 + $0x24] sm:$0xf]
    %v405 = vld [vmem:[#allocation17 + $0x28] sm:$0xf]
    %v406 = vld [vmem:[#allocation17 + $0x2c] sm:$0xf]
    %v407 = vld [vmem:[#allocation17 + $0x30] sm:$0xf]
    %v408 = vld [vmem:[#allocation17 + $0x34] sm:$0xf]
    %v409 = vld [vmem:[#allocation17 + $0x38] sm:$0xf]
    %v410 = vld [vmem:[#allocation17 + $0x3c] sm:$0xf]
    %v411 = vld [vmem:[#allocation17 + $0x40] sm:$0xf]
    %v412 = vld [vmem:[#allocation17 + $0x44] sm:$0xf]
    %v413 = vld [vmem:[#allocation17 + $0x48] sm:$0xf]
    %v414 = vld [vmem:[#allocation17 + $0x4c] sm:$0xf]
    %v415 = vld [vmem:[#allocation17 + $0x50] sm:$0xf]
    %v416 = vld [vmem:[#allocation17 + $0x54] sm:$0xf]
    %v417 = vld [vmem:[#allocation17 + $0x58] sm:$0xf]
    %v418 = vld [vmem:[#allocation17 + $0x5c] sm:$0xf]
    %v419 = vld [vmem:[#allocation17 + $0x60] sm:$0xf]
    %v420 = vld [vmem:[#allocation17 + $0x64] sm:$0xf]
    %v421 = vld [vmem:[#allocation17 + $0x68] sm:$0xf]
    %v422 = vld [vmem:[#allocation17 + $0x6c] sm:$0xf]
    %v423 = vld [vmem:[#allocation17 + $0x70] sm:$0xf]
    %v424 = vld [vmem:[#allocation17 + $0x74] sm:$0xf]
    %v425 = vld [vmem:[#allocation17 + $0x78] sm:$0xf]
    %v426 = vld [vmem:[#allocation17 + $0x7c] sm:$0xf]
    %v427 = vld [vmem:[#allocation17 + $0x80] sm:$0xf]
    %v428 = vld [vmem:[#allocation17 + $0x84] sm:$0xf]
    %v429 = vld [vmem:[#allocation17 + $0x88] sm:$0xf]
    %v430 = vld [vmem:[#allocation17 + $0x8c] sm:$0xf]
    %v431 = vld [vmem:[#allocation17 + $0x90] sm:$0xf]
    %v432 = vld [vmem:[#allocation17 + $0x94] sm:$0xf]
    %v433 = vld [vmem:[#allocation17 + $0x98] sm:$0xf]
    %v434 = vld [vmem:[#allocation17 + $0x9c] sm:$0xf]
    %v435 = vld [vmem:[#allocation17 + $0xa0] sm:$0xf]
    %v436 = vld [vmem:[#allocation17 + $0xa4] sm:$0xf]
    %v437 = vld [vmem:[#allocation17 + $0xa8] sm:$0xf]
    %v438 = vld [vmem:[#allocation17 + $0xac] sm:$0xf]
    %v439 = vld [vmem:[#allocation17 + $0xb0] sm:$0xf]
    %v440 = vld [vmem:[#allocation17 + $0xb4] sm:$0xf]
    %v441 = vld [vmem:[#allocation17 + $0xb8] sm:$0xf]
    %v442 = vld [vmem:[#allocation17 + $0xbc] sm:$0xf]
    %v443 = vld [vmem:[#allocation17 + $0xc0] sm:$0xf]
    %v444 = vld [vmem:[#allocation17 + $0xc4] sm:$0xf]
    %v445 = vld [vmem:[#allocation17 + $0xc8] sm:$0xf]
    %v446 = vld [vmem:[#allocation17 + $0xcc] sm:$0xf]
    %v447 = vld [vmem:[#allocation17 + $0xd0] sm:$0xf]
    %v448 = vld [vmem:[#allocation17 + $0xd4] sm:$0xf]
    %v449 = vld [vmem:[#allocation17 + $0xd8] sm:$0xf]
    %v450 = vld [vmem:[#allocation17 + $0xdc] sm:$0xf]
    %v451 = vld [vmem:[#allocation17 + $0xe0] sm:$0xf]
    %v452 = vld [vmem:[#allocation17 + $0xe4] sm:$0xf]
    %v453 = vld [vmem:[#allocation17 + $0xe8] sm:$0xf]
    %v454 = vld [vmem:[#allocation17 + $0xec] sm:$0xf]
    %v455 = vld [vmem:[#allocation17 + $0xf0] sm:$0xf]
    %v456 = vld [vmem:[#allocation17 + $0xf4] sm:$0xf]
    %v457 = vld [vmem:[#allocation17 + $0xf8] sm:$0xf]
    %v458 = vld [vmem:[#allocation17 + $0xfc] sm:$0xf]
    %v459 = vld [vmem:[%s12] sm:$0x1]
    %v460 = vld [vmem:[%s13] sm:$0x1]
    %v461 = vld [vmem:[%s14] sm:$0x1]
    %v462 = vld [vmem:[#allocation19] sm:$0xf]
    %v463 = vld [vmem:[#allocation19 + $0x4] sm:$0xf]
    %v464 = vld [vmem:[#allocation19 + $0x8] sm:$0xf]
    %v465 = vld [vmem:[#allocation19 + $0xc] sm:$0xf]
    %v466 = vld [vmem:[#allocation19 + $0x10] sm:$0xf]
    %v467 = vld [vmem:[#allocation19 + $0x14] sm:$0xf]
    %v468 = vld [vmem:[#allocation19 + $0x18] sm:$0xf]
    %v469 = vld [vmem:[#allocation19 + $0x1c] sm:$0xf]
    %v470 = vld [vmem:[#allocation19 + $0x20] sm:$0xf]
    %v471 = vld [vmem:[#allocation19 + $0x24] sm:$0xf]
    %v472 = vld [vmem:[#allocation19 + $0x28] sm:$0xf]
    %v473 = vld [vmem:[#allocation19 + $0x2c] sm:$0xf]
    %v474 = vld [vmem:[#allocation19 + $0x30] sm:$0xf]
    %v475 = vld [vmem:[#allocation19 + $0x34] sm:$0xf]
    %v476 = vld [vmem:[#allocation19 + $0x38] sm:$0xf]
    %v477 = vld [vmem:[#allocation19 + $0x3c] sm:$0xf]
    %v478 = vld [vmem:[%s16] sm:$0x1]
    %v481 = vunpack.c.l.b16 %v223
    %v482 = vunpack.c.l.b16 %v224
    %v483 = vpack.c.b16 %v482, %v481
    %v502 = vunpack.c.l.b16 %v243
    %v503 = vunpack.c.h.b16 %v243
    %v504 = vunpack.c.l.b16 %v244
    %v505 = vunpack.c.h.b16 %v244
    %v506 = vunpack.c.l.b16 %v245
    %v507 = vunpack.c.h.b16 %v245
    %v508 = vunpack.c.l.b16 %v246
    %v509 = vunpack.c.h.b16 %v246
    %v510 = vunpack.c.l.b16 %v247
    %v511 = vunpack.c.h.b16 %v247
    %v512 = vunpack.c.l.b16 %v248
    %v513 = vunpack.c.h.b16 %v248
    %v514 = vunpack.c.l.b16 %v249
    %v515 = vunpack.c.h.b16 %v249
    %v516 = vunpack.c.l.b16 %v250
    %v517 = vunpack.c.h.b16 %v250
    %v518 = vunpack.c.l.b16 %v251
    %v519 = vunpack.c.h.b16 %v251
    %v520 = vunpack.c.l.b16 %v252
    %v521 = vunpack.c.h.b16 %v252
    %v522 = vunpack.c.l.b16 %v253
    %v523 = vunpack.c.h.b16 %v253
    %v524 = vunpack.c.l.b16 %v254
    %v525 = vunpack.c.h.b16 %v254
    %v526 = vunpack.c.l.b16 %v255
    %v527 = vunpack.c.h.b16 %v255
    %v528 = vunpack.c.l.b16 %v256
    %v529 = vunpack.c.h.b16 %v256
    %v530 = vunpack.c.l.b16 %v257
    %v531 = vunpack.c.h.b16 %v257
    %v532 = vunpack.c.l.b16 %v258
    %v533 = vunpack.c.h.b16 %v258
    %v534 = vunpack.c.l.b16 %v259
    %v535 = vunpack.c.h.b16 %v259
    %v536 = vunpack.c.l.b16 %v260
    %v537 = vunpack.c.h.b16 %v260
    %v538 = vpack.c.b16 %v506, %v502
    %v539 = vpack.c.b16 %v507, %v503
    %v540 = vpack.c.b16 %v508, %v504
    %v541 = vpack.c.b16 %v509, %v505
    %v542 = vpack.c.b16 %v514, %v510
    %v543 = vpack.c.b16 %v515, %v511
    %v544 = vpack.c.b16 %v516, %v512
    %v545 = vpack.c.b16 %v517, %v513
    %v546 = vpack.c.b16 %v522, %v518
    %v547 = vpack.c.b16 %v523, %v519
    %v548 = vpack.c.b16 %v524, %v520
    %v549 = vpack.c.b16 %v525, %v521
    %v550 = vpack.c.b16 %v530, %v526
    %v551 = vpack.c.b16 %v531, %v527
    %v552 = vpack.c.b16 %v532, %v528
    %v553 = vpack.c.b16 %v533, %v529
    %v554 = vpack.c.b16 %v534, %v534
    %v555 = vpack.c.b16 %v535, %v535
    %v556 = vpack.c.b16 %v536, %v536
    %v557 = vpack.c.b16 %v537, %v537
    %vm574 = vcmask 572416
    %v576 = vsel %vm574, %v483, 0
    %vm578 = vcmask 1042432
    %v580 = vsel %vm578, %v554, 0
    %v583 = vsel %vm578, %v555, 0
    %v586 = vsel %vm578, %v556, 0
    %v589 = vsel %vm578, %v557, 0
    %591 = vmatpush.bf16.msra.mxu0 0
    %592 = vmatpush.bf16.msra.mxu0 0
    %593 = vmatpush.bf16.msra.mxu0 0
    %594 = vmatpush.bf16.msra.mxu0 %v580
    %595 = vmatpush.bf16.msra.mxu0 %v550
    %596 = vmatpush.bf16.msra.mxu0 %v546
    %597 = vmatpush.bf16.msra.mxu0 %v542
    %598 = vmatpush.bf16.msra.mxu0 %v538
    %599 = vmatmul.bf16.gmra.mxu0 %v576
    %v600 = vpop.f32.mrf.mxu0
    %v601 = vadd.f32 0.0, %v600
    %v602 = vpop.f32.mrf.mxu0
    %v603 = vadd.f32 0.0, %v602
    %604 = vdwg.mxu0
    %605 = vmatpush.bf16.msra.mxu0 0
    %606 = vmatpush.bf16.msra.mxu0 0
    %607 = vmatpush.bf16.msra.mxu0 0
    %608 = vmatpush.bf16.msra.mxu0 %v583
    %609 = vmatpush.bf16.msra.mxu0 %v551
    %610 = vmatpush.bf16.msra.mxu0 %v547
    %611 = vmatpush.bf16.msra.mxu0 %v543
    %612 = vmatpush.bf16.msra.mxu0 %v539
    %613 = vmatmul.bf16.gmra.mxu0 %v576
    %v614 = vpop.f32.mrf.mxu0
    %v615 = vadd.f32 0.0, %v614
    %v616 = vpop.f32.mrf.mxu0
    %v617 = vadd.f32 0.0, %v616
    %618 = vdwg.mxu0
    %619 = vmatpush.bf16.msra.mxu0 0
    %620 = vmatpush.bf16.msra.mxu0 0
    %621 = vmatpush.bf16.msra.mxu0 0
    %622 = vmatpush.bf16.msra.mxu0 %v586
    %623 = vmatpush.bf16.msra.mxu0 %v552
    %624 = vmatpush.bf16.msra.mxu0 %v548
    %625 = vmatpush.bf16.msra.mxu0 %v544
    %626 = vmatpush.bf16.msra.mxu0 %v540
    %627 = vmatmul.bf16.gmra.mxu0 %v576
    %v628 = vpop.f32.mrf.mxu0
    %v629 = vadd.f32 0.0, %v628
    %v630 = vpop.f32.mrf.mxu0
    %v631 = vadd.f32 0.0, %v630
    %632 = vdwg.mxu0
    %633 = vmatpush.bf16.msra.mxu0 0
    %634 = vmatpush.bf16.msra.mxu0 0
    %635 = vmatpush.bf16.msra.mxu0 0
    %636 = vmatpush.bf16.msra.mxu0 %v589
    %637 = vmatpush.bf16.msra.mxu0 %v553
    %638 = vmatpush.bf16.msra.mxu0 %v549
    %639 = vmatpush.bf16.msra.mxu0 %v545
    %640 = vmatpush.bf16.msra.mxu0 %v541
    %641 = vmatmul.bf16.gmra.mxu0 %v576
    %v642 = vpop.f32.mrf.mxu0
    %v643 = vadd.f32 0.0, %v642
    %v644 = vpop.f32.mrf.mxu0
    %v645 = vadd.f32 0.0, %v644
    %646 = vdwg.mxu0
    %v649 = vunpack.c.l.b16 %v221
    %v650 = vunpack.c.l.b16 %v222
    %v651 = vpack.c.b16 %v650, %v649
    %v670 = vunpack.c.l.b16 %v225
    %v671 = vunpack.c.h.b16 %v225
    %v672 = vunpack.c.l.b16 %v226
    %v673 = vunpack.c.h.b16 %v226
    %v674 = vunpack.c.l.b16 %v227
    %v675 = vunpack.c.h.b16 %v227
    %v676 = vunpack.c.l.b16 %v228
    %v677 = vunpack.c.h.b16 %v228
    %v678 = vunpack.c.l.b16 %v229
    %v679 = vunpack.c.h.b16 %v229
    %v680 = vunpack.c.l.b16 %v230
    %v681 = vunpack.c.h.b16 %v230
    %v682 = vunpack.c.l.b16 %v231
    %v683 = vunpack.c.h.b16 %v231
    %v684 = vunpack.c.l.b16 %v232
    %v685 = vunpack.c.h.b16 %v232
    %v686 = vunpack.c.l.b16 %v233
    %v687 = vunpack.c.h.b16 %v233
    %v688 = vunpack.c.l.b16 %v234
    %v689 = vunpack.c.h.b16 %v234
    %v690 = vunpack.c.l.b16 %v235
    %v691 = vunpack.c.h.b16 %v235
    %v692 = vunpack.c.l.b16 %v236
    %v693 = vunpack.c.h.b16 %v236
    %v694 = vunpack.c.l.b16 %v237
    %v695 = vunpack.c.h.b16 %v237
    %v696 = vunpack.c.l.b16 %v238
    %v697 = vunpack.c.h.b16 %v238
    %v698 = vunpack.c.l.b16 %v239
    %v699 = vunpack.c.h.b16 %v239
    %v700 = vunpack.c.l.b16 %v240
    %v701 = vunpack.c.h.b16 %v240
    %v702 = vunpack.c.l.b16 %v241
    %v703 = vunpack.c.h.b16 %v241
    %v704 = vunpack.c.l.b16 %v242
    %v705 = vunpack.c.h.b16 %v242
    %v706 = vpack.c.b16 %v674, %v670
    %v707 = vpack.c.b16 %v675, %v671
    %v708 = vpack.c.b16 %v676, %v672
    %v709 = vpack.c.b16 %v677, %v673
    %v710 = vpack.c.b16 %v682, %v678
    %v711 = vpack.c.b16 %v683, %v679
    %v712 = vpack.c.b16 %v684, %v680
    %v713 = vpack.c.b16 %v685, %v681
    %v714 = vpack.c.b16 %v690, %v686
    %v715 = vpack.c.b16 %v691, %v687
    %v716 = vpack.c.b16 %v692, %v688
    %v717 = vpack.c.b16 %v693, %v689
    %v718 = vpack.c.b16 %v698, %v694
    %v719 = vpack.c.b16 %v699, %v695
    %v720 = vpack.c.b16 %v700, %v696
    %v721 = vpack.c.b16 %v701, %v697
    %v722 = vpack.c.b16 %v702, %v702
    %v723 = vpack.c.b16 %v703, %v703
    %v724 = vpack.c.b16 %v704, %v704
    %v725 = vpack.c.b16 %v705, %v705
    %v743 = vsel %vm574, %v651, 0
    %v746 = vsel %vm578, %v722, 0
    %v749 = vsel %vm578, %v723, 0
    %v752 = vsel %vm578, %v724, 0
    %v755 = vsel %vm578, %v725, 0
    %757 = vmatpush.bf16.msra.mxu0 0
    %758 = vmatpush.bf16.msra.mxu0 0
    %759 = vmatpush.bf16.msra.mxu0 0
    %760 = vmatpush.bf16.msra.mxu0 %v746
    %761 = vmatpush.bf16.msra.mxu0 %v718
    %762 = vmatpush.bf16.msra.mxu0 %v714
    %763 = vmatpush.bf16.msra.mxu0 %v710
    %764 = vmatpush.bf16.msra.mxu0 %v706
    %765 = vmatmul.bf16.gmra.mxu0 %v743
    %v766 = vpop.f32.mrf.mxu0
    %v767 = vadd.f32 %v601, %v766
    %v768 = vpop.f32.mrf.mxu0
    %v769 = vadd.f32 %v603, %v768
    %770 = vdwg.mxu0
    %771 = vmatpush.bf16.msra.mxu0 0
    %772 = vmatpush.bf16.msra.mxu0 0
    %773 = vmatpush.bf16.msra.mxu0 0
    %774 = vmatpush.bf16.msra.mxu0 %v749
    %775 = vmatpush.bf16.msra.mxu0 %v719
    %776 = vmatpush.bf16.msra.mxu0 %v715
    %777 = vmatpush.bf16.msra.mxu0 %v711
    %778 = vmatpush.bf16.msra.mxu0 %v707
    %779 = vmatmul.bf16.gmra.mxu0 %v743
    %v780 = vpop.f32.mrf.mxu0
    %v781 = vadd.f32 %v615, %v780
    %v782 = vpop.f32.mrf.mxu0
    %v783 = vadd.f32 %v617, %v782
    %784 = vdwg.mxu0
    %785 = vmatpush.bf16.msra.mxu0 0
    %786 = vmatpush.bf16.msra.mxu0 0
    %787 = vmatpush.bf16.msra.mxu0 0
    %788 = vmatpush.bf16.msra.mxu0 %v752
    %789 = vmatpush.bf16.msra.mxu0 %v720
    %790 = vmatpush.bf16.msra.mxu0 %v716
    %791 = vmatpush.bf16.msra.mxu0 %v712
    %792 = vmatpush.bf16.msra.mxu0 %v708
    %793 = vmatmul.bf16.gmra.mxu0 %v743
    %v794 = vpop.f32.mrf.mxu0
    %v795 = vadd.f32 %v629, %v794
    %v796 = vpop.f32.mrf.mxu0
    %v797 = vadd.f32 %v631, %v796
    %798 = vdwg.mxu0
    %799 = vmatpush.bf16.msra.mxu0 0
    %800 = vmatpush.bf16.msra.mxu0 0
    %801 = vmatpush.bf16.msra.mxu0 0
    %802 = vmatpush.bf16.msra.mxu0 %v755
    %803 = vmatpush.bf16.msra.mxu0 %v721
    %804 = vmatpush.bf16.msra.mxu0 %v717
    %805 = vmatpush.bf16.msra.mxu0 %v713
    %806 = vmatpush.bf16.msra.mxu0 %v709
    %807 = vmatmul.bf16.gmra.mxu0 %v743
    %v808 = vpop.f32.mrf.mxu0
    %v809 = vadd.f32 %v643, %v808
    %v810 = vpop.f32.mrf.mxu0
    %v811 = vadd.f32 %v645, %v810
    %812 = vdwg.mxu0
    %v814 = vperm.slane %v261, 0
    %v815 = vperm.slane %v261, 1
    %v816 = vperm.slane %v261, 2
    %v817 = vperm.slane %v261, 3
    %v822 = vadd.f32 %v767, %v814
    %v823 = vadd.f32 %v781, %v815
    %v824 = vadd.f32 %v795, %v816
    %v825 = vadd.f32 %v809, %v817
    %v826 = vadd.f32 %v769, %v814
    %v827 = vadd.f32 %v783, %v815
    %v828 = vadd.f32 %v797, %v816
    %v829 = vadd.f32 %v811, %v817
    %v830 = vadd.f32 %v822, %v826
    %v831 = vrot.slane %v830, 4
    %v832 = vadd.f32 %v830, %v831
    %v833 = vrot.slane %v832, 2
    %v834 = vadd.f32 %v832, %v833
    %v835 = vrot.slane %v834, 1
    %v836 = vadd.f32 %v834, %v835
    %v837 = vadd.f32 %v823, %v827
    %v838 = vrot.slane %v837, 4
    %v839 = vadd.f32 %v837, %v838
    %v840 = vrot.slane %v839, 2
    %v841 = vadd.f32 %v839, %v840
    %v842 = vrot.slane %v841, 1
    %v843 = vadd.f32 %v841, %v842
    %v844 = vadd.f32 %v824, %v828
    %v845 = vrot.slane %v844, 4
    %v846 = vadd.f32 %v844, %v845
    %v847 = vrot.slane %v846, 2
    %v848 = vadd.f32 %v846, %v847
    %v849 = vrot.slane %v848, 1
    %v850 = vadd.f32 %v848, %v849
    %v851 = vadd.f32 %v825, %v829
    %v852 = vrot.slane %v851, 4
    %v853 = vadd.f32 %v851, %v852
    %v854 = vrot.slane %v853, 2
    %v855 = vadd.f32 %v853, %v854
    %v856 = vrot.slane %v855, 1
    %v857 = vadd.f32 %v855, %v856
    %v858 = vrcp.pop 16.0
    %v859 = vmul.f32 16.0, %v858
    %v860 = vsub.f32 1.0, %v859
    %v861 = vmul.f32 %v858, %v860
    %v862 = vadd.f32 %v858, %v861
    %vm863 = vweird.f32 %v858
    %v864 = vsel %vm863, %v858, %v862
    %v865 = vmul.f32 %v836, %v864
    %v866 = vmul.f32 %v843, %v864
    %v867 = vmul.f32 %v850, %v864
    %v868 = vmul.f32 %v857, %v864
    %v869 = vmul.f32 %v822, %v822
    %v870 = vmul.f32 %v823, %v823
    %v871 = vmul.f32 %v824, %v824
    %v872 = vmul.f32 %v825, %v825
    %v873 = vmul.f32 %v826, %v826
    %v874 = vmul.f32 %v827, %v827
    %v875 = vmul.f32 %v828, %v828
    %v876 = vmul.f32 %v829, %v829
    %v877 = vadd.f32 %v869, %v873
    %v878 = vrot.slane %v877, 4
    %v879 = vadd.f32 %v877, %v878
    %v880 = vrot.slane %v879, 2
    %v881 = vadd.f32 %v879, %v880
    %v882 = vrot.slane %v881, 1
    %v883 = vadd.f32 %v881, %v882
    %v884 = vadd.f32 %v870, %v874
    %v885 = vrot.slane %v884, 4
    %v886 = vadd.f32 %v884, %v885
    %v887 = vrot.slane %v886, 2
    %v888 = vadd.f32 %v886, %v887
    %v889 = vrot.slane %v888, 1
    %v890 = vadd.f32 %v888, %v889
    %v891 = vadd.f32 %v871, %v875
    %v892 = vrot.slane %v891, 4
    %v893 = vadd.f32 %v891, %v892
    %v894 = vrot.slane %v893, 2
    %v895 = vadd.f32 %v893, %v894
    %v896 = vrot.slane %v895, 1
    %v897 = vadd.f32 %v895, %v896
    %v898 = vadd.f32 %v872, %v876
    %v899 = vrot.slane %v898, 4
    %v900 = vadd.f32 %v898, %v899
    %v901 = vrot.slane %v900, 2
    %v902 = vadd.f32 %v900, %v901
    %v903 = vrot.slane %v902, 1
    %v904 = vadd.f32 %v902, %v903
    %v905 = vmul.f32 %v883, %v864
    %v906 = vmul.f32 %v890, %v864
    %v907 = vmul.f32 %v897, %v864
    %v908 = vmul.f32 %v904, %v864
    %v909 = vmul.f32 %v865, %v865
    %v910 = vmul.f32 %v866, %v866
    %v911 = vmul.f32 %v867, %v867
    %v912 = vmul.f32 %v868, %v868
    %v913 = vsub.f32 %v905, %v909
    %v914 = vsub.f32 %v906, %v910
    %v915 = vsub.f32 %v907, %v911
    %v916 = vsub.f32 %v908, %v912
    %v917 = vmax.f32 %v913, 0.0
    %v918 = vmax.f32 %v914, 0.0
    %v919 = vmax.f32 %v915, 0.0
    %v920 = vmax.f32 %v916, 0.0
    %v921 = vadd.f32 %v917, 1e-05
    %v922 = vadd.f32 %v918, 1e-05
    %v923 = vadd.f32 %v919, 1e-05
    %v924 = vadd.f32 %v920, 1e-05
    %v925 = vrsqrt.pop %v921
    %v926 = vmul.f32 %v925, %v921
    %v927 = vmul.f32 %v926, %v925
    %v928 = vmul.f32 0.5, %v927
    %v929 = vsub.f32 1.5, %v928
    %v930 = vmul.f32 %v925, %v929
    %vm931 = vweird.f32 %v921
    %vm932 = vweird.f32 %v925
    %vm933 = vmor %vm931, %vm932
    %v934 = vsel %vm933, %v925, %v930
    %v935 = vrsqrt.pop %v922
    %v936 = vmul.f32 %v935, %v922
    %v937 = vmul.f32 %v936, %v935
    %v938 = vmul.f32 0.5, %v937
    %v939 = vsub.f32 1.5, %v938
    %v940 = vmul.f32 %v935, %v939
    %vm941 = vweird.f32 %v922
    %vm942 = vweird.f32 %v935
    %vm943 = vmor %vm941, %vm942
    %v944 = vsel %vm943, %v935, %v940
    %v945 = vrsqrt.pop %v923
    %v946 = vmul.f32 %v945, %v923
    %v947 = vmul.f32 %v946, %v945
    %v948 = vmul.f32 0.5, %v947
    %v949 = vsub.f32 1.5, %v948
    %v950 = vmul.f32 %v945, %v949
    %vm951 = vweird.f32 %v923
    %vm952 = vweird.f32 %v945
    %vm953 = vmor %vm951, %vm952
    %v954 = vsel %vm953, %v945, %v950
    %v955 = vrsqrt.pop %v924
    %v956 = vmul.f32 %v955, %v924
    %v957 = vmul.f32 %v956, %v955
    %v958 = vmul.f32 0.5, %v957
    %v959 = vsub.f32 1.5, %v958
    %v960 = vmul.f32 %v955, %v959
    %vm961 = vweird.f32 %v924
    %vm962 = vweird.f32 %v955
    %vm963 = vmor %vm961, %vm962
    %v964 = vsel %vm963, %v955, %v960
    %v969 = vrot.slane %v944, 7
    %v970 = vrot.slane %v954, 6
    %v971 = vrot.slane %v964, 5
    %vm972 = vcmask 1040384
    %v973 = vsel %vm972, %v934, %v969
    %vm974 = vcmask 1042434
    %v975 = vsel %vm974, %v970, %v971
    %vm976 = vcmask 1041408
    %v977 = vsel %vm976, %v973, %v975
    %v979 = vmul.f32 %v262, %v977
    %v981 = vperm.slane %v979, 0
    %v982 = vperm.slane %v979, 1
    %v983 = vperm.slane %v979, 2
    %v984 = vperm.slane %v979, 3
    %v989 = vmul.f32 %v865, %v981
    %v990 = vmul.f32 %v866, %v982
    %v991 = vmul.f32 %v867, %v983
    %v992 = vmul.f32 %v868, %v984
    %v997 = vrot.slane %v990, 7
    %v998 = vrot.slane %v991, 6
    %v999 = vrot.slane %v992, 5
    %v1000 = vsel %vm972, %v989, %v997
    %v1001 = vsel %vm974, %v998, %v999
    %v1002 = vsel %vm976, %v1000, %v1001
    %v1004 = vsub.f32 %v263, %v1002
    %v1005 = vmul.f32 %v822, %v981
    %v1006 = vmul.f32 %v823, %v982
    %v1007 = vmul.f32 %v824, %v983
    %v1008 = vmul.f32 %v825, %v984
    %v1009 = vmul.f32 %v826, %v981
    %v1010 = vmul.f32 %v827, %v982
    %v1011 = vmul.f32 %v828, %v983
    %v1012 = vmul.f32 %v829, %v984
    %v1014 = vperm.slane %v1004, 0
    %v1015 = vperm.slane %v1004, 1
    %v1016 = vperm.slane %v1004, 2
    %v1017 = vperm.slane %v1004, 3
    %v1022 = vadd.f32 %v1005, %v1014
    %v1023 = vadd.f32 %v1006, %v1015
    %v1024 = vadd.f32 %v1007, %v1016
    %v1025 = vadd.f32 %v1008, %v1017
    %v1026 = vadd.f32 %v1009, %v1014
    %v1027 = vadd.f32 %v1010, %v1015
    %v1028 = vadd.f32 %v1011, %v1016
    %v1029 = vadd.f32 %v1012, %v1017
    %v1030 = vmax.f32 %v1022, 0.0
    %v1031 = vmax.f32 %v1023, 0.0
    %v1032 = vmax.f32 %v1024, 0.0
    %v1033 = vmax.f32 %v1025, 0.0
    %v1034 = vmax.f32 %v1026, 0.0
    %v1035 = vmax.f32 %v1027, 0.0
    %v1036 = vmax.f32 %v1028, 0.0
    %v1037 = vmax.f32 %v1029, 0.0
    %v1038 = vpack.c.bf16 %v1034, %v1030
    %v1039 = vpack.c.bf16 %v1035, %v1031
    %v1040 = vpack.c.bf16 %v1036, %v1032
    %v1041 = vpack.c.bf16 %v1037, %v1033
    %v1043 = vperm.slane %v392, 0
    %v1044 = vperm.slane %v392, 1
    %v1045 = vperm.slane %v392, 2
    %v1046 = vperm.slane %v392, 3
    %v1179 = vunpack.c.l.b16 %v264
    %v1180 = vunpack.c.h.b16 %v264
    %v1181 = vunpack.c.l.b16 %v265
    %v1182 = vunpack.c.h.b16 %v265
    %v1183 = vunpack.c.l.b16 %v266
    %v1184 = vunpack.c.h.b16 %v266
    %v1185 = vunpack.c.l.b16 %v267
    %v1186 = vunpack.c.h.b16 %v267
    %v1187 = vunpack.c.l.b16 %v268
    %v1188 = vunpack.c.h.b16 %v268
    %v1189 = vunpack.c.l.b16 %v269
    %v1190 = vunpack.c.h.b16 %v269
    %v1191 = vunpack.c.l.b16 %v270
    %v1192 = vunpack.c.h.b16 %v270
    %v1193 = vunpack.c.l.b16 %v271
    %v1194 = vunpack.c.h.b16 %v271
    %v1195 = vunpack.c.l.b16 %v272
    %v1196 = vunpack.c.h.b16 %v272
    %v1197 = vunpack.c.l.b16 %v273
    %v1198 = vunpack.c.h.b16 %v273
    %v1199 = vunpack.c.l.b16 %v274
    %v1200 = vunpack.c.h.b16 %v274
    %v1201 = vunpack.c.l.b16 %v275
    %v1202 = vunpack.c.h.b16 %v275
    %v1203 = vunpack.c.l.b16 %v276
    %v1204 = vunpack.c.h.b16 %v276
    %v1205 = vunpack.c.l.b16 %v277
    %v1206 = vunpack.c.h.b16 %v277
    %v1207 = vunpack.c.l.b16 %v278
    %v1208 = vunpack.c.h.b16 %v278
    %v1209 = vunpack.c.l.b16 %v279
    %v1210 = vunpack.c.h.b16 %v279
    %v1211 = vunpack.c.l.b16 %v280
    %v1212 = vunpack.c.h.b16 %v280
    %v1213 = vunpack.c.l.b16 %v281
    %v1214 = vunpack.c.h.b16 %v281
    %v1215 = vunpack.c.l.b16 %v282
    %v1216 = vunpack.c.h.b16 %v282
    %v1217 = vunpack.c.l.b16 %v283
    %v1218 = vunpack.c.h.b16 %v283
    %v1219 = vunpack.c.l.b16 %v284
    %v1220 = vunpack.c.h.b16 %v284
    %v1221 = vunpack.c.l.b16 %v285
    %v1222 = vunpack.c.h.b16 %v285
    %v1223 = vunpack.c.l.b16 %v286
    %v1224 = vunpack.c.h.b16 %v286
    %v1225 = vunpack.c.l.b16 %v287
    %v1226 = vunpack.c.h.b16 %v287
    %v1227 = vunpack.c.l.b16 %v288
    %v1228 = vunpack.c.h.b16 %v288
    %v1229 = vunpack.c.l.b16 %v289
    %v1230 = vunpack.c.h.b16 %v289
    %v1231 = vunpack.c.l.b16 %v290
    %v1232 = vunpack.c.h.b16 %v290
    %v1233 = vunpack.c.l.b16 %v291
    %v1234 = vunpack.c.h.b16 %v291
    %v1235 = vunpack.c.l.b16 %v292
    %v1236 = vunpack.c.h.b16 %v292
    %v1237 = vunpack.c.l.b16 %v293
    %v1238 = vunpack.c.h.b16 %v293
    %v1239 = vunpack.c.l.b16 %v294
    %v1240 = vunpack.c.h.b16 %v294
    %v1241 = vunpack.c.l.b16 %v295
    %v1242 = vunpack.c.h.b16 %v295
    %v1243 = vunpack.c.l.b16 %v296
    %v1244 = vunpack.c.h.b16 %v296
    %v1245 = vunpack.c.l.b16 %v297
    %v1246 = vunpack.c.h.b16 %v297
    %v1247 = vunpack.c.l.b16 %v298
    %v1248 = vunpack.c.h.b16 %v298
    %v1249 = vunpack.c.l.b16 %v299
    %v1250 = vunpack.c.h.b16 %v299
    %v1251 = vunpack.c.l.b16 %v300
    %v1252 = vunpack.c.h.b16 %v300
    %v1253 = vunpack.c.l.b16 %v301
    %v1254 = vunpack.c.h.b16 %v301
    %v1255 = vunpack.c.l.b16 %v302
    %v1256 = vunpack.c.h.b16 %v302
    %v1257 = vunpack.c.l.b16 %v303
    %v1258 = vunpack.c.h.b16 %v303
    %v1259 = vunpack.c.l.b16 %v304
    %v1260 = vunpack.c.h.b16 %v304
    %v1261 = vunpack.c.l.b16 %v305
    %v1262 = vunpack.c.h.b16 %v305
    %v1263 = vunpack.c.l.b16 %v306
    %v1264 = vunpack.c.h.b16 %v306
    %v1265 = vunpack.c.l.b16 %v307
    %v1266 = vunpack.c.h.b16 %v307
    %v1267 = vunpack.c.l.b16 %v308
    %v1268 = vunpack.c.h.b16 %v308
    %v1269 = vunpack.c.l.b16 %v309
    %v1270 = vunpack.c.h.b16 %v309
    %v1271 = vunpack.c.l.b16 %v310
    %v1272 = vunpack.c.h.b16 %v310
    %v1273 = vunpack.c.l.b16 %v311
    %v1274 = vunpack.c.h.b16 %v311
    %v1275 = vunpack.c.l.b16 %v312
    %v1276 = vunpack.c.h.b16 %v312
    %v1277 = vunpack.c.l.b16 %v313
    %v1278 = vunpack.c.h.b16 %v313
    %v1279 = vunpack.c.l.b16 %v314
    %v1280 = vunpack.c.h.b16 %v314
    %v1281 = vunpack.c.l.b16 %v315
    %v1282 = vunpack.c.h.b16 %v315
    %v1283 = vunpack.c.l.b16 %v316
    %v1284 = vunpack.c.h.b16 %v316
    %v1285 = vunpack.c.l.b16 %v317
    %v1286 = vunpack.c.h.b16 %v317
    %v1287 = vunpack.c.l.b16 %v318
    %v1288 = vunpack.c.h.b16 %v318
    %v1289 = vunpack.c.l.b16 %v319
    %v1290 = vunpack.c.h.b16 %v319
    %v1291 = vunpack.c.l.b16 %v320
    %v1292 = vunpack.c.h.b16 %v320
    %v1293 = vunpack.c.l.b16 %v321
    %v1294 = vunpack.c.h.b16 %v321
    %v1295 = vunpack.c.l.b16 %v322
    %v1296 = vunpack.c.h.b16 %v322
    %v1297 = vunpack.c.l.b16 %v323
    %v1298 = vunpack.c.h.b16 %v323
    %v1299 = vunpack.c.l.b16 %v324
    %v1300 = vunpack.c.h.b16 %v324
    %v1301 = vunpack.c.l.b16 %v325
    %v1302 = vunpack.c.h.b16 %v325
    %v1303 = vunpack.c.l.b16 %v326
    %v1304 = vunpack.c.h.b16 %v326
    %v1305 = vunpack.c.l.b16 %v327
    %v1306 = vunpack.c.h.b16 %v327
    %v1307 = vunpack.c.l.b16 %v328
    %v1308 = vunpack.c.h.b16 %v328
    %v1309 = vunpack.c.l.b16 %v329
    %v1310 = vunpack.c.h.b16 %v329
    %v1311 = vunpack.c.l.b16 %v330
    %v1312 = vunpack.c.h.b16 %v330
    %v1313 = vunpack.c.l.b16 %v331
    %v1314 = vunpack.c.h.b16 %v331
    %v1315 = vunpack.c.l.b16 %v332
    %v1316 = vunpack.c.h.b16 %v332
    %v1317 = vunpack.c.l.b16 %v333
    %v1318 = vunpack.c.h.b16 %v333
    %v1319 = vunpack.c.l.b16 %v334
    %v1320 = vunpack.c.h.b16 %v334
    %v1321 = vunpack.c.l.b16 %v335
    %v1322 = vunpack.c.h.b16 %v335
    %v1323 = vunpack.c.l.b16 %v336
    %v1324 = vunpack.c.h.b16 %v336
    %v1325 = vunpack.c.l.b16 %v337
    %v1326 = vunpack.c.h.b16 %v337
    %v1327 = vunpack.c.l.b16 %v338
    %v1328 = vunpack.c.h.b16 %v338
    %v1329 = vunpack.c.l.b16 %v339
    %v1330 = vunpack.c.h.b16 %v339
    %v1331 = vunpack.c.l.b16 %v340
    %v1332 = vunpack.c.h.b16 %v340
    %v1333 = vunpack.c.l.b16 %v341
    %v1334 = vunpack.c.h.b16 %v341
    %v1335 = vunpack.c.l.b16 %v342
    %v1336 = vunpack.c.h.b16 %v342
    %v1337 = vunpack.c.l.b16 %v343
    %v1338 = vunpack.c.h.b16 %v343
    %v1339 = vunpack.c.l.b16 %v344
    %v1340 = vunpack.c.h.b16 %v344
    %v1341 = vunpack.c.l.b16 %v345
    %v1342 = vunpack.c.h.b16 %v345
    %v1343 = vunpack.c.l.b16 %v346
    %v1344 = vunpack.c.h.b16 %v346
    %v1345 = vunpack.c.l.b16 %v347
    %v1346 = vunpack.c.h.b16 %v347
    %v1347 = vunpack.c.l.b16 %v348
    %v1348 = vunpack.c.h.b16 %v348
    %v1349 = vunpack.c.l.b16 %v349
    %v1350 = vunpack.c.h.b16 %v349
    %v1351 = vunpack.c.l.b16 %v350
    %v1352 = vunpack.c.h.b16 %v350
    %v1353 = vunpack.c.l.b16 %v351
    %v1354 = vunpack.c.h.b16 %v351
    %v1355 = vunpack.c.l.b16 %v352
    %v1356 = vunpack.c.h.b16 %v352
    %v1357 = vunpack.c.l.b16 %v353
    %v1358 = vunpack.c.h.b16 %v353
    %v1359 = vunpack.c.l.b16 %v354
    %v1360 = vunpack.c.h.b16 %v354
    %v1361 = vunpack.c.l.b16 %v355
    %v1362 = vunpack.c.h.b16 %v355
    %v1363 = vunpack.c.l.b16 %v356
    %v1364 = vunpack.c.h.b16 %v356
    %v1365 = vunpack.c.l.b16 %v357
    %v1366 = vunpack.c.h.b16 %v357
    %v1367 = vunpack.c.l.b16 %v358
    %v1368 = vunpack.c.h.b16 %v358
    %v1369 = vunpack.c.l.b16 %v359
    %v1370 = vunpack.c.h.b16 %v359
    %v1371 = vunpack.c.l.b16 %v360
    %v1372 = vunpack.c.h.b16 %v360
    %v1373 = vunpack.c.l.b16 %v361
    %v1374 = vunpack.c.h.b16 %v361
    %v1375 = vunpack.c.l.b16 %v362
    %v1376 = vunpack.c.h.b16 %v362
    %v1377 = vunpack.c.l.b16 %v363
    %v1378 = vunpack.c.h.b16 %v363
    %v1379 = vunpack.c.l.b16 %v364
    %v1380 = vunpack.c.h.b16 %v364
    %v1381 = vunpack.c.l.b16 %v365
    %v1382 = vunpack.c.h.b16 %v365
    %v1383 = vunpack.c.l.b16 %v366
    %v1384 = vunpack.c.h.b16 %v366
    %v1385 = vunpack.c.l.b16 %v367
    %v1386 = vunpack.c.h.b16 %v367
    %v1387 = vunpack.c.l.b16 %v368
    %v1388 = vunpack.c.h.b16 %v368
    %v1389 = vunpack.c.l.b16 %v369
    %v1390 = vunpack.c.h.b16 %v369
    %v1391 = vunpack.c.l.b16 %v370
    %v1392 = vunpack.c.h.b16 %v370
    %v1393 = vunpack.c.l.b16 %v371
    %v1394 = vunpack.c.h.b16 %v371
    %v1395 = vunpack.c.l.b16 %v372
    %v1396 = vunpack.c.h.b16 %v372
    %v1397 = vunpack.c.l.b16 %v373
    %v1398 = vunpack.c.h.b16 %v373
    %v1399 = vunpack.c.l.b16 %v374
    %v1400 = vunpack.c.h.b16 %v374
    %v1401 = vunpack.c.l.b16 %v375
    %v1402 = vunpack.c.h.b16 %v375
    %v1403 = vunpack.c.l.b16 %v376
    %v1404 = vunpack.c.h.b16 %v376
    %v1405 = vunpack.c.l.b16 %v377
    %v1406 = vunpack.c.h.b16 %v377
    %v1407 = vunpack.c.l.b16 %v378
    %v1408 = vunpack.c.h.b16 %v378
    %v1409 = vunpack.c.l.b16 %v379
    %v1410 = vunpack.c.h.b16 %v379
    %v1411 = vunpack.c.l.b16 %v380
    %v1412 = vunpack.c.h.b16 %v380
    %v1413 = vunpack.c.l.b16 %v381
    %v1414 = vunpack.c.h.b16 %v381
    %v1415 = vunpack.c.l.b16 %v382
    %v1416 = vunpack.c.h.b16 %v382
    %v1417 = vunpack.c.l.b16 %v383
    %v1418 = vunpack.c.h.b16 %v383
    %v1419 = vunpack.c.l.b16 %v384
    %v1420 = vunpack.c.h.b16 %v384
    %v1421 = vunpack.c.l.b16 %v385
    %v1422 = vunpack.c.h.b16 %v385
    %v1423 = vunpack.c.l.b16 %v386
    %v1424 = vunpack.c.h.b16 %v386
    %v1425 = vunpack.c.l.b16 %v387
    %v1426 = vunpack.c.h.b16 %v387
    %v1427 = vunpack.c.l.b16 %v388
    %v1428 = vunpack.c.h.b16 %v388
    %v1429 = vunpack.c.l.b16 %v389
    %v1430 = vunpack.c.h.b16 %v389
    %v1431 = vunpack.c.l.b16 %v390
    %v1432 = vunpack.c.h.b16 %v390
    %v1433 = vunpack.c.l.b16 %v391
    %v1434 = vunpack.c.h.b16 %v391
    %v1435 = vpack.c.b16 %v1183, %v1179
    %v1436 = vpack.c.b16 %v1184, %v1180
    %v1437 = vpack.c.b16 %v1185, %v1181
    %v1438 = vpack.c.b16 %v1186, %v1182
    %v1439 = vpack.c.b16 %v1191, %v1187
    %v1440 = vpack.c.b16 %v1192, %v1188
    %v1441 = vpack.c.b16 %v1193, %v1189
    %v1442 = vpack.c.b16 %v1194, %v1190
    %v1443 = vpack.c.b16 %v1199, %v1195
    %v1444 = vpack.c.b16 %v1200, %v1196
    %v1445 = vpack.c.b16 %v1201, %v1197
    %v1446 = vpack.c.b16 %v1202, %v1198
    %v1447 = vpack.c.b16 %v1207, %v1203
    %v1448 = vpack.c.b16 %v1208, %v1204
    %v1449 = vpack.c.b16 %v1209, %v1205
    %v1450 = vpack.c.b16 %v1210, %v1206
    %v1451 = vpack.c.b16 %v1215, %v1211
    %v1452 = vpack.c.b16 %v1216, %v1212
    %v1453 = vpack.c.b16 %v1217, %v1213
    %v1454 = vpack.c.b16 %v1218, %v1214
    %v1455 = vpack.c.b16 %v1223, %v1219
    %v1456 = vpack.c.b16 %v1224, %v1220
    %v1457 = vpack.c.b16 %v1225, %v1221
    %v1458 = vpack.c.b16 %v1226, %v1222
    %v1459 = vpack.c.b16 %v1231, %v1227
    %v1460 = vpack.c.b16 %v1232, %v1228
    %v1461 = vpack.c.b16 %v1233, %v1229
    %v1462 = vpack.c.b16 %v1234, %v1230
    %v1463 = vpack.c.b16 %v1239, %v1235
    %v1464 = vpack.c.b16 %v1240, %v1236
    %v1465 = vpack.c.b16 %v1241, %v1237
    %v1466 = vpack.c.b16 %v1242, %v1238
    %v1467 = vpack.c.b16 %v1247, %v1243
    %v1468 = vpack.c.b16 %v1248, %v1244
    %v1469 = vpack.c.b16 %v1249, %v1245
    %v1470 = vpack.c.b16 %v1250, %v1246
    %v1471 = vpack.c.b16 %v1255, %v1251
    %v1472 = vpack.c.b16 %v1256, %v1252
    %v1473 = vpack.c.b16 %v1257, %v1253
    %v1474 = vpack.c.b16 %v1258, %v1254
    %v1475 = vpack.c.b16 %v1263, %v1259
    %v1476 = vpack.c.b16 %v1264, %v1260
    %v1477 = vpack.c.b16 %v1265, %v1261
    %v1478 = vpack.c.b16 %v1266, %v1262
    %v1479 = vpack.c.b16 %v1271, %v1267
    %v1480 = vpack.c.b16 %v1272, %v1268
    %v1481 = vpack.c.b16 %v1273, %v1269
    %v1482 = vpack.c.b16 %v1274, %v1270
    %v1483 = vpack.c.b16 %v1279, %v1275
    %v1484 = vpack.c.b16 %v1280, %v1276
    %v1485 = vpack.c.b16 %v1281, %v1277
    %v1486 = vpack.c.b16 %v1282, %v1278
    %v1487 = vpack.c.b16 %v1287, %v1283
    %v1488 = vpack.c.b16 %v1288, %v1284
    %v1489 = vpack.c.b16 %v1289, %v1285
    %v1490 = vpack.c.b16 %v1290, %v1286
    %v1491 = vpack.c.b16 %v1295, %v1291
    %v1492 = vpack.c.b16 %v1296, %v1292
    %v1493 = vpack.c.b16 %v1297, %v1293
    %v1494 = vpack.c.b16 %v1298, %v1294
    %v1495 = vpack.c.b16 %v1303, %v1299
    %v1496 = vpack.c.b16 %v1304, %v1300
    %v1497 = vpack.c.b16 %v1305, %v1301
    %v1498 = vpack.c.b16 %v1306, %v1302
    %v1499 = vpack.c.b16 %v1311, %v1307
    %v1500 = vpack.c.b16 %v1312, %v1308
    %v1501 = vpack.c.b16 %v1313, %v1309
    %v1502 = vpack.c.b16 %v1314, %v1310
    %v1503 = vpack.c.b16 %v1319, %v1315
    %v1504 = vpack.c.b16 %v1320, %v1316
    %v1505 = vpack.c.b16 %v1321, %v1317
    %v1506 = vpack.c.b16 %v1322, %v1318
    %v1507 = vpack.c.b16 %v1327, %v1323
    %v1508 = vpack.c.b16 %v1328, %v1324
    %v1509 = vpack.c.b16 %v1329, %v1325
    %v1510 = vpack.c.b16 %v1330, %v1326
    %v1511 = vpack.c.b16 %v1335, %v1331
    %v1512 = vpack.c.b16 %v1336, %v1332
    %v1513 = vpack.c.b16 %v1337, %v1333
    %v1514 = vpack.c.b16 %v1338, %v1334
    %v1515 = vpack.c.b16 %v1343, %v1339
    %v1516 = vpack.c.b16 %v1344, %v1340
    %v1517 = vpack.c.b16 %v1345, %v1341
    %v1518 = vpack.c.b16 %v1346, %v1342
    %v1519 = vpack.c.b16 %v1351, %v1347
    %v1520 = vpack.c.b16 %v1352, %v1348
    %v1521 = vpack.c.b16 %v1353, %v1349
    %v1522 = vpack.c.b16 %v1354, %v1350
    %v1523 = vpack.c.b16 %v1359, %v1355
    %v1524 = vpack.c.b16 %v1360, %v1356
    %v1525 = vpack.c.b16 %v1361, %v1357
    %v1526 = vpack.c.b16 %v1362, %v1358
    %v1527 = vpack.c.b16 %v1367, %v1363
    %v1528 = vpack.c.b16 %v1368, %v1364
    %v1529 = vpack.c.b16 %v1369, %v1365
    %v1530 = vpack.c.b16 %v1370, %v1366
    %v1531 = vpack.c.b16 %v1375, %v1371
    %v1532 = vpack.c.b16 %v1376, %v1372
    %v1533 = vpack.c.b16 %v1377, %v1373
    %v1534 = vpack.c.b16 %v1378, %v1374
    %v1535 = vpack.c.b16 %v1383, %v1379
    %v1536 = vpack.c.b16 %v1384, %v1380
    %v1537 = vpack.c.b16 %v1385, %v1381
    %v1538 = vpack.c.b16 %v1386, %v1382
    %v1539 = vpack.c.b16 %v1391, %v1387
    %v1540 = vpack.c.b16 %v1392, %v1388
    %v1541 = vpack.c.b16 %v1393, %v1389
    %v1542 = vpack.c.b16 %v1394, %v1390
    %v1543 = vpack.c.b16 %v1399, %v1395
    %v1544 = vpack.c.b16 %v1400, %v1396
    %v1545 = vpack.c.b16 %v1401, %v1397
    %v1546 = vpack.c.b16 %v1402, %v1398
    %v1547 = vpack.c.b16 %v1407, %v1403
    %v1548 = vpack.c.b16 %v1408, %v1404
    %v1549 = vpack.c.b16 %v1409, %v1405
    %v1550 = vpack.c.b16 %v1410, %v1406
    %v1551 = vpack.c.b16 %v1415, %v1411
    %v1552 = vpack.c.b16 %v1416, %v1412
    %v1553 = vpack.c.b16 %v1417, %v1413
    %v1554 = vpack.c.b16 %v1418, %v1414
    %v1555 = vpack.c.b16 %v1423, %v1419
    %v1556 = vpack.c.b16 %v1424, %v1420
    %v1557 = vpack.c.b16 %v1425, %v1421
    %v1558 = vpack.c.b16 %v1426, %v1422
    %v1559 = vpack.c.b16 %v1431, %v1427
    %v1560 = vpack.c.b16 %v1432, %v1428
    %v1561 = vpack.c.b16 %v1433, %v1429
    %v1562 = vpack.c.b16 %v1434, %v1430
    %1691 = vmatpush.bf16.msra.mxu0 %v1463
    %1692 = vmatpush.bf16.msra.mxu0 %v1459
    %1693 = vmatpush.bf16.msra.mxu0 %v1455
    %1694 = vmatpush.bf16.msra.mxu0 %v1451
    %1695 = vmatpush.bf16.msra.mxu0 %v1447
    %1696 = vmatpush.bf16.msra.mxu0 %v1443
    %1697 = vmatpush.bf16.msra.mxu0 %v1439
    %1698 = vmatpush.bf16.msra.mxu0 %v1435
    %1699 = vmatmul.bf16.gmra.mxu0 %v1038
    %v1700 = vpop.f32.mrf.mxu0
    %v1701 = vadd.f32 %v1043, %v1700
    %v1702 = vpop.f32.mrf.mxu0
    %v1703 = vadd.f32 %v1043, %v1702
    %1704 = vdwg.mxu0
    %1705 = vmatpush.bf16.msra.mxu0 %v1495
    %1706 = vmatpush.bf16.msra.mxu0 %v1491
    %1707 = vmatpush.bf16.msra.mxu0 %v1487
    %1708 = vmatpush.bf16.msra.mxu0 %v1483
    %1709 = vmatpush.bf16.msra.mxu0 %v1479
    %1710 = vmatpush.bf16.msra.mxu0 %v1475
    %1711 = vmatpush.bf16.msra.mxu0 %v1471
    %1712 = vmatpush.bf16.msra.mxu0 %v1467
    %1713 = vmatmul.bf16.gmra.mxu0 %v1039
    %v1714 = vpop.f32.mrf.mxu0
    %v1715 = vadd.f32 %v1701, %v1714
    %v1716 = vpop.f32.mrf.mxu0
    %v1717 = vadd.f32 %v1703, %v1716
    %1718 = vdwg.mxu0
    %1719 = vmatpush.bf16.msra.mxu0 %v1527
    %1720 = vmatpush.bf16.msra.mxu0 %v1523
    %1721 = vmatpush.bf16.msra.mxu0 %v1519
    %1722 = vmatpush.bf16.msra.mxu0 %v1515
    %1723 = vmatpush.bf16.msra.mxu0 %v1511
    %1724 = vmatpush.bf16.msra.mxu0 %v1507
    %1725 = vmatpush.bf16.msra.mxu0 %v1503
    %1726 = vmatpush.bf16.msra.mxu0 %v1499
    %1727 = vmatmul.bf16.gmra.mxu0 %v1040
    %v1728 = vpop.f32.mrf.mxu0
    %v1729 = vadd.f32 %v1715, %v1728
    %v1730 = vpop.f32.mrf.mxu0
    %v1731 = vadd.f32 %v1717, %v1730
    %1732 = vdwg.mxu0
    %1733 = vmatpush.bf16.msra.mxu0 %v1559
    %1734 = vmatpush.bf16.msra.mxu0 %v1555
    %1735 = vmatpush.bf16.msra.mxu0 %v1551
    %1736 = vmatpush.bf16.msra.mxu0 %v1547
    %1737 = vmatpush.bf16.msra.mxu0 %v1543
    %1738 = vmatpush.bf16.msra.mxu0 %v1539
    %1739 = vmatpush.bf16.msra.mxu0 %v1535
    %1740 = vmatpush.bf16.msra.mxu0 %v1531
    %1741 = vmatmul.bf16.gmra.mxu0 %v1041
    %v1742 = vpop.f32.mrf.mxu0
    %v1743 = vadd.f32 %v1729, %v1742
    %v1744 = vpop.f32.mrf.mxu0
    %v1745 = vadd.f32 %v1731, %v1744
    %1746 = vdwg.mxu0
    %1747 = vmatpush.bf16.msra.mxu0 %v1464
    %1748 = vmatpush.bf16.msra.mxu0 %v1460
    %1749 = vmatpush.bf16.msra.mxu0 %v1456
    %1750 = vmatpush.bf16.msra.mxu0 %v1452
    %1751 = vmatpush.bf16.msra.mxu0 %v1448
    %1752 = vmatpush.bf16.msra.mxu0 %v1444
    %1753 = vmatpush.bf16.msra.mxu0 %v1440
    %1754 = vmatpush.bf16.msra.mxu0 %v1436
    %1755 = vmatmul.bf16.gmra.mxu0 %v1038
    %v1756 = vpop.f32.mrf.mxu0
    %v1757 = vadd.f32 %v1044, %v1756
    %v1758 = vpop.f32.mrf.mxu0
    %v1759 = vadd.f32 %v1044, %v1758
    %1760 = vdwg.mxu0
    %1761 = vmatpush.bf16.msra.mxu0 %v1496
    %1762 = vmatpush.bf16.msra.mxu0 %v1492
    %1763 = vmatpush.bf16.msra.mxu0 %v1488
    %1764 = vmatpush.bf16.msra.mxu0 %v1484
    %1765 = vmatpush.bf16.msra.mxu0 %v1480
    %1766 = vmatpush.bf16.msra.mxu0 %v1476
    %1767 = vmatpush.bf16.msra.mxu0 %v1472
    %1768 = vmatpush.bf16.msra.mxu0 %v1468
    %1769 = vmatmul.bf16.gmra.mxu0 %v1039
    %v1770 = vpop.f32.mrf.mxu0
    %v1771 = vadd.f32 %v1757, %v1770
    %v1772 = vpop.f32.mrf.mxu0
    %v1773 = vadd.f32 %v1759, %v1772
    %1774 = vdwg.mxu0
    %1775 = vmatpush.bf16.msra.mxu0 %v1528
    %1776 = vmatpush.bf16.msra.mxu0 %v1524
    %1777 = vmatpush.bf16.msra.mxu0 %v1520
    %1778 = vmatpush.bf16.msra.mxu0 %v1516
    %1779 = vmatpush.bf16.msra.mxu0 %v1512
    %1780 = vmatpush.bf16.msra.mxu0 %v1508
    %1781 = vmatpush.bf16.msra.mxu0 %v1504
    %1782 = vmatpush.bf16.msra.mxu0 %v1500
    %1783 = vmatmul.bf16.gmra.mxu0 %v1040
    %v1784 = vpop.f32.mrf.mxu0
    %v1785 = vadd.f32 %v1771, %v1784
    %v1786 = vpop.f32.mrf.mxu0
    %v1787 = vadd.f32 %v1773, %v1786
    %1788 = vdwg.mxu0
    %1789 = vmatpush.bf16.msra.mxu0 %v1560
    %1790 = vmatpush.bf16.msra.mxu0 %v1556
    %1791 = vmatpush.bf16.msra.mxu0 %v1552
    %1792 = vmatpush.bf16.msra.mxu0 %v1548
    %1793 = vmatpush.bf16.msra.mxu0 %v1544
    %1794 = vmatpush.bf16.msra.mxu0 %v1540
    %1795 = vmatpush.bf16.msra.mxu0 %v1536
    %1796 = vmatpush.bf16.msra.mxu0 %v1532
    %1797 = vmatmul.bf16.gmra.mxu0 %v1041
    %v1798 = vpop.f32.mrf.mxu0
    %v1799 = vadd.f32 %v1785, %v1798
    %v1800 = vpop.f32.mrf.mxu0
    %v1801 = vadd.f32 %v1787, %v1800
    %1802 = vdwg.mxu0
    %1803 = vmatpush.bf16.msra.mxu0 %v1465
    %1804 = vmatpush.bf16.msra.mxu0 %v1461
    %1805 = vmatpush.bf16.msra.mxu0 %v1457
    %1806 = vmatpush.bf16.msra.mxu0 %v1453
    %1807 = vmatpush.bf16.msra.mxu0 %v1449
    %1808 = vmatpush.bf16.msra.mxu0 %v1445
    %1809 = vmatpush.bf16.msra.mxu0 %v1441
    %1810 = vmatpush.bf16.msra.mxu0 %v1437
    %1811 = vmatmul.bf16.gmra.mxu0 %v1038
    %v1812 = vpop.f32.mrf.mxu0
    %v1813 = vadd.f32 %v1045, %v1812
    %v1814 = vpop.f32.mrf.mxu0
    %v1815 = vadd.f32 %v1045, %v1814
    %1816 = vdwg.mxu0
    %1817 = vmatpush.bf16.msra.mxu0 %v1497
    %1818 = vmatpush.bf16.msra.mxu0 %v1493
    %1819 = vmatpush.bf16.msra.mxu0 %v1489
    %1820 = vmatpush.bf16.msra.mxu0 %v1485
    %1821 = vmatpush.bf16.msra.mxu0 %v1481
    %1822 = vmatpush.bf16.msra.mxu0 %v1477
    %1823 = vmatpush.bf16.msra.mxu0 %v1473
    %1824 = vmatpush.bf16.msra.mxu0 %v1469
    %1825 = vmatmul.bf16.gmra.mxu0 %v1039
    %v1826 = vpop.f32.mrf.mxu0
    %v1827 = vadd.f32 %v1813, %v1826
    %v1828 = vpop.f32.mrf.mxu0
    %v1829 = vadd.f32 %v1815, %v1828
    %1830 = vdwg.mxu0
    %1831 = vmatpush.bf16.msra.mxu0 %v1529
    %1832 = vmatpush.bf16.msra.mxu0 %v1525
    %1833 = vmatpush.bf16.msra.mxu0 %v1521
    %1834 = vmatpush.bf16.msra.mxu0 %v1517
    %1835 = vmatpush.bf16.msra.mxu0 %v1513
    %1836 = vmatpush.bf16.msra.mxu0 %v1509
    %1837 = vmatpush.bf16.msra.mxu0 %v1505
    %1838 = vmatpush.bf16.msra.mxu0 %v1501
    %1839 = vmatmul.bf16.gmra.mxu0 %v1040
    %v1840 = vpop.f32.mrf.mxu0
    %v1841 = vadd.f32 %v1827, %v1840
    %v1842 = vpop.f32.mrf.mxu0
    %v1843 = vadd.f32 %v1829, %v1842
    %1844 = vdwg.mxu0
    %1845 = vmatpush.bf16.msra.mxu0 %v1561
    %1846 = vmatpush.bf16.msra.mxu0 %v1557
    %1847 = vmatpush.bf16.msra.mxu0 %v1553
    %1848 = vmatpush.bf16.msra.mxu0 %v1549
    %1849 = vmatpush.bf16.msra.mxu0 %v1545
    %1850 = vmatpush.bf16.msra.mxu0 %v1541
    %1851 = vmatpush.bf16.msra.mxu0 %v1537
    %1852 = vmatpush.bf16.msra.mxu0 %v1533
    %1853 = vmatmul.bf16.gmra.mxu0 %v1041
    %v1854 = vpop.f32.mrf.mxu0
    %v1855 = vadd.f32 %v1841, %v1854
    %v1856 = vpop.f32.mrf.mxu0
    %v1857 = vadd.f32 %v1843, %v1856
    %1858 = vdwg.mxu0
    %1859 = vmatpush.bf16.msra.mxu0 %v1466
    %1860 = vmatpush.bf16.msra.mxu0 %v1462
    %1861 = vmatpush.bf16.msra.mxu0 %v1458
    %1862 = vmatpush.bf16.msra.mxu0 %v1454
    %1863 = vmatpush.bf16.msra.mxu0 %v1450
    %1864 = vmatpush.bf16.msra.mxu0 %v1446
    %1865 = vmatpush.bf16.msra.mxu0 %v1442
    %1866 = vmatpush.bf16.msra.mxu0 %v1438
    %1867 = vmatmul.bf16.gmra.mxu0 %v1038
    %v1868 = vpop.f32.mrf.mxu0
    %v1869 = vadd.f32 %v1046, %v1868
    %v1870 = vpop.f32.mrf.mxu0
    %v1871 = vadd.f32 %v1046, %v1870
    %1872 = vdwg.mxu0
    %1873 = vmatpush.bf16.msra.mxu0 %v1498
    %1874 = vmatpush.bf16.msra.mxu0 %v1494
    %1875 = vmatpush.bf16.msra.mxu0 %v1490
    %1876 = vmatpush.bf16.msra.mxu0 %v1486
    %1877 = vmatpush.bf16.msra.mxu0 %v1482
    %1878 = vmatpush.bf16.msra.mxu0 %v1478
    %1879 = vmatpush.bf16.msra.mxu0 %v1474
    %1880 = vmatpush.bf16.msra.mxu0 %v1470
    %1881 = vmatmul.bf16.gmra.mxu0 %v1039
    %v1882 = vpop.f32.mrf.mxu0
    %v1883 = vadd.f32 %v1869, %v1882
    %v1884 = vpop.f32.mrf.mxu0
    %v1885 = vadd.f32 %v1871, %v1884
    %1886 = vdwg.mxu0
    %1887 = vmatpush.bf16.msra.mxu0 %v1530
    %1888 = vmatpush.bf16.msra.mxu0 %v1526
    %1889 = vmatpush.bf16.msra.mxu0 %v1522
    %1890 = vmatpush.bf16.msra.mxu0 %v1518
    %1891 = vmatpush.bf16.msra.mxu0 %v1514
    %1892 = vmatpush.bf16.msra.mxu0 %v1510
    %1893 = vmatpush.bf16.msra.mxu0 %v1506
    %1894 = vmatpush.bf16.msra.mxu0 %v1502
    %1895 = vmatmul.bf16.gmra.mxu0 %v1040
    %v1896 = vpop.f32.mrf.mxu0
    %v1897 = vadd.f32 %v1883, %v1896
    %v1898 = vpop.f32.mrf.mxu0
    %v1899 = vadd.f32 %v1885, %v1898
    %1900 = vdwg.mxu0
    %1901 = vmatpush.bf16.msra.mxu0 %v1562
    %1902 = vmatpush.bf16.msra.mxu0 %v1558
    %1903 = vmatpush.bf16.msra.mxu0 %v1554
    %1904 = vmatpush.bf16.msra.mxu0 %v1550
    %1905 = vmatpush.bf16.msra.mxu0 %v1546
    %1906 = vmatpush.bf16.msra.mxu0 %v1542
    %1907 = vmatpush.bf16.msra.mxu0 %v1538
    %1908 = vmatpush.bf16.msra.mxu0 %v1534
    %1909 = vmatmul.bf16.gmra.mxu0 %v1041
    %v1910 = vpop.f32.mrf.mxu0
    %v1911 = vadd.f32 %v1897, %v1910
    %v1912 = vpop.f32.mrf.mxu0
    %v1913 = vadd.f32 %v1899, %v1912
    %1914 = vdwg.mxu0
    %v1915 = vadd.f32 %v1743, %v1745
    %v1916 = vrot.slane %v1915, 4
    %v1917 = vadd.f32 %v1915, %v1916
    %v1918 = vrot.slane %v1917, 2
    %v1919 = vadd.f32 %v1917, %v1918
    %v1920 = vrot.slane %v1919, 1
    %v1921 = vadd.f32 %v1919, %v1920
    %v1922 = vadd.f32 %v1799, %v1801
    %v1923 = vrot.slane %v1922, 4
    %v1924 = vadd.f32 %v1922, %v1923
    %v1925 = vrot.slane %v1924, 2
    %v1926 = vadd.f32 %v1924, %v1925
    %v1927 = vrot.slane %v1926, 1
    %v1928 = vadd.f32 %v1926, %v1927
    %v1929 = vadd.f32 %v1855, %v1857
    %v1930 = vrot.slane %v1929, 4
    %v1931 = vadd.f32 %v1929, %v1930
    %v1932 = vrot.slane %v1931, 2
    %v1933 = vadd.f32 %v1931, %v1932
    %v1934 = vrot.slane %v1933, 1
    %v1935 = vadd.f32 %v1933, %v1934
    %v1936 = vadd.f32 %v1911, %v1913
    %v1937 = vrot.slane %v1936, 4
    %v1938 = vadd.f32 %v1936, %v1937
    %v1939 = vrot.slane %v1938, 2
    %v1940 = vadd.f32 %v1938, %v1939
    %v1941 = vrot.slane %v1940, 1
    %v1942 = vadd.f32 %v1940, %v1941
    %v1943 = vmul.f32 %v1921, %v864
    %v1944 = vmul.f32 %v1928, %v864
    %v1945 = vmul.f32 %v1935, %v864
    %v1946 = vmul.f32 %v1942, %v864
    %v1947 = vmul.f32 %v1743, %v1743
    %v1948 = vmul.f32 %v1799, %v1799
    %v1949 = vmul.f32 %v1855, %v1855
    %v1950 = vmul.f32 %v1911, %v1911
    %v1951 = vmul.f32 %v1745, %v1745
    %v1952 = vmul.f32 %v1801, %v1801
    %v1953 = vmul.f32 %v1857, %v1857
    %v1954 = vmul.f32 %v1913, %v1913
    %v1955 = vadd.f32 %v1947, %v1951
    %v1956 = vrot.slane %v1955, 4
    %v1957 = vadd.f32 %v1955, %v1956
    %v1958 = vrot.slane %v1957, 2
    %v1959 = vadd.f32 %v1957, %v1958
    %v1960 = vrot.slane %v1959, 1
    %v1961 = vadd.f32 %v1959, %v1960
    %v1962 = vadd.f32 %v1948, %v1952
    %v1963 = vrot.slane %v1962, 4
    %v1964 = vadd.f32 %v1962, %v1963
    %v1965 = vrot.slane %v1964, 2
    %v1966 = vadd.f32 %v1964, %v1965
    %v1967 = vrot.slane %v1966, 1
    %v1968 = vadd.f32 %v1966, %v1967
    %v1969 = vadd.f32 %v1949, %v1953
    %v1970 = vrot.slane %v1969, 4
    %v1971 = vadd.f32 %v1969, %v1970
    %v1972 = vrot.slane %v1971, 2
    %v1973 = vadd.f32 %v1971, %v1972
    %v1974 = vrot.slane %v1973, 1
    %v1975 = vadd.f32 %v1973, %v1974
    %v1976 = vadd.f32 %v1950, %v1954
    %v1977 = vrot.slane %v1976, 4
    %v1978 = vadd.f32 %v1976, %v1977
    %v1979 = vrot.slane %v1978, 2
    %v1980 = vadd.f32 %v1978, %v1979
    %v1981 = vrot.slane %v1980, 1
    %v1982 = vadd.f32 %v1980, %v1981
    %v1983 = vmul.f32 %v1961, %v864
    %v1984 = vmul.f32 %v1968, %v864
    %v1985 = vmul.f32 %v1975, %v864
    %v1986 = vmul.f32 %v1982, %v864
    %v1987 = vmul.f32 %v1943, %v1943
    %v1988 = vmul.f32 %v1944, %v1944
    %v1989 = vmul.f32 %v1945, %v1945
    %v1990 = vmul.f32 %v1946, %v1946
    %v1991 = vsub.f32 %v1983, %v1987
    %v1992 = vsub.f32 %v1984, %v1988
    %v1993 = vsub.f32 %v1985, %v1989
    %v1994 = vsub.f32 %v1986, %v1990
    %v1995 = vmax.f32 %v1991, 0.0
    %v1996 = vmax.f32 %v1992, 0.0
    %v1997 = vmax.f32 %v1993, 0.0
    %v1998 = vmax.f32 %v1994, 0.0
    %v1999 = vadd.f32 %v1995, 1e-05
    %v2000 = vadd.f32 %v1996, 1e-05
    %v2001 = vadd.f32 %v1997, 1e-05
    %v2002 = vadd.f32 %v1998, 1e-05
    %v2003 = vrsqrt.pop %v1999
    %v2004 = vmul.f32 %v2003, %v1999
    %v2005 = vmul.f32 %v2004, %v2003
    %v2006 = vmul.f32 0.5, %v2005
    %v2007 = vsub.f32 1.5, %v2006
    %v2008 = vmul.f32 %v2003, %v2007
    %vm2009 = vweird.f32 %v1999
    %vm2010 = vweird.f32 %v2003
    %vm2011 = vmor %vm2009, %vm2010
    %v2012 = vsel %vm2011, %v2003, %v2008
    %v2013 = vrsqrt.pop %v2000
    %v2014 = vmul.f32 %v2013, %v2000
    %v2015 = vmul.f32 %v2014, %v2013
    %v2016 = vmul.f32 0.5, %v2015
    %v2017 = vsub.f32 1.5, %v2016
    %v2018 = vmul.f32 %v2013, %v2017
    %vm2019 = vweird.f32 %v2000
    %vm2020 = vweird.f32 %v2013
    %vm2021 = vmor %vm2019, %vm2020
    %v2022 = vsel %vm2021, %v2013, %v2018
    %v2023 = vrsqrt.pop %v2001
    %v2024 = vmul.f32 %v2023, %v2001
    %v2025 = vmul.f32 %v2024, %v2023
    %v2026 = vmul.f32 0.5, %v2025
    %v2027 = vsub.f32 1.5, %v2026
    %v2028 = vmul.f32 %v2023, %v2027
    %vm2029 = vweird.f32 %v2001
    %vm2030 = vweird.f32 %v2023
    %vm2031 = vmor %vm2029, %vm2030
    %v2032 = vsel %vm2031, %v2023, %v2028
    %v2033 = vrsqrt.pop %v2002
    %v2034 = vmul.f32 %v2033, %v2002
    %v2035 = vmul.f32 %v2034, %v2033
    %v2036 = vmul.f32 0.5, %v2035
    %v2037 = vsub.f32 1.5, %v2036
    %v2038 = vmul.f32 %v2033, %v2037
    %vm2039 = vweird.f32 %v2002
    %vm2040 = vweird.f32 %v2033
    %vm2041 = vmor %vm2039, %vm2040
    %v2042 = vsel %vm2041, %v2033, %v2038
    %v2047 = vrot.slane %v2022, 7
    %v2048 = vrot.slane %v2032, 6
    %v2049 = vrot.slane %v2042, 5
    %v2050 = vsel %vm972, %v2012, %v2047
    %v2051 = vsel %vm974, %v2048, %v2049
    %v2052 = vsel %vm976, %v2050, %v2051
    %v2054 = vmul.f32 %v393, %v2052
    %v2056 = vperm.slane %v2054, 0
    %v2057 = vperm.slane %v2054, 1
    %v2058 = vperm.slane %v2054, 2
    %v2059 = vperm.slane %v2054, 3
    %v2064 = vmul.f32 %v1943, %v2056
    %v2065 = vmul.f32 %v1944, %v2057
    %v2066 = vmul.f32 %v1945, %v2058
    %v2067 = vmul.f32 %v1946, %v2059
    %v2072 = vrot.slane %v2065, 7
    %v2073 = vrot.slane %v2066, 6
    %v2074 = vrot.slane %v2067, 5
    %v2075 = vsel %vm972, %v2064, %v2072
    %v2076 = vsel %vm974, %v2073, %v2074
    %v2077 = vsel %vm976, %v2075, %v2076
    %v2079 = vsub.f32 %v394, %v2077
    %v2080 = vmul.f32 %v1743, %v2056
    %v2081 = vmul.f32 %v1799, %v2057
    %v2082 = vmul.f32 %v1855, %v2058
    %v2083 = vmul.f32 %v1911, %v2059
    %v2084 = vmul.f32 %v1745, %v2056
    %v2085 = vmul.f32 %v1801, %v2057
    %v2086 = vmul.f32 %v1857, %v2058
    %v2087 = vmul.f32 %v1913, %v2059
    %v2089 = vperm.slane %v2079, 0
    %v2090 = vperm.slane %v2079, 1
    %v2091 = vperm.slane %v2079, 2
    %v2092 = vperm.slane %v2079, 3
    %v2097 = vadd.f32 %v2080, %v2089
    %v2098 = vadd.f32 %v2081, %v2090
    %v2099 = vadd.f32 %v2082, %v2091
    %v2100 = vadd.f32 %v2083, %v2092
    %v2101 = vadd.f32 %v2084, %v2089
    %v2102 = vadd.f32 %v2085, %v2090
    %v2103 = vadd.f32 %v2086, %v2091
    %v2104 = vadd.f32 %v2087, %v2092
    %v2105 = vmax.f32 %v2097, 0.0
    %v2106 = vmax.f32 %v2098, 0.0
    %v2107 = vmax.f32 %v2099, 0.0
    %v2108 = vmax.f32 %v2100, 0.0
    %v2109 = vmax.f32 %v2101, 0.0
    %v2110 = vmax.f32 %v2102, 0.0
    %v2111 = vmax.f32 %v2103, 0.0
    %v2112 = vmax.f32 %v2104, 0.0
    %v2113 = vpack.c.bf16 %v2109, %v2105
    %v2114 = vpack.c.bf16 %v2110, %v2106
    %v2115 = vpack.c.bf16 %v2111, %v2107
    %v2116 = vpack.c.bf16 %v2112, %v2108
    %2117 = vmatpush.bf16.msra.mxu0 %v1463
    %2118 = vmatpush.bf16.msra.mxu0 %v1459
    %2119 = vmatpush.bf16.msra.mxu0 %v1455
    %2120 = vmatpush.bf16.msra.mxu0 %v1451
    %2121 = vmatpush.bf16.msra.mxu0 %v1447
    %2122 = vmatpush.bf16.msra.mxu0 %v1443
    %2123 = vmatpush.bf16.msra.mxu0 %v1439
    %2124 = vmatpush.bf16.msra.mxu0 %v1435
    %2125 = vmatmul.bf16.gmra.mxu0 %v2113
    %v2126 = vpop.f32.mrf.mxu0
    %v2127 = vadd.f32 %v1043, %v2126
    %v2128 = vpop.f32.mrf.mxu0
    %v2129 = vadd.f32 %v1043, %v2128
    %2130 = vdwg.mxu0
    %2131 = vmatpush.bf16.msra.mxu0 %v1495
    %2132 = vmatpush.bf16.msra.mxu0 %v1491
    %2133 = vmatpush.bf16.msra.mxu0 %v1487
    %2134 = vmatpush.bf16.msra.mxu0 %v1483
    %2135 = vmatpush.bf16.msra.mxu0 %v1479
    %2136 = vmatpush.bf16.msra.mxu0 %v1475
    %2137 = vmatpush.bf16.msra.mxu0 %v1471
    %2138 = vmatpush.bf16.msra.mxu0 %v1467
    %2139 = vmatmul.bf16.gmra.mxu0 %v2114
    %v2140 = vpop.f32.mrf.mxu0
    %v2141 = vadd.f32 %v2127, %v2140
    %v2142 = vpop.f32.mrf.mxu0
    %v2143 = vadd.f32 %v2129, %v2142
    %2144 = vdwg.mxu0
    %2145 = vmatpush.bf16.msra.mxu0 %v1527
    %2146 = vmatpush.bf16.msra.mxu0 %v1523
    %2147 = vmatpush.bf16.msra.mxu0 %v1519
    %2148 = vmatpush.bf16.msra.mxu0 %v1515
    %2149 = vmatpush.bf16.msra.mxu0 %v1511
    %2150 = vmatpush.bf16.msra.mxu0 %v1507
    %2151 = vmatpush.bf16.msra.mxu0 %v1503
    %2152 = vmatpush.bf16.msra.mxu0 %v1499
    %2153 = vmatmul.bf16.gmra.mxu0 %v2115
    %v2154 = vpop.f32.mrf.mxu0
    %v2155 = vadd.f32 %v2141, %v2154
    %v2156 = vpop.f32.mrf.mxu0
    %v2157 = vadd.f32 %v2143, %v2156
    %2158 = vdwg.mxu0
    %2159 = vmatpush.bf16.msra.mxu0 %v1559
    %2160 = vmatpush.bf16.msra.mxu0 %v1555
    %2161 = vmatpush.bf16.msra.mxu0 %v1551
    %2162 = vmatpush.bf16.msra.mxu0 %v1547
    %2163 = vmatpush.bf16.msra.mxu0 %v1543
    %2164 = vmatpush.bf16.msra.mxu0 %v1539
    %2165 = vmatpush.bf16.msra.mxu0 %v1535
    %2166 = vmatpush.bf16.msra.mxu0 %v1531
    %2167 = vmatmul.bf16.gmra.mxu0 %v2116
    %v2168 = vpop.f32.mrf.mxu0
    %v2169 = vadd.f32 %v2155, %v2168
    %v2170 = vpop.f32.mrf.mxu0
    %v2171 = vadd.f32 %v2157, %v2170
    %2172 = vdwg.mxu0
    %2173 = vmatpush.bf16.msra.mxu0 %v1464
    %2174 = vmatpush.bf16.msra.mxu0 %v1460
    %2175 = vmatpush.bf16.msra.mxu0 %v1456
    %2176 = vmatpush.bf16.msra.mxu0 %v1452
    %2177 = vmatpush.bf16.msra.mxu0 %v1448
    %2178 = vmatpush.bf16.msra.mxu0 %v1444
    %2179 = vmatpush.bf16.msra.mxu0 %v1440
    %2180 = vmatpush.bf16.msra.mxu0 %v1436
    %2181 = vmatmul.bf16.gmra.mxu0 %v2113
    %v2182 = vpop.f32.mrf.mxu0
    %v2183 = vadd.f32 %v1044, %v2182
    %v2184 = vpop.f32.mrf.mxu0
    %v2185 = vadd.f32 %v1044, %v2184
    %2186 = vdwg.mxu0
    %2187 = vmatpush.bf16.msra.mxu0 %v1496
    %2188 = vmatpush.bf16.msra.mxu0 %v1492
    %2189 = vmatpush.bf16.msra.mxu0 %v1488
    %2190 = vmatpush.bf16.msra.mxu0 %v1484
    %2191 = vmatpush.bf16.msra.mxu0 %v1480
    %2192 = vmatpush.bf16.msra.mxu0 %v1476
    %2193 = vmatpush.bf16.msra.mxu0 %v1472
    %2194 = vmatpush.bf16.msra.mxu0 %v1468
    %2195 = vmatmul.bf16.gmra.mxu0 %v2114
    %v2196 = vpop.f32.mrf.mxu0
    %v2197 = vadd.f32 %v2183, %v2196
    %v2198 = vpop.f32.mrf.mxu0
    %v2199 = vadd.f32 %v2185, %v2198
    %2200 = vdwg.mxu0
    %2201 = vmatpush.bf16.msra.mxu0 %v1528
    %2202 = vmatpush.bf16.msra.mxu0 %v1524
    %2203 = vmatpush.bf16.msra.mxu0 %v1520
    %2204 = vmatpush.bf16.msra.mxu0 %v1516
    %2205 = vmatpush.bf16.msra.mxu0 %v1512
    %2206 = vmatpush.bf16.msra.mxu0 %v1508
    %2207 = vmatpush.bf16.msra.mxu0 %v1504
    %2208 = vmatpush.bf16.msra.mxu0 %v1500
    %2209 = vmatmul.bf16.gmra.mxu0 %v2115
    %v2210 = vpop.f32.mrf.mxu0
    %v2211 = vadd.f32 %v2197, %v2210
    %v2212 = vpop.f32.mrf.mxu0
    %v2213 = vadd.f32 %v2199, %v2212
    %2214 = vdwg.mxu0
    %2215 = vmatpush.bf16.msra.mxu0 %v1560
    %2216 = vmatpush.bf16.msra.mxu0 %v1556
    %2217 = vmatpush.bf16.msra.mxu0 %v1552
    %2218 = vmatpush.bf16.msra.mxu0 %v1548
    %2219 = vmatpush.bf16.msra.mxu0 %v1544
    %2220 = vmatpush.bf16.msra.mxu0 %v1540
    %2221 = vmatpush.bf16.msra.mxu0 %v1536
    %2222 = vmatpush.bf16.msra.mxu0 %v1532
    %2223 = vmatmul.bf16.gmra.mxu0 %v2116
    %v2224 = vpop.f32.mrf.mxu0
    %v2225 = vadd.f32 %v2211, %v2224
    %v2226 = vpop.f32.mrf.mxu0
    %v2227 = vadd.f32 %v2213, %v2226
    %2228 = vdwg.mxu0
    %2229 = vmatpush.bf16.msra.mxu0 %v1465
    %2230 = vmatpush.bf16.msra.mxu0 %v1461
    %2231 = vmatpush.bf16.msra.mxu0 %v1457
    %2232 = vmatpush.bf16.msra.mxu0 %v1453
    %2233 = vmatpush.bf16.msra.mxu0 %v1449
    %2234 = vmatpush.bf16.msra.mxu0 %v1445
    %2235 = vmatpush.bf16.msra.mxu0 %v1441
    %2236 = vmatpush.bf16.msra.mxu0 %v1437
    %2237 = vmatmul.bf16.gmra.mxu0 %v2113
    %v2238 = vpop.f32.mrf.mxu0
    %v2239 = vadd.f32 %v1045, %v2238
    %v2240 = vpop.f32.mrf.mxu0
    %v2241 = vadd.f32 %v1045, %v2240
    %2242 = vdwg.mxu0
    %2243 = vmatpush.bf16.msra.mxu0 %v1497
    %2244 = vmatpush.bf16.msra.mxu0 %v1493
    %2245 = vmatpush.bf16.msra.mxu0 %v1489
    %2246 = vmatpush.bf16.msra.mxu0 %v1485
    %2247 = vmatpush.bf16.msra.mxu0 %v1481
    %2248 = vmatpush.bf16.msra.mxu0 %v1477
    %2249 = vmatpush.bf16.msra.mxu0 %v1473
    %2250 = vmatpush.bf16.msra.mxu0 %v1469
    %2251 = vmatmul.bf16.gmra.mxu0 %v2114
    %v2252 = vpop.f32.mrf.mxu0
    %v2253 = vadd.f32 %v2239, %v2252
    %v2254 = vpop.f32.mrf.mxu0
    %v2255 = vadd.f32 %v2241, %v2254
    %2256 = vdwg.mxu0
    %2257 = vmatpush.bf16.msra.mxu0 %v1529
    %2258 = vmatpush.bf16.msra.mxu0 %v1525
    %2259 = vmatpush.bf16.msra.mxu0 %v1521
    %2260 = vmatpush.bf16.msra.mxu0 %v1517
    %2261 = vmatpush.bf16.msra.mxu0 %v1513
    %2262 = vmatpush.bf16.msra.mxu0 %v1509
    %2263 = vmatpush.bf16.msra.mxu0 %v1505
    %2264 = vmatpush.bf16.msra.mxu0 %v1501
    %2265 = vmatmul.bf16.gmra.mxu0 %v2115
    %v2266 = vpop.f32.mrf.mxu0
    %v2267 = vadd.f32 %v2253, %v2266
    %v2268 = vpop.f32.mrf.mxu0
    %v2269 = vadd.f32 %v2255, %v2268
    %2270 = vdwg.mxu0
    %2271 = vmatpush.bf16.msra.mxu0 %v1561
    %2272 = vmatpush.bf16.msra.mxu0 %v1557
    %2273 = vmatpush.bf16.msra.mxu0 %v1553
    %2274 = vmatpush.bf16.msra.mxu0 %v1549
    %2275 = vmatpush.bf16.msra.mxu0 %v1545
    %2276 = vmatpush.bf16.msra.mxu0 %v1541
    %2277 = vmatpush.bf16.msra.mxu0 %v1537
    %2278 = vmatpush.bf16.msra.mxu0 %v1533
    %2279 = vmatmul.bf16.gmra.mxu0 %v2116
    %v2280 = vpop.f32.mrf.mxu0
    %v2281 = vadd.f32 %v2267, %v2280
    %v2282 = vpop.f32.mrf.mxu0
    %v2283 = vadd.f32 %v2269, %v2282
    %2284 = vdwg.mxu0
    %2285 = vmatpush.bf16.msra.mxu0 %v1466
    %2286 = vmatpush.bf16.msra.mxu0 %v1462
    %2287 = vmatpush.bf16.msra.mxu0 %v1458
    %2288 = vmatpush.bf16.msra.mxu0 %v1454
    %2289 = vmatpush.bf16.msra.mxu0 %v1450
    %2290 = vmatpush.bf16.msra.mxu0 %v1446
    %2291 = vmatpush.bf16.msra.mxu0 %v1442
    %2292 = vmatpush.bf16.msra.mxu0 %v1438
    %2293 = vmatmul.bf16.gmra.mxu0 %v2113
    %v2294 = vpop.f32.mrf.mxu0
    %v2295 = vadd.f32 %v1046, %v2294
    %v2296 = vpop.f32.mrf.mxu0
    %v2297 = vadd.f32 %v1046, %v2296
    %2298 = vdwg.mxu0
    %2299 = vmatpush.bf16.msra.mxu0 %v1498
    %2300 = vmatpush.bf16.msra.mxu0 %v1494
    %2301 = vmatpush.bf16.msra.mxu0 %v1490
    %2302 = vmatpush.bf16.msra.mxu0 %v1486
    %2303 = vmatpush.bf16.msra.mxu0 %v1482
    %2304 = vmatpush.bf16.msra.mxu0 %v1478
    %2305 = vmatpush.bf16.msra.mxu0 %v1474
    %2306 = vmatpush.bf16.msra.mxu0 %v1470
    %2307 = vmatmul.bf16.gmra.mxu0 %v2114
    %v2308 = vpop.f32.mrf.mxu0
    %v2309 = vadd.f32 %v2295, %v2308
    %v2310 = vpop.f32.mrf.mxu0
    %v2311 = vadd.f32 %v2297, %v2310
    %2312 = vdwg.mxu0
    %2313 = vmatpush.bf16.msra.mxu0 %v1530
    %2314 = vmatpush.bf16.msra.mxu0 %v1526
    %2315 = vmatpush.bf16.msra.mxu0 %v1522
    %2316 = vmatpush.bf16.msra.mxu0 %v1518
    %2317 = vmatpush.bf16.msra.mxu0 %v1514
    %2318 = vmatpush.bf16.msra.mxu0 %v1510
    %2319 = vmatpush.bf16.msra.mxu0 %v1506
    %2320 = vmatpush.bf16.msra.mxu0 %v1502
    %2321 = vmatmul.bf16.gmra.mxu0 %v2115
    %v2322 = vpop.f32.mrf.mxu0
    %v2323 = vadd.f32 %v2309, %v2322
    %v2324 = vpop.f32.mrf.mxu0
    %v2325 = vadd.f32 %v2311, %v2324
    %2326 = vdwg.mxu0
    %2327 = vmatpush.bf16.msra.mxu0 %v1562
    %2328 = vmatpush.bf16.msra.mxu0 %v1558
    %2329 = vmatpush.bf16.msra.mxu0 %v1554
    %2330 = vmatpush.bf16.msra.mxu0 %v1550
    %2331 = vmatpush.bf16.msra.mxu0 %v1546
    %2332 = vmatpush.bf16.msra.mxu0 %v1542
    %2333 = vmatpush.bf16.msra.mxu0 %v1538
    %2334 = vmatpush.bf16.msra.mxu0 %v1534
    %2335 = vmatmul.bf16.gmra.mxu0 %v2116
    %v2336 = vpop.f32.mrf.mxu0
    %v2337 = vadd.f32 %v2323, %v2336
    %v2338 = vpop.f32.mrf.mxu0
    %v2339 = vadd.f32 %v2325, %v2338
    %2340 = vdwg.mxu0
    %v2341 = vadd.f32 %v2169, %v2171
    %v2342 = vrot.slane %v2341, 4
    %v2343 = vadd.f32 %v2341, %v2342
    %v2344 = vrot.slane %v2343, 2
    %v2345 = vadd.f32 %v2343, %v2344
    %v2346 = vrot.slane %v2345, 1
    %v2347 = vadd.f32 %v2345, %v2346
    %v2348 = vadd.f32 %v2225, %v2227
    %v2349 = vrot.slane %v2348, 4
    %v2350 = vadd.f32 %v2348, %v2349
    %v2351 = vrot.slane %v2350, 2
    %v2352 = vadd.f32 %v2350, %v2351
    %v2353 = vrot.slane %v2352, 1
    %v2354 = vadd.f32 %v2352, %v2353
    %v2355 = vadd.f32 %v2281, %v2283
    %v2356 = vrot.slane %v2355, 4
    %v2357 = vadd.f32 %v2355, %v2356
    %v2358 = vrot.slane %v2357, 2
    %v2359 = vadd.f32 %v2357, %v2358
    %v2360 = vrot.slane %v2359, 1
    %v2361 = vadd.f32 %v2359, %v2360
    %v2362 = vadd.f32 %v2337, %v2339
    %v2363 = vrot.slane %v2362, 4
    %v2364 = vadd.f32 %v2362, %v2363
    %v2365 = vrot.slane %v2364, 2
    %v2366 = vadd.f32 %v2364, %v2365
    %v2367 = vrot.slane %v2366, 1
    %v2368 = vadd.f32 %v2366, %v2367
    %v2369 = vmul.f32 %v2347, %v864
    %v2370 = vmul.f32 %v2354, %v864
    %v2371 = vmul.f32 %v2361, %v864
    %v2372 = vmul.f32 %v2368, %v864
    %v2373 = vmul.f32 %v2169, %v2169
    %v2374 = vmul.f32 %v2225, %v2225
    %v2375 = vmul.f32 %v2281, %v2281
    %v2376 = vmul.f32 %v2337, %v2337
    %v2377 = vmul.f32 %v2171, %v2171
    %v2378 = vmul.f32 %v2227, %v2227
    %v2379 = vmul.f32 %v2283, %v2283
    %v2380 = vmul.f32 %v2339, %v2339
    %v2381 = vadd.f32 %v2373, %v2377
    %v2382 = vrot.slane %v2381, 4
    %v2383 = vadd.f32 %v2381, %v2382
    %v2384 = vrot.slane %v2383, 2
    %v2385 = vadd.f32 %v2383, %v2384
    %v2386 = vrot.slane %v2385, 1
    %v2387 = vadd.f32 %v2385, %v2386
    %v2388 = vadd.f32 %v2374, %v2378
    %v2389 = vrot.slane %v2388, 4
    %v2390 = vadd.f32 %v2388, %v2389
    %v2391 = vrot.slane %v2390, 2
    %v2392 = vadd.f32 %v2390, %v2391
    %v2393 = vrot.slane %v2392, 1
    %v2394 = vadd.f32 %v2392, %v2393
    %v2395 = vadd.f32 %v2375, %v2379
    %v2396 = vrot.slane %v2395, 4
    %v2397 = vadd.f32 %v2395, %v2396
    %v2398 = vrot.slane %v2397, 2
    %v2399 = vadd.f32 %v2397, %v2398
    %v2400 = vrot.slane %v2399, 1
    %v2401 = vadd.f32 %v2399, %v2400
    %v2402 = vadd.f32 %v2376, %v2380
    %v2403 = vrot.slane %v2402, 4
    %v2404 = vadd.f32 %v2402, %v2403
    %v2405 = vrot.slane %v2404, 2
    %v2406 = vadd.f32 %v2404, %v2405
    %v2407 = vrot.slane %v2406, 1
    %v2408 = vadd.f32 %v2406, %v2407
    %v2409 = vmul.f32 %v2387, %v864
    %v2410 = vmul.f32 %v2394, %v864
    %v2411 = vmul.f32 %v2401, %v864
    %v2412 = vmul.f32 %v2408, %v864
    %v2413 = vmul.f32 %v2369, %v2369
    %v2414 = vmul.f32 %v2370, %v2370
    %v2415 = vmul.f32 %v2371, %v2371
    %v2416 = vmul.f32 %v2372, %v2372
    %v2417 = vsub.f32 %v2409, %v2413
    %v2418 = vsub.f32 %v2410, %v2414
    %v2419 = vsub.f32 %v2411, %v2415
    %v2420 = vsub.f32 %v2412, %v2416
    %v2421 = vmax.f32 %v2417, 0.0
    %v2422 = vmax.f32 %v2418, 0.0
    %v2423 = vmax.f32 %v2419, 0.0
    %v2424 = vmax.f32 %v2420, 0.0
    %v2425 = vadd.f32 %v2421, 1e-05
    %v2426 = vadd.f32 %v2422, 1e-05
    %v2427 = vadd.f32 %v2423, 1e-05
    %v2428 = vadd.f32 %v2424, 1e-05
    %v2429 = vrsqrt.pop %v2425
    %v2430 = vmul.f32 %v2429, %v2425
    %v2431 = vmul.f32 %v2430, %v2429
    %v2432 = vmul.f32 0.5, %v2431
    %v2433 = vsub.f32 1.5, %v2432
    %v2434 = vmul.f32 %v2429, %v2433
    %vm2435 = vweird.f32 %v2425
    %vm2436 = vweird.f32 %v2429
    %vm2437 = vmor %vm2435, %vm2436
    %v2438 = vsel %vm2437, %v2429, %v2434
    %v2439 = vrsqrt.pop %v2426
    %v2440 = vmul.f32 %v2439, %v2426
    %v2441 = vmul.f32 %v2440, %v2439
    %v2442 = vmul.f32 0.5, %v2441
    %v2443 = vsub.f32 1.5, %v2442
    %v2444 = vmul.f32 %v2439, %v2443
    %vm2445 = vweird.f32 %v2426
    %vm2446 = vweird.f32 %v2439
    %vm2447 = vmor %vm2445, %vm2446
    %v2448 = vsel %vm2447, %v2439, %v2444
    %v2449 = vrsqrt.pop %v2427
    %v2450 = vmul.f32 %v2449, %v2427
    %v2451 = vmul.f32 %v2450, %v2449
    %v2452 = vmul.f32 0.5, %v2451
    %v2453 = vsub.f32 1.5, %v2452
    %v2454 = vmul.f32 %v2449, %v2453
    %vm2455 = vweird.f32 %v2427
    %vm2456 = vweird.f32 %v2449
    %vm2457 = vmor %vm2455, %vm2456
    %v2458 = vsel %vm2457, %v2449, %v2454
    %v2459 = vrsqrt.pop %v2428
    %v2460 = vmul.f32 %v2459, %v2428
    %v2461 = vmul.f32 %v2460, %v2459
    %v2462 = vmul.f32 0.5, %v2461
    %v2463 = vsub.f32 1.5, %v2462
    %v2464 = vmul.f32 %v2459, %v2463
    %vm2465 = vweird.f32 %v2428
    %vm2466 = vweird.f32 %v2459
    %vm2467 = vmor %vm2465, %vm2466
    %v2468 = vsel %vm2467, %v2459, %v2464
    %v2473 = vrot.slane %v2448, 7
    %v2474 = vrot.slane %v2458, 6
    %v2475 = vrot.slane %v2468, 5
    %v2476 = vsel %vm972, %v2438, %v2473
    %v2477 = vsel %vm974, %v2474, %v2475
    %v2478 = vsel %vm976, %v2476, %v2477
    %v2480 = vmul.f32 %v393, %v2478
    %v2482 = vperm.slane %v2480, 0
    %v2483 = vperm.slane %v2480, 1
    %v2484 = vperm.slane %v2480, 2
    %v2485 = vperm.slane %v2480, 3
    %v2490 = vmul.f32 %v2369, %v2482
    %v2491 = vmul.f32 %v2370, %v2483
    %v2492 = vmul.f32 %v2371, %v2484
    %v2493 = vmul.f32 %v2372, %v2485
    %v2498 = vrot.slane %v2491, 7
    %v2499 = vrot.slane %v2492, 6
    %v2500 = vrot.slane %v2493, 5
    %v2501 = vsel %vm972, %v2490, %v2498
    %v2502 = vsel %vm974, %v2499, %v2500
    %v2503 = vsel %vm976, %v2501, %v2502
    %v2505 = vsub.f32 %v394, %v2503
    %v2506 = vmul.f32 %v2169, %v2482
    %v2507 = vmul.f32 %v2225, %v2483
    %v2508 = vmul.f32 %v2281, %v2484
    %v2509 = vmul.f32 %v2337, %v2485
    %v2510 = vmul.f32 %v2171, %v2482
    %v2511 = vmul.f32 %v2227, %v2483
    %v2512 = vmul.f32 %v2283, %v2484
    %v2513 = vmul.f32 %v2339, %v2485
    %v2515 = vperm.slane %v2505, 0
    %v2516 = vperm.slane %v2505, 1
    %v2517 = vperm.slane %v2505, 2
    %v2518 = vperm.slane %v2505, 3
    %v2523 = vadd.f32 %v2506, %v2515
    %v2524 = vadd.f32 %v2507, %v2516
    %v2525 = vadd.f32 %v2508, %v2517
    %v2526 = vadd.f32 %v2509, %v2518
    %v2527 = vadd.f32 %v2510, %v2515
    %v2528 = vadd.f32 %v2511, %v2516
    %v2529 = vadd.f32 %v2512, %v2517
    %v2530 = vadd.f32 %v2513, %v2518
    %v2531 = vmax.f32 %v2523, 0.0
    %v2532 = vmax.f32 %v2524, 0.0
    %v2533 = vmax.f32 %v2525, 0.0
    %v2534 = vmax.f32 %v2526, 0.0
    %v2535 = vmax.f32 %v2527, 0.0
    %v2536 = vmax.f32 %v2528, 0.0
    %v2537 = vmax.f32 %v2529, 0.0
    %v2538 = vmax.f32 %v2530, 0.0
    %v2539 = vpack.c.bf16 %v2535, %v2531
    %v2540 = vpack.c.bf16 %v2536, %v2532
    %v2541 = vpack.c.bf16 %v2537, %v2533
    %v2542 = vpack.c.bf16 %v2538, %v2534
    %2543 = vmatpush.bf16.msra.mxu0 %v1463
    %2544 = vmatpush.bf16.msra.mxu0 %v1459
    %2545 = vmatpush.bf16.msra.mxu0 %v1455
    %2546 = vmatpush.bf16.msra.mxu0 %v1451
    %2547 = vmatpush.bf16.msra.mxu0 %v1447
    %2548 = vmatpush.bf16.msra.mxu0 %v1443
    %2549 = vmatpush.bf16.msra.mxu0 %v1439
    %2550 = vmatpush.bf16.msra.mxu0 %v1435
    %2551 = vmatmul.bf16.gmra.mxu0 %v2539
    %v2552 = vpop.f32.mrf.mxu0
    %v2553 = vadd.f32 %v1043, %v2552
    %v2554 = vpop.f32.mrf.mxu0
    %v2555 = vadd.f32 %v1043, %v2554
    %2556 = vdwg.mxu0
    %2557 = vmatpush.bf16.msra.mxu0 %v1495
    %2558 = vmatpush.bf16.msra.mxu0 %v1491
    %2559 = vmatpush.bf16.msra.mxu0 %v1487
    %2560 = vmatpush.bf16.msra.mxu0 %v1483
    %2561 = vmatpush.bf16.msra.mxu0 %v1479
    %2562 = vmatpush.bf16.msra.mxu0 %v1475
    %2563 = vmatpush.bf16.msra.mxu0 %v1471
    %2564 = vmatpush.bf16.msra.mxu0 %v1467
    %2565 = vmatmul.bf16.gmra.mxu0 %v2540
    %v2566 = vpop.f32.mrf.mxu0
    %v2567 = vadd.f32 %v2553, %v2566
    %v2568 = vpop.f32.mrf.mxu0
    %v2569 = vadd.f32 %v2555, %v2568
    %2570 = vdwg.mxu0
    %2571 = vmatpush.bf16.msra.mxu0 %v1527
    %2572 = vmatpush.bf16.msra.mxu0 %v1523
    %2573 = vmatpush.bf16.msra.mxu0 %v1519
    %2574 = vmatpush.bf16.msra.mxu0 %v1515
    %2575 = vmatpush.bf16.msra.mxu0 %v1511
    %2576 = vmatpush.bf16.msra.mxu0 %v1507
    %2577 = vmatpush.bf16.msra.mxu0 %v1503
    %2578 = vmatpush.bf16.msra.mxu0 %v1499
    %2579 = vmatmul.bf16.gmra.mxu0 %v2541
    %v2580 = vpop.f32.mrf.mxu0
    %v2581 = vadd.f32 %v2567, %v2580
    %v2582 = vpop.f32.mrf.mxu0
    %v2583 = vadd.f32 %v2569, %v2582
    %2584 = vdwg.mxu0
    %2585 = vmatpush.bf16.msra.mxu0 %v1559
    %2586 = vmatpush.bf16.msra.mxu0 %v1555
    %2587 = vmatpush.bf16.msra.mxu0 %v1551
    %2588 = vmatpush.bf16.msra.mxu0 %v1547
    %2589 = vmatpush.bf16.msra.mxu0 %v1543
    %2590 = vmatpush.bf16.msra.mxu0 %v1539
    %2591 = vmatpush.bf16.msra.mxu0 %v1535
    %2592 = vmatpush.bf16.msra.mxu0 %v1531
    %2593 = vmatmul.bf16.gmra.mxu0 %v2542
    %v2594 = vpop.f32.mrf.mxu0
    %v2595 = vadd.f32 %v2581, %v2594
    %v2596 = vpop.f32.mrf.mxu0
    %v2597 = vadd.f32 %v2583, %v2596
    %2598 = vdwg.mxu0
    %2599 = vmatpush.bf16.msra.mxu0 %v1464
    %2600 = vmatpush.bf16.msra.mxu0 %v1460
    %2601 = vmatpush.bf16.msra.mxu0 %v1456
    %2602 = vmatpush.bf16.msra.mxu0 %v1452
    %2603 = vmatpush.bf16.msra.mxu0 %v1448
    %2604 = vmatpush.bf16.msra.mxu0 %v1444
    %2605 = vmatpush.bf16.msra.mxu0 %v1440
    %2606 = vmatpush.bf16.msra.mxu0 %v1436
    %2607 = vmatmul.bf16.gmra.mxu0 %v2539
    %v2608 = vpop.f32.mrf.mxu0
    %v2609 = vadd.f32 %v1044, %v2608
    %v2610 = vpop.f32.mrf.mxu0
    %v2611 = vadd.f32 %v1044, %v2610
    %2612 = vdwg.mxu0
    %2613 = vmatpush.bf16.msra.mxu0 %v1496
    %2614 = vmatpush.bf16.msra.mxu0 %v1492
    %2615 = vmatpush.bf16.msra.mxu0 %v1488
    %2616 = vmatpush.bf16.msra.mxu0 %v1484
    %2617 = vmatpush.bf16.msra.mxu0 %v1480
    %2618 = vmatpush.bf16.msra.mxu0 %v1476
    %2619 = vmatpush.bf16.msra.mxu0 %v1472
    %2620 = vmatpush.bf16.msra.mxu0 %v1468
    %2621 = vmatmul.bf16.gmra.mxu0 %v2540
    %v2622 = vpop.f32.mrf.mxu0
    %v2623 = vadd.f32 %v2609, %v2622
    %v2624 = vpop.f32.mrf.mxu0
    %v2625 = vadd.f32 %v2611, %v2624
    %2626 = vdwg.mxu0
    %2627 = vmatpush.bf16.msra.mxu0 %v1528
    %2628 = vmatpush.bf16.msra.mxu0 %v1524
    %2629 = vmatpush.bf16.msra.mxu0 %v1520
    %2630 = vmatpush.bf16.msra.mxu0 %v1516
    %2631 = vmatpush.bf16.msra.mxu0 %v1512
    %2632 = vmatpush.bf16.msra.mxu0 %v1508
    %2633 = vmatpush.bf16.msra.mxu0 %v1504
    %2634 = vmatpush.bf16.msra.mxu0 %v1500
    %2635 = vmatmul.bf16.gmra.mxu0 %v2541
    %v2636 = vpop.f32.mrf.mxu0
    %v2637 = vadd.f32 %v2623, %v2636
    %v2638 = vpop.f32.mrf.mxu0
    %v2639 = vadd.f32 %v2625, %v2638
    %2640 = vdwg.mxu0
    %2641 = vmatpush.bf16.msra.mxu0 %v1560
    %2642 = vmatpush.bf16.msra.mxu0 %v1556
    %2643 = vmatpush.bf16.msra.mxu0 %v1552
    %2644 = vmatpush.bf16.msra.mxu0 %v1548
    %2645 = vmatpush.bf16.msra.mxu0 %v1544
    %2646 = vmatpush.bf16.msra.mxu0 %v1540
    %2647 = vmatpush.bf16.msra.mxu0 %v1536
    %2648 = vmatpush.bf16.msra.mxu0 %v1532
    %2649 = vmatmul.bf16.gmra.mxu0 %v2542
    %v2650 = vpop.f32.mrf.mxu0
    %v2651 = vadd.f32 %v2637, %v2650
    %v2652 = vpop.f32.mrf.mxu0
    %v2653 = vadd.f32 %v2639, %v2652
    %2654 = vdwg.mxu0
    %2655 = vmatpush.bf16.msra.mxu0 %v1465
    %2656 = vmatpush.bf16.msra.mxu0 %v1461
    %2657 = vmatpush.bf16.msra.mxu0 %v1457
    %2658 = vmatpush.bf16.msra.mxu0 %v1453
    %2659 = vmatpush.bf16.msra.mxu0 %v1449
    %2660 = vmatpush.bf16.msra.mxu0 %v1445
    %2661 = vmatpush.bf16.msra.mxu0 %v1441
    %2662 = vmatpush.bf16.msra.mxu0 %v1437
    %2663 = vmatmul.bf16.gmra.mxu0 %v2539
    %v2664 = vpop.f32.mrf.mxu0
    %v2665 = vadd.f32 %v1045, %v2664
    %v2666 = vpop.f32.mrf.mxu0
    %v2667 = vadd.f32 %v1045, %v2666
    %2668 = vdwg.mxu0
    %2669 = vmatpush.bf16.msra.mxu0 %v1497
    %2670 = vmatpush.bf16.msra.mxu0 %v1493
    %2671 = vmatpush.bf16.msra.mxu0 %v1489
    %2672 = vmatpush.bf16.msra.mxu0 %v1485
    %2673 = vmatpush.bf16.msra.mxu0 %v1481
    %2674 = vmatpush.bf16.msra.mxu0 %v1477
    %2675 = vmatpush.bf16.msra.mxu0 %v1473
    %2676 = vmatpush.bf16.msra.mxu0 %v1469
    %2677 = vmatmul.bf16.gmra.mxu0 %v2540
    %v2678 = vpop.f32.mrf.mxu0
    %v2679 = vadd.f32 %v2665, %v2678
    %v2680 = vpop.f32.mrf.mxu0
    %v2681 = vadd.f32 %v2667, %v2680
    %2682 = vdwg.mxu0
    %2683 = vmatpush.bf16.msra.mxu0 %v1529
    %2684 = vmatpush.bf16.msra.mxu0 %v1525
    %2685 = vmatpush.bf16.msra.mxu0 %v1521
    %2686 = vmatpush.bf16.msra.mxu0 %v1517
    %2687 = vmatpush.bf16.msra.mxu0 %v1513
    %2688 = vmatpush.bf16.msra.mxu0 %v1509
    %2689 = vmatpush.bf16.msra.mxu0 %v1505
    %2690 = vmatpush.bf16.msra.mxu0 %v1501
    %2691 = vmatmul.bf16.gmra.mxu0 %v2541
    %v2692 = vpop.f32.mrf.mxu0
    %v2693 = vadd.f32 %v2679, %v2692
    %v2694 = vpop.f32.mrf.mxu0
    %v2695 = vadd.f32 %v2681, %v2694
    %2696 = vdwg.mxu0
    %2697 = vmatpush.bf16.msra.mxu0 %v1561
    %2698 = vmatpush.bf16.msra.mxu0 %v1557
    %2699 = vmatpush.bf16.msra.mxu0 %v1553
    %2700 = vmatpush.bf16.msra.mxu0 %v1549
    %2701 = vmatpush.bf16.msra.mxu0 %v1545
    %2702 = vmatpush.bf16.msra.mxu0 %v1541
    %2703 = vmatpush.bf16.msra.mxu0 %v1537
    %2704 = vmatpush.bf16.msra.mxu0 %v1533
    %2705 = vmatmul.bf16.gmra.mxu0 %v2542
    %v2706 = vpop.f32.mrf.mxu0
    %v2707 = vadd.f32 %v2693, %v2706
    %v2708 = vpop.f32.mrf.mxu0
    %v2709 = vadd.f32 %v2695, %v2708
    %2710 = vdwg.mxu0
    %2711 = vmatpush.bf16.msra.mxu0 %v1466
    %2712 = vmatpush.bf16.msra.mxu0 %v1462
    %2713 = vmatpush.bf16.msra.mxu0 %v1458
    %2714 = vmatpush.bf16.msra.mxu0 %v1454
    %2715 = vmatpush.bf16.msra.mxu0 %v1450
    %2716 = vmatpush.bf16.msra.mxu0 %v1446
    %2717 = vmatpush.bf16.msra.mxu0 %v1442
    %2718 = vmatpush.bf16.msra.mxu0 %v1438
    %2719 = vmatmul.bf16.gmra.mxu0 %v2539
    %v2720 = vpop.f32.mrf.mxu0
    %v2721 = vadd.f32 %v1046, %v2720
    %v2722 = vpop.f32.mrf.mxu0
    %v2723 = vadd.f32 %v1046, %v2722
    %2724 = vdwg.mxu0
    %2725 = vmatpush.bf16.msra.mxu0 %v1498
    %2726 = vmatpush.bf16.msra.mxu0 %v1494
    %2727 = vmatpush.bf16.msra.mxu0 %v1490
    %2728 = vmatpush.bf16.msra.mxu0 %v1486
    %2729 = vmatpush.bf16.msra.mxu0 %v1482
    %2730 = vmatpush.bf16.msra.mxu0 %v1478
    %2731 = vmatpush.bf16.msra.mxu0 %v1474
    %2732 = vmatpush.bf16.msra.mxu0 %v1470
    %2733 = vmatmul.bf16.gmra.mxu0 %v2540
    %v2734 = vpop.f32.mrf.mxu0
    %v2735 = vadd.f32 %v2721, %v2734
    %v2736 = vpop.f32.mrf.mxu0
    %v2737 = vadd.f32 %v2723, %v2736
    %2738 = vdwg.mxu0
    %2739 = vmatpush.bf16.msra.mxu0 %v1530
    %2740 = vmatpush.bf16.msra.mxu0 %v1526
    %2741 = vmatpush.bf16.msra.mxu0 %v1522
    %2742 = vmatpush.bf16.msra.mxu0 %v1518
    %2743 = vmatpush.bf16.msra.mxu0 %v1514
    %2744 = vmatpush.bf16.msra.mxu0 %v1510
    %2745 = vmatpush.bf16.msra.mxu0 %v1506
    %2746 = vmatpush.bf16.msra.mxu0 %v1502
    %2747 = vmatmul.bf16.gmra.mxu0 %v2541
    %v2748 = vpop.f32.mrf.mxu0
    %v2749 = vadd.f32 %v2735, %v2748
    %v2750 = vpop.f32.mrf.mxu0
    %v2751 = vadd.f32 %v2737, %v2750
    %2752 = vdwg.mxu0
    %2753 = vmatpush.bf16.msra.mxu0 %v1562
    %2754 = vmatpush.bf16.msra.mxu0 %v1558
    %2755 = vmatpush.bf16.msra.mxu0 %v1554
    %2756 = vmatpush.bf16.msra.mxu0 %v1550
    %2757 = vmatpush.bf16.msra.mxu0 %v1546
    %2758 = vmatpush.bf16.msra.mxu0 %v1542
    %2759 = vmatpush.bf16.msra.mxu0 %v1538
    %2760 = vmatpush.bf16.msra.mxu0 %v1534
    %2761 = vmatmul.bf16.gmra.mxu0 %v2542
    %v2762 = vpop.f32.mrf.mxu0
    %v2763 = vadd.f32 %v2749, %v2762
    %v2764 = vpop.f32.mrf.mxu0
    %v2765 = vadd.f32 %v2751, %v2764
    %2766 = vdwg.mxu0
    %v2767 = vadd.f32 %v2595, %v2597
    %v2768 = vrot.slane %v2767, 4
    %v2769 = vadd.f32 %v2767, %v2768
    %v2770 = vrot.slane %v2769, 2
    %v2771 = vadd.f32 %v2769, %v2770
    %v2772 = vrot.slane %v2771, 1
    %v2773 = vadd.f32 %v2771, %v2772
    %v2774 = vadd.f32 %v2651, %v2653
    %v2775 = vrot.slane %v2774, 4
    %v2776 = vadd.f32 %v2774, %v2775
    %v2777 = vrot.slane %v2776, 2
    %v2778 = vadd.f32 %v2776, %v2777
    %v2779 = vrot.slane %v2778, 1
    %v2780 = vadd.f32 %v2778, %v2779
    %v2781 = vadd.f32 %v2707, %v2709
    %v2782 = vrot.slane %v2781, 4
    %v2783 = vadd.f32 %v2781, %v2782
    %v2784 = vrot.slane %v2783, 2
    %v2785 = vadd.f32 %v2783, %v2784
    %v2786 = vrot.slane %v2785, 1
    %v2787 = vadd.f32 %v2785, %v2786
    %v2788 = vadd.f32 %v2763, %v2765
    %v2789 = vrot.slane %v2788, 4
    %v2790 = vadd.f32 %v2788, %v2789
    %v2791 = vrot.slane %v2790, 2
    %v2792 = vadd.f32 %v2790, %v2791
    %v2793 = vrot.slane %v2792, 1
    %v2794 = vadd.f32 %v2792, %v2793
    %v2795 = vmul.f32 %v2773, %v864
    %v2796 = vmul.f32 %v2780, %v864
    %v2797 = vmul.f32 %v2787, %v864
    %v2798 = vmul.f32 %v2794, %v864
    %v2799 = vmul.f32 %v2595, %v2595
    %v2800 = vmul.f32 %v2651, %v2651
    %v2801 = vmul.f32 %v2707, %v2707
    %v2802 = vmul.f32 %v2763, %v2763
    %v2803 = vmul.f32 %v2597, %v2597
    %v2804 = vmul.f32 %v2653, %v2653
    %v2805 = vmul.f32 %v2709, %v2709
    %v2806 = vmul.f32 %v2765, %v2765
    %v2807 = vadd.f32 %v2799, %v2803
    %v2808 = vrot.slane %v2807, 4
    %v2809 = vadd.f32 %v2807, %v2808
    %v2810 = vrot.slane %v2809, 2
    %v2811 = vadd.f32 %v2809, %v2810
    %v2812 = vrot.slane %v2811, 1
    %v2813 = vadd.f32 %v2811, %v2812
    %v2814 = vadd.f32 %v2800, %v2804
    %v2815 = vrot.slane %v2814, 4
    %v2816 = vadd.f32 %v2814, %v2815
    %v2817 = vrot.slane %v2816, 2
    %v2818 = vadd.f32 %v2816, %v2817
    %v2819 = vrot.slane %v2818, 1
    %v2820 = vadd.f32 %v2818, %v2819
    %v2821 = vadd.f32 %v2801, %v2805
    %v2822 = vrot.slane %v2821, 4
    %v2823 = vadd.f32 %v2821, %v2822
    %v2824 = vrot.slane %v2823, 2
    %v2825 = vadd.f32 %v2823, %v2824
    %v2826 = vrot.slane %v2825, 1
    %v2827 = vadd.f32 %v2825, %v2826
    %v2828 = vadd.f32 %v2802, %v2806
    %v2829 = vrot.slane %v2828, 4
    %v2830 = vadd.f32 %v2828, %v2829
    %v2831 = vrot.slane %v2830, 2
    %v2832 = vadd.f32 %v2830, %v2831
    %v2833 = vrot.slane %v2832, 1
    %v2834 = vadd.f32 %v2832, %v2833
    %v2835 = vmul.f32 %v2813, %v864
    %v2836 = vmul.f32 %v2820, %v864
    %v2837 = vmul.f32 %v2827, %v864
    %v2838 = vmul.f32 %v2834, %v864
    %v2839 = vmul.f32 %v2795, %v2795
    %v2840 = vmul.f32 %v2796, %v2796
    %v2841 = vmul.f32 %v2797, %v2797
    %v2842 = vmul.f32 %v2798, %v2798
    %v2843 = vsub.f32 %v2835, %v2839
    %v2844 = vsub.f32 %v2836, %v2840
    %v2845 = vsub.f32 %v2837, %v2841
    %v2846 = vsub.f32 %v2838, %v2842
    %v2847 = vmax.f32 %v2843, 0.0
    %v2848 = vmax.f32 %v2844, 0.0
    %v2849 = vmax.f32 %v2845, 0.0
    %v2850 = vmax.f32 %v2846, 0.0
    %v2851 = vadd.f32 %v2847, 1e-05
    %v2852 = vadd.f32 %v2848, 1e-05
    %v2853 = vadd.f32 %v2849, 1e-05
    %v2854 = vadd.f32 %v2850, 1e-05
    %v2855 = vrsqrt.pop %v2851
    %v2856 = vmul.f32 %v2855, %v2851
    %v2857 = vmul.f32 %v2856, %v2855
    %v2858 = vmul.f32 0.5, %v2857
    %v2859 = vsub.f32 1.5, %v2858
    %v2860 = vmul.f32 %v2855, %v2859
    %vm2861 = vweird.f32 %v2851
    %vm2862 = vweird.f32 %v2855
    %vm2863 = vmor %vm2861, %vm2862
    %v2864 = vsel %vm2863, %v2855, %v2860
    %v2865 = vrsqrt.pop %v2852
    %v2866 = vmul.f32 %v2865, %v2852
    %v2867 = vmul.f32 %v2866, %v2865
    %v2868 = vmul.f32 0.5, %v2867
    %v2869 = vsub.f32 1.5, %v2868
    %v2870 = vmul.f32 %v2865, %v2869
    %vm2871 = vweird.f32 %v2852
    %vm2872 = vweird.f32 %v2865
    %vm2873 = vmor %vm2871, %vm2872
    %v2874 = vsel %vm2873, %v2865, %v2870
    %v2875 = vrsqrt.pop %v2853
    %v2876 = vmul.f32 %v2875, %v2853
    %v2877 = vmul.f32 %v2876, %v2875
    %v2878 = vmul.f32 0.5, %v2877
    %v2879 = vsub.f32 1.5, %v2878
    %v2880 = vmul.f32 %v2875, %v2879
    %vm2881 = vweird.f32 %v2853
    %vm2882 = vweird.f32 %v2875
    %vm2883 = vmor %vm2881, %vm2882
    %v2884 = vsel %vm2883, %v2875, %v2880
    %v2885 = vrsqrt.pop %v2854
    %v2886 = vmul.f32 %v2885, %v2854
    %v2887 = vmul.f32 %v2886, %v2885
    %v2888 = vmul.f32 0.5, %v2887
    %v2889 = vsub.f32 1.5, %v2888
    %v2890 = vmul.f32 %v2885, %v2889
    %vm2891 = vweird.f32 %v2854
    %vm2892 = vweird.f32 %v2885
    %vm2893 = vmor %vm2891, %vm2892
    %v2894 = vsel %vm2893, %v2885, %v2890
    %v2899 = vrot.slane %v2874, 7
    %v2900 = vrot.slane %v2884, 6
    %v2901 = vrot.slane %v2894, 5
    %v2902 = vsel %vm972, %v2864, %v2899
    %v2903 = vsel %vm974, %v2900, %v2901
    %v2904 = vsel %vm976, %v2902, %v2903
    %v2906 = vmul.f32 %v393, %v2904
    %v2908 = vperm.slane %v2906, 0
    %v2909 = vperm.slane %v2906, 1
    %v2910 = vperm.slane %v2906, 2
    %v2911 = vperm.slane %v2906, 3
    %v2916 = vmul.f32 %v2795, %v2908
    %v2917 = vmul.f32 %v2796, %v2909
    %v2918 = vmul.f32 %v2797, %v2910
    %v2919 = vmul.f32 %v2798, %v2911
    %v2924 = vrot.slane %v2917, 7
    %v2925 = vrot.slane %v2918, 6
    %v2926 = vrot.slane %v2919, 5
    %v2927 = vsel %vm972, %v2916, %v2924
    %v2928 = vsel %vm974, %v2925, %v2926
    %v2929 = vsel %vm976, %v2927, %v2928
    %v2931 = vsub.f32 %v394, %v2929
    %v2932 = vmul.f32 %v2595, %v2908
    %v2933 = vmul.f32 %v2651, %v2909
    %v2934 = vmul.f32 %v2707, %v2910
    %v2935 = vmul.f32 %v2763, %v2911
    %v2936 = vmul.f32 %v2597, %v2908
    %v2937 = vmul.f32 %v2653, %v2909
    %v2938 = vmul.f32 %v2709, %v2910
    %v2939 = vmul.f32 %v2765, %v2911
    %v2941 = vperm.slane %v2931, 0
    %v2942 = vperm.slane %v2931, 1
    %v2943 = vperm.slane %v2931, 2
    %v2944 = vperm.slane %v2931, 3
    %v2949 = vadd.f32 %v2932, %v2941
    %v2950 = vadd.f32 %v2933, %v2942
    %v2951 = vadd.f32 %v2934, %v2943
    %v2952 = vadd.f32 %v2935, %v2944
    %v2953 = vadd.f32 %v2936, %v2941
    %v2954 = vadd.f32 %v2937, %v2942
    %v2955 = vadd.f32 %v2938, %v2943
    %v2956 = vadd.f32 %v2939, %v2944
    %v2957 = vmax.f32 %v2949, 0.0
    %v2958 = vmax.f32 %v2950, 0.0
    %v2959 = vmax.f32 %v2951, 0.0
    %v2960 = vmax.f32 %v2952, 0.0
    %v2961 = vmax.f32 %v2953, 0.0
    %v2962 = vmax.f32 %v2954, 0.0
    %v2963 = vmax.f32 %v2955, 0.0
    %v2964 = vmax.f32 %v2956, 0.0
    %v2965 = vpack.c.bf16 %v2961, %v2957
    %v2966 = vpack.c.bf16 %v2962, %v2958
    %v2967 = vpack.c.bf16 %v2963, %v2959
    %v2968 = vpack.c.bf16 %v2964, %v2960
    %2969 = vmatpush.bf16.msra.mxu0 %v1463
    %2970 = vmatpush.bf16.msra.mxu0 %v1459
    %2971 = vmatpush.bf16.msra.mxu0 %v1455
    %2972 = vmatpush.bf16.msra.mxu0 %v1451
    %2973 = vmatpush.bf16.msra.mxu0 %v1447
    %2974 = vmatpush.bf16.msra.mxu0 %v1443
    %2975 = vmatpush.bf16.msra.mxu0 %v1439
    %2976 = vmatpush.bf16.msra.mxu0 %v1435
    %2977 = vmatmul.bf16.gmra.mxu0 %v2965
    %v2978 = vpop.f32.mrf.mxu0
    %v2979 = vadd.f32 %v1043, %v2978
    %v2980 = vpop.f32.mrf.mxu0
    %v2981 = vadd.f32 %v1043, %v2980
    %2982 = vdwg.mxu0
    %2983 = vmatpush.bf16.msra.mxu0 %v1495
    %2984 = vmatpush.bf16.msra.mxu0 %v1491
    %2985 = vmatpush.bf16.msra.mxu0 %v1487
    %2986 = vmatpush.bf16.msra.mxu0 %v1483
    %2987 = vmatpush.bf16.msra.mxu0 %v1479
    %2988 = vmatpush.bf16.msra.mxu0 %v1475
    %2989 = vmatpush.bf16.msra.mxu0 %v1471
    %2990 = vmatpush.bf16.msra.mxu0 %v1467
    %2991 = vmatmul.bf16.gmra.mxu0 %v2966
    %v2992 = vpop.f32.mrf.mxu0
    %v2993 = vadd.f32 %v2979, %v2992
    %v2994 = vpop.f32.mrf.mxu0
    %v2995 = vadd.f32 %v2981, %v2994
    %2996 = vdwg.mxu0
    %2997 = vmatpush.bf16.msra.mxu0 %v1527
    %2998 = vmatpush.bf16.msra.mxu0 %v1523
    %2999 = vmatpush.bf16.msra.mxu0 %v1519
    %3000 = vmatpush.bf16.msra.mxu0 %v1515
    %3001 = vmatpush.bf16.msra.mxu0 %v1511
    %3002 = vmatpush.bf16.msra.mxu0 %v1507
    %3003 = vmatpush.bf16.msra.mxu0 %v1503
    %3004 = vmatpush.bf16.msra.mxu0 %v1499
    %3005 = vmatmul.bf16.gmra.mxu0 %v2967
    %v3006 = vpop.f32.mrf.mxu0
    %v3007 = vadd.f32 %v2993, %v3006
    %v3008 = vpop.f32.mrf.mxu0
    %v3009 = vadd.f32 %v2995, %v3008
    %3010 = vdwg.mxu0
    %3011 = vmatpush.bf16.msra.mxu0 %v1559
    %3012 = vmatpush.bf16.msra.mxu0 %v1555
    %3013 = vmatpush.bf16.msra.mxu0 %v1551
    %3014 = vmatpush.bf16.msra.mxu0 %v1547
    %3015 = vmatpush.bf16.msra.mxu0 %v1543
    %3016 = vmatpush.bf16.msra.mxu0 %v1539
    %3017 = vmatpush.bf16.msra.mxu0 %v1535
    %3018 = vmatpush.bf16.msra.mxu0 %v1531
    %3019 = vmatmul.bf16.gmra.mxu0 %v2968
    %v3020 = vpop.f32.mrf.mxu0
    %v3021 = vadd.f32 %v3007, %v3020
    %v3022 = vpop.f32.mrf.mxu0
    %v3023 = vadd.f32 %v3009, %v3022
    %3024 = vdwg.mxu0
    %3025 = vmatpush.bf16.msra.mxu0 %v1464
    %3026 = vmatpush.bf16.msra.mxu0 %v1460
    %3027 = vmatpush.bf16.msra.mxu0 %v1456
    %3028 = vmatpush.bf16.msra.mxu0 %v1452
    %3029 = vmatpush.bf16.msra.mxu0 %v1448
    %3030 = vmatpush.bf16.msra.mxu0 %v1444
    %3031 = vmatpush.bf16.msra.mxu0 %v1440
    %3032 = vmatpush.bf16.msra.mxu0 %v1436
    %3033 = vmatmul.bf16.gmra.mxu0 %v2965
    %v3034 = vpop.f32.mrf.mxu0
    %v3035 = vadd.f32 %v1044, %v3034
    %v3036 = vpop.f32.mrf.mxu0
    %v3037 = vadd.f32 %v1044, %v3036
    %3038 = vdwg.mxu0
    %3039 = vmatpush.bf16.msra.mxu0 %v1496
    %3040 = vmatpush.bf16.msra.mxu0 %v1492
    %3041 = vmatpush.bf16.msra.mxu0 %v1488
    %3042 = vmatpush.bf16.msra.mxu0 %v1484
    %3043 = vmatpush.bf16.msra.mxu0 %v1480
    %3044 = vmatpush.bf16.msra.mxu0 %v1476
    %3045 = vmatpush.bf16.msra.mxu0 %v1472
    %3046 = vmatpush.bf16.msra.mxu0 %v1468
    %3047 = vmatmul.bf16.gmra.mxu0 %v2966
    %v3048 = vpop.f32.mrf.mxu0
    %v3049 = vadd.f32 %v3035, %v3048
    %v3050 = vpop.f32.mrf.mxu0
    %v3051 = vadd.f32 %v3037, %v3050
    %3052 = vdwg.mxu0
    %3053 = vmatpush.bf16.msra.mxu0 %v1528
    %3054 = vmatpush.bf16.msra.mxu0 %v1524
    %3055 = vmatpush.bf16.msra.mxu0 %v1520
    %3056 = vmatpush.bf16.msra.mxu0 %v1516
    %3057 = vmatpush.bf16.msra.mxu0 %v1512
    %3058 = vmatpush.bf16.msra.mxu0 %v1508
    %3059 = vmatpush.bf16.msra.mxu0 %v1504
    %3060 = vmatpush.bf16.msra.mxu0 %v1500
    %3061 = vmatmul.bf16.gmra.mxu0 %v2967
    %v3062 = vpop.f32.mrf.mxu0
    %v3063 = vadd.f32 %v3049, %v3062
    %v3064 = vpop.f32.mrf.mxu0
    %v3065 = vadd.f32 %v3051, %v3064
    %3066 = vdwg.mxu0
    %3067 = vmatpush.bf16.msra.mxu0 %v1560
    %3068 = vmatpush.bf16.msra.mxu0 %v1556
    %3069 = vmatpush.bf16.msra.mxu0 %v1552
    %3070 = vmatpush.bf16.msra.mxu0 %v1548
    %3071 = vmatpush.bf16.msra.mxu0 %v1544
    %3072 = vmatpush.bf16.msra.mxu0 %v1540
    %3073 = vmatpush.bf16.msra.mxu0 %v1536
    %3074 = vmatpush.bf16.msra.mxu0 %v1532
    %3075 = vmatmul.bf16.gmra.mxu0 %v2968
    %v3076 = vpop.f32.mrf.mxu0
    %v3077 = vadd.f32 %v3063, %v3076
    %v3078 = vpop.f32.mrf.mxu0
    %v3079 = vadd.f32 %v3065, %v3078
    %3080 = vdwg.mxu0
    %3081 = vmatpush.bf16.msra.mxu0 %v1465
    %3082 = vmatpush.bf16.msra.mxu0 %v1461
    %3083 = vmatpush.bf16.msra.mxu0 %v1457
    %3084 = vmatpush.bf16.msra.mxu0 %v1453
    %3085 = vmatpush.bf16.msra.mxu0 %v1449
    %3086 = vmatpush.bf16.msra.mxu0 %v1445
    %3087 = vmatpush.bf16.msra.mxu0 %v1441
    %3088 = vmatpush.bf16.msra.mxu0 %v1437
    %3089 = vmatmul.bf16.gmra.mxu0 %v2965
    %v3090 = vpop.f32.mrf.mxu0
    %v3091 = vadd.f32 %v1045, %v3090
    %v3092 = vpop.f32.mrf.mxu0
    %v3093 = vadd.f32 %v1045, %v3092
    %3094 = vdwg.mxu0
    %3095 = vmatpush.bf16.msra.mxu0 %v1497
    %3096 = vmatpush.bf16.msra.mxu0 %v1493
    %3097 = vmatpush.bf16.msra.mxu0 %v1489
    %3098 = vmatpush.bf16.msra.mxu0 %v1485
    %3099 = vmatpush.bf16.msra.mxu0 %v1481
    %3100 = vmatpush.bf16.msra.mxu0 %v1477
    %3101 = vmatpush.bf16.msra.mxu0 %v1473
    %3102 = vmatpush.bf16.msra.mxu0 %v1469
    %3103 = vmatmul.bf16.gmra.mxu0 %v2966
    %v3104 = vpop.f32.mrf.mxu0
    %v3105 = vadd.f32 %v3091, %v3104
    %v3106 = vpop.f32.mrf.mxu0
    %v3107 = vadd.f32 %v3093, %v3106
    %3108 = vdwg.mxu0
    %3109 = vmatpush.bf16.msra.mxu0 %v1529
    %3110 = vmatpush.bf16.msra.mxu0 %v1525
    %3111 = vmatpush.bf16.msra.mxu0 %v1521
    %3112 = vmatpush.bf16.msra.mxu0 %v1517
    %3113 = vmatpush.bf16.msra.mxu0 %v1513
    %3114 = vmatpush.bf16.msra.mxu0 %v1509
    %3115 = vmatpush.bf16.msra.mxu0 %v1505
    %3116 = vmatpush.bf16.msra.mxu0 %v1501
    %3117 = vmatmul.bf16.gmra.mxu0 %v2967
    %v3118 = vpop.f32.mrf.mxu0
    %v3119 = vadd.f32 %v3105, %v3118
    %v3120 = vpop.f32.mrf.mxu0
    %v3121 = vadd.f32 %v3107, %v3120
    %3122 = vdwg.mxu0
    %3123 = vmatpush.bf16.msra.mxu0 %v1561
    %3124 = vmatpush.bf16.msra.mxu0 %v1557
    %3125 = vmatpush.bf16.msra.mxu0 %v1553
    %3126 = vmatpush.bf16.msra.mxu0 %v1549
    %3127 = vmatpush.bf16.msra.mxu0 %v1545
    %3128 = vmatpush.bf16.msra.mxu0 %v1541
    %3129 = vmatpush.bf16.msra.mxu0 %v1537
    %3130 = vmatpush.bf16.msra.mxu0 %v1533
    %3131 = vmatmul.bf16.gmra.mxu0 %v2968
    %v3132 = vpop.f32.mrf.mxu0
    %v3133 = vadd.f32 %v3119, %v3132
    %v3134 = vpop.f32.mrf.mxu0
    %v3135 = vadd.f32 %v3121, %v3134
    %3136 = vdwg.mxu0
    %3137 = vmatpush.bf16.msra.mxu0 %v1466
    %3138 = vmatpush.bf16.msra.mxu0 %v1462
    %3139 = vmatpush.bf16.msra.mxu0 %v1458
    %3140 = vmatpush.bf16.msra.mxu0 %v1454
    %3141 = vmatpush.bf16.msra.mxu0 %v1450
    %3142 = vmatpush.bf16.msra.mxu0 %v1446
    %3143 = vmatpush.bf16.msra.mxu0 %v1442
    %3144 = vmatpush.bf16.msra.mxu0 %v1438
    %3145 = vmatmul.bf16.gmra.mxu0 %v2965
    %v3146 = vpop.f32.mrf.mxu0
    %v3147 = vadd.f32 %v1046, %v3146
    %v3148 = vpop.f32.mrf.mxu0
    %v3149 = vadd.f32 %v1046, %v3148
    %3150 = vdwg.mxu0
    %3151 = vmatpush.bf16.msra.mxu0 %v1498
    %3152 = vmatpush.bf16.msra.mxu0 %v1494
    %3153 = vmatpush.bf16.msra.mxu0 %v1490
    %3154 = vmatpush.bf16.msra.mxu0 %v1486
    %3155 = vmatpush.bf16.msra.mxu0 %v1482
    %3156 = vmatpush.bf16.msra.mxu0 %v1478
    %3157 = vmatpush.bf16.msra.mxu0 %v1474
    %3158 = vmatpush.bf16.msra.mxu0 %v1470
    %3159 = vmatmul.bf16.gmra.mxu0 %v2966
    %v3160 = vpop.f32.mrf.mxu0
    %v3161 = vadd.f32 %v3147, %v3160
    %v3162 = vpop.f32.mrf.mxu0
    %v3163 = vadd.f32 %v3149, %v3162
    %3164 = vdwg.mxu0
    %3165 = vmatpush.bf16.msra.mxu0 %v1530
    %3166 = vmatpush.bf16.msra.mxu0 %v1526
    %3167 = vmatpush.bf16.msra.mxu0 %v1522
    %3168 = vmatpush.bf16.msra.mxu0 %v1518
    %3169 = vmatpush.bf16.msra.mxu0 %v1514
    %3170 = vmatpush.bf16.msra.mxu0 %v1510
    %3171 = vmatpush.bf16.msra.mxu0 %v1506
    %3172 = vmatpush.bf16.msra.mxu0 %v1502
    %3173 = vmatmul.bf16.gmra.mxu0 %v2967
    %v3174 = vpop.f32.mrf.mxu0
    %v3175 = vadd.f32 %v3161, %v3174
    %v3176 = vpop.f32.mrf.mxu0
    %v3177 = vadd.f32 %v3163, %v3176
    %3178 = vdwg.mxu0
    %3179 = vmatpush.bf16.msra.mxu0 %v1562
    %3180 = vmatpush.bf16.msra.mxu0 %v1558
    %3181 = vmatpush.bf16.msra.mxu0 %v1554
    %3182 = vmatpush.bf16.msra.mxu0 %v1550
    %3183 = vmatpush.bf16.msra.mxu0 %v1546
    %3184 = vmatpush.bf16.msra.mxu0 %v1542
    %3185 = vmatpush.bf16.msra.mxu0 %v1538
    %3186 = vmatpush.bf16.msra.mxu0 %v1534
    %3187 = vmatmul.bf16.gmra.mxu0 %v2968
    %v3188 = vpop.f32.mrf.mxu0
    %v3189 = vadd.f32 %v3175, %v3188
    %v3190 = vpop.f32.mrf.mxu0
    %v3191 = vadd.f32 %v3177, %v3190
    %3192 = vdwg.mxu0
    %v3193 = vadd.f32 %v3021, %v3023
    %v3194 = vrot.slane %v3193, 4
    %v3195 = vadd.f32 %v3193, %v3194
    %v3196 = vrot.slane %v3195, 2
    %v3197 = vadd.f32 %v3195, %v3196
    %v3198 = vrot.slane %v3197, 1
    %v3199 = vadd.f32 %v3197, %v3198
    %v3200 = vadd.f32 %v3077, %v3079
    %v3201 = vrot.slane %v3200, 4
    %v3202 = vadd.f32 %v3200, %v3201
    %v3203 = vrot.slane %v3202, 2
    %v3204 = vadd.f32 %v3202, %v3203
    %v3205 = vrot.slane %v3204, 1
    %v3206 = vadd.f32 %v3204, %v3205
    %v3207 = vadd.f32 %v3133, %v3135
    %v3208 = vrot.slane %v3207, 4
    %v3209 = vadd.f32 %v3207, %v3208
    %v3210 = vrot.slane %v3209, 2
    %v3211 = vadd.f32 %v3209, %v3210
    %v3212 = vrot.slane %v3211, 1
    %v3213 = vadd.f32 %v3211, %v3212
    %v3214 = vadd.f32 %v3189, %v3191
    %v3215 = vrot.slane %v3214, 4
    %v3216 = vadd.f32 %v3214, %v3215
    %v3217 = vrot.slane %v3216, 2
    %v3218 = vadd.f32 %v3216, %v3217
    %v3219 = vrot.slane %v3218, 1
    %v3220 = vadd.f32 %v3218, %v3219
    %v3221 = vmul.f32 %v3199, %v864
    %v3222 = vmul.f32 %v3206, %v864
    %v3223 = vmul.f32 %v3213, %v864
    %v3224 = vmul.f32 %v3220, %v864
    %v3225 = vmul.f32 %v3021, %v3021
    %v3226 = vmul.f32 %v3077, %v3077
    %v3227 = vmul.f32 %v3133, %v3133
    %v3228 = vmul.f32 %v3189, %v3189
    %v3229 = vmul.f32 %v3023, %v3023
    %v3230 = vmul.f32 %v3079, %v3079
    %v3231 = vmul.f32 %v3135, %v3135
    %v3232 = vmul.f32 %v3191, %v3191
    %v3233 = vadd.f32 %v3225, %v3229
    %v3234 = vrot.slane %v3233, 4
    %v3235 = vadd.f32 %v3233, %v3234
    %v3236 = vrot.slane %v3235, 2
    %v3237 = vadd.f32 %v3235, %v3236
    %v3238 = vrot.slane %v3237, 1
    %v3239 = vadd.f32 %v3237, %v3238
    %v3240 = vadd.f32 %v3226, %v3230
    %v3241 = vrot.slane %v3240, 4
    %v3242 = vadd.f32 %v3240, %v3241
    %v3243 = vrot.slane %v3242, 2
    %v3244 = vadd.f32 %v3242, %v3243
    %v3245 = vrot.slane %v3244, 1
    %v3246 = vadd.f32 %v3244, %v3245
    %v3247 = vadd.f32 %v3227, %v3231
    %v3248 = vrot.slane %v3247, 4
    %v3249 = vadd.f32 %v3247, %v3248
    %v3250 = vrot.slane %v3249, 2
    %v3251 = vadd.f32 %v3249, %v3250
    %v3252 = vrot.slane %v3251, 1
    %v3253 = vadd.f32 %v3251, %v3252
    %v3254 = vadd.f32 %v3228, %v3232
    %v3255 = vrot.slane %v3254, 4
    %v3256 = vadd.f32 %v3254, %v3255
    %v3257 = vrot.slane %v3256, 2
    %v3258 = vadd.f32 %v3256, %v3257
    %v3259 = vrot.slane %v3258, 1
    %v3260 = vadd.f32 %v3258, %v3259
    %v3261 = vmul.f32 %v3239, %v864
    %v3262 = vmul.f32 %v3246, %v864
    %v3263 = vmul.f32 %v3253, %v864
    %v3264 = vmul.f32 %v3260, %v864
    %v3265 = vmul.f32 %v3221, %v3221
    %v3266 = vmul.f32 %v3222, %v3222
    %v3267 = vmul.f32 %v3223, %v3223
    %v3268 = vmul.f32 %v3224, %v3224
    %v3269 = vsub.f32 %v3261, %v3265
    %v3270 = vsub.f32 %v3262, %v3266
    %v3271 = vsub.f32 %v3263, %v3267
    %v3272 = vsub.f32 %v3264, %v3268
    %v3273 = vmax.f32 %v3269, 0.0
    %v3274 = vmax.f32 %v3270, 0.0
    %v3275 = vmax.f32 %v3271, 0.0
    %v3276 = vmax.f32 %v3272, 0.0
    %v3277 = vadd.f32 %v3273, 1e-05
    %v3278 = vadd.f32 %v3274, 1e-05
    %v3279 = vadd.f32 %v3275, 1e-05
    %v3280 = vadd.f32 %v3276, 1e-05
    %v3281 = vrsqrt.pop %v3277
    %v3282 = vmul.f32 %v3281, %v3277
    %v3283 = vmul.f32 %v3282, %v3281
    %v3284 = vmul.f32 0.5, %v3283
    %v3285 = vsub.f32 1.5, %v3284
    %v3286 = vmul.f32 %v3281, %v3285
    %vm3287 = vweird.f32 %v3277
    %vm3288 = vweird.f32 %v3281
    %vm3289 = vmor %vm3287, %vm3288
    %v3290 = vsel %vm3289, %v3281, %v3286
    %v3291 = vrsqrt.pop %v3278
    %v3292 = vmul.f32 %v3291, %v3278
    %v3293 = vmul.f32 %v3292, %v3291
    %v3294 = vmul.f32 0.5, %v3293
    %v3295 = vsub.f32 1.5, %v3294
    %v3296 = vmul.f32 %v3291, %v3295
    %vm3297 = vweird.f32 %v3278
    %vm3298 = vweird.f32 %v3291
    %vm3299 = vmor %vm3297, %vm3298
    %v3300 = vsel %vm3299, %v3291, %v3296
    %v3301 = vrsqrt.pop %v3279
    %v3302 = vmul.f32 %v3301, %v3279
    %v3303 = vmul.f32 %v3302, %v3301
    %v3304 = vmul.f32 0.5, %v3303
    %v3305 = vsub.f32 1.5, %v3304
    %v3306 = vmul.f32 %v3301, %v3305
    %vm3307 = vweird.f32 %v3279
    %vm3308 = vweird.f32 %v3301
    %vm3309 = vmor %vm3307, %vm3308
    %v3310 = vsel %vm3309, %v3301, %v3306
    %v3311 = vrsqrt.pop %v3280
    %v3312 = vmul.f32 %v3311, %v3280
    %v3313 = vmul.f32 %v3312, %v3311
    %v3314 = vmul.f32 0.5, %v3313
    %v3315 = vsub.f32 1.5, %v3314
    %v3316 = vmul.f32 %v3311, %v3315
    %vm3317 = vweird.f32 %v3280
    %vm3318 = vweird.f32 %v3311
    %vm3319 = vmor %vm3317, %vm3318
    %v3320 = vsel %vm3319, %v3311, %v3316
    %v3325 = vrot.slane %v3300, 7
    %v3326 = vrot.slane %v3310, 6
    %v3327 = vrot.slane %v3320, 5
    %v3328 = vsel %vm972, %v3290, %v3325
    %v3329 = vsel %vm974, %v3326, %v3327
    %v3330 = vsel %vm976, %v3328, %v3329
    %v3332 = vmul.f32 %v393, %v3330
    %v3334 = vperm.slane %v3332, 0
    %v3335 = vperm.slane %v3332, 1
    %v3336 = vperm.slane %v3332, 2
    %v3337 = vperm.slane %v3332, 3
    %v3342 = vmul.f32 %v3221, %v3334
    %v3343 = vmul.f32 %v3222, %v3335
    %v3344 = vmul.f32 %v3223, %v3336
    %v3345 = vmul.f32 %v3224, %v3337
    %v3350 = vrot.slane %v3343, 7
    %v3351 = vrot.slane %v3344, 6
    %v3352 = vrot.slane %v3345, 5
    %v3353 = vsel %vm972, %v3342, %v3350
    %v3354 = vsel %vm974, %v3351, %v3352
    %v3355 = vsel %vm976, %v3353, %v3354
    %v3357 = vsub.f32 %v394, %v3355
    %v3358 = vmul.f32 %v3021, %v3334
    %v3359 = vmul.f32 %v3077, %v3335
    %v3360 = vmul.f32 %v3133, %v3336
    %v3361 = vmul.f32 %v3189, %v3337
    %v3362 = vmul.f32 %v3023, %v3334
    %v3363 = vmul.f32 %v3079, %v3335
    %v3364 = vmul.f32 %v3135, %v3336
    %v3365 = vmul.f32 %v3191, %v3337
    %v3367 = vperm.slane %v3357, 0
    %v3368 = vperm.slane %v3357, 1
    %v3369 = vperm.slane %v3357, 2
    %v3370 = vperm.slane %v3357, 3
    %v3375 = vadd.f32 %v3358, %v3367
    %v3376 = vadd.f32 %v3359, %v3368
    %v3377 = vadd.f32 %v3360, %v3369
    %v3378 = vadd.f32 %v3361, %v3370
    %v3379 = vadd.f32 %v3362, %v3367
    %v3380 = vadd.f32 %v3363, %v3368
    %v3381 = vadd.f32 %v3364, %v3369
    %v3382 = vadd.f32 %v3365, %v3370
    %v3383 = vmax.f32 %v3375, 0.0
    %v3384 = vmax.f32 %v3376, 0.0
    %v3385 = vmax.f32 %v3377, 0.0
    %v3386 = vmax.f32 %v3378, 0.0
    %v3387 = vmax.f32 %v3379, 0.0
    %v3388 = vmax.f32 %v3380, 0.0
    %v3389 = vmax.f32 %v3381, 0.0
    %v3390 = vmax.f32 %v3382, 0.0
    %v3391 = vpack.c.bf16 %v3387, %v3383
    %v3392 = vpack.c.bf16 %v3388, %v3384
    %v3393 = vpack.c.bf16 %v3389, %v3385
    %v3394 = vpack.c.bf16 %v3390, %v3386
    %v3396 = vperm.slane %v459, 0
    %v3462 = vunpack.c.l.b16 %v395
    %v3463 = vunpack.c.l.b16 %v396
    %v3464 = vunpack.c.l.b16 %v397
    %v3465 = vunpack.c.l.b16 %v398
    %v3466 = vunpack.c.l.b16 %v399
    %v3467 = vunpack.c.l.b16 %v400
    %v3468 = vunpack.c.l.b16 %v401
    %v3469 = vunpack.c.l.b16 %v402
    %v3470 = vunpack.c.l.b16 %v403
    %v3471 = vunpack.c.l.b16 %v404
    %v3472 = vunpack.c.l.b16 %v405
    %v3473 = vunpack.c.l.b16 %v406
    %v3474 = vunpack.c.l.b16 %v407
    %v3475 = vunpack.c.l.b16 %v408
    %v3476 = vunpack.c.l.b16 %v409
    %v3477 = vunpack.c.l.b16 %v410
    %v3478 = vunpack.c.l.b16 %v411
    %v3479 = vunpack.c.l.b16 %v412
    %v3480 = vunpack.c.l.b16 %v413
    %v3481 = vunpack.c.l.b16 %v414
    %v3482 = vunpack.c.l.b16 %v415
    %v3483 = vunpack.c.l.b16 %v416
    %v3484 = vunpack.c.l.b16 %v417
    %v3485 = vunpack.c.l.b16 %v418
    %v3486 = vunpack.c.l.b16 %v419
    %v3487 = vunpack.c.l.b16 %v420
    %v3488 = vunpack.c.l.b16 %v421
    %v3489 = vunpack.c.l.b16 %v422
    %v3490 = vunpack.c.l.b16 %v423
    %v3491 = vunpack.c.l.b16 %v424
    %v3492 = vunpack.c.l.b16 %v425
    %v3493 = vunpack.c.l.b16 %v426
    %v3494 = vunpack.c.l.b16 %v427
    %v3495 = vunpack.c.l.b16 %v428
    %v3496 = vunpack.c.l.b16 %v429
    %v3497 = vunpack.c.l.b16 %v430
    %v3498 = vunpack.c.l.b16 %v431
    %v3499 = vunpack.c.l.b16 %v432
    %v3500 = vunpack.c.l.b16 %v433
    %v3501 = vunpack.c.l.b16 %v434
    %v3502 = vunpack.c.l.b16 %v435
    %v3503 = vunpack.c.l.b16 %v436
    %v3504 = vunpack.c.l.b16 %v437
    %v3505 = vunpack.c.l.b16 %v438
    %v3506 = vunpack.c.l.b16 %v439
    %v3507 = vunpack.c.l.b16 %v440
    %v3508 = vunpack.c.l.b16 %v441
    %v3509 = vunpack.c.l.b16 %v442
    %v3510 = vunpack.c.l.b16 %v443
    %v3511 = vunpack.c.l.b16 %v444
    %v3512 = vunpack.c.l.b16 %v445
    %v3513 = vunpack.c.l.b16 %v446
    %v3514 = vunpack.c.l.b16 %v447
    %v3515 = vunpack.c.l.b16 %v448
    %v3516 = vunpack.c.l.b16 %v449
    %v3517 = vunpack.c.l.b16 %v450
    %v3518 = vunpack.c.l.b16 %v451
    %v3519 = vunpack.c.l.b16 %v452
    %v3520 = vunpack.c.l.b16 %v453
    %v3521 = vunpack.c.l.b16 %v454
    %v3522 = vunpack.c.l.b16 %v455
    %v3523 = vunpack.c.l.b16 %v456
    %v3524 = vunpack.c.l.b16 %v457
    %v3525 = vunpack.c.l.b16 %v458
    %v3526 = vpack.c.b16 %v3463, %v3462
    %v3527 = vpack.c.b16 %v3465, %v3464
    %v3528 = vpack.c.b16 %v3467, %v3466
    %v3529 = vpack.c.b16 %v3469, %v3468
    %v3530 = vpack.c.b16 %v3471, %v3470
    %v3531 = vpack.c.b16 %v3473, %v3472
    %v3532 = vpack.c.b16 %v3475, %v3474
    %v3533 = vpack.c.b16 %v3477, %v3476
    %v3534 = vpack.c.b16 %v3479, %v3478
    %v3535 = vpack.c.b16 %v3481, %v3480
    %v3536 = vpack.c.b16 %v3483, %v3482
    %v3537 = vpack.c.b16 %v3485, %v3484
    %v3538 = vpack.c.b16 %v3487, %v3486
    %v3539 = vpack.c.b16 %v3489, %v3488
    %v3540 = vpack.c.b16 %v3491, %v3490
    %v3541 = vpack.c.b16 %v3493, %v3492
    %v3542 = vpack.c.b16 %v3495, %v3494
    %v3543 = vpack.c.b16 %v3497, %v3496
    %v3544 = vpack.c.b16 %v3499, %v3498
    %v3545 = vpack.c.b16 %v3501, %v3500
    %v3546 = vpack.c.b16 %v3503, %v3502
    %v3547 = vpack.c.b16 %v3505, %v3504
    %v3548 = vpack.c.b16 %v3507, %v3506
    %v3549 = vpack.c.b16 %v3509, %v3508
    %v3550 = vpack.c.b16 %v3511, %v3510
    %v3551 = vpack.c.b16 %v3513, %v3512
    %v3552 = vpack.c.b16 %v3515, %v3514
    %v3553 = vpack.c.b16 %v3517, %v3516
    %v3554 = vpack.c.b16 %v3519, %v3518
    %v3555 = vpack.c.b16 %v3521, %v3520
    %v3556 = vpack.c.b16 %v3523, %v3522
    %v3557 = vpack.c.b16 %v3525, %v3524
    %3590 = vmatpush.bf16.msra.mxu0 %v3533
    %3591 = vmatpush.bf16.msra.mxu0 %v3532
    %3592 = vmatpush.bf16.msra.mxu0 %v3531
    %3593 = vmatpush.bf16.msra.mxu0 %v3530
    %3594 = vmatpush.bf16.msra.mxu0 %v3529
    %3595 = vmatpush.bf16.msra.mxu0 %v3528
    %3596 = vmatpush.bf16.msra.mxu0 %v3527
    %3597 = vmatpush.bf16.msra.mxu0 %v3526
    %3598 = vmatmul.bf16.gmra.mxu0 %v3391
    %v3599 = vpop.f32.mrf.mxu0
    %v3600 = vadd.f32 %v3396, %v3599
    %v3601 = vpop.f32.mrf.mxu0
    %v3602 = vadd.f32 %v3396, %v3601
    %3603 = vdwg.mxu0
    %3604 = vmatpush.bf16.msra.mxu0 %v3541
    %3605 = vmatpush.bf16.msra.mxu0 %v3540
    %3606 = vmatpush.bf16.msra.mxu0 %v3539
    %3607 = vmatpush.bf16.msra.mxu0 %v3538
    %3608 = vmatpush.bf16.msra.mxu0 %v3537
    %3609 = vmatpush.bf16.msra.mxu0 %v3536
    %3610 = vmatpush.bf16.msra.mxu0 %v3535
    %3611 = vmatpush.bf16.msra.mxu0 %v3534
    %3612 = vmatmul.bf16.gmra.mxu0 %v3392
    %v3613 = vpop.f32.mrf.mxu0
    %v3614 = vadd.f32 %v3600, %v3613
    %v3615 = vpop.f32.mrf.mxu0
    %v3616 = vadd.f32 %v3602, %v3615
    %3617 = vdwg.mxu0
    %3618 = vmatpush.bf16.msra.mxu0 %v3549
    %3619 = vmatpush.bf16.msra.mxu0 %v3548
    %3620 = vmatpush.bf16.msra.mxu0 %v3547
    %3621 = vmatpush.bf16.msra.mxu0 %v3546
    %3622 = vmatpush.bf16.msra.mxu0 %v3545
    %3623 = vmatpush.bf16.msra.mxu0 %v3544
    %3624 = vmatpush.bf16.msra.mxu0 %v3543
    %3625 = vmatpush.bf16.msra.mxu0 %v3542
    %3626 = vmatmul.bf16.gmra.mxu0 %v3393
    %v3627 = vpop.f32.mrf.mxu0
    %v3628 = vadd.f32 %v3614, %v3627
    %v3629 = vpop.f32.mrf.mxu0
    %v3630 = vadd.f32 %v3616, %v3629
    %3631 = vdwg.mxu0
    %3632 = vmatpush.bf16.msra.mxu0 %v3557
    %3633 = vmatpush.bf16.msra.mxu0 %v3556
    %3634 = vmatpush.bf16.msra.mxu0 %v3555
    %3635 = vmatpush.bf16.msra.mxu0 %v3554
    %3636 = vmatpush.bf16.msra.mxu0 %v3553
    %3637 = vmatpush.bf16.msra.mxu0 %v3552
    %3638 = vmatpush.bf16.msra.mxu0 %v3551
    %3639 = vmatpush.bf16.msra.mxu0 %v3550
    %3640 = vmatmul.bf16.gmra.mxu0 %v3394
    %v3641 = vpop.f32.mrf.mxu0
    %v3642 = vadd.f32 %v3628, %v3641
    %v3643 = vpop.f32.mrf.mxu0
    %v3644 = vadd.f32 %v3630, %v3643
    %3645 = vdwg.mxu0
    %v3646 = vadd.f32 %v3642, %v3644
    %v3647 = vrot.slane %v3646, 4
    %v3648 = vadd.f32 %v3646, %v3647
    %v3649 = vrot.slane %v3648, 2
    %v3650 = vadd.f32 %v3648, %v3649
    %v3651 = vrot.slane %v3650, 1
    %v3652 = vadd.f32 %v3650, %v3651
    %v3653 = vmul.f32 %v3652, %v864
    %v3654 = vmul.f32 %v3642, %v3642
    %v3655 = vmul.f32 %v3644, %v3644
    %v3656 = vadd.f32 %v3654, %v3655
    %v3657 = vrot.slane %v3656, 4
    %v3658 = vadd.f32 %v3656, %v3657
    %v3659 = vrot.slane %v3658, 2
    %v3660 = vadd.f32 %v3658, %v3659
    %v3661 = vrot.slane %v3660, 1
    %v3662 = vadd.f32 %v3660, %v3661
    %v3663 = vmul.f32 %v3662, %v864
    %v3664 = vmul.f32 %v3653, %v3653
    %v3665 = vsub.f32 %v3663, %v3664
    %v3666 = vmax.f32 %v3665, 0.0
    %v3667 = vadd.f32 %v3666, 1e-05
    %v3668 = vrsqrt.pop %v3667
    %v3669 = vmul.f32 %v3668, %v3667
    %v3670 = vmul.f32 %v3669, %v3668
    %v3671 = vmul.f32 0.5, %v3670
    %v3672 = vsub.f32 1.5, %v3671
    %v3673 = vmul.f32 %v3668, %v3672
    %vm3674 = vweird.f32 %v3667
    %vm3675 = vweird.f32 %v3668
    %vm3676 = vmor %vm3674, %vm3675
    %v3677 = vsel %vm3676, %v3668, %v3673
    %v3678 = vmul.f32 %v460, %v3677
    %v3679 = vmul.f32 %v3653, %v3678
    %v3680 = vsub.f32 %v461, %v3679
    %v3682 = vperm.slane %v3678, 0
    %v3684 = vmul.f32 %v3642, %v3682
    %v3685 = vmul.f32 %v3644, %v3682
    %v3687 = vperm.slane %v3680, 0
    %v3689 = vadd.f32 %v3684, %v3687
    %v3690 = vadd.f32 %v3685, %v3687
    %v3691 = vmax.f32 %v3689, 0.0
    %v3692 = vmax.f32 %v3690, 0.0
    %v3693 = vpack.c.bf16 %v3692, %v3691
    %v3695 = vperm.slane %v478, 0
    %v3713 = vunpack.c.l.b16 %v462
    %v3714 = vunpack.c.l.b16 %v463
    %v3715 = vunpack.c.l.b16 %v464
    %v3716 = vunpack.c.l.b16 %v465
    %v3717 = vunpack.c.l.b16 %v466
    %v3718 = vunpack.c.l.b16 %v467
    %v3719 = vunpack.c.l.b16 %v468
    %v3720 = vunpack.c.l.b16 %v469
    %v3721 = vunpack.c.l.b16 %v470
    %v3722 = vunpack.c.l.b16 %v471
    %v3723 = vunpack.c.l.b16 %v472
    %v3724 = vunpack.c.l.b16 %v473
    %v3725 = vunpack.c.l.b16 %v474
    %v3726 = vunpack.c.l.b16 %v475
    %v3727 = vunpack.c.l.b16 %v476
    %v3728 = vunpack.c.l.b16 %v477
    %v3729 = vpack.c.b16 %v3714, %v3713
    %v3730 = vpack.c.b16 %v3716, %v3715
    %v3731 = vpack.c.b16 %v3718, %v3717
    %v3732 = vpack.c.b16 %v3720, %v3719
    %v3733 = vpack.c.b16 %v3722, %v3721
    %v3734 = vpack.c.b16 %v3724, %v3723
    %v3735 = vpack.c.b16 %v3726, %v3725
    %v3736 = vpack.c.b16 %v3728, %v3727
    %3745 = vmatpush.bf16.msra.mxu0 %v3736
    %3746 = vmatpush.bf16.msra.mxu0 %v3735
    %3747 = vmatpush.bf16.msra.mxu0 %v3734
    %3748 = vmatpush.bf16.msra.mxu0 %v3733
    %3749 = vmatpush.bf16.msra.mxu0 %v3732
    %3750 = vmatpush.bf16.msra.mxu0 %v3731
    %3751 = vmatpush.bf16.msra.mxu0 %v3730
    %3752 = vmatpush.bf16.msra.mxu0 %v3729
    %3753 = vmatmul.bf16.gmra.mxu0 %v3693
    %v3754 = vpop.f32.mrf.mxu0
    %v3755 = vadd.f32 %v3695, %v3754
    %v3756 = vpop.f32.mrf.mxu0
    %v3757 = vadd.f32 %v3695, %v3756
    %3758 = vdwg.mxu0
    %3759 = vst [vmem:[#allocation20] sm:$0xff] %v3755
    %3760 = vst [vmem:[#allocation20 + $0x8] sm:$0xff] %v3757
    // Predicated region
    $region114: #{tpu_custom_call.1} parent=1 // pred_check
      _
    $region115: #{tpu_custom_call.1} parent=1 // pred_check_branch
      %3762 = sbr.rel (0) target = $region117
    $region116: #{tpu_custom_call.1} parent=1 // pred_region
      %3764 = vsyncadd [#allocation4], 0
      %s3765 = sshll.u32 [#allocation20], 4
      %s3766 = int_to_ptr.vmem [resolvable:$true] %s3765
      %s3767 = sshll.u32 %s17, 4
      %s3768 = int_to_ptr.hbm [resolvable:$true] %s3767
      %3773 = dma.vmem_to_hbm [thread:$0]  %s3766, 256, %s3768, [#allocation4], 128, 128, 8
    $region117: #{tpu_custom_call.1} parent=1 // pred_fallthru
      _
    // Predicated region
    $region118: #{tpu_custom_call.1} parent=1 // pred_check
      _
    $region119: #{tpu_custom_call.1} parent=1 // pred_check_branch
      %3775 = sbr.rel (0) target = $region121
    $region120: #{tpu_custom_call.1} parent=1 // pred_region
      %3777 = dma.done [#allocation4], 256
    $region121: #{tpu_custom_call.1} parent=1 // pred_fallthru
      _
    %3778 = vsyncpa [#allocation3], 1
    %3779 = vsyncpa [#allocation6], 1
    %3780 = vsyncpa [#allocation9], 1
    %3781 = vsyncpa [#allocation12], 1
    %3782 = vsyncpa [#allocation15], 1
    %3783 = vsyncpa [#allocation18], 1
    %3784 = vsyncpa [#allocation4], 1

</llo_original>
